<compile_context>
chip_gen: v6e
topology: v6e:2x2x1
jax: 0.10.0
libtpu: 0.0.40
codegen_flags: <defaults>
</compile_context>

<pallas_src>
import numpy as np

import jax
import jax.numpy as jnp
from jax.experimental import pallas as pl
from jax.experimental.pallas import tpu as pltpu


# ----------------------------------------------------------------------------
# helpers
# ----------------------------------------------------------------------------
def _round_up(n, m):
    return ((n + m - 1) // m) * m


def _choose_tile(batch, max_tile=128):
    """Batch tile TB (multiple of 16).  Prefer >=2 grid steps (v7x megacore)."""
    b16 = _round_up(batch, 16)
    if b16 <= 16:
        return b16
    n_blocks = max(2, -(-b16 // max_tile))
    return min(max_tile, _round_up(-(-b16 // n_blocks), 16))


# ----------------------------------------------------------------------------
# Fused whole-network kernel: one tile of TB images per grid step
# ----------------------------------------------------------------------------
def _net_kernel(x_ref, w1_ref, w2_ref, wf1_ref, wf2_ref, wf3_ref, b_ref, o_ref):
    """x_ref : (2, 16*TB, 96) bf16  input rows split by height parity; inside
               each slab row = h_half*TB + b_local, lane = w*3 + ci.
       w1_ref: (2, 5, 96, 84) bf16  conv1 banded weights [width_parity, di].
       w2_ref: (2, 5, 84, 80) bf16  conv2 banded weights [width_parity, di].
       wf1_ref: (5, 80, 120) bf16   fc1, pre-permuted per pooled-height row.
       wf2_ref: (120, 20) bf16, wf3_ref: (20, 9) bf16.
       b_ref : (5, 128) f32         biases (conv1, conv2, fc1, fc2, fc3).
       o_ref : (TB, 9) f32          logits."""
    f32 = jnp.float32
    bf16 = jnp.bfloat16
    TB = o_ref.shape[0]

    # ---- conv1 + bias + ReLU + full 2x2 maxpool, fused ----------------------
    # Computed directly at pooled resolution: 4 accumulators, one per
    # (height-parity hp, width-parity wp) phase of the 2x2 pooling window.
    # The activation slice for kernel row di and phase hp depends only on
    # t = hp + di: even t reads the even-row slab, odd t the odd-row slab,
    # always as an aligned, static, full-lane-width window.
    a_t = [x_ref[t % 2, (t // 2) * TB:(t // 2) * TB + 14 * TB, :]
           for t in range(6)]                                  # (14*TB, 96) bf16
    acc = [[None, None], [None, None]]
    for hp in range(2):
        for di in range(5):
            a = a_t[hp + di]
            for wp in range(2):
                prod = jnp.dot(a, w1_ref[wp, di], preferred_element_type=f32)
                acc[hp][wp] = prod if acc[hp][wp] is None else acc[hp][wp] + prod
    c1 = jnp.maximum(jnp.maximum(acc[0][0], acc[0][1]),
                     jnp.maximum(acc[1][0], acc[1][1]))        # (14*TB, 84) f32
    p1 = jnp.maximum(c1 + b_ref[0:1, 0:84], 0.0).astype(bf16)  # row = hp*TB + b
                                                               # col = c1out*14+w

    # ---- conv2 + bias + ReLU + width half of the 2x2 maxpool ----------------
    ze = zo = None
    for di in range(5):
        a = p1[di * TB:(di + 10) * TB, :]                      # (10*TB, 84)
        pe = jnp.dot(a, w2_ref[0, di], preferred_element_type=f32)
        po = jnp.dot(a, w2_ref[1, di], preferred_element_type=f32)
        ze = pe if ze is None else ze + pe
        zo = po if zo is None else zo + po
    y2 = jnp.maximum(jnp.maximum(ze, zo) + b_ref[1:2, 0:80], 0.0)
    y2 = y2.astype(bf16)                                       # (10*TB, 80)
                                                               # col = c2out*5+w

    # ---- height half of the conv2 pool + flatten + fc1 ----------------------
    h1 = None
    for hp in range(5):
        q = jnp.maximum(y2[(2 * hp) * TB:(2 * hp + 1) * TB, :],
                        y2[(2 * hp + 1) * TB:(2 * hp + 2) * TB, :])   # (TB, 80)
        prod = jnp.dot(q, wf1_ref[hp], preferred_element_type=f32)    # (TB, 120)
        h1 = prod if h1 is None else h1 + prod
    h1 = jnp.maximum(h1 + b_ref[2:3, 0:120], 0.0)

    # ---- fc2 -> relu -> fc3 --------------------------------------------------
    h2 = jnp.maximum(
        jnp.dot(h1.astype(bf16), wf2_ref[...],
                preferred_element_type=f32) + b_ref[3:4, 0:20], 0.0)   # (TB, 20)
    out = (jnp.dot(h2.astype(bf16), wf3_ref[...],
                   preferred_element_type=f32) + b_ref[4:5, 0:9])      # (TB, 9)
    o_ref[...] = out


# ----------------------------------------------------------------------------
# Host-side one-time weight packing (numpy; outside the jitted forward)
# ----------------------------------------------------------------------------
def pack_params(params):
    """Pack PyTorch-layout weights into banded / pre-permuted bf16 matrices."""
    w1 = np.asarray(params["conv1_w"], np.float32)   # (6, 3, 5, 5)  (co,ci,di,dj)
    w2 = np.asarray(params["conv2_w"], np.float32)   # (16, 6, 5, 5)

    # conv1: activation lane j = w*3 + ci ; output col n = co*14 + we.
    # W1[wp, di, 3*w + ci, co*14 + we] = w1[co, ci, di, dj]  with w = 2*we+wp+dj.
    W1 = np.zeros((2, 5, 96, 84), np.float32)
    s1 = w1.transpose(2, 1, 0, 3)                    # (di, ci, co, dj)
    for wp in range(2):
        for dj in range(5):
            for we in range(14):
                w = 2 * we + wp + dj
                W1[wp, :, 3 * w:3 * w + 3, we::14] = s1[..., dj]

    # conv2: activation col m = ci*14 + u ; output col n = co*5 + we.
    # W2[wp, di, ci*14 + u, co*5 + we] = w2[co, ci, di, dj]  with u = 2*we+wp+dj.
    W2 = np.zeros((2, 5, 84, 80), np.float32)
    s2 = w2.transpose(2, 1, 0, 3)                    # (di, ci, co, dj)
    for wp in range(2):
        for dj in range(5):
            for we in range(5):
                u = 2 * we + wp + dj
                W2[wp, :, u::14, we::5] = s2[..., dj]

    # fc1: kernel feature row hp, col co*5+we  ==  torch flatten index co*25+hp*5+we
    WF1 = (np.asarray(params["fc1_w"], np.float32)   # (120, 400)
           .reshape(120, 16, 5, 5).transpose(2, 1, 3, 0).reshape(5, 80, 120))
    WF2 = np.asarray(params["fc2_w"], np.float32).T  # (120, 20)
    WF3 = np.asarray(params["fc3_w"], np.float32).T  # (20, 9)

    BIAS = np.zeros((5, 128), np.float32)
    BIAS[0, :84] = np.repeat(np.asarray(params["conv1_b"], np.float32), 14)
    BIAS[1, :80] = np.repeat(np.asarray(params["conv2_b"], np.float32), 5)
    BIAS[2, :120] = np.asarray(params["fc1_b"], np.float32)
    BIAS[3, :20] = np.asarray(params["fc2_b"], np.float32)
    BIAS[4, :9] = np.asarray(params["fc3_b"], np.float32)

    bf16 = jnp.bfloat16
    return (jnp.asarray(W1, bf16), jnp.asarray(W2, bf16), jnp.asarray(WF1, bf16),
            jnp.asarray(WF2, bf16), jnp.asarray(WF3, bf16),
            jnp.asarray(BIAS, jnp.float32))


# ----------------------------------------------------------------------------
# Forward pass: XLA-side input repacking + one pallas_call over batch tiles
# ----------------------------------------------------------------------------
@jax.jit
def net_forward(x, packed):
    W1, W2, WF1, WF2, WF3, BIAS = packed
    B = x.shape[0]
    assert x.shape[1:] == (3, 32, 32), x.shape

    TB = _choose_tile(B)
    Bp = _round_up(B, TB)
    G = Bp // TB

    # One-time (per call, amortized over the batch) XLA-side layout prep:
    # pad batch -> (h, b, w*3+ci) -> split even/odd h -> arrange rows so each
    # grid block sees rows  h_half*TB + b_local  contiguously; cast to bf16.
    xp = jnp.pad(x, ((0, Bp - B), (0, 0), (0, 0), (0, 0)))
    xl = jnp.transpose(xp, (2, 0, 3, 1)).reshape(32, Bp, 96)

    def arrange(v):                                   # v: (16, Bp, 96)
        return (v.reshape(16, G, TB, 96).transpose(1, 0, 2, 3)
                 .reshape(G * 16 * TB, 96))

    xin = jnp.stack([arrange(xl[0::2]), arrange(xl[1::2])]).astype(jnp.bfloat16)

    def const_spec(a):
        return pl.BlockSpec(a.shape, lambda g, _n=a.ndim: (0,) * _n)

    out = pl.pallas_call(
        _net_kernel,
        out_shape=jax.ShapeDtypeStruct((Bp, 9), jnp.float32),
        grid=(G,),
        in_specs=[pl.BlockSpec((2, 16 * TB, 96), lambda g: (0, g, 0)),
                  const_spec(W1), const_spec(W2), const_spec(WF1),
                  const_spec(WF2), const_spec(WF3), const_spec(BIAS)],
        out_specs=pl.BlockSpec((TB, 9), lambda g: (g, 0)),
        compiler_params=pltpu.CompilerParams(
            dimension_semantics=("parallel",),
            vmem_limit_bytes=48 * 1024 * 1024),
    )(xin, W1, W2, WF1, WF2, WF3, BIAS)
    return out[:B]


# ----------------------------------------------------------------------------
# Pure-JAX reference (mirrors the kernel's bf16-input / f32-accumulate points)
# ----------------------------------------------------------------------------
def _reference_forward(x, params):
    bf16, f32 = jnp.bfloat16, jnp.float32

    def conv(v, w, b):
        y = jax.lax.conv_general_dilated(
            v.astype(bf16), jnp.asarray(w, f32).astype(bf16),
            window_strides=(1, 1), padding="VALID",
            dimension_numbers=("NCHW", "OIHW", "NCHW"),
            preferred_element_type=f32)
        return y + jnp.asarray(b, f32)[None, :, None, None]

    def pool(v):
        return jax.lax.reduce_window(v, -jnp.inf, jax.lax.max,
                                     (1, 1, 2, 2), (1, 1, 2, 2), "VALID")

    def fc(v, w, b, relu):
        y = (jnp.dot(v.astype(bf16), jnp.asarray(w, f32).astype(bf16).T,
                     preferred_element_type=f32) + jnp.asarray(b, f32))
        return jnp.maximum(y, 0.0) if relu else y

    v = pool(jnp.maximum(conv(x, params["conv1_w"], params["conv1_b"]), 0.0))
    v = pool(jnp.maximum(conv(v, params["conv2_w"], params["conv2_b"]), 0.0))
    v = v.reshape(v.shape[0], -1)                 # torch.flatten(x, 1) order
    v = fc(v, params["fc1_w"], params["fc1_b"], True)
    v = fc(v, params["fc2_w"], params["fc2_b"], True)
    return fc(v, params["fc3_w"], params["fc3_b"], False)


# ----------------------------------------------------------------------------
# Deterministic parameter init (synthetic; PyTorch Conv2d/Linear layouts)
# ----------------------------------------------------------------------------
def init_params(key):
    ks = jax.random.split(key, 10)

    def u(k, shape, fan_in):
        bound = 1.0 / jnp.sqrt(fan_in)
        return jax.random.uniform(k, shape, jnp.float32, -bound, bound)

    return {
        "conv1_w": u(ks[0], (6, 3, 5, 5), 3 * 5 * 5),
        "conv1_b": u(ks[1], (6,), 3 * 5 * 5),
        "conv2_w": u(ks[2], (16, 6, 5, 5), 6 * 5 * 5),
        "conv2_b": u(ks[3], (16,), 6 * 5 * 5),
        "fc1_w": u(ks[4], (120, 400), 400),   # PyTorch Linear: (out, in)
        "fc1_b": u(ks[5], (120,), 400),
        "fc2_w": u(ks[6], (20, 120), 120),
        "fc2_b": u(ks[7], (20,), 120),
        "fc3_w": u(ks[8], (9, 20), 20),
        "fc3_b": u(ks[9], (9,), 20),
    }


if __name__ == "__main__":
    key = jax.random.PRNGKey(0)
    k_params, k_x = jax.random.split(key)
    params = init_params(k_params)
    packed = pack_params(params)          # one-time host-side packing

    def check(batch):
        # Input spatial size must be 32x32 to satisfy fc1's 16*5*5 contract.
        xk = jax.random.fold_in(k_x, batch)
        x = jax.random.normal(xk, (batch, 3, 32, 32), jnp.float32)
        out = jax.block_until_ready(net_forward(x, packed))
        assert out.shape == (batch, 9), out.shape
        ref = jax.block_until_ready(_reference_forward(x, params))
        err = float(jnp.max(jnp.abs(out - ref)))
        tol = 2e-2 + 2e-2 * float(jnp.max(jnp.abs(ref)))
        assert err <= tol, (err, tol)

    check(2)    # tiny batch: single grid step, padded to TB=16
    check(40)   # multi-step grid (exercises batch tiling + padding path)
    print("KERNEL_OK")
</pallas_src>

<mosaic_0001>
module attributes {stable_mosaic.version = 11 : i64} {
  func.func @_net_kernel(%arg0: i32, %arg1: memref<2x256x96xbf16, #tpu.memory_space<vmem>>, %arg2: memref<2x5x96x84xbf16, #tpu.memory_space<vmem>>, %arg3: memref<2x5x84x80xbf16, #tpu.memory_space<vmem>>, %arg4: memref<5x80x120xbf16, #tpu.memory_space<vmem>>, %arg5: memref<120x20xbf16, #tpu.memory_space<vmem>>, %arg6: memref<20x9xbf16, #tpu.memory_space<vmem>>, %arg7: memref<5x128xf32, #tpu.memory_space<vmem>>, %arg8: memref<16x9xf32, #tpu.memory_space<vmem>>) attributes {dimension_semantics = [#tpu.dimension_semantics<parallel>], iteration_bounds = array<i64: 1>, scalar_prefetch = 0 : i64, scratch_operands = 0 : i64, tpu.core_type = #tpu.core_type<tc>, window_params = [{transform_indices = @transform_0, window_bounds = array<i64: 2, 256, 96>}, {pipeline_mode = #tpu.pipeline_mode<synchronous>, transform_indices = @transform_1, window_bounds = array<i64: 2, 5, 96, 84>}, {pipeline_mode = #tpu.pipeline_mode<synchronous>, transform_indices = @transform_2, window_bounds = array<i64: 2, 5, 84, 80>}, {pipeline_mode = #tpu.pipeline_mode<synchronous>, transform_indices = @transform_3, window_bounds = array<i64: 5, 80, 120>}, {pipeline_mode = #tpu.pipeline_mode<synchronous>, transform_indices = @transform_4, window_bounds = array<i64: 120, 20>}, {pipeline_mode = #tpu.pipeline_mode<synchronous>, transform_indices = @transform_5, window_bounds = array<i64: 20, 9>}, {pipeline_mode = #tpu.pipeline_mode<synchronous>, transform_indices = @transform_6, window_bounds = array<i64: 5, 128>}, {transform_indices = @transform_7, window_bounds = array<i64: 16, 9>}]} {
    %c0 = arith.constant 0 : index
    %c0_0 = arith.constant 0 : index
    %c0_1 = arith.constant 0 : index
    %0 = vector.load %arg1[%c0, %c0_0, %c0_1] : memref<2x256x96xbf16, #tpu.memory_space<vmem>>, vector<1x224x96xbf16>
    %1 = vector.shape_cast %0 : vector<1x224x96xbf16> to vector<224x96xbf16>
    %c1 = arith.constant 1 : index
    %c0_2 = arith.constant 0 : index
    %c0_3 = arith.constant 0 : index
    %2 = vector.load %arg1[%c1, %c0_2, %c0_3] : memref<2x256x96xbf16, #tpu.memory_space<vmem>>, vector<1x224x96xbf16>
    %3 = vector.shape_cast %2 : vector<1x224x96xbf16> to vector<224x96xbf16>
    %c0_4 = arith.constant 0 : index
    %c16 = arith.constant 16 : index
    %c0_5 = arith.constant 0 : index
    %4 = vector.load %arg1[%c0_4, %c16, %c0_5] : memref<2x256x96xbf16, #tpu.memory_space<vmem>>, vector<1x224x96xbf16>
    %5 = vector.shape_cast %4 : vector<1x224x96xbf16> to vector<224x96xbf16>
    %c1_6 = arith.constant 1 : index
    %c16_7 = arith.constant 16 : index
    %c0_8 = arith.constant 0 : index
    %6 = vector.load %arg1[%c1_6, %c16_7, %c0_8] : memref<2x256x96xbf16, #tpu.memory_space<vmem>>, vector<1x224x96xbf16>
    %7 = vector.shape_cast %6 : vector<1x224x96xbf16> to vector<224x96xbf16>
    %c0_9 = arith.constant 0 : index
    %c32 = arith.constant 32 : index
    %c0_10 = arith.constant 0 : index
    %8 = vector.load %arg1[%c0_9, %c32, %c0_10] : memref<2x256x96xbf16, #tpu.memory_space<vmem>>, vector<1x224x96xbf16>
    %9 = vector.shape_cast %8 : vector<1x224x96xbf16> to vector<224x96xbf16>
    %c1_11 = arith.constant 1 : index
    %c32_12 = arith.constant 32 : index
    %c0_13 = arith.constant 0 : index
    %10 = vector.load %arg1[%c1_11, %c32_12, %c0_13] : memref<2x256x96xbf16, #tpu.memory_space<vmem>>, vector<1x224x96xbf16>
    %11 = vector.shape_cast %10 : vector<1x224x96xbf16> to vector<224x96xbf16>
    %c0_14 = arith.constant 0 : index
    %c0_15 = arith.constant 0 : index
    %c0_16 = arith.constant 0 : index
    %c0_17 = arith.constant 0 : index
    %12 = vector.load %arg2[%c0_14, %c0_15, %c0_16, %c0_17] : memref<2x5x96x84xbf16, #tpu.memory_space<vmem>>, vector<1x1x96x84xbf16>
    %13 = vector.shape_cast %12 : vector<1x1x96x84xbf16> to vector<96x84xbf16>
    %cst = arith.constant dense<0.000000e+00> : vector<224x84xf32>
    %14 = tpu.matmul %1, %13, %cst {dimension_numbers = #tpu.dot_dimension_numbers<[1], [0], [0], [1], [0, 0, 1, 1], [], []>} : vector<224x96xbf16>, vector<96x84xbf16>, vector<224x84xf32> -> vector<224x84xf32>
    %c1_18 = arith.constant 1 : index
    %c0_19 = arith.constant 0 : index
    %c0_20 = arith.constant 0 : index
    %c0_21 = arith.constant 0 : index
    %15 = vector.load %arg2[%c1_18, %c0_19, %c0_20, %c0_21] : memref<2x5x96x84xbf16, #tpu.memory_space<vmem>>, vector<1x1x96x84xbf16>
    %16 = vector.shape_cast %15 : vector<1x1x96x84xbf16> to vector<96x84xbf16>
    %cst_22 = arith.constant dense<0.000000e+00> : vector<224x84xf32>
    %17 = tpu.matmul %1, %16, %cst_22 {dimension_numbers = #tpu.dot_dimension_numbers<[1], [0], [0], [1], [0, 0, 1, 1], [], []>} : vector<224x96xbf16>, vector<96x84xbf16>, vector<224x84xf32> -> vector<224x84xf32>
    %c0_23 = arith.constant 0 : index
    %c1_24 = arith.constant 1 : index
    %c0_25 = arith.constant 0 : index
    %c0_26 = arith.constant 0 : index
    %18 = vector.load %arg2[%c0_23, %c1_24, %c0_25, %c0_26] : memref<2x5x96x84xbf16, #tpu.memory_space<vmem>>, vector<1x1x96x84xbf16>
    %19 = vector.shape_cast %18 : vector<1x1x96x84xbf16> to vector<96x84xbf16>
    %cst_27 = arith.constant dense<0.000000e+00> : vector<224x84xf32>
    %20 = tpu.matmul %3, %19, %cst_27 {dimension_numbers = #tpu.dot_dimension_numbers<[1], [0], [0], [1], [0, 0, 1, 1], [], []>} : vector<224x96xbf16>, vector<96x84xbf16>, vector<224x84xf32> -> vector<224x84xf32>
    %21 = arith.addf %14, %20 : vector<224x84xf32>
    %c1_28 = arith.constant 1 : index
    %c1_29 = arith.constant 1 : index
    %c0_30 = arith.constant 0 : index
    %c0_31 = arith.constant 0 : index
    %22 = vector.load %arg2[%c1_28, %c1_29, %c0_30, %c0_31] : memref<2x5x96x84xbf16, #tpu.memory_space<vmem>>, vector<1x1x96x84xbf16>
    %23 = vector.shape_cast %22 : vector<1x1x96x84xbf16> to vector<96x84xbf16>
    %cst_32 = arith.constant dense<0.000000e+00> : vector<224x84xf32>
    %24 = tpu.matmul %3, %23, %cst_32 {dimension_numbers = #tpu.dot_dimension_numbers<[1], [0], [0], [1], [0, 0, 1, 1], [], []>} : vector<224x96xbf16>, vector<96x84xbf16>, vector<224x84xf32> -> vector<224x84xf32>
    %25 = arith.addf %17, %24 : vector<224x84xf32>
    %c0_33 = arith.constant 0 : index
    %c2 = arith.constant 2 : index
    %c0_34 = arith.constant 0 : index
    %c0_35 = arith.constant 0 : index
    %26 = vector.load %arg2[%c0_33, %c2, %c0_34, %c0_35] : memref<2x5x96x84xbf16, #tpu.memory_space<vmem>>, vector<1x1x96x84xbf16>
    %27 = vector.shape_cast %26 : vector<1x1x96x84xbf16> to vector<96x84xbf16>
    %cst_36 = arith.constant dense<0.000000e+00> : vector<224x84xf32>
    %28 = tpu.matmul %5, %27, %cst_36 {dimension_numbers = #tpu.dot_dimension_numbers<[1], [0], [0], [1], [0, 0, 1, 1], [], []>} : vector<224x96xbf16>, vector<96x84xbf16>, vector<224x84xf32> -> vector<224x84xf32>
    %29 = arith.addf %21, %28 : vector<224x84xf32>
    %c1_37 = arith.constant 1 : index
    %c2_38 = arith.constant 2 : index
    %c0_39 = arith.constant 0 : index
    %c0_40 = arith.constant 0 : index
    %30 = vector.load %arg2[%c1_37, %c2_38, %c0_39, %c0_40] : memref<2x5x96x84xbf16, #tpu.memory_space<vmem>>, vector<1x1x96x84xbf16>
    %31 = vector.shape_cast %30 : vector<1x1x96x84xbf16> to vector<96x84xbf16>
    %cst_41 = arith.constant dense<0.000000e+00> : vector<224x84xf32>
    %32 = tpu.matmul %5, %31, %cst_41 {dimension_numbers = #tpu.dot_dimension_numbers<[1], [0], [0], [1], [0, 0, 1, 1], [], []>} : vector<224x96xbf16>, vector<96x84xbf16>, vector<224x84xf32> -> vector<224x84xf32>
    %33 = arith.addf %25, %32 : vector<224x84xf32>
    %c0_42 = arith.constant 0 : index
    %c3 = arith.constant 3 : index
    %c0_43 = arith.constant 0 : index
    %c0_44 = arith.constant 0 : index
    %34 = vector.load %arg2[%c0_42, %c3, %c0_43, %c0_44] : memref<2x5x96x84xbf16, #tpu.memory_space<vmem>>, vector<1x1x96x84xbf16>
    %35 = vector.shape_cast %34 : vector<1x1x96x84xbf16> to vector<96x84xbf16>
    %cst_45 = arith.constant dense<0.000000e+00> : vector<224x84xf32>
    %36 = tpu.matmul %7, %35, %cst_45 {dimension_numbers = #tpu.dot_dimension_numbers<[1], [0], [0], [1], [0, 0, 1, 1], [], []>} : vector<224x96xbf16>, vector<96x84xbf16>, vector<224x84xf32> -> vector<224x84xf32>
    %37 = arith.addf %29, %36 : vector<224x84xf32>
    %c1_46 = arith.constant 1 : index
    %c3_47 = arith.constant 3 : index
    %c0_48 = arith.constant 0 : index
    %c0_49 = arith.constant 0 : index
    %38 = vector.load %arg2[%c1_46, %c3_47, %c0_48, %c0_49] : memref<2x5x96x84xbf16, #tpu.memory_space<vmem>>, vector<1x1x96x84xbf16>
    %39 = vector.shape_cast %38 : vector<1x1x96x84xbf16> to vector<96x84xbf16>
    %cst_50 = arith.constant dense<0.000000e+00> : vector<224x84xf32>
    %40 = tpu.matmul %7, %39, %cst_50 {dimension_numbers = #tpu.dot_dimension_numbers<[1], [0], [0], [1], [0, 0, 1, 1], [], []>} : vector<224x96xbf16>, vector<96x84xbf16>, vector<224x84xf32> -> vector<224x84xf32>
    %41 = arith.addf %33, %40 : vector<224x84xf32>
    %c0_51 = arith.constant 0 : index
    %c4 = arith.constant 4 : index
    %c0_52 = arith.constant 0 : index
    %c0_53 = arith.constant 0 : index
    %42 = vector.load %arg2[%c0_51, %c4, %c0_52, %c0_53] : memref<2x5x96x84xbf16, #tpu.memory_space<vmem>>, vector<1x1x96x84xbf16>
    %43 = vector.shape_cast %42 : vector<1x1x96x84xbf16> to vector<96x84xbf16>
    %cst_54 = arith.constant dense<0.000000e+00> : vector<224x84xf32>
    %44 = tpu.matmul %9, %43, %cst_54 {dimension_numbers = #tpu.dot_dimension_numbers<[1], [0], [0], [1], [0, 0, 1, 1], [], []>} : vector<224x96xbf16>, vector<96x84xbf16>, vector<224x84xf32> -> vector<224x84xf32>
    %45 = arith.addf %37, %44 : vector<224x84xf32>
    %c1_55 = arith.constant 1 : index
    %c4_56 = arith.constant 4 : index
    %c0_57 = arith.constant 0 : index
    %c0_58 = arith.constant 0 : index
    %46 = vector.load %arg2[%c1_55, %c4_56, %c0_57, %c0_58] : memref<2x5x96x84xbf16, #tpu.memory_space<vmem>>, vector<1x1x96x84xbf16>
    %47 = vector.shape_cast %46 : vector<1x1x96x84xbf16> to vector<96x84xbf16>
    %cst_59 = arith.constant dense<0.000000e+00> : vector<224x84xf32>
    %48 = tpu.matmul %9, %47, %cst_59 {dimension_numbers = #tpu.dot_dimension_numbers<[1], [0], [0], [1], [0, 0, 1, 1], [], []>} : vector<224x96xbf16>, vector<96x84xbf16>, vector<224x84xf32> -> vector<224x84xf32>
    %49 = arith.addf %41, %48 : vector<224x84xf32>
    %c0_60 = arith.constant 0 : index
    %c0_61 = arith.constant 0 : index
    %c0_62 = arith.constant 0 : index
    %c0_63 = arith.constant 0 : index
    %50 = vector.load %arg2[%c0_60, %c0_61, %c0_62, %c0_63] : memref<2x5x96x84xbf16, #tpu.memory_space<vmem>>, vector<1x1x96x84xbf16>
    %51 = vector.shape_cast %50 : vector<1x1x96x84xbf16> to vector<96x84xbf16>
    %cst_64 = arith.constant dense<0.000000e+00> : vector<224x84xf32>
    %52 = tpu.matmul %3, %51, %cst_64 {dimension_numbers = #tpu.dot_dimension_numbers<[1], [0], [0], [1], [0, 0, 1, 1], [], []>} : vector<224x96xbf16>, vector<96x84xbf16>, vector<224x84xf32> -> vector<224x84xf32>
    %c1_65 = arith.constant 1 : index
    %c0_66 = arith.constant 0 : index
    %c0_67 = arith.constant 0 : index
    %c0_68 = arith.constant 0 : index
    %53 = vector.load %arg2[%c1_65, %c0_66, %c0_67, %c0_68] : memref<2x5x96x84xbf16, #tpu.memory_space<vmem>>, vector<1x1x96x84xbf16>
    %54 = vector.shape_cast %53 : vector<1x1x96x84xbf16> to vector<96x84xbf16>
    %cst_69 = arith.constant dense<0.000000e+00> : vector<224x84xf32>
    %55 = tpu.matmul %3, %54, %cst_69 {dimension_numbers = #tpu.dot_dimension_numbers<[1], [0], [0], [1], [0, 0, 1, 1], [], []>} : vector<224x96xbf16>, vector<96x84xbf16>, vector<224x84xf32> -> vector<224x84xf32>
    %c0_70 = arith.constant 0 : index
    %c1_71 = arith.constant 1 : index
    %c0_72 = arith.constant 0 : index
    %c0_73 = arith.constant 0 : index
    %56 = vector.load %arg2[%c0_70, %c1_71, %c0_72, %c0_73] : memref<2x5x96x84xbf16, #tpu.memory_space<vmem>>, vector<1x1x96x84xbf16>
    %57 = vector.shape_cast %56 : vector<1x1x96x84xbf16> to vector<96x84xbf16>
    %cst_74 = arith.constant dense<0.000000e+00> : vector<224x84xf32>
    %58 = tpu.matmul %5, %57, %cst_74 {dimension_numbers = #tpu.dot_dimension_numbers<[1], [0], [0], [1], [0, 0, 1, 1], [], []>} : vector<224x96xbf16>, vector<96x84xbf16>, vector<224x84xf32> -> vector<224x84xf32>
    %59 = arith.addf %52, %58 : vector<224x84xf32>
    %c1_75 = arith.constant 1 : index
    %c1_76 = arith.constant 1 : index
    %c0_77 = arith.constant 0 : index
    %c0_78 = arith.constant 0 : index
    %60 = vector.load %arg2[%c1_75, %c1_76, %c0_77, %c0_78] : memref<2x5x96x84xbf16, #tpu.memory_space<vmem>>, vector<1x1x96x84xbf16>
    %61 = vector.shape_cast %60 : vector<1x1x96x84xbf16> to vector<96x84xbf16>
    %cst_79 = arith.constant dense<0.000000e+00> : vector<224x84xf32>
    %62 = tpu.matmul %5, %61, %cst_79 {dimension_numbers = #tpu.dot_dimension_numbers<[1], [0], [0], [1], [0, 0, 1, 1], [], []>} : vector<224x96xbf16>, vector<96x84xbf16>, vector<224x84xf32> -> vector<224x84xf32>
    %63 = arith.addf %55, %62 : vector<224x84xf32>
    %c0_80 = arith.constant 0 : index
    %c2_81 = arith.constant 2 : index
    %c0_82 = arith.constant 0 : index
    %c0_83 = arith.constant 0 : index
    %64 = vector.load %arg2[%c0_80, %c2_81, %c0_82, %c0_83] : memref<2x5x96x84xbf16, #tpu.memory_space<vmem>>, vector<1x1x96x84xbf16>
    %65 = vector.shape_cast %64 : vector<1x1x96x84xbf16> to vector<96x84xbf16>
    %cst_84 = arith.constant dense<0.000000e+00> : vector<224x84xf32>
    %66 = tpu.matmul %7, %65, %cst_84 {dimension_numbers = #tpu.dot_dimension_numbers<[1], [0], [0], [1], [0, 0, 1, 1], [], []>} : vector<224x96xbf16>, vector<96x84xbf16>, vector<224x84xf32> -> vector<224x84xf32>
    %67 = arith.addf %59, %66 : vector<224x84xf32>
    %c1_85 = arith.constant 1 : index
    %c2_86 = arith.constant 2 : index
    %c0_87 = arith.constant 0 : index
    %c0_88 = arith.constant 0 : index
    %68 = vector.load %arg2[%c1_85, %c2_86, %c0_87, %c0_88] : memref<2x5x96x84xbf16, #tpu.memory_space<vmem>>, vector<1x1x96x84xbf16>
    %69 = vector.shape_cast %68 : vector<1x1x96x84xbf16> to vector<96x84xbf16>
    %cst_89 = arith.constant dense<0.000000e+00> : vector<224x84xf32>
    %70 = tpu.matmul %7, %69, %cst_89 {dimension_numbers = #tpu.dot_dimension_numbers<[1], [0], [0], [1], [0, 0, 1, 1], [], []>} : vector<224x96xbf16>, vector<96x84xbf16>, vector<224x84xf32> -> vector<224x84xf32>
    %71 = arith.addf %63, %70 : vector<224x84xf32>
    %c0_90 = arith.constant 0 : index
    %c3_91 = arith.constant 3 : index
    %c0_92 = arith.constant 0 : index
    %c0_93 = arith.constant 0 : index
    %72 = vector.load %arg2[%c0_90, %c3_91, %c0_92, %c0_93] : memref<2x5x96x84xbf16, #tpu.memory_space<vmem>>, vector<1x1x96x84xbf16>
    %73 = vector.shape_cast %72 : vector<1x1x96x84xbf16> to vector<96x84xbf16>
    %cst_94 = arith.constant dense<0.000000e+00> : vector<224x84xf32>
    %74 = tpu.matmul %9, %73, %cst_94 {dimension_numbers = #tpu.dot_dimension_numbers<[1], [0], [0], [1], [0, 0, 1, 1], [], []>} : vector<224x96xbf16>, vector<96x84xbf16>, vector<224x84xf32> -> vector<224x84xf32>
    %75 = arith.addf %67, %74 : vector<224x84xf32>
    %c1_95 = arith.constant 1 : index
    %c3_96 = arith.constant 3 : index
    %c0_97 = arith.constant 0 : index
    %c0_98 = arith.constant 0 : index
    %76 = vector.load %arg2[%c1_95, %c3_96, %c0_97, %c0_98] : memref<2x5x96x84xbf16, #tpu.memory_space<vmem>>, vector<1x1x96x84xbf16>
    %77 = vector.shape_cast %76 : vector<1x1x96x84xbf16> to vector<96x84xbf16>
    %cst_99 = arith.constant dense<0.000000e+00> : vector<224x84xf32>
    %78 = tpu.matmul %9, %77, %cst_99 {dimension_numbers = #tpu.dot_dimension_numbers<[1], [0], [0], [1], [0, 0, 1, 1], [], []>} : vector<224x96xbf16>, vector<96x84xbf16>, vector<224x84xf32> -> vector<224x84xf32>
    %79 = arith.addf %71, %78 : vector<224x84xf32>
    %c0_100 = arith.constant 0 : index
    %c4_101 = arith.constant 4 : index
    %c0_102 = arith.constant 0 : index
    %c0_103 = arith.constant 0 : index
    %80 = vector.load %arg2[%c0_100, %c4_101, %c0_102, %c0_103] : memref<2x5x96x84xbf16, #tpu.memory_space<vmem>>, vector<1x1x96x84xbf16>
    %81 = vector.shape_cast %80 : vector<1x1x96x84xbf16> to vector<96x84xbf16>
    %cst_104 = arith.constant dense<0.000000e+00> : vector<224x84xf32>
    %82 = tpu.matmul %11, %81, %cst_104 {dimension_numbers = #tpu.dot_dimension_numbers<[1], [0], [0], [1], [0, 0, 1, 1], [], []>} : vector<224x96xbf16>, vector<96x84xbf16>, vector<224x84xf32> -> vector<224x84xf32>
    %83 = arith.addf %75, %82 : vector<224x84xf32>
    %c1_105 = arith.constant 1 : index
    %c4_106 = arith.constant 4 : index
    %c0_107 = arith.constant 0 : index
    %c0_108 = arith.constant 0 : index
    %84 = vector.load %arg2[%c1_105, %c4_106, %c0_107, %c0_108] : memref<2x5x96x84xbf16, #tpu.memory_space<vmem>>, vector<1x1x96x84xbf16>
    %85 = vector.shape_cast %84 : vector<1x1x96x84xbf16> to vector<96x84xbf16>
    %cst_109 = arith.constant dense<0.000000e+00> : vector<224x84xf32>
    %86 = tpu.matmul %11, %85, %cst_109 {dimension_numbers = #tpu.dot_dimension_numbers<[1], [0], [0], [1], [0, 0, 1, 1], [], []>} : vector<224x96xbf16>, vector<96x84xbf16>, vector<224x84xf32> -> vector<224x84xf32>
    %87 = arith.addf %79, %86 : vector<224x84xf32>
    %88 = arith.maximumf %45, %49 : vector<224x84xf32>
    %89 = arith.maximumf %83, %87 : vector<224x84xf32>
    %90 = arith.maximumf %88, %89 : vector<224x84xf32>
    %c0_110 = arith.constant 0 : index
    %c0_111 = arith.constant 0 : index
    %91 = vector.load %arg7[%c0_110, %c0_111] : memref<5x128xf32, #tpu.memory_space<vmem>>, vector<1x84xf32>
    %92 = vector.broadcast %91 : vector<1x84xf32> to vector<224x84xf32>
    %93 = arith.addf %90, %92 : vector<224x84xf32>
    %cst_112 = arith.constant 0.000000e+00 : f32
    %94 = vector.broadcast %cst_112 : f32 to vector<224x84xf32>
    %95 = arith.maximumf %93, %94 : vector<224x84xf32>
    %96 = arith.truncf %95 : vector<224x84xf32> to vector<224x84xbf16>
    %97 = vector.extract_strided_slice %96 {offsets = [0, 0], sizes = [160, 84], strides = [1, 1]} : vector<224x84xbf16> to vector<160x84xbf16>
    %c0_113 = arith.constant 0 : index
    %c0_114 = arith.constant 0 : index
    %c0_115 = arith.constant 0 : index
    %c0_116 = arith.constant 0 : index
    %98 = vector.load %arg3[%c0_113, %c0_114, %c0_115, %c0_116] : memref<2x5x84x80xbf16, #tpu.memory_space<vmem>>, vector<1x1x84x80xbf16>
    %99 = vector.shape_cast %98 : vector<1x1x84x80xbf16> to vector<84x80xbf16>
    %cst_117 = arith.constant dense<0.000000e+00> : vector<160x80xf32>
    %100 = tpu.matmul %97, %99, %cst_117 {dimension_numbers = #tpu.dot_dimension_numbers<[1], [0], [0], [1], [0, 0, 1, 1], [], []>} : vector<160x84xbf16>, vector<84x80xbf16>, vector<160x80xf32> -> vector<160x80xf32>
    %c1_118 = arith.constant 1 : index
    %c0_119 = arith.constant 0 : index
    %c0_120 = arith.constant 0 : index
    %c0_121 = arith.constant 0 : index
    %101 = vector.load %arg3[%c1_118, %c0_119, %c0_120, %c0_121] : memref<2x5x84x80xbf16, #tpu.memory_space<vmem>>, vector<1x1x84x80xbf16>
    %102 = vector.shape_cast %101 : vector<1x1x84x80xbf16> to vector<84x80xbf16>
    %cst_122 = arith.constant dense<0.000000e+00> : vector<160x80xf32>
    %103 = tpu.matmul %97, %102, %cst_122 {dimension_numbers = #tpu.dot_dimension_numbers<[1], [0], [0], [1], [0, 0, 1, 1], [], []>} : vector<160x84xbf16>, vector<84x80xbf16>, vector<160x80xf32> -> vector<160x80xf32>
    %104 = vector.extract_strided_slice %96 {offsets = [16, 0], sizes = [160, 84], strides = [1, 1]} : vector<224x84xbf16> to vector<160x84xbf16>
    %c0_123 = arith.constant 0 : index
    %c1_124 = arith.constant 1 : index
    %c0_125 = arith.constant 0 : index
    %c0_126 = arith.constant 0 : index
    %105 = vector.load %arg3[%c0_123, %c1_124, %c0_125, %c0_126] : memref<2x5x84x80xbf16, #tpu.memory_space<vmem>>, vector<1x1x84x80xbf16>
    %106 = vector.shape_cast %105 : vector<1x1x84x80xbf16> to vector<84x80xbf16>
    %cst_127 = arith.constant dense<0.000000e+00> : vector<160x80xf32>
    %107 = tpu.matmul %104, %106, %cst_127 {dimension_numbers = #tpu.dot_dimension_numbers<[1], [0], [0], [1], [0, 0, 1, 1], [], []>} : vector<160x84xbf16>, vector<84x80xbf16>, vector<160x80xf32> -> vector<160x80xf32>
    %c1_128 = arith.constant 1 : index
    %c1_129 = arith.constant 1 : index
    %c0_130 = arith.constant 0 : index
    %c0_131 = arith.constant 0 : index
    %108 = vector.load %arg3[%c1_128, %c1_129, %c0_130, %c0_131] : memref<2x5x84x80xbf16, #tpu.memory_space<vmem>>, vector<1x1x84x80xbf16>
    %109 = vector.shape_cast %108 : vector<1x1x84x80xbf16> to vector<84x80xbf16>
    %cst_132 = arith.constant dense<0.000000e+00> : vector<160x80xf32>
    %110 = tpu.matmul %104, %109, %cst_132 {dimension_numbers = #tpu.dot_dimension_numbers<[1], [0], [0], [1], [0, 0, 1, 1], [], []>} : vector<160x84xbf16>, vector<84x80xbf16>, vector<160x80xf32> -> vector<160x80xf32>
    %111 = arith.addf %100, %107 : vector<160x80xf32>
    %112 = arith.addf %103, %110 : vector<160x80xf32>
    %113 = vector.extract_strided_slice %96 {offsets = [32, 0], sizes = [160, 84], strides = [1, 1]} : vector<224x84xbf16> to vector<160x84xbf16>
    %c0_133 = arith.constant 0 : index
    %c2_134 = arith.constant 2 : index
    %c0_135 = arith.constant 0 : index
    %c0_136 = arith.constant 0 : index
    %114 = vector.load %arg3[%c0_133, %c2_134, %c0_135, %c0_136] : memref<2x5x84x80xbf16, #tpu.memory_space<vmem>>, vector<1x1x84x80xbf16>
    %115 = vector.shape_cast %114 : vector<1x1x84x80xbf16> to vector<84x80xbf16>
    %cst_137 = arith.constant dense<0.000000e+00> : vector<160x80xf32>
    %116 = tpu.matmul %113, %115, %cst_137 {dimension_numbers = #tpu.dot_dimension_numbers<[1], [0], [0], [1], [0, 0, 1, 1], [], []>} : vector<160x84xbf16>, vector<84x80xbf16>, vector<160x80xf32> -> vector<160x80xf32>
    %c1_138 = arith.constant 1 : index
    %c2_139 = arith.constant 2 : index
    %c0_140 = arith.constant 0 : index
    %c0_141 = arith.constant 0 : index
    %117 = vector.load %arg3[%c1_138, %c2_139, %c0_140, %c0_141] : memref<2x5x84x80xbf16, #tpu.memory_space<vmem>>, vector<1x1x84x80xbf16>
    %118 = vector.shape_cast %117 : vector<1x1x84x80xbf16> to vector<84x80xbf16>
    %cst_142 = arith.constant dense<0.000000e+00> : vector<160x80xf32>
    %119 = tpu.matmul %113, %118, %cst_142 {dimension_numbers = #tpu.dot_dimension_numbers<[1], [0], [0], [1], [0, 0, 1, 1], [], []>} : vector<160x84xbf16>, vector<84x80xbf16>, vector<160x80xf32> -> vector<160x80xf32>
    %120 = arith.addf %111, %116 : vector<160x80xf32>
    %121 = arith.addf %112, %119 : vector<160x80xf32>
    %122 = vector.extract_strided_slice %96 {offsets = [48, 0], sizes = [160, 84], strides = [1, 1]} : vector<224x84xbf16> to vector<160x84xbf16>
    %c0_143 = arith.constant 0 : index
    %c3_144 = arith.constant 3 : index
    %c0_145 = arith.constant 0 : index
    %c0_146 = arith.constant 0 : index
    %123 = vector.load %arg3[%c0_143, %c3_144, %c0_145, %c0_146] : memref<2x5x84x80xbf16, #tpu.memory_space<vmem>>, vector<1x1x84x80xbf16>
    %124 = vector.shape_cast %123 : vector<1x1x84x80xbf16> to vector<84x80xbf16>
    %cst_147 = arith.constant dense<0.000000e+00> : vector<160x80xf32>
    %125 = tpu.matmul %122, %124, %cst_147 {dimension_numbers = #tpu.dot_dimension_numbers<[1], [0], [0], [1], [0, 0, 1, 1], [], []>} : vector<160x84xbf16>, vector<84x80xbf16>, vector<160x80xf32> -> vector<160x80xf32>
    %c1_148 = arith.constant 1 : index
    %c3_149 = arith.constant 3 : index
    %c0_150 = arith.constant 0 : index
    %c0_151 = arith.constant 0 : index
    %126 = vector.load %arg3[%c1_148, %c3_149, %c0_150, %c0_151] : memref<2x5x84x80xbf16, #tpu.memory_space<vmem>>, vector<1x1x84x80xbf16>
    %127 = vector.shape_cast %126 : vector<1x1x84x80xbf16> to vector<84x80xbf16>
    %cst_152 = arith.constant dense<0.000000e+00> : vector<160x80xf32>
    %128 = tpu.matmul %122, %127, %cst_152 {dimension_numbers = #tpu.dot_dimension_numbers<[1], [0], [0], [1], [0, 0, 1, 1], [], []>} : vector<160x84xbf16>, vector<84x80xbf16>, vector<160x80xf32> -> vector<160x80xf32>
    %129 = arith.addf %120, %125 : vector<160x80xf32>
    %130 = arith.addf %121, %128 : vector<160x80xf32>
    %131 = vector.extract_strided_slice %96 {offsets = [64, 0], sizes = [160, 84], strides = [1, 1]} : vector<224x84xbf16> to vector<160x84xbf16>
    %c0_153 = arith.constant 0 : index
    %c4_154 = arith.constant 4 : index
    %c0_155 = arith.constant 0 : index
    %c0_156 = arith.constant 0 : index
    %132 = vector.load %arg3[%c0_153, %c4_154, %c0_155, %c0_156] : memref<2x5x84x80xbf16, #tpu.memory_space<vmem>>, vector<1x1x84x80xbf16>
    %133 = vector.shape_cast %132 : vector<1x1x84x80xbf16> to vector<84x80xbf16>
    %cst_157 = arith.constant dense<0.000000e+00> : vector<160x80xf32>
    %134 = tpu.matmul %131, %133, %cst_157 {dimension_numbers = #tpu.dot_dimension_numbers<[1], [0], [0], [1], [0, 0, 1, 1], [], []>} : vector<160x84xbf16>, vector<84x80xbf16>, vector<160x80xf32> -> vector<160x80xf32>
    %c1_158 = arith.constant 1 : index
    %c4_159 = arith.constant 4 : index
    %c0_160 = arith.constant 0 : index
    %c0_161 = arith.constant 0 : index
    %135 = vector.load %arg3[%c1_158, %c4_159, %c0_160, %c0_161] : memref<2x5x84x80xbf16, #tpu.memory_space<vmem>>, vector<1x1x84x80xbf16>
    %136 = vector.shape_cast %135 : vector<1x1x84x80xbf16> to vector<84x80xbf16>
    %cst_162 = arith.constant dense<0.000000e+00> : vector<160x80xf32>
    %137 = tpu.matmul %131, %136, %cst_162 {dimension_numbers = #tpu.dot_dimension_numbers<[1], [0], [0], [1], [0, 0, 1, 1], [], []>} : vector<160x84xbf16>, vector<84x80xbf16>, vector<160x80xf32> -> vector<160x80xf32>
    %138 = arith.addf %129, %134 : vector<160x80xf32>
    %139 = arith.addf %130, %137 : vector<160x80xf32>
    %140 = arith.maximumf %138, %139 : vector<160x80xf32>
    %c1_163 = arith.constant 1 : index
    %c0_164 = arith.constant 0 : index
    %141 = vector.load %arg7[%c1_163, %c0_164] : memref<5x128xf32, #tpu.memory_space<vmem>>, vector<1x80xf32>
    %142 = vector.broadcast %141 : vector<1x80xf32> to vector<160x80xf32>
    %143 = arith.addf %140, %142 : vector<160x80xf32>
    %cst_165 = arith.constant 0.000000e+00 : f32
    %144 = vector.broadcast %cst_165 : f32 to vector<160x80xf32>
    %145 = arith.maximumf %143, %144 : vector<160x80xf32>
    %146 = arith.truncf %145 : vector<160x80xf32> to vector<160x80xbf16>
    %147 = vector.extract_strided_slice %146 {offsets = [0, 0], sizes = [16, 80], strides = [1, 1]} : vector<160x80xbf16> to vector<16x80xbf16>
    %148 = vector.extract_strided_slice %146 {offsets = [16, 0], sizes = [16, 80], strides = [1, 1]} : vector<160x80xbf16> to vector<16x80xbf16>
    %149 = arith.maximumf %147, %148 : vector<16x80xbf16>
    %c0_166 = arith.constant 0 : index
    %c0_167 = arith.constant 0 : index
    %c0_168 = arith.constant 0 : index
    %150 = vector.load %arg4[%c0_166, %c0_167, %c0_168] : memref<5x80x120xbf16, #tpu.memory_space<vmem>>, vector<1x80x120xbf16>
    %151 = vector.shape_cast %150 : vector<1x80x120xbf16> to vector<80x120xbf16>
    %cst_169 = arith.constant dense<0.000000e+00> : vector<16x120xf32>
    %152 = tpu.matmul %149, %151, %cst_169 {dimension_numbers = #tpu.dot_dimension_numbers<[1], [0], [0], [1], [0, 0, 1, 1], [], []>} : vector<16x80xbf16>, vector<80x120xbf16>, vector<16x120xf32> -> vector<16x120xf32>
    %153 = vector.extract_strided_slice %146 {offsets = [32, 0], sizes = [16, 80], strides = [1, 1]} : vector<160x80xbf16> to vector<16x80xbf16>
    %154 = vector.extract_strided_slice %146 {offsets = [48, 0], sizes = [16, 80], strides = [1, 1]} : vector<160x80xbf16> to vector<16x80xbf16>
    %155 = arith.maximumf %153, %154 : vector<16x80xbf16>
    %c1_170 = arith.constant 1 : index
    %c0_171 = arith.constant 0 : index
    %c0_172 = arith.constant 0 : index
    %156 = vector.load %arg4[%c1_170, %c0_171, %c0_172] : memref<5x80x120xbf16, #tpu.memory_space<vmem>>, vector<1x80x120xbf16>
    %157 = vector.shape_cast %156 : vector<1x80x120xbf16> to vector<80x120xbf16>
    %cst_173 = arith.constant dense<0.000000e+00> : vector<16x120xf32>
    %158 = tpu.matmul %155, %157, %cst_173 {dimension_numbers = #tpu.dot_dimension_numbers<[1], [0], [0], [1], [0, 0, 1, 1], [], []>} : vector<16x80xbf16>, vector<80x120xbf16>, vector<16x120xf32> -> vector<16x120xf32>
    %159 = arith.addf %152, %158 : vector<16x120xf32>
    %160 = vector.extract_strided_slice %146 {offsets = [64, 0], sizes = [16, 80], strides = [1, 1]} : vector<160x80xbf16> to vector<16x80xbf16>
    %161 = vector.extract_strided_slice %146 {offsets = [80, 0], sizes = [16, 80], strides = [1, 1]} : vector<160x80xbf16> to vector<16x80xbf16>
    %162 = arith.maximumf %160, %161 : vector<16x80xbf16>
    %c2_174 = arith.constant 2 : index
    %c0_175 = arith.constant 0 : index
    %c0_176 = arith.constant 0 : index
    %163 = vector.load %arg4[%c2_174, %c0_175, %c0_176] : memref<5x80x120xbf16, #tpu.memory_space<vmem>>, vector<1x80x120xbf16>
    %164 = vector.shape_cast %163 : vector<1x80x120xbf16> to vector<80x120xbf16>
    %cst_177 = arith.constant dense<0.000000e+00> : vector<16x120xf32>
    %165 = tpu.matmul %162, %164, %cst_177 {dimension_numbers = #tpu.dot_dimension_numbers<[1], [0], [0], [1], [0, 0, 1, 1], [], []>} : vector<16x80xbf16>, vector<80x120xbf16>, vector<16x120xf32> -> vector<16x120xf32>
    %166 = arith.addf %159, %165 : vector<16x120xf32>
    %167 = vector.extract_strided_slice %146 {offsets = [96, 0], sizes = [16, 80], strides = [1, 1]} : vector<160x80xbf16> to vector<16x80xbf16>
    %168 = vector.extract_strided_slice %146 {offsets = [112, 0], sizes = [16, 80], strides = [1, 1]} : vector<160x80xbf16> to vector<16x80xbf16>
    %169 = arith.maximumf %167, %168 : vector<16x80xbf16>
    %c3_178 = arith.constant 3 : index
    %c0_179 = arith.constant 0 : index
    %c0_180 = arith.constant 0 : index
    %170 = vector.load %arg4[%c3_178, %c0_179, %c0_180] : memref<5x80x120xbf16, #tpu.memory_space<vmem>>, vector<1x80x120xbf16>
    %171 = vector.shape_cast %170 : vector<1x80x120xbf16> to vector<80x120xbf16>
    %cst_181 = arith.constant dense<0.000000e+00> : vector<16x120xf32>
    %172 = tpu.matmul %169, %171, %cst_181 {dimension_numbers = #tpu.dot_dimension_numbers<[1], [0], [0], [1], [0, 0, 1, 1], [], []>} : vector<16x80xbf16>, vector<80x120xbf16>, vector<16x120xf32> -> vector<16x120xf32>
    %173 = arith.addf %166, %172 : vector<16x120xf32>
    %174 = vector.extract_strided_slice %146 {offsets = [128, 0], sizes = [16, 80], strides = [1, 1]} : vector<160x80xbf16> to vector<16x80xbf16>
    %175 = vector.extract_strided_slice %146 {offsets = [144, 0], sizes = [16, 80], strides = [1, 1]} : vector<160x80xbf16> to vector<16x80xbf16>
    %176 = arith.maximumf %174, %175 : vector<16x80xbf16>
    %c4_182 = arith.constant 4 : index
    %c0_183 = arith.constant 0 : index
    %c0_184 = arith.constant 0 : index
    %177 = vector.load %arg4[%c4_182, %c0_183, %c0_184] : memref<5x80x120xbf16, #tpu.memory_space<vmem>>, vector<1x80x120xbf16>
    %178 = vector.shape_cast %177 : vector<1x80x120xbf16> to vector<80x120xbf16>
    %cst_185 = arith.constant dense<0.000000e+00> : vector<16x120xf32>
    %179 = tpu.matmul %176, %178, %cst_185 {dimension_numbers = #tpu.dot_dimension_numbers<[1], [0], [0], [1], [0, 0, 1, 1], [], []>} : vector<16x80xbf16>, vector<80x120xbf16>, vector<16x120xf32> -> vector<16x120xf32>
    %180 = arith.addf %173, %179 : vector<16x120xf32>
    %c2_186 = arith.constant 2 : index
    %c0_187 = arith.constant 0 : index
    %181 = vector.load %arg7[%c2_186, %c0_187] : memref<5x128xf32, #tpu.memory_space<vmem>>, vector<1x120xf32>
    %182 = vector.broadcast %181 : vector<1x120xf32> to vector<16x120xf32>
    %183 = arith.addf %180, %182 : vector<16x120xf32>
    %cst_188 = arith.constant 0.000000e+00 : f32
    %184 = vector.broadcast %cst_188 : f32 to vector<16x120xf32>
    %185 = arith.maximumf %183, %184 : vector<16x120xf32>
    %186 = arith.truncf %185 : vector<16x120xf32> to vector<16x120xbf16>
    %c0_189 = arith.constant 0 : index
    %c0_190 = arith.constant 0 : index
    %187 = vector.load %arg5[%c0_189, %c0_190] : memref<120x20xbf16, #tpu.memory_space<vmem>>, vector<120x20xbf16>
    %cst_191 = arith.constant dense<0.000000e+00> : vector<16x20xf32>
    %188 = tpu.matmul %186, %187, %cst_191 {dimension_numbers = #tpu.dot_dimension_numbers<[1], [0], [0], [1], [0, 0, 1, 1], [], []>} : vector<16x120xbf16>, vector<120x20xbf16>, vector<16x20xf32> -> vector<16x20xf32>
    %c3_192 = arith.constant 3 : index
    %c0_193 = arith.constant 0 : index
    %189 = vector.load %arg7[%c3_192, %c0_193] : memref<5x128xf32, #tpu.memory_space<vmem>>, vector<1x20xf32>
    %190 = vector.broadcast %189 : vector<1x20xf32> to vector<16x20xf32>
    %191 = arith.addf %188, %190 : vector<16x20xf32>
    %cst_194 = arith.constant 0.000000e+00 : f32
    %192 = vector.broadcast %cst_194 : f32 to vector<16x20xf32>
    %193 = arith.maximumf %191, %192 : vector<16x20xf32>
    %194 = arith.truncf %193 : vector<16x20xf32> to vector<16x20xbf16>
    %c0_195 = arith.constant 0 : index
    %c0_196 = arith.constant 0 : index
    %195 = vector.load %arg6[%c0_195, %c0_196] : memref<20x9xbf16, #tpu.memory_space<vmem>>, vector<20x9xbf16>
    %cst_197 = arith.constant dense<0.000000e+00> : vector<16x9xf32>
    %196 = tpu.matmul %194, %195, %cst_197 {dimension_numbers = #tpu.dot_dimension_numbers<[1], [0], [0], [1], [0, 0, 1, 1], [], []>} : vector<16x20xbf16>, vector<20x9xbf16>, vector<16x9xf32> -> vector<16x9xf32>
    %c4_198 = arith.constant 4 : index
    %c0_199 = arith.constant 0 : index
    %197 = vector.load %arg7[%c4_198, %c0_199] : memref<5x128xf32, #tpu.memory_space<vmem>>, vector<1x9xf32>
    %198 = vector.broadcast %197 : vector<1x9xf32> to vector<16x9xf32>
    %199 = arith.addf %196, %198 : vector<16x9xf32>
    %c0_200 = arith.constant 0 : index
    %c0_201 = arith.constant 0 : index
    %200 = vector.load %arg8[%c0_200, %c0_201] : memref<16x9xf32, #tpu.memory_space<vmem>>, vector<16x9xf32>
    tpu.vector_store %arg8[%c0_200, %c0_201], %199 {strides = array<i32>} : memref<16x9xf32, #tpu.memory_space<vmem>>, vector<16x9xf32>,
    return
  }
  func.func @transform_0(%arg0: i32) -> (i32, i32, i32) {
    %c0_i32 = arith.constant 0 : i32
    %c0_i32_0 = arith.constant 0 : i32
    %c0_i32_1 = arith.constant 0 : i32
    return %c0_i32, %arg0, %c0_i32_0 : i32, i32, i32
  }
  func.func @transform_1(%arg0: i32) -> (i32, i32, i32, i32) {
    %c0_i32 = arith.constant 0 : i32
    %c0_i32_0 = arith.constant 0 : i32
    %c0_i32_1 = arith.constant 0 : i32
    %c0_i32_2 = arith.constant 0 : i32
    %c0_i32_3 = arith.constant 0 : i32
    return %c0_i32, %c0_i32_0, %c0_i32_1, %c0_i32_2 : i32, i32, i32, i32
  }
  func.func @transform_2(%arg0: i32) -> (i32, i32, i32, i32) {
    %c0_i32 = arith.constant 0 : i32
    %c0_i32_0 = arith.constant 0 : i32
    %c0_i32_1 = arith.constant 0 : i32
    %c0_i32_2 = arith.constant 0 : i32
    %c0_i32_3 = arith.constant 0 : i32
    return %c0_i32, %c0_i32_0, %c0_i32_1, %c0_i32_2 : i32, i32, i32, i32
  }
  func.func @transform_3(%arg0: i32) -> (i32, i32, i32) {
    %c0_i32 = arith.constant 0 : i32
    %c0_i32_0 = arith.constant 0 : i32
    %c0_i32_1 = arith.constant 0 : i32
    %c0_i32_2 = arith.constant 0 : i32
    return %c0_i32, %c0_i32_0, %c0_i32_1 : i32, i32, i32
  }
  func.func @transform_4(%arg0: i32) -> (i32, i32) {
    %c0_i32 = arith.constant 0 : i32
    %c0_i32_0 = arith.constant 0 : i32
    %c0_i32_1 = arith.constant 0 : i32
    return %c0_i32, %c0_i32_0 : i32, i32
  }
  func.func @transform_5(%arg0: i32) -> (i32, i32) {
    %c0_i32 = arith.constant 0 : i32
    %c0_i32_0 = arith.constant 0 : i32
    %c0_i32_1 = arith.constant 0 : i32
    return %c0_i32, %c0_i32_0 : i32, i32
  }
  func.func @transform_6(%arg0: i32) -> (i32, i32) {
    %c0_i32 = arith.constant 0 : i32
    %c0_i32_0 = arith.constant 0 : i32
    %c0_i32_1 = arith.constant 0 : i32
    return %c0_i32, %c0_i32_0 : i32, i32
  }
  func.func @transform_7(%arg0: i32) -> (i32, i32) {
    %c0_i32 = arith.constant 0 : i32
    %c0_i32_0 = arith.constant 0 : i32
    return %arg0, %c0_i32 : i32, i32
  }
}

</mosaic_0001>

<llo_original>
// kernel: net_forward.1
$region0: #{net_forward.1}
  #allocation0 [shape = 'u32[]', space=smem, size = 0x4, offset = 0x4, fixed_abs, tag = 'smem constant byte address 0x4 - core index']
  #allocation1 [shape = 'u32[144,128]{1,0:T(1,128)}', space=vmem, size = 0x12000, scoped, tag = 'internal scratch']
  %s0 = inlined_call_operand.vmem [shape: bf16[2,256,96], index: 0, kind: input, shape index: {}]
  %s1 = inlined_call_operand.vmem [shape: bf16[2,5,96,84], index: 1, kind: input, shape index: {}]
  %s2 = inlined_call_operand.vmem [shape: bf16[2,5,84,80], index: 2, kind: input, shape index: {}]
  %s3 = inlined_call_operand.vmem [shape: bf16[5,80,120], index: 3, kind: input, shape index: {}]
  %s4 = inlined_call_operand.vmem [shape: bf16[120,20], index: 4, kind: input, shape index: {}]
  %s5 = inlined_call_operand.vmem [shape: bf16[20,9], index: 5, kind: input, shape index: {}]
  %s6 = inlined_call_operand.vmem [shape: f32[5,128], index: 6, kind: input, shape index: {}]
  %s7 = inlined_call_operand.vmem [shape: f32[16,9], index: 7, kind: output, shape index: {}]
  %s8 = sld [smem:[#allocation0]]
  $region38: #{net_forward.1} parent=0
    _
  %s10 = ssub.s32 1, %s8
  %s11 = scalar_select 0, %s10, %s8
  // Predicated region
  $region2: #{net_forward.1} parent=0 // pred_check
    _
  $region3: #{net_forward.1} parent=0 // pred_check_branch
    %13 = sbr.rel (0) target = $region5
  $region4: #{net_forward.1} parent=0 // pred_region
    _
  $region5: #{net_forward.1} parent=0 // pred_fallthru
    _
  // Predicated region
  $region6: #{net_forward.1} parent=0 // pred_check
    _
  $region7: #{net_forward.1} parent=0 // pred_check_branch
    %15 = sbr.rel (0) target = $region9
  $region8: #{net_forward.1} parent=0 // pred_region
    _
  $region9: #{net_forward.1} parent=0 // pred_fallthru
    _
  // Predicated region
  $region10: #{net_forward.1} parent=0 // pred_check
    _
  $region11: #{net_forward.1} parent=0 // pred_check_branch
    %17 = sbr.rel (0) target = $region13
  $region12: #{net_forward.1} parent=0 // pred_region
    _
  $region13: #{net_forward.1} parent=0 // pred_fallthru
    _
  // Predicated region
  $region14: #{net_forward.1} parent=0 // pred_check
    _
  $region15: #{net_forward.1} parent=0 // pred_check_branch
    %19 = sbr.rel (0) target = $region17
  $region16: #{net_forward.1} parent=0 // pred_region
    _
  $region17: #{net_forward.1} parent=0 // pred_fallthru
    _
  // Predicated region
  $region18: #{net_forward.1} parent=0 // pred_check
    _
  $region19: #{net_forward.1} parent=0 // pred_check_branch
    %21 = sbr.rel (0) target = $region21
  $region20: #{net_forward.1} parent=0 // pred_region
    _
  $region21: #{net_forward.1} parent=0 // pred_fallthru
    _
  // Predicated region
  $region22: #{net_forward.1} parent=0 // pred_check
    _
  $region23: #{net_forward.1} parent=0 // pred_check_branch
    %23 = sbr.rel (0) target = $region25
  $region24: #{net_forward.1} parent=0 // pred_region
    _
  $region25: #{net_forward.1} parent=0 // pred_fallthru
    _
  // Predicated region
  $region26: #{net_forward.1} parent=0 // pred_check
    _
  $region27: #{net_forward.1} parent=0 // pred_check_branch
    %25 = sbr.rel (0) target = $region29
  $region28: #{net_forward.1} parent=0 // pred_region
    _
  $region29: #{net_forward.1} parent=0 // pred_fallthru
    _
  %v27 = vld [vmem:[%s0] sm:$0xf]
  %v28 = vld [vmem:[%s0 + $0x4] sm:$0xf]
  %v29 = vld [vmem:[%s0 + $0x8] sm:$0xf]
  %v30 = vld [vmem:[%s0 + $0xc] sm:$0xf]
  %v31 = vld [vmem:[%s0 + $0x10] sm:$0xf]
  %v32 = vld [vmem:[%s0 + $0x14] sm:$0xf]
  %v33 = vld [vmem:[%s0 + $0x18] sm:$0xf]
  %v34 = vld [vmem:[%s0 + $0x1c] sm:$0xf]
  %v35 = vld [vmem:[%s0 + $0x20] sm:$0xf]
  %v36 = vld [vmem:[%s0 + $0x24] sm:$0xf]
  %v37 = vld [vmem:[%s0 + $0x28] sm:$0xf]
  %v38 = vld [vmem:[%s0 + $0x2c] sm:$0xf]
  %v39 = vld [vmem:[%s0 + $0x30] sm:$0xf]
  %v40 = vld [vmem:[%s0 + $0x34] sm:$0xf]
  %v41 = vld [vmem:[%s0 + $0x38] sm:$0xf]
  %v42 = vld [vmem:[%s0 + $0x3c] sm:$0xf]
  %v43 = vld [vmem:[%s0 + $0x40] sm:$0xf]
  %v44 = vld [vmem:[%s0 + $0x44] sm:$0xf]
  %v45 = vld [vmem:[%s0 + $0x48] sm:$0xf]
  %v46 = vld [vmem:[%s0 + $0x4c] sm:$0xf]
  %v47 = vld [vmem:[%s0 + $0x50] sm:$0xf]
  %v48 = vld [vmem:[%s0 + $0x54] sm:$0xf]
  %v49 = vld [vmem:[%s0 + $0x58] sm:$0xf]
  %v50 = vld [vmem:[%s0 + $0x5c] sm:$0xf]
  %v51 = vld [vmem:[%s0 + $0x60] sm:$0xf]
  %v52 = vld [vmem:[%s0 + $0x64] sm:$0xf]
  %v53 = vld [vmem:[%s0 + $0x68] sm:$0xf]
  %v54 = vld [vmem:[%s0 + $0x6c] sm:$0xf]
  %s55 = scalar_lea.vmem %s0, 128
  %v56 = vld [vmem:[%s55] sm:$0xf]
  %v57 = vld [vmem:[%s55 + $0x4] sm:$0xf]
  %v58 = vld [vmem:[%s55 + $0x8] sm:$0xf]
  %v59 = vld [vmem:[%s55 + $0xc] sm:$0xf]
  %v60 = vld [vmem:[%s55 + $0x10] sm:$0xf]
  %v61 = vld [vmem:[%s55 + $0x14] sm:$0xf]
  %v62 = vld [vmem:[%s55 + $0x18] sm:$0xf]
  %v63 = vld [vmem:[%s55 + $0x1c] sm:$0xf]
  %v64 = vld [vmem:[%s55 + $0x20] sm:$0xf]
  %v65 = vld [vmem:[%s55 + $0x24] sm:$0xf]
  %v66 = vld [vmem:[%s55 + $0x28] sm:$0xf]
  %v67 = vld [vmem:[%s55 + $0x2c] sm:$0xf]
  %v68 = vld [vmem:[%s55 + $0x30] sm:$0xf]
  %v69 = vld [vmem:[%s55 + $0x34] sm:$0xf]
  %v70 = vld [vmem:[%s55 + $0x38] sm:$0xf]
  %v71 = vld [vmem:[%s55 + $0x3c] sm:$0xf]
  %v72 = vld [vmem:[%s55 + $0x40] sm:$0xf]
  %v73 = vld [vmem:[%s55 + $0x44] sm:$0xf]
  %v74 = vld [vmem:[%s55 + $0x48] sm:$0xf]
  %v75 = vld [vmem:[%s55 + $0x4c] sm:$0xf]
  %v76 = vld [vmem:[%s55 + $0x50] sm:$0xf]
  %v77 = vld [vmem:[%s55 + $0x54] sm:$0xf]
  %v78 = vld [vmem:[%s55 + $0x58] sm:$0xf]
  %v79 = vld [vmem:[%s55 + $0x5c] sm:$0xf]
  %v80 = vld [vmem:[%s55 + $0x60] sm:$0xf]
  %v81 = vld [vmem:[%s55 + $0x64] sm:$0xf]
  %v82 = vld [vmem:[%s55 + $0x68] sm:$0xf]
  %v83 = vld [vmem:[%s55 + $0x6c] sm:$0xf]
  %v84 = vld [vmem:[%s0 + $0x70] sm:$0xf]
  %v85 = vld [vmem:[%s0 + $0x74] sm:$0xf]
  %v86 = vld [vmem:[%s55 + $0x70] sm:$0xf]
  %v87 = vld [vmem:[%s55 + $0x74] sm:$0xf]
  %v88 = vld [vmem:[%s0 + $0x78] sm:$0xf]
  %v89 = vld [vmem:[%s0 + $0x7c] sm:$0xf]
  %v90 = vld [vmem:[%s55 + $0x78] sm:$0xf]
  %v91 = vld [vmem:[%s55 + $0x7c] sm:$0xf]
  %v92 = vld [vmem:[%s1] sm:$0xf]
  %v93 = vld [vmem:[%s1 + $0x4] sm:$0xf]
  %v94 = vld [vmem:[%s1 + $0x8] sm:$0xf]
  %v95 = vld [vmem:[%s1 + $0xc] sm:$0xf]
  %v96 = vld [vmem:[%s1 + $0x10] sm:$0xf]
  %v97 = vld [vmem:[%s1 + $0x14] sm:$0xf]
  %v98 = vld [vmem:[%s1 + $0x18] sm:$0xf]
  %v99 = vld [vmem:[%s1 + $0x1c] sm:$0xf]
  %v100 = vld [vmem:[%s1 + $0x20] sm:$0xf]
  %v101 = vld [vmem:[%s1 + $0x24] sm:$0xf]
  %v102 = vld [vmem:[%s1 + $0x28] sm:$0xf]
  %v103 = vld [vmem:[%s1 + $0x2c] sm:$0xf]
  %s104 = scalar_lea.vmem %s1, 240
  %v105 = vld [vmem:[%s104] sm:$0xf]
  %v106 = vld [vmem:[%s104 + $0x4] sm:$0xf]
  %v107 = vld [vmem:[%s104 + $0x8] sm:$0xf]
  %v108 = vld [vmem:[%s104 + $0xc] sm:$0xf]
  %v109 = vld [vmem:[%s104 + $0x10] sm:$0xf]
  %v110 = vld [vmem:[%s104 + $0x14] sm:$0xf]
  %v111 = vld [vmem:[%s104 + $0x18] sm:$0xf]
  %v112 = vld [vmem:[%s104 + $0x1c] sm:$0xf]
  %v113 = vld [vmem:[%s104 + $0x20] sm:$0xf]
  %v114 = vld [vmem:[%s104 + $0x24] sm:$0xf]
  %v115 = vld [vmem:[%s104 + $0x28] sm:$0xf]
  %v116 = vld [vmem:[%s104 + $0x2c] sm:$0xf]
  %s117 = scalar_lea.vmem %s1, 48
  %v118 = vld [vmem:[%s117] sm:$0xf]
  %v119 = vld [vmem:[%s117 + $0x4] sm:$0xf]
  %v120 = vld [vmem:[%s117 + $0x8] sm:$0xf]
  %v121 = vld [vmem:[%s117 + $0xc] sm:$0xf]
  %v122 = vld [vmem:[%s117 + $0x10] sm:$0xf]
  %v123 = vld [vmem:[%s117 + $0x14] sm:$0xf]
  %v124 = vld [vmem:[%s117 + $0x18] sm:$0xf]
  %v125 = vld [vmem:[%s117 + $0x1c] sm:$0xf]
  %v126 = vld [vmem:[%s117 + $0x20] sm:$0xf]
  %v127 = vld [vmem:[%s117 + $0x24] sm:$0xf]
  %v128 = vld [vmem:[%s117 + $0x28] sm:$0xf]
  %v129 = vld [vmem:[%s117 + $0x2c] sm:$0xf]
  %v158 = vunpack.c.l.b16 %v56
  %v159 = vunpack.c.l.b16 %v57
  %v160 = vunpack.c.l.b16 %v58
  %v161 = vunpack.c.l.b16 %v59
  %v162 = vunpack.c.l.b16 %v60
  %v163 = vunpack.c.l.b16 %v61
  %v164 = vunpack.c.l.b16 %v62
  %v165 = vunpack.c.l.b16 %v63
  %v166 = vunpack.c.l.b16 %v64
  %v167 = vunpack.c.l.b16 %v65
  %v168 = vunpack.c.l.b16 %v66
  %v169 = vunpack.c.l.b16 %v67
  %v170 = vunpack.c.l.b16 %v68
  %v171 = vunpack.c.l.b16 %v69
  %v172 = vunpack.c.l.b16 %v70
  %v173 = vunpack.c.l.b16 %v71
  %v174 = vunpack.c.l.b16 %v72
  %v175 = vunpack.c.l.b16 %v73
  %v176 = vunpack.c.l.b16 %v74
  %v177 = vunpack.c.l.b16 %v75
  %v178 = vunpack.c.l.b16 %v76
  %v179 = vunpack.c.l.b16 %v77
  %v180 = vunpack.c.l.b16 %v78
  %v181 = vunpack.c.l.b16 %v79
  %v182 = vunpack.c.l.b16 %v80
  %v183 = vunpack.c.l.b16 %v81
  %v184 = vunpack.c.l.b16 %v82
  %v185 = vunpack.c.l.b16 %v83
  %v186 = vpack.c.b16 %v159, %v158
  %v187 = vpack.c.b16 %v161, %v160
  %v188 = vpack.c.b16 %v163, %v162
  %v189 = vpack.c.b16 %v165, %v164
  %v190 = vpack.c.b16 %v167, %v166
  %v191 = vpack.c.b16 %v169, %v168
  %v192 = vpack.c.b16 %v171, %v170
  %v193 = vpack.c.b16 %v173, %v172
  %v194 = vpack.c.b16 %v175, %v174
  %v195 = vpack.c.b16 %v177, %v176
  %v196 = vpack.c.b16 %v179, %v178
  %v197 = vpack.c.b16 %v181, %v180
  %v198 = vpack.c.b16 %v183, %v182
  %v199 = vpack.c.b16 %v185, %v184
  %v212 = vunpack.c.l.b16 %v118
  %v213 = vunpack.c.l.b16 %v119
  %v214 = vunpack.c.l.b16 %v120
  %v215 = vunpack.c.l.b16 %v121
  %v216 = vunpack.c.l.b16 %v122
  %v217 = vunpack.c.l.b16 %v123
  %v218 = vunpack.c.l.b16 %v124
  %v219 = vunpack.c.l.b16 %v125
  %v220 = vunpack.c.l.b16 %v126
  %v221 = vunpack.c.l.b16 %v127
  %v222 = vunpack.c.l.b16 %v128
  %v223 = vunpack.c.l.b16 %v129
  %v224 = vpack.c.b16 %v213, %v212
  %v225 = vpack.c.b16 %v215, %v214
  %v226 = vpack.c.b16 %v217, %v216
  %v227 = vpack.c.b16 %v219, %v218
  %v228 = vpack.c.b16 %v221, %v220
  %v229 = vpack.c.b16 %v223, %v222
  %vm236 = vcmask 785408
  %v238 = vsel %vm236, %v186, 0
  %v241 = vsel %vm236, %v187, 0
  %v244 = vsel %vm236, %v188, 0
  %v247 = vsel %vm236, %v189, 0
  %v250 = vsel %vm236, %v190, 0
  %v253 = vsel %vm236, %v191, 0
  %v256 = vsel %vm236, %v192, 0
  %v259 = vsel %vm236, %v193, 0
  %v262 = vsel %vm236, %v194, 0
  %v265 = vsel %vm236, %v195, 0
  %v268 = vsel %vm236, %v196, 0
  %v271 = vsel %vm236, %v197, 0
  %v274 = vsel %vm236, %v198, 0
  %v277 = vsel %vm236, %v199, 0
  %279 = vmatprep.subr.bf16.mxu0 0
  %280 = vmatpush1.bf16.msra.mxu0 0
  %281 = vmatprep.subr.bf16.mxu0 0
  %282 = vmatpush1.bf16.msra.mxu0 0
  %283 = vmatprep.subr.bf16.mxu0 0
  %284 = vmatpush1.bf16.msra.mxu0 %v229
  %285 = vmatprep.subr.bf16.mxu0 0
  %286 = vmatpush1.bf16.msra.mxu0 %v228
  %287 = vmatprep.subr.bf16.mxu0 0
  %288 = vmatpush1.bf16.msra.mxu0 %v227
  %289 = vmatprep.subr.bf16.mxu0 0
  %290 = vmatpush1.bf16.msra.mxu0 %v226
  %291 = vmatprep.subr.bf16.mxu0 0
  %292 = vmatpush1.bf16.msra.mxu0 %v225
  %293 = vmatprep.subr.bf16.mxu0 0
  %294 = vmatpush1.bf16.msra.mxu0 %v224
  %295 = vmatprep.subr.bf16.mxu0 0
  %296 = vmatpush2.bf16.msra.mxu0 0
  %297 = vmatprep.subr.bf16.mxu0 0
  %298 = vmatpush2.bf16.msra.mxu0 0
  %299 = vmatprep.subr.bf16.mxu0 0
  %300 = vmatpush2.bf16.msra.mxu0 0
  %301 = vmatprep.subr.bf16.mxu0 0
  %302 = vmatpush2.bf16.msra.mxu0 0
  %303 = vmatprep.subr.bf16.mxu0 0
  %304 = vmatpush2.bf16.msra.mxu0 0
  %305 = vmatprep.subr.bf16.mxu0 0
  %306 = vmatpush2.bf16.msra.mxu0 0
  %307 = vmatprep.subr.bf16.mxu0 0
  %308 = vmatpush2.bf16.msra.mxu0 0
  %309 = vmatprep.subr.bf16.mxu0 0
  %310 = vmatpush2.bf16.msra.mxu0 0
  %311 = vmatprep.mubr.bf16.mxu0 0
  %312 = vmatmul.mubr.bf16.gmra.mxu0 %v238
  %v313 = vpop.f32.mrf.mxu0
  %v314 = vadd.f32 0.0, %v313
  %v315 = vpop.f32.mrf.mxu0
  %v316 = vpop.f32.mrf.mxu0
  %v317 = vadd.f32 0.0, %v316
  %v318 = vpop.f32.mrf.mxu0
  %319 = vmatprep.mubr.bf16.mxu0 0
  %320 = vmatmul.mubr.bf16.gmra.mxu0 %v241
  %v321 = vpop.f32.mrf.mxu0
  %v322 = vadd.f32 0.0, %v321
  %v323 = vpop.f32.mrf.mxu0
  %v324 = vpop.f32.mrf.mxu0
  %v325 = vadd.f32 0.0, %v324
  %v326 = vpop.f32.mrf.mxu0
  %327 = vmatprep.mubr.bf16.mxu0 0
  %328 = vmatmul.mubr.bf16.gmra.mxu0 %v244
  %v329 = vpop.f32.mrf.mxu0
  %v330 = vadd.f32 0.0, %v329
  %v331 = vpop.f32.mrf.mxu0
  %v332 = vpop.f32.mrf.mxu0
  %v333 = vadd.f32 0.0, %v332
  %v334 = vpop.f32.mrf.mxu0
  %335 = vmatprep.mubr.bf16.mxu0 0
  %336 = vmatmul.mubr.bf16.gmra.mxu0 %v247
  %v337 = vpop.f32.mrf.mxu0
  %v338 = vadd.f32 0.0, %v337
  %v339 = vpop.f32.mrf.mxu0
  %v340 = vpop.f32.mrf.mxu0
  %v341 = vadd.f32 0.0, %v340
  %v342 = vpop.f32.mrf.mxu0
  %343 = vmatprep.mubr.bf16.mxu0 0
  %344 = vmatmul.mubr.bf16.gmra.mxu0 %v250
  %v345 = vpop.f32.mrf.mxu0
  %v346 = vadd.f32 0.0, %v345
  %v347 = vpop.f32.mrf.mxu0
  %v348 = vpop.f32.mrf.mxu0
  %v349 = vadd.f32 0.0, %v348
  %v350 = vpop.f32.mrf.mxu0
  %351 = vmatprep.mubr.bf16.mxu0 0
  %352 = vmatmul.mubr.bf16.gmra.mxu0 %v253
  %v353 = vpop.f32.mrf.mxu0
  %v354 = vadd.f32 0.0, %v353
  %v355 = vpop.f32.mrf.mxu0
  %v356 = vpop.f32.mrf.mxu0
  %v357 = vadd.f32 0.0, %v356
  %v358 = vpop.f32.mrf.mxu0
  %359 = vmatprep.mubr.bf16.mxu0 0
  %360 = vmatmul.mubr.bf16.gmra.mxu0 %v256
  %v361 = vpop.f32.mrf.mxu0
  %v362 = vadd.f32 0.0, %v361
  %v363 = vpop.f32.mrf.mxu0
  %v364 = vpop.f32.mrf.mxu0
  %v365 = vadd.f32 0.0, %v364
  %v366 = vpop.f32.mrf.mxu0
  %367 = vmatprep.mubr.bf16.mxu0 0
  %368 = vmatmul.mubr.bf16.gmra.mxu0 %v259
  %v369 = vpop.f32.mrf.mxu0
  %v370 = vadd.f32 0.0, %v369
  %v371 = vpop.f32.mrf.mxu0
  %v372 = vpop.f32.mrf.mxu0
  %v373 = vadd.f32 0.0, %v372
  %v374 = vpop.f32.mrf.mxu0
  %375 = vmatprep.mubr.bf16.mxu0 0
  %376 = vmatmul.mubr.bf16.gmra.mxu0 %v262
  %v377 = vpop.f32.mrf.mxu0
  %v378 = vadd.f32 0.0, %v377
  %v379 = vpop.f32.mrf.mxu0
  %v380 = vpop.f32.mrf.mxu0
  %v381 = vadd.f32 0.0, %v380
  %v382 = vpop.f32.mrf.mxu0
  %383 = vmatprep.mubr.bf16.mxu0 0
  %384 = vmatmul.mubr.bf16.gmra.mxu0 %v265
  %v385 = vpop.f32.mrf.mxu0
  %v386 = vadd.f32 0.0, %v385
  %v387 = vpop.f32.mrf.mxu0
  %v388 = vpop.f32.mrf.mxu0
  %v389 = vadd.f32 0.0, %v388
  %v390 = vpop.f32.mrf.mxu0
  %391 = vmatprep.mubr.bf16.mxu0 0
  %392 = vmatmul.mubr.bf16.gmra.mxu0 %v268
  %v393 = vpop.f32.mrf.mxu0
  %v394 = vadd.f32 0.0, %v393
  %v395 = vpop.f32.mrf.mxu0
  %v396 = vpop.f32.mrf.mxu0
  %v397 = vadd.f32 0.0, %v396
  %v398 = vpop.f32.mrf.mxu0
  %399 = vmatprep.mubr.bf16.mxu0 0
  %400 = vmatmul.mubr.bf16.gmra.mxu0 %v271
  %v401 = vpop.f32.mrf.mxu0
  %v402 = vadd.f32 0.0, %v401
  %v403 = vpop.f32.mrf.mxu0
  %v404 = vpop.f32.mrf.mxu0
  %v405 = vadd.f32 0.0, %v404
  %v406 = vpop.f32.mrf.mxu0
  %407 = vmatprep.mubr.bf16.mxu0 0
  %408 = vmatmul.mubr.bf16.gmra.mxu0 %v274
  %v409 = vpop.f32.mrf.mxu0
  %v410 = vadd.f32 0.0, %v409
  %v411 = vpop.f32.mrf.mxu0
  %v412 = vpop.f32.mrf.mxu0
  %v413 = vadd.f32 0.0, %v412
  %v414 = vpop.f32.mrf.mxu0
  %415 = vmatprep.mubr.bf16.mxu0 0
  %416 = vmatmul.mubr.bf16.gmra.mxu0 %v277
  %v417 = vpop.f32.mrf.mxu0
  %v418 = vadd.f32 0.0, %v417
  %v419 = vpop.f32.mrf.mxu0
  %v420 = vpop.f32.mrf.mxu0
  %v421 = vadd.f32 0.0, %v420
  %v422 = vpop.f32.mrf.mxu0
  %423 = vdwg.mxu0
  %v452 = vunpack.c.l.b16 %v27
  %v453 = vunpack.c.l.b16 %v28
  %v454 = vunpack.c.l.b16 %v29
  %v455 = vunpack.c.l.b16 %v30
  %v456 = vunpack.c.l.b16 %v31
  %v457 = vunpack.c.l.b16 %v32
  %v458 = vunpack.c.l.b16 %v33
  %v459 = vunpack.c.l.b16 %v34
  %v460 = vunpack.c.l.b16 %v35
  %v461 = vunpack.c.l.b16 %v36
  %v462 = vunpack.c.l.b16 %v37
  %v463 = vunpack.c.l.b16 %v38
  %v464 = vunpack.c.l.b16 %v39
  %v465 = vunpack.c.l.b16 %v40
  %v466 = vunpack.c.l.b16 %v41
  %v467 = vunpack.c.l.b16 %v42
  %v468 = vunpack.c.l.b16 %v43
  %v469 = vunpack.c.l.b16 %v44
  %v470 = vunpack.c.l.b16 %v45
  %v471 = vunpack.c.l.b16 %v46
  %v472 = vunpack.c.l.b16 %v47
  %v473 = vunpack.c.l.b16 %v48
  %v474 = vunpack.c.l.b16 %v49
  %v475 = vunpack.c.l.b16 %v50
  %v476 = vunpack.c.l.b16 %v51
  %v477 = vunpack.c.l.b16 %v52
  %v478 = vunpack.c.l.b16 %v53
  %v479 = vunpack.c.l.b16 %v54
  %v480 = vpack.c.b16 %v453, %v452
  %v481 = vpack.c.b16 %v455, %v454
  %v482 = vpack.c.b16 %v457, %v456
  %v483 = vpack.c.b16 %v459, %v458
  %v484 = vpack.c.b16 %v461, %v460
  %v485 = vpack.c.b16 %v463, %v462
  %v486 = vpack.c.b16 %v465, %v464
  %v487 = vpack.c.b16 %v467, %v466
  %v488 = vpack.c.b16 %v469, %v468
  %v489 = vpack.c.b16 %v471, %v470
  %v490 = vpack.c.b16 %v473, %v472
  %v491 = vpack.c.b16 %v475, %v474
  %v492 = vpack.c.b16 %v477, %v476
  %v493 = vpack.c.b16 %v479, %v478
  %v506 = vunpack.c.l.b16 %v92
  %v507 = vunpack.c.l.b16 %v93
  %v508 = vunpack.c.l.b16 %v94
  %v509 = vunpack.c.l.b16 %v95
  %v510 = vunpack.c.l.b16 %v96
  %v511 = vunpack.c.l.b16 %v97
  %v512 = vunpack.c.l.b16 %v98
  %v513 = vunpack.c.l.b16 %v99
  %v514 = vunpack.c.l.b16 %v100
  %v515 = vunpack.c.l.b16 %v101
  %v516 = vunpack.c.l.b16 %v102
  %v517 = vunpack.c.l.b16 %v103
  %v518 = vpack.c.b16 %v507, %v506
  %v519 = vpack.c.b16 %v509, %v508
  %v520 = vpack.c.b16 %v511, %v510
  %v521 = vpack.c.b16 %v513, %v512
  %v522 = vpack.c.b16 %v515, %v514
  %v523 = vpack.c.b16 %v517, %v516
  %v531 = vsel %vm236, %v480, 0
  %v534 = vsel %vm236, %v481, 0
  %v537 = vsel %vm236, %v482, 0
  %v540 = vsel %vm236, %v483, 0
  %v543 = vsel %vm236, %v484, 0
  %v546 = vsel %vm236, %v485, 0
  %v549 = vsel %vm236, %v486, 0
  %v552 = vsel %vm236, %v487, 0
  %v555 = vsel %vm236, %v488, 0
  %v558 = vsel %vm236, %v489, 0
  %v561 = vsel %vm236, %v490, 0
  %v564 = vsel %vm236, %v491, 0
  %v567 = vsel %vm236, %v492, 0
  %v570 = vsel %vm236, %v493, 0
  %572 = vmatprep.subr.bf16.mxu0 0
  %573 = vmatpush1.bf16.msra.mxu0 0
  %574 = vmatprep.subr.bf16.mxu0 0
  %575 = vmatpush1.bf16.msra.mxu0 0
  %576 = vmatprep.subr.bf16.mxu0 0
  %577 = vmatpush1.bf16.msra.mxu0 %v523
  %578 = vmatprep.subr.bf16.mxu0 0
  %579 = vmatpush1.bf16.msra.mxu0 %v522
  %580 = vmatprep.subr.bf16.mxu0 0
  %581 = vmatpush1.bf16.msra.mxu0 %v521
  %582 = vmatprep.subr.bf16.mxu0 0
  %583 = vmatpush1.bf16.msra.mxu0 %v520
  %584 = vmatprep.subr.bf16.mxu0 0
  %585 = vmatpush1.bf16.msra.mxu0 %v519
  %586 = vmatprep.subr.bf16.mxu0 0
  %587 = vmatpush1.bf16.msra.mxu0 %v518
  %588 = vmatprep.subr.bf16.mxu0 0
  %589 = vmatpush2.bf16.msra.mxu0 0
  %590 = vmatprep.subr.bf16.mxu0 0
  %591 = vmatpush2.bf16.msra.mxu0 0
  %592 = vmatprep.subr.bf16.mxu0 0
  %593 = vmatpush2.bf16.msra.mxu0 0
  %594 = vmatprep.subr.bf16.mxu0 0
  %595 = vmatpush2.bf16.msra.mxu0 0
  %596 = vmatprep.subr.bf16.mxu0 0
  %597 = vmatpush2.bf16.msra.mxu0 0
  %598 = vmatprep.subr.bf16.mxu0 0
  %599 = vmatpush2.bf16.msra.mxu0 0
  %600 = vmatprep.subr.bf16.mxu0 0
  %601 = vmatpush2.bf16.msra.mxu0 0
  %602 = vmatprep.subr.bf16.mxu0 0
  %603 = vmatpush2.bf16.msra.mxu0 0
  %604 = vmatprep.mubr.bf16.mxu0 0
  %605 = vmatmul.mubr.bf16.gmra.mxu0 %v531
  %v606 = vpop.f32.mrf.mxu0
  %v607 = vadd.f32 %v314, %v606
  %v608 = vpop.f32.mrf.mxu0
  %v609 = vpop.f32.mrf.mxu0
  %v610 = vadd.f32 %v317, %v609
  %v611 = vpop.f32.mrf.mxu0
  %612 = vmatprep.mubr.bf16.mxu0 0
  %613 = vmatmul.mubr.bf16.gmra.mxu0 %v534
  %v614 = vpop.f32.mrf.mxu0
  %v615 = vadd.f32 %v322, %v614
  %v616 = vpop.f32.mrf.mxu0
  %v617 = vpop.f32.mrf.mxu0
  %v618 = vadd.f32 %v325, %v617
  %v619 = vpop.f32.mrf.mxu0
  %620 = vmatprep.mubr.bf16.mxu0 0
  %621 = vmatmul.mubr.bf16.gmra.mxu0 %v537
  %v622 = vpop.f32.mrf.mxu0
  %v623 = vadd.f32 %v330, %v622
  %v624 = vpop.f32.mrf.mxu0
  %v625 = vpop.f32.mrf.mxu0
  %v626 = vadd.f32 %v333, %v625
  %v627 = vpop.f32.mrf.mxu0
  %628 = vmatprep.mubr.bf16.mxu0 0
  %629 = vmatmul.mubr.bf16.gmra.mxu0 %v540
  %v630 = vpop.f32.mrf.mxu0
  %v631 = vadd.f32 %v338, %v630
  %v632 = vpop.f32.mrf.mxu0
  %v633 = vpop.f32.mrf.mxu0
  %v634 = vadd.f32 %v341, %v633
  %v635 = vpop.f32.mrf.mxu0
  %636 = vmatprep.mubr.bf16.mxu0 0
  %637 = vmatmul.mubr.bf16.gmra.mxu0 %v543
  %v638 = vpop.f32.mrf.mxu0
  %v639 = vadd.f32 %v346, %v638
  %v640 = vpop.f32.mrf.mxu0
  %v641 = vpop.f32.mrf.mxu0
  %v642 = vadd.f32 %v349, %v641
  %v643 = vpop.f32.mrf.mxu0
  %644 = vmatprep.mubr.bf16.mxu0 0
  %645 = vmatmul.mubr.bf16.gmra.mxu0 %v546
  %v646 = vpop.f32.mrf.mxu0
  %v647 = vadd.f32 %v354, %v646
  %v648 = vpop.f32.mrf.mxu0
  %v649 = vpop.f32.mrf.mxu0
  %v650 = vadd.f32 %v357, %v649
  %v651 = vpop.f32.mrf.mxu0
  %652 = vmatprep.mubr.bf16.mxu0 0
  %653 = vmatmul.mubr.bf16.gmra.mxu0 %v549
  %v654 = vpop.f32.mrf.mxu0
  %v655 = vadd.f32 %v362, %v654
  %v656 = vpop.f32.mrf.mxu0
  %v657 = vpop.f32.mrf.mxu0
  %v658 = vadd.f32 %v365, %v657
  %v659 = vpop.f32.mrf.mxu0
  %660 = vmatprep.mubr.bf16.mxu0 0
  %661 = vmatmul.mubr.bf16.gmra.mxu0 %v552
  %v662 = vpop.f32.mrf.mxu0
  %v663 = vadd.f32 %v370, %v662
  %v664 = vpop.f32.mrf.mxu0
  %v665 = vpop.f32.mrf.mxu0
  %v666 = vadd.f32 %v373, %v665
  %v667 = vpop.f32.mrf.mxu0
  %668 = vmatprep.mubr.bf16.mxu0 0
  %669 = vmatmul.mubr.bf16.gmra.mxu0 %v555
  %v670 = vpop.f32.mrf.mxu0
  %v671 = vadd.f32 %v378, %v670
  %v672 = vpop.f32.mrf.mxu0
  %v673 = vpop.f32.mrf.mxu0
  %v674 = vadd.f32 %v381, %v673
  %v675 = vpop.f32.mrf.mxu0
  %676 = vmatprep.mubr.bf16.mxu0 0
  %677 = vmatmul.mubr.bf16.gmra.mxu0 %v558
  %v678 = vpop.f32.mrf.mxu0
  %v679 = vadd.f32 %v386, %v678
  %v680 = vpop.f32.mrf.mxu0
  %v681 = vpop.f32.mrf.mxu0
  %v682 = vadd.f32 %v389, %v681
  %v683 = vpop.f32.mrf.mxu0
  %684 = vmatprep.mubr.bf16.mxu0 0
  %685 = vmatmul.mubr.bf16.gmra.mxu0 %v561
  %v686 = vpop.f32.mrf.mxu0
  %v687 = vadd.f32 %v394, %v686
  %v688 = vpop.f32.mrf.mxu0
  %v689 = vpop.f32.mrf.mxu0
  %v690 = vadd.f32 %v397, %v689
  %v691 = vpop.f32.mrf.mxu0
  %692 = vmatprep.mubr.bf16.mxu0 0
  %693 = vmatmul.mubr.bf16.gmra.mxu0 %v564
  %v694 = vpop.f32.mrf.mxu0
  %v695 = vadd.f32 %v402, %v694
  %v696 = vpop.f32.mrf.mxu0
  %v697 = vpop.f32.mrf.mxu0
  %v698 = vadd.f32 %v405, %v697
  %v699 = vpop.f32.mrf.mxu0
  %700 = vmatprep.mubr.bf16.mxu0 0
  %701 = vmatmul.mubr.bf16.gmra.mxu0 %v567
  %v702 = vpop.f32.mrf.mxu0
  %v703 = vadd.f32 %v410, %v702
  %v704 = vpop.f32.mrf.mxu0
  %v705 = vpop.f32.mrf.mxu0
  %v706 = vadd.f32 %v413, %v705
  %v707 = vpop.f32.mrf.mxu0
  %708 = vmatprep.mubr.bf16.mxu0 0
  %709 = vmatmul.mubr.bf16.gmra.mxu0 %v570
  %v710 = vpop.f32.mrf.mxu0
  %v711 = vadd.f32 %v418, %v710
  %v712 = vpop.f32.mrf.mxu0
  %v713 = vpop.f32.mrf.mxu0
  %v714 = vadd.f32 %v421, %v713
  %v715 = vpop.f32.mrf.mxu0
  %716 = vdwg.mxu0
  %s717 = scalar_lea.vmem %s1, 288
  %v718 = vld [vmem:[%s717] sm:$0xf]
  %v719 = vld [vmem:[%s717 + $0x4] sm:$0xf]
  %v720 = vld [vmem:[%s717 + $0x8] sm:$0xf]
  %v721 = vld [vmem:[%s717 + $0xc] sm:$0xf]
  %v722 = vld [vmem:[%s717 + $0x10] sm:$0xf]
  %v723 = vld [vmem:[%s717 + $0x14] sm:$0xf]
  %v724 = vld [vmem:[%s717 + $0x18] sm:$0xf]
  %v725 = vld [vmem:[%s717 + $0x1c] sm:$0xf]
  %v726 = vld [vmem:[%s717 + $0x20] sm:$0xf]
  %v727 = vld [vmem:[%s717 + $0x24] sm:$0xf]
  %v728 = vld [vmem:[%s717 + $0x28] sm:$0xf]
  %v729 = vld [vmem:[%s717 + $0x2c] sm:$0xf]
  %v742 = vunpack.c.l.b16 %v718
  %v743 = vunpack.c.l.b16 %v719
  %v744 = vunpack.c.l.b16 %v720
  %v745 = vunpack.c.l.b16 %v721
  %v746 = vunpack.c.l.b16 %v722
  %v747 = vunpack.c.l.b16 %v723
  %v748 = vunpack.c.l.b16 %v724
  %v749 = vunpack.c.l.b16 %v725
  %v750 = vunpack.c.l.b16 %v726
  %v751 = vunpack.c.l.b16 %v727
  %v752 = vunpack.c.l.b16 %v728
  %v753 = vunpack.c.l.b16 %v729
  %v754 = vpack.c.b16 %v743, %v742
  %v755 = vpack.c.b16 %v745, %v744
  %v756 = vpack.c.b16 %v747, %v746
  %v757 = vpack.c.b16 %v749, %v748
  %v758 = vpack.c.b16 %v751, %v750
  %v759 = vpack.c.b16 %v753, %v752
  %766 = vmatprep.subr.bf16.mxu0 0
  %767 = vmatpush1.bf16.msra.mxu0 0
  %768 = vmatprep.subr.bf16.mxu0 0
  %769 = vmatpush1.bf16.msra.mxu0 0
  %770 = vmatprep.subr.bf16.mxu0 0
  %771 = vmatpush1.bf16.msra.mxu0 %v759
  %772 = vmatprep.subr.bf16.mxu0 0
  %773 = vmatpush1.bf16.msra.mxu0 %v758
  %774 = vmatprep.subr.bf16.mxu0 0
  %775 = vmatpush1.bf16.msra.mxu0 %v757
  %776 = vmatprep.subr.bf16.mxu0 0
  %777 = vmatpush1.bf16.msra.mxu0 %v756
  %778 = vmatprep.subr.bf16.mxu0 0
  %779 = vmatpush1.bf16.msra.mxu0 %v755
  %780 = vmatprep.subr.bf16.mxu0 0
  %781 = vmatpush1.bf16.msra.mxu0 %v754
  %782 = vmatprep.subr.bf16.mxu0 0
  %783 = vmatpush2.bf16.msra.mxu0 0
  %784 = vmatprep.subr.bf16.mxu0 0
  %785 = vmatpush2.bf16.msra.mxu0 0
  %786 = vmatprep.subr.bf16.mxu0 0
  %787 = vmatpush2.bf16.msra.mxu0 0
  %788 = vmatprep.subr.bf16.mxu0 0
  %789 = vmatpush2.bf16.msra.mxu0 0
  %790 = vmatprep.subr.bf16.mxu0 0
  %791 = vmatpush2.bf16.msra.mxu0 0
  %792 = vmatprep.subr.bf16.mxu0 0
  %793 = vmatpush2.bf16.msra.mxu0 0
  %794 = vmatprep.subr.bf16.mxu0 0
  %795 = vmatpush2.bf16.msra.mxu0 0
  %796 = vmatprep.subr.bf16.mxu0 0
  %797 = vmatpush2.bf16.msra.mxu0 0
  %798 = vmatprep.mubr.bf16.mxu0 0
  %799 = vmatmul.mubr.bf16.gmra.mxu0 %v238
  %v800 = vpop.f32.mrf.mxu0
  %v801 = vadd.f32 0.0, %v800
  %v802 = vpop.f32.mrf.mxu0
  %v803 = vpop.f32.mrf.mxu0
  %v804 = vadd.f32 0.0, %v803
  %v805 = vpop.f32.mrf.mxu0
  %806 = vmatprep.mubr.bf16.mxu0 0
  %807 = vmatmul.mubr.bf16.gmra.mxu0 %v241
  %v808 = vpop.f32.mrf.mxu0
  %v809 = vadd.f32 0.0, %v808
  %v810 = vpop.f32.mrf.mxu0
  %v811 = vpop.f32.mrf.mxu0
  %v812 = vadd.f32 0.0, %v811
  %v813 = vpop.f32.mrf.mxu0
  %814 = vmatprep.mubr.bf16.mxu0 0
  %815 = vmatmul.mubr.bf16.gmra.mxu0 %v244
  %v816 = vpop.f32.mrf.mxu0
  %v817 = vadd.f32 0.0, %v816
  %v818 = vpop.f32.mrf.mxu0
  %v819 = vpop.f32.mrf.mxu0
  %v820 = vadd.f32 0.0, %v819
  %v821 = vpop.f32.mrf.mxu0
  %822 = vmatprep.mubr.bf16.mxu0 0
  %823 = vmatmul.mubr.bf16.gmra.mxu0 %v247
  %v824 = vpop.f32.mrf.mxu0
  %v825 = vadd.f32 0.0, %v824
  %v826 = vpop.f32.mrf.mxu0
  %v827 = vpop.f32.mrf.mxu0
  %v828 = vadd.f32 0.0, %v827
  %v829 = vpop.f32.mrf.mxu0
  %830 = vmatprep.mubr.bf16.mxu0 0
  %831 = vmatmul.mubr.bf16.gmra.mxu0 %v250
  %v832 = vpop.f32.mrf.mxu0
  %v833 = vadd.f32 0.0, %v832
  %v834 = vpop.f32.mrf.mxu0
  %v835 = vpop.f32.mrf.mxu0
  %v836 = vadd.f32 0.0, %v835
  %v837 = vpop.f32.mrf.mxu0
  %838 = vmatprep.mubr.bf16.mxu0 0
  %839 = vmatmul.mubr.bf16.gmra.mxu0 %v253
  %v840 = vpop.f32.mrf.mxu0
  %v841 = vadd.f32 0.0, %v840
  %v842 = vpop.f32.mrf.mxu0
  %v843 = vpop.f32.mrf.mxu0
  %v844 = vadd.f32 0.0, %v843
  %v845 = vpop.f32.mrf.mxu0
  %846 = vmatprep.mubr.bf16.mxu0 0
  %847 = vmatmul.mubr.bf16.gmra.mxu0 %v256
  %v848 = vpop.f32.mrf.mxu0
  %v849 = vadd.f32 0.0, %v848
  %v850 = vpop.f32.mrf.mxu0
  %v851 = vpop.f32.mrf.mxu0
  %v852 = vadd.f32 0.0, %v851
  %v853 = vpop.f32.mrf.mxu0
  %854 = vmatprep.mubr.bf16.mxu0 0
  %855 = vmatmul.mubr.bf16.gmra.mxu0 %v259
  %v856 = vpop.f32.mrf.mxu0
  %v857 = vadd.f32 0.0, %v856
  %v858 = vpop.f32.mrf.mxu0
  %v859 = vpop.f32.mrf.mxu0
  %v860 = vadd.f32 0.0, %v859
  %v861 = vpop.f32.mrf.mxu0
  %862 = vmatprep.mubr.bf16.mxu0 0
  %863 = vmatmul.mubr.bf16.gmra.mxu0 %v262
  %v864 = vpop.f32.mrf.mxu0
  %v865 = vadd.f32 0.0, %v864
  %v866 = vpop.f32.mrf.mxu0
  %v867 = vpop.f32.mrf.mxu0
  %v868 = vadd.f32 0.0, %v867
  %v869 = vpop.f32.mrf.mxu0
  %870 = vmatprep.mubr.bf16.mxu0 0
  %871 = vmatmul.mubr.bf16.gmra.mxu0 %v265
  %v872 = vpop.f32.mrf.mxu0
  %v873 = vadd.f32 0.0, %v872
  %v874 = vpop.f32.mrf.mxu0
  %v875 = vpop.f32.mrf.mxu0
  %v876 = vadd.f32 0.0, %v875
  %v877 = vpop.f32.mrf.mxu0
  %878 = vmatprep.mubr.bf16.mxu0 0
  %879 = vmatmul.mubr.bf16.gmra.mxu0 %v268
  %v880 = vpop.f32.mrf.mxu0
  %v881 = vadd.f32 0.0, %v880
  %v882 = vpop.f32.mrf.mxu0
  %v883 = vpop.f32.mrf.mxu0
  %v884 = vadd.f32 0.0, %v883
  %v885 = vpop.f32.mrf.mxu0
  %886 = vmatprep.mubr.bf16.mxu0 0
  %887 = vmatmul.mubr.bf16.gmra.mxu0 %v271
  %v888 = vpop.f32.mrf.mxu0
  %v889 = vadd.f32 0.0, %v888
  %v890 = vpop.f32.mrf.mxu0
  %v891 = vpop.f32.mrf.mxu0
  %v892 = vadd.f32 0.0, %v891
  %v893 = vpop.f32.mrf.mxu0
  %894 = vmatprep.mubr.bf16.mxu0 0
  %895 = vmatmul.mubr.bf16.gmra.mxu0 %v274
  %v896 = vpop.f32.mrf.mxu0
  %v897 = vadd.f32 0.0, %v896
  %v898 = vpop.f32.mrf.mxu0
  %v899 = vpop.f32.mrf.mxu0
  %v900 = vadd.f32 0.0, %v899
  %v901 = vpop.f32.mrf.mxu0
  %902 = vmatprep.mubr.bf16.mxu0 0
  %903 = vmatmul.mubr.bf16.gmra.mxu0 %v277
  %v904 = vpop.f32.mrf.mxu0
  %v905 = vadd.f32 0.0, %v904
  %v906 = vpop.f32.mrf.mxu0
  %v907 = vpop.f32.mrf.mxu0
  %v908 = vadd.f32 0.0, %v907
  %v909 = vpop.f32.mrf.mxu0
  %910 = vdwg.mxu0
  %v923 = vunpack.c.l.b16 %v105
  %v924 = vunpack.c.l.b16 %v106
  %v925 = vunpack.c.l.b16 %v107
  %v926 = vunpack.c.l.b16 %v108
  %v927 = vunpack.c.l.b16 %v109
  %v928 = vunpack.c.l.b16 %v110
  %v929 = vunpack.c.l.b16 %v111
  %v930 = vunpack.c.l.b16 %v112
  %v931 = vunpack.c.l.b16 %v113
  %v932 = vunpack.c.l.b16 %v114
  %v933 = vunpack.c.l.b16 %v115
  %v934 = vunpack.c.l.b16 %v116
  %v935 = vpack.c.b16 %v924, %v923
  %v936 = vpack.c.b16 %v926, %v925
  %v937 = vpack.c.b16 %v928, %v927
  %v938 = vpack.c.b16 %v930, %v929
  %v939 = vpack.c.b16 %v932, %v931
  %v940 = vpack.c.b16 %v934, %v933
  %947 = vmatprep.subr.bf16.mxu0 0
  %948 = vmatpush1.bf16.msra.mxu0 0
  %949 = vmatprep.subr.bf16.mxu0 0
  %950 = vmatpush1.bf16.msra.mxu0 0
  %951 = vmatprep.subr.bf16.mxu0 0
  %952 = vmatpush1.bf16.msra.mxu0 %v940
  %953 = vmatprep.subr.bf16.mxu0 0
  %954 = vmatpush1.bf16.msra.mxu0 %v939
  %955 = vmatprep.subr.bf16.mxu0 0
  %956 = vmatpush1.bf16.msra.mxu0 %v938
  %957 = vmatprep.subr.bf16.mxu0 0
  %958 = vmatpush1.bf16.msra.mxu0 %v937
  %959 = vmatprep.subr.bf16.mxu0 0
  %960 = vmatpush1.bf16.msra.mxu0 %v936
  %961 = vmatprep.subr.bf16.mxu0 0
  %962 = vmatpush1.bf16.msra.mxu0 %v935
  %963 = vmatprep.subr.bf16.mxu0 0
  %964 = vmatpush2.bf16.msra.mxu0 0
  %965 = vmatprep.subr.bf16.mxu0 0
  %966 = vmatpush2.bf16.msra.mxu0 0
  %967 = vmatprep.subr.bf16.mxu0 0
  %968 = vmatpush2.bf16.msra.mxu0 0
  %969 = vmatprep.subr.bf16.mxu0 0
  %970 = vmatpush2.bf16.msra.mxu0 0
  %971 = vmatprep.subr.bf16.mxu0 0
  %972 = vmatpush2.bf16.msra.mxu0 0
  %973 = vmatprep.subr.bf16.mxu0 0
  %974 = vmatpush2.bf16.msra.mxu0 0
  %975 = vmatprep.subr.bf16.mxu0 0
  %976 = vmatpush2.bf16.msra.mxu0 0
  %977 = vmatprep.subr.bf16.mxu0 0
  %978 = vmatpush2.bf16.msra.mxu0 0
  %979 = vmatprep.mubr.bf16.mxu0 0
  %980 = vmatmul.mubr.bf16.gmra.mxu0 %v531
  %v981 = vpop.f32.mrf.mxu0
  %v982 = vadd.f32 %v801, %v981
  %v983 = vpop.f32.mrf.mxu0
  %v984 = vpop.f32.mrf.mxu0
  %v985 = vadd.f32 %v804, %v984
  %v986 = vpop.f32.mrf.mxu0
  %987 = vmatprep.mubr.bf16.mxu0 0
  %988 = vmatmul.mubr.bf16.gmra.mxu0 %v534
  %v989 = vpop.f32.mrf.mxu0
  %v990 = vadd.f32 %v809, %v989
  %v991 = vpop.f32.mrf.mxu0
  %v992 = vpop.f32.mrf.mxu0
  %v993 = vadd.f32 %v812, %v992
  %v994 = vpop.f32.mrf.mxu0
  %995 = vmatprep.mubr.bf16.mxu0 0
  %996 = vmatmul.mubr.bf16.gmra.mxu0 %v537
  %v997 = vpop.f32.mrf.mxu0
  %v998 = vadd.f32 %v817, %v997
  %v999 = vpop.f32.mrf.mxu0
  %v1000 = vpop.f32.mrf.mxu0
  %v1001 = vadd.f32 %v820, %v1000
  %v1002 = vpop.f32.mrf.mxu0
  %1003 = vmatprep.mubr.bf16.mxu0 0
  %1004 = vmatmul.mubr.bf16.gmra.mxu0 %v540
  %v1005 = vpop.f32.mrf.mxu0
  %v1006 = vadd.f32 %v825, %v1005
  %v1007 = vpop.f32.mrf.mxu0
  %v1008 = vpop.f32.mrf.mxu0
  %v1009 = vadd.f32 %v828, %v1008
  %v1010 = vpop.f32.mrf.mxu0
  %1011 = vmatprep.mubr.bf16.mxu0 0
  %1012 = vmatmul.mubr.bf16.gmra.mxu0 %v543
  %v1013 = vpop.f32.mrf.mxu0
  %v1014 = vadd.f32 %v833, %v1013
  %v1015 = vpop.f32.mrf.mxu0
  %v1016 = vpop.f32.mrf.mxu0
  %v1017 = vadd.f32 %v836, %v1016
  %v1018 = vpop.f32.mrf.mxu0
  %1019 = vmatprep.mubr.bf16.mxu0 0
  %1020 = vmatmul.mubr.bf16.gmra.mxu0 %v546
  %v1021 = vpop.f32.mrf.mxu0
  %v1022 = vadd.f32 %v841, %v1021
  %v1023 = vpop.f32.mrf.mxu0
  %v1024 = vpop.f32.mrf.mxu0
  %v1025 = vadd.f32 %v844, %v1024
  %v1026 = vpop.f32.mrf.mxu0
  %1027 = vmatprep.mubr.bf16.mxu0 0
  %1028 = vmatmul.mubr.bf16.gmra.mxu0 %v549
  %v1029 = vpop.f32.mrf.mxu0
  %v1030 = vadd.f32 %v849, %v1029
  %v1031 = vpop.f32.mrf.mxu0
  %v1032 = vpop.f32.mrf.mxu0
  %v1033 = vadd.f32 %v852, %v1032
  %v1034 = vpop.f32.mrf.mxu0
  %1035 = vmatprep.mubr.bf16.mxu0 0
  %1036 = vmatmul.mubr.bf16.gmra.mxu0 %v552
  %v1037 = vpop.f32.mrf.mxu0
  %v1038 = vadd.f32 %v857, %v1037
  %v1039 = vpop.f32.mrf.mxu0
  %v1040 = vpop.f32.mrf.mxu0
  %v1041 = vadd.f32 %v860, %v1040
  %v1042 = vpop.f32.mrf.mxu0
  %1043 = vmatprep.mubr.bf16.mxu0 0
  %1044 = vmatmul.mubr.bf16.gmra.mxu0 %v555
  %v1045 = vpop.f32.mrf.mxu0
  %v1046 = vadd.f32 %v865, %v1045
  %v1047 = vpop.f32.mrf.mxu0
  %v1048 = vpop.f32.mrf.mxu0
  %v1049 = vadd.f32 %v868, %v1048
  %v1050 = vpop.f32.mrf.mxu0
  %1051 = vmatprep.mubr.bf16.mxu0 0
  %1052 = vmatmul.mubr.bf16.gmra.mxu0 %v558
  %v1053 = vpop.f32.mrf.mxu0
  %v1054 = vadd.f32 %v873, %v1053
  %v1055 = vpop.f32.mrf.mxu0
  %v1056 = vpop.f32.mrf.mxu0
  %v1057 = vadd.f32 %v876, %v1056
  %v1058 = vpop.f32.mrf.mxu0
  %1059 = vmatprep.mubr.bf16.mxu0 0
  %1060 = vmatmul.mubr.bf16.gmra.mxu0 %v561
  %v1061 = vpop.f32.mrf.mxu0
  %v1062 = vadd.f32 %v881, %v1061
  %v1063 = vpop.f32.mrf.mxu0
  %v1064 = vpop.f32.mrf.mxu0
  %v1065 = vadd.f32 %v884, %v1064
  %v1066 = vpop.f32.mrf.mxu0
  %1067 = vmatprep.mubr.bf16.mxu0 0
  %1068 = vmatmul.mubr.bf16.gmra.mxu0 %v564
  %v1069 = vpop.f32.mrf.mxu0
  %v1070 = vadd.f32 %v889, %v1069
  %v1071 = vpop.f32.mrf.mxu0
  %v1072 = vpop.f32.mrf.mxu0
  %v1073 = vadd.f32 %v892, %v1072
  %v1074 = vpop.f32.mrf.mxu0
  %1075 = vmatprep.mubr.bf16.mxu0 0
  %1076 = vmatmul.mubr.bf16.gmra.mxu0 %v567
  %v1077 = vpop.f32.mrf.mxu0
  %v1078 = vadd.f32 %v897, %v1077
  %v1079 = vpop.f32.mrf.mxu0
  %v1080 = vpop.f32.mrf.mxu0
  %v1081 = vadd.f32 %v900, %v1080
  %v1082 = vpop.f32.mrf.mxu0
  %1083 = vmatprep.mubr.bf16.mxu0 0
  %1084 = vmatmul.mubr.bf16.gmra.mxu0 %v570
  %v1085 = vpop.f32.mrf.mxu0
  %v1086 = vadd.f32 %v905, %v1085
  %v1087 = vpop.f32.mrf.mxu0
  %v1088 = vpop.f32.mrf.mxu0
  %v1089 = vadd.f32 %v908, %v1088
  %v1090 = vpop.f32.mrf.mxu0
  %1091 = vdwg.mxu0
  %s1092 = scalar_lea.vmem %s1, 96
  %v1093 = vld [vmem:[%s1092] sm:$0xf]
  %v1094 = vld [vmem:[%s1092 + $0x4] sm:$0xf]
  %v1095 = vld [vmem:[%s1092 + $0x8] sm:$0xf]
  %v1096 = vld [vmem:[%s1092 + $0xc] sm:$0xf]
  %v1097 = vld [vmem:[%s1092 + $0x10] sm:$0xf]
  %v1098 = vld [vmem:[%s1092 + $0x14] sm:$0xf]
  %v1099 = vld [vmem:[%s1092 + $0x18] sm:$0xf]
  %v1100 = vld [vmem:[%s1092 + $0x1c] sm:$0xf]
  %v1101 = vld [vmem:[%s1092 + $0x20] sm:$0xf]
  %v1102 = vld [vmem:[%s1092 + $0x24] sm:$0xf]
  %v1103 = vld [vmem:[%s1092 + $0x28] sm:$0xf]
  %v1104 = vld [vmem:[%s1092 + $0x2c] sm:$0xf]
  %v1107 = vunpack.c.l.b16 %v84
  %v1108 = vunpack.c.l.b16 %v85
  %v1109 = vpack.c.b16 %v1108, %v1107
  %v1122 = vunpack.c.l.b16 %v1093
  %v1123 = vunpack.c.l.b16 %v1094
  %v1124 = vunpack.c.l.b16 %v1095
  %v1125 = vunpack.c.l.b16 %v1096
  %v1126 = vunpack.c.l.b16 %v1097
  %v1127 = vunpack.c.l.b16 %v1098
  %v1128 = vunpack.c.l.b16 %v1099
  %v1129 = vunpack.c.l.b16 %v1100
  %v1130 = vunpack.c.l.b16 %v1101
  %v1131 = vunpack.c.l.b16 %v1102
  %v1132 = vunpack.c.l.b16 %v1103
  %v1133 = vunpack.c.l.b16 %v1104
  %v1134 = vpack.c.b16 %v1123, %v1122
  %v1135 = vpack.c.b16 %v1125, %v1124
  %v1136 = vpack.c.b16 %v1127, %v1126
  %v1137 = vpack.c.b16 %v1129, %v1128
  %v1138 = vpack.c.b16 %v1131, %v1130
  %v1139 = vpack.c.b16 %v1133, %v1132
  %v1147 = vsel %vm236, %v1109, 0
  %1149 = vmatprep.subr.bf16.mxu0 0
  %1150 = vmatpush1.bf16.msra.mxu0 0
  %1151 = vmatprep.subr.bf16.mxu0 0
  %1152 = vmatpush1.bf16.msra.mxu0 0
  %1153 = vmatprep.subr.bf16.mxu0 0
  %1154 = vmatpush1.bf16.msra.mxu0 %v1139
  %1155 = vmatprep.subr.bf16.mxu0 0
  %1156 = vmatpush1.bf16.msra.mxu0 %v1138
  %1157 = vmatprep.subr.bf16.mxu0 0
  %1158 = vmatpush1.bf16.msra.mxu0 %v1137
  %1159 = vmatprep.subr.bf16.mxu0 0
  %1160 = vmatpush1.bf16.msra.mxu0 %v1136
  %1161 = vmatprep.subr.bf16.mxu0 0
  %1162 = vmatpush1.bf16.msra.mxu0 %v1135
  %1163 = vmatprep.subr.bf16.mxu0 0
  %1164 = vmatpush1.bf16.msra.mxu0 %v1134
  %1165 = vmatprep.subr.bf16.mxu0 0
  %1166 = vmatpush2.bf16.msra.mxu0 0
  %1167 = vmatprep.subr.bf16.mxu0 0
  %1168 = vmatpush2.bf16.msra.mxu0 0
  %1169 = vmatprep.subr.bf16.mxu0 0
  %1170 = vmatpush2.bf16.msra.mxu0 0
  %1171 = vmatprep.subr.bf16.mxu0 0
  %1172 = vmatpush2.bf16.msra.mxu0 0
  %1173 = vmatprep.subr.bf16.mxu0 0
  %1174 = vmatpush2.bf16.msra.mxu0 0
  %1175 = vmatprep.subr.bf16.mxu0 0
  %1176 = vmatpush2.bf16.msra.mxu0 0
  %1177 = vmatprep.subr.bf16.mxu0 0
  %1178 = vmatpush2.bf16.msra.mxu0 0
  %1179 = vmatprep.subr.bf16.mxu0 0
  %1180 = vmatpush2.bf16.msra.mxu0 0
  %1181 = vmatprep.mubr.bf16.mxu0 0
  %1182 = vmatmul.mubr.bf16.gmra.mxu0 %v534
  %v1183 = vpop.f32.mrf.mxu0
  %v1184 = vadd.f32 0.0, %v1183
  %v1185 = vpop.f32.mrf.mxu0
  %v1186 = vpop.f32.mrf.mxu0
  %v1187 = vadd.f32 0.0, %v1186
  %v1188 = vpop.f32.mrf.mxu0
  %1189 = vmatprep.mubr.bf16.mxu0 0
  %1190 = vmatmul.mubr.bf16.gmra.mxu0 %v537
  %v1191 = vpop.f32.mrf.mxu0
  %v1192 = vadd.f32 0.0, %v1191
  %v1193 = vpop.f32.mrf.mxu0
  %v1194 = vpop.f32.mrf.mxu0
  %v1195 = vadd.f32 0.0, %v1194
  %v1196 = vpop.f32.mrf.mxu0
  %1197 = vmatprep.mubr.bf16.mxu0 0
  %1198 = vmatmul.mubr.bf16.gmra.mxu0 %v540
  %v1199 = vpop.f32.mrf.mxu0
  %v1200 = vadd.f32 0.0, %v1199
  %v1201 = vpop.f32.mrf.mxu0
  %v1202 = vpop.f32.mrf.mxu0
  %v1203 = vadd.f32 0.0, %v1202
  %v1204 = vpop.f32.mrf.mxu0
  %1205 = vmatprep.mubr.bf16.mxu0 0
  %1206 = vmatmul.mubr.bf16.gmra.mxu0 %v543
  %v1207 = vpop.f32.mrf.mxu0
  %v1208 = vadd.f32 0.0, %v1207
  %v1209 = vpop.f32.mrf.mxu0
  %v1210 = vpop.f32.mrf.mxu0
  %v1211 = vadd.f32 0.0, %v1210
  %v1212 = vpop.f32.mrf.mxu0
  %1213 = vmatprep.mubr.bf16.mxu0 0
  %1214 = vmatmul.mubr.bf16.gmra.mxu0 %v546
  %v1215 = vpop.f32.mrf.mxu0
  %v1216 = vadd.f32 0.0, %v1215
  %v1217 = vpop.f32.mrf.mxu0
  %v1218 = vpop.f32.mrf.mxu0
  %v1219 = vadd.f32 0.0, %v1218
  %v1220 = vpop.f32.mrf.mxu0
  %1221 = vmatprep.mubr.bf16.mxu0 0
  %1222 = vmatmul.mubr.bf16.gmra.mxu0 %v549
  %v1223 = vpop.f32.mrf.mxu0
  %v1224 = vadd.f32 0.0, %v1223
  %v1225 = vpop.f32.mrf.mxu0
  %v1226 = vpop.f32.mrf.mxu0
  %v1227 = vadd.f32 0.0, %v1226
  %v1228 = vpop.f32.mrf.mxu0
  %1229 = vmatprep.mubr.bf16.mxu0 0
  %1230 = vmatmul.mubr.bf16.gmra.mxu0 %v552
  %v1231 = vpop.f32.mrf.mxu0
  %v1232 = vadd.f32 0.0, %v1231
  %v1233 = vpop.f32.mrf.mxu0
  %v1234 = vpop.f32.mrf.mxu0
  %v1235 = vadd.f32 0.0, %v1234
  %v1236 = vpop.f32.mrf.mxu0
  %1237 = vmatprep.mubr.bf16.mxu0 0
  %1238 = vmatmul.mubr.bf16.gmra.mxu0 %v555
  %v1239 = vpop.f32.mrf.mxu0
  %v1240 = vadd.f32 0.0, %v1239
  %v1241 = vpop.f32.mrf.mxu0
  %v1242 = vpop.f32.mrf.mxu0
  %v1243 = vadd.f32 0.0, %v1242
  %v1244 = vpop.f32.mrf.mxu0
  %1245 = vmatprep.mubr.bf16.mxu0 0
  %1246 = vmatmul.mubr.bf16.gmra.mxu0 %v558
  %v1247 = vpop.f32.mrf.mxu0
  %v1248 = vadd.f32 0.0, %v1247
  %v1249 = vpop.f32.mrf.mxu0
  %v1250 = vpop.f32.mrf.mxu0
  %v1251 = vadd.f32 0.0, %v1250
  %v1252 = vpop.f32.mrf.mxu0
  %1253 = vmatprep.mubr.bf16.mxu0 0
  %1254 = vmatmul.mubr.bf16.gmra.mxu0 %v561
  %v1255 = vpop.f32.mrf.mxu0
  %v1256 = vadd.f32 0.0, %v1255
  %v1257 = vpop.f32.mrf.mxu0
  %v1258 = vpop.f32.mrf.mxu0
  %v1259 = vadd.f32 0.0, %v1258
  %v1260 = vpop.f32.mrf.mxu0
  %1261 = vmatprep.mubr.bf16.mxu0 0
  %1262 = vmatmul.mubr.bf16.gmra.mxu0 %v564
  %v1263 = vpop.f32.mrf.mxu0
  %v1264 = vadd.f32 0.0, %v1263
  %v1265 = vpop.f32.mrf.mxu0
  %v1266 = vpop.f32.mrf.mxu0
  %v1267 = vadd.f32 0.0, %v1266
  %v1268 = vpop.f32.mrf.mxu0
  %1269 = vmatprep.mubr.bf16.mxu0 0
  %1270 = vmatmul.mubr.bf16.gmra.mxu0 %v567
  %v1271 = vpop.f32.mrf.mxu0
  %v1272 = vadd.f32 0.0, %v1271
  %v1273 = vpop.f32.mrf.mxu0
  %v1274 = vpop.f32.mrf.mxu0
  %v1275 = vadd.f32 0.0, %v1274
  %v1276 = vpop.f32.mrf.mxu0
  %1277 = vmatprep.mubr.bf16.mxu0 0
  %1278 = vmatmul.mubr.bf16.gmra.mxu0 %v570
  %v1279 = vpop.f32.mrf.mxu0
  %v1280 = vadd.f32 0.0, %v1279
  %v1281 = vpop.f32.mrf.mxu0
  %v1282 = vpop.f32.mrf.mxu0
  %v1283 = vadd.f32 0.0, %v1282
  %v1284 = vpop.f32.mrf.mxu0
  %1285 = vmatprep.mubr.bf16.mxu0 0
  %1286 = vmatmul.mubr.bf16.gmra.mxu0 %v1147
  %v1287 = vpop.f32.mrf.mxu0
  %v1288 = vadd.f32 0.0, %v1287
  %v1289 = vpop.f32.mrf.mxu0
  %v1290 = vpop.f32.mrf.mxu0
  %v1291 = vadd.f32 0.0, %v1290
  %v1292 = vpop.f32.mrf.mxu0
  %1293 = vdwg.mxu0
  %v1294 = vadd.f32 %v607, %v1184
  %v1295 = vadd.f32 %v610, %v1187
  %v1296 = vadd.f32 %v615, %v1192
  %v1297 = vadd.f32 %v618, %v1195
  %v1298 = vadd.f32 %v623, %v1200
  %v1299 = vadd.f32 %v626, %v1203
  %v1300 = vadd.f32 %v631, %v1208
  %v1301 = vadd.f32 %v634, %v1211
  %v1302 = vadd.f32 %v639, %v1216
  %v1303 = vadd.f32 %v642, %v1219
  %v1304 = vadd.f32 %v647, %v1224
  %v1305 = vadd.f32 %v650, %v1227
  %v1306 = vadd.f32 %v655, %v1232
  %v1307 = vadd.f32 %v658, %v1235
  %v1308 = vadd.f32 %v663, %v1240
  %v1309 = vadd.f32 %v666, %v1243
  %v1310 = vadd.f32 %v671, %v1248
  %v1311 = vadd.f32 %v674, %v1251
  %v1312 = vadd.f32 %v679, %v1256
  %v1313 = vadd.f32 %v682, %v1259
  %v1314 = vadd.f32 %v687, %v1264
  %v1315 = vadd.f32 %v690, %v1267
  %v1316 = vadd.f32 %v695, %v1272
  %v1317 = vadd.f32 %v698, %v1275
  %v1318 = vadd.f32 %v703, %v1280
  %v1319 = vadd.f32 %v706, %v1283
  %v1320 = vadd.f32 %v711, %v1288
  %v1321 = vadd.f32 %v714, %v1291
  %s1322 = scalar_lea.vmem %s1, 336
  %v1323 = vld [vmem:[%s1322] sm:$0xf]
  %v1324 = vld [vmem:[%s1322 + $0x4] sm:$0xf]
  %v1325 = vld [vmem:[%s1322 + $0x8] sm:$0xf]
  %v1326 = vld [vmem:[%s1322 + $0xc] sm:$0xf]
  %v1327 = vld [vmem:[%s1322 + $0x10] sm:$0xf]
  %v1328 = vld [vmem:[%s1322 + $0x14] sm:$0xf]
  %v1329 = vld [vmem:[%s1322 + $0x18] sm:$0xf]
  %v1330 = vld [vmem:[%s1322 + $0x1c] sm:$0xf]
  %v1331 = vld [vmem:[%s1322 + $0x20] sm:$0xf]
  %v1332 = vld [vmem:[%s1322 + $0x24] sm:$0xf]
  %v1333 = vld [vmem:[%s1322 + $0x28] sm:$0xf]
  %v1334 = vld [vmem:[%s1322 + $0x2c] sm:$0xf]
  %v1347 = vunpack.c.l.b16 %v1323
  %v1348 = vunpack.c.l.b16 %v1324
  %v1349 = vunpack.c.l.b16 %v1325
  %v1350 = vunpack.c.l.b16 %v1326
  %v1351 = vunpack.c.l.b16 %v1327
  %v1352 = vunpack.c.l.b16 %v1328
  %v1353 = vunpack.c.l.b16 %v1329
  %v1354 = vunpack.c.l.b16 %v1330
  %v1355 = vunpack.c.l.b16 %v1331
  %v1356 = vunpack.c.l.b16 %v1332
  %v1357 = vunpack.c.l.b16 %v1333
  %v1358 = vunpack.c.l.b16 %v1334
  %v1359 = vpack.c.b16 %v1348, %v1347
  %v1360 = vpack.c.b16 %v1350, %v1349
  %v1361 = vpack.c.b16 %v1352, %v1351
  %v1362 = vpack.c.b16 %v1354, %v1353
  %v1363 = vpack.c.b16 %v1356, %v1355
  %v1364 = vpack.c.b16 %v1358, %v1357
  %1371 = vmatprep.subr.bf16.mxu0 0
  %1372 = vmatpush1.bf16.msra.mxu0 0
  %1373 = vmatprep.subr.bf16.mxu0 0
  %1374 = vmatpush1.bf16.msra.mxu0 0
  %1375 = vmatprep.subr.bf16.mxu0 0
  %1376 = vmatpush1.bf16.msra.mxu0 %v1364
  %1377 = vmatprep.subr.bf16.mxu0 0
  %1378 = vmatpush1.bf16.msra.mxu0 %v1363
  %1379 = vmatprep.subr.bf16.mxu0 0
  %1380 = vmatpush1.bf16.msra.mxu0 %v1362
  %1381 = vmatprep.subr.bf16.mxu0 0
  %1382 = vmatpush1.bf16.msra.mxu0 %v1361
  %1383 = vmatprep.subr.bf16.mxu0 0
  %1384 = vmatpush1.bf16.msra.mxu0 %v1360
  %1385 = vmatprep.subr.bf16.mxu0 0
  %1386 = vmatpush1.bf16.msra.mxu0 %v1359
  %1387 = vmatprep.subr.bf16.mxu0 0
  %1388 = vmatpush2.bf16.msra.mxu0 0
  %1389 = vmatprep.subr.bf16.mxu0 0
  %1390 = vmatpush2.bf16.msra.mxu0 0
  %1391 = vmatprep.subr.bf16.mxu0 0
  %1392 = vmatpush2.bf16.msra.mxu0 0
  %1393 = vmatprep.subr.bf16.mxu0 0
  %1394 = vmatpush2.bf16.msra.mxu0 0
  %1395 = vmatprep.subr.bf16.mxu0 0
  %1396 = vmatpush2.bf16.msra.mxu0 0
  %1397 = vmatprep.subr.bf16.mxu0 0
  %1398 = vmatpush2.bf16.msra.mxu0 0
  %1399 = vmatprep.subr.bf16.mxu0 0
  %1400 = vmatpush2.bf16.msra.mxu0 0
  %1401 = vmatprep.subr.bf16.mxu0 0
  %1402 = vmatpush2.bf16.msra.mxu0 0
  %1403 = vmatprep.mubr.bf16.mxu0 0
  %1404 = vmatmul.mubr.bf16.gmra.mxu0 %v534
  %v1405 = vpop.f32.mrf.mxu0
  %v1406 = vadd.f32 0.0, %v1405
  %v1407 = vpop.f32.mrf.mxu0
  %v1408 = vpop.f32.mrf.mxu0
  %v1409 = vadd.f32 0.0, %v1408
  %v1410 = vpop.f32.mrf.mxu0
  %1411 = vmatprep.mubr.bf16.mxu0 0
  %1412 = vmatmul.mubr.bf16.gmra.mxu0 %v537
  %v1413 = vpop.f32.mrf.mxu0
  %v1414 = vadd.f32 0.0, %v1413
  %v1415 = vpop.f32.mrf.mxu0
  %v1416 = vpop.f32.mrf.mxu0
  %v1417 = vadd.f32 0.0, %v1416
  %v1418 = vpop.f32.mrf.mxu0
  %1419 = vmatprep.mubr.bf16.mxu0 0
  %1420 = vmatmul.mubr.bf16.gmra.mxu0 %v540
  %v1421 = vpop.f32.mrf.mxu0
  %v1422 = vadd.f32 0.0, %v1421
  %v1423 = vpop.f32.mrf.mxu0
  %v1424 = vpop.f32.mrf.mxu0
  %v1425 = vadd.f32 0.0, %v1424
  %v1426 = vpop.f32.mrf.mxu0
  %1427 = vmatprep.mubr.bf16.mxu0 0
  %1428 = vmatmul.mubr.bf16.gmra.mxu0 %v543
  %v1429 = vpop.f32.mrf.mxu0
  %v1430 = vadd.f32 0.0, %v1429
  %v1431 = vpop.f32.mrf.mxu0
  %v1432 = vpop.f32.mrf.mxu0
  %v1433 = vadd.f32 0.0, %v1432
  %v1434 = vpop.f32.mrf.mxu0
  %1435 = vmatprep.mubr.bf16.mxu0 0
  %1436 = vmatmul.mubr.bf16.gmra.mxu0 %v546
  %v1437 = vpop.f32.mrf.mxu0
  %v1438 = vadd.f32 0.0, %v1437
  %v1439 = vpop.f32.mrf.mxu0
  %v1440 = vpop.f32.mrf.mxu0
  %v1441 = vadd.f32 0.0, %v1440
  %v1442 = vpop.f32.mrf.mxu0
  %1443 = vmatprep.mubr.bf16.mxu0 0
  %1444 = vmatmul.mubr.bf16.gmra.mxu0 %v549
  %v1445 = vpop.f32.mrf.mxu0
  %v1446 = vadd.f32 0.0, %v1445
  %v1447 = vpop.f32.mrf.mxu0
  %v1448 = vpop.f32.mrf.mxu0
  %v1449 = vadd.f32 0.0, %v1448
  %v1450 = vpop.f32.mrf.mxu0
  %1451 = vmatprep.mubr.bf16.mxu0 0
  %1452 = vmatmul.mubr.bf16.gmra.mxu0 %v552
  %v1453 = vpop.f32.mrf.mxu0
  %v1454 = vadd.f32 0.0, %v1453
  %v1455 = vpop.f32.mrf.mxu0
  %v1456 = vpop.f32.mrf.mxu0
  %v1457 = vadd.f32 0.0, %v1456
  %v1458 = vpop.f32.mrf.mxu0
  %1459 = vmatprep.mubr.bf16.mxu0 0
  %1460 = vmatmul.mubr.bf16.gmra.mxu0 %v555
  %v1461 = vpop.f32.mrf.mxu0
  %v1462 = vadd.f32 0.0, %v1461
  %v1463 = vpop.f32.mrf.mxu0
  %v1464 = vpop.f32.mrf.mxu0
  %v1465 = vadd.f32 0.0, %v1464
  %v1466 = vpop.f32.mrf.mxu0
  %1467 = vmatprep.mubr.bf16.mxu0 0
  %1468 = vmatmul.mubr.bf16.gmra.mxu0 %v558
  %v1469 = vpop.f32.mrf.mxu0
  %v1470 = vadd.f32 0.0, %v1469
  %v1471 = vpop.f32.mrf.mxu0
  %v1472 = vpop.f32.mrf.mxu0
  %v1473 = vadd.f32 0.0, %v1472
  %v1474 = vpop.f32.mrf.mxu0
  %1475 = vmatprep.mubr.bf16.mxu0 0
  %1476 = vmatmul.mubr.bf16.gmra.mxu0 %v561
  %v1477 = vpop.f32.mrf.mxu0
  %v1478 = vadd.f32 0.0, %v1477
  %v1479 = vpop.f32.mrf.mxu0
  %v1480 = vpop.f32.mrf.mxu0
  %v1481 = vadd.f32 0.0, %v1480
  %v1482 = vpop.f32.mrf.mxu0
  %1483 = vmatprep.mubr.bf16.mxu0 0
  %1484 = vmatmul.mubr.bf16.gmra.mxu0 %v564
  %v1485 = vpop.f32.mrf.mxu0
  %v1486 = vadd.f32 0.0, %v1485
  %v1487 = vpop.f32.mrf.mxu0
  %v1488 = vpop.f32.mrf.mxu0
  %v1489 = vadd.f32 0.0, %v1488
  %v1490 = vpop.f32.mrf.mxu0
  %1491 = vmatprep.mubr.bf16.mxu0 0
  %1492 = vmatmul.mubr.bf16.gmra.mxu0 %v567
  %v1493 = vpop.f32.mrf.mxu0
  %v1494 = vadd.f32 0.0, %v1493
  %v1495 = vpop.f32.mrf.mxu0
  %v1496 = vpop.f32.mrf.mxu0
  %v1497 = vadd.f32 0.0, %v1496
  %v1498 = vpop.f32.mrf.mxu0
  %1499 = vmatprep.mubr.bf16.mxu0 0
  %1500 = vmatmul.mubr.bf16.gmra.mxu0 %v570
  %v1501 = vpop.f32.mrf.mxu0
  %v1502 = vadd.f32 0.0, %v1501
  %v1503 = vpop.f32.mrf.mxu0
  %v1504 = vpop.f32.mrf.mxu0
  %v1505 = vadd.f32 0.0, %v1504
  %v1506 = vpop.f32.mrf.mxu0
  %1507 = vmatprep.mubr.bf16.mxu0 0
  %1508 = vmatmul.mubr.bf16.gmra.mxu0 %v1147
  %v1509 = vpop.f32.mrf.mxu0
  %v1510 = vadd.f32 0.0, %v1509
  %v1511 = vpop.f32.mrf.mxu0
  %v1512 = vpop.f32.mrf.mxu0
  %v1513 = vadd.f32 0.0, %v1512
  %v1514 = vpop.f32.mrf.mxu0
  %1515 = vdwg.mxu0
  %v1516 = vadd.f32 %v982, %v1406
  %v1517 = vadd.f32 %v985, %v1409
  %v1518 = vadd.f32 %v990, %v1414
  %v1519 = vadd.f32 %v993, %v1417
  %v1520 = vadd.f32 %v998, %v1422
  %v1521 = vadd.f32 %v1001, %v1425
  %v1522 = vadd.f32 %v1006, %v1430
  %v1523 = vadd.f32 %v1009, %v1433
  %v1524 = vadd.f32 %v1014, %v1438
  %v1525 = vadd.f32 %v1017, %v1441
  %v1526 = vadd.f32 %v1022, %v1446
  %v1527 = vadd.f32 %v1025, %v1449
  %v1528 = vadd.f32 %v1030, %v1454
  %v1529 = vadd.f32 %v1033, %v1457
  %v1530 = vadd.f32 %v1038, %v1462
  %v1531 = vadd.f32 %v1041, %v1465
  %v1532 = vadd.f32 %v1046, %v1470
  %v1533 = vadd.f32 %v1049, %v1473
  %v1534 = vadd.f32 %v1054, %v1478
  %v1535 = vadd.f32 %v1057, %v1481
  %v1536 = vadd.f32 %v1062, %v1486
  %v1537 = vadd.f32 %v1065, %v1489
  %v1538 = vadd.f32 %v1070, %v1494
  %v1539 = vadd.f32 %v1073, %v1497
  %v1540 = vadd.f32 %v1078, %v1502
  %v1541 = vadd.f32 %v1081, %v1505
  %v1542 = vadd.f32 %v1086, %v1510
  %v1543 = vadd.f32 %v1089, %v1513
  %s1544 = scalar_lea.vmem %s1, 144
  %v1545 = vld [vmem:[%s1544] sm:$0xf]
  %v1546 = vld [vmem:[%s1544 + $0x4] sm:$0xf]
  %v1547 = vld [vmem:[%s1544 + $0x8] sm:$0xf]
  %v1548 = vld [vmem:[%s1544 + $0xc] sm:$0xf]
  %v1549 = vld [vmem:[%s1544 + $0x10] sm:$0xf]
  %v1550 = vld [vmem:[%s1544 + $0x14] sm:$0xf]
  %v1551 = vld [vmem:[%s1544 + $0x18] sm:$0xf]
  %v1552 = vld [vmem:[%s1544 + $0x1c] sm:$0xf]
  %v1553 = vld [vmem:[%s1544 + $0x20] sm:$0xf]
  %v1554 = vld [vmem:[%s1544 + $0x24] sm:$0xf]
  %v1555 = vld [vmem:[%s1544 + $0x28] sm:$0xf]
  %v1556 = vld [vmem:[%s1544 + $0x2c] sm:$0xf]
  %v1559 = vunpack.c.l.b16 %v86
  %v1560 = vunpack.c.l.b16 %v87
  %v1561 = vpack.c.b16 %v1560, %v1559
  %v1574 = vunpack.c.l.b16 %v1545
  %v1575 = vunpack.c.l.b16 %v1546
  %v1576 = vunpack.c.l.b16 %v1547
  %v1577 = vunpack.c.l.b16 %v1548
  %v1578 = vunpack.c.l.b16 %v1549
  %v1579 = vunpack.c.l.b16 %v1550
  %v1580 = vunpack.c.l.b16 %v1551
  %v1581 = vunpack.c.l.b16 %v1552
  %v1582 = vunpack.c.l.b16 %v1553
  %v1583 = vunpack.c.l.b16 %v1554
  %v1584 = vunpack.c.l.b16 %v1555
  %v1585 = vunpack.c.l.b16 %v1556
  %v1586 = vpack.c.b16 %v1575, %v1574
  %v1587 = vpack.c.b16 %v1577, %v1576
  %v1588 = vpack.c.b16 %v1579, %v1578
  %v1589 = vpack.c.b16 %v1581, %v1580
  %v1590 = vpack.c.b16 %v1583, %v1582
  %v1591 = vpack.c.b16 %v1585, %v1584
  %v1599 = vsel %vm236, %v1561, 0
  %1601 = vmatprep.subr.bf16.mxu0 0
  %1602 = vmatpush1.bf16.msra.mxu0 0
  %1603 = vmatprep.subr.bf16.mxu0 0
  %1604 = vmatpush1.bf16.msra.mxu0 0
  %1605 = vmatprep.subr.bf16.mxu0 0
  %1606 = vmatpush1.bf16.msra.mxu0 %v1591
  %1607 = vmatprep.subr.bf16.mxu0 0
  %1608 = vmatpush1.bf16.msra.mxu0 %v1590
  %1609 = vmatprep.subr.bf16.mxu0 0
  %1610 = vmatpush1.bf16.msra.mxu0 %v1589
  %1611 = vmatprep.subr.bf16.mxu0 0
  %1612 = vmatpush1.bf16.msra.mxu0 %v1588
  %1613 = vmatprep.subr.bf16.mxu0 0
  %1614 = vmatpush1.bf16.msra.mxu0 %v1587
  %1615 = vmatprep.subr.bf16.mxu0 0
  %1616 = vmatpush1.bf16.msra.mxu0 %v1586
  %1617 = vmatprep.subr.bf16.mxu0 0
  %1618 = vmatpush2.bf16.msra.mxu0 0
  %1619 = vmatprep.subr.bf16.mxu0 0
  %1620 = vmatpush2.bf16.msra.mxu0 0
  %1621 = vmatprep.subr.bf16.mxu0 0
  %1622 = vmatpush2.bf16.msra.mxu0 0
  %1623 = vmatprep.subr.bf16.mxu0 0
  %1624 = vmatpush2.bf16.msra.mxu0 0
  %1625 = vmatprep.subr.bf16.mxu0 0
  %1626 = vmatpush2.bf16.msra.mxu0 0
  %1627 = vmatprep.subr.bf16.mxu0 0
  %1628 = vmatpush2.bf16.msra.mxu0 0
  %1629 = vmatprep.subr.bf16.mxu0 0
  %1630 = vmatpush2.bf16.msra.mxu0 0
  %1631 = vmatprep.subr.bf16.mxu0 0
  %1632 = vmatpush2.bf16.msra.mxu0 0
  %1633 = vmatprep.mubr.bf16.mxu0 0
  %1634 = vmatmul.mubr.bf16.gmra.mxu0 %v241
  %v1635 = vpop.f32.mrf.mxu0
  %v1636 = vadd.f32 0.0, %v1635
  %v1637 = vpop.f32.mrf.mxu0
  %v1638 = vpop.f32.mrf.mxu0
  %v1639 = vadd.f32 0.0, %v1638
  %v1640 = vpop.f32.mrf.mxu0
  %1641 = vmatprep.mubr.bf16.mxu0 0
  %1642 = vmatmul.mubr.bf16.gmra.mxu0 %v244
  %v1643 = vpop.f32.mrf.mxu0
  %v1644 = vadd.f32 0.0, %v1643
  %v1645 = vpop.f32.mrf.mxu0
  %v1646 = vpop.f32.mrf.mxu0
  %v1647 = vadd.f32 0.0, %v1646
  %v1648 = vpop.f32.mrf.mxu0
  %1649 = vmatprep.mubr.bf16.mxu0 0
  %1650 = vmatmul.mubr.bf16.gmra.mxu0 %v247
  %v1651 = vpop.f32.mrf.mxu0
  %v1652 = vadd.f32 0.0, %v1651
  %v1653 = vpop.f32.mrf.mxu0
  %v1654 = vpop.f32.mrf.mxu0
  %v1655 = vadd.f32 0.0, %v1654
  %v1656 = vpop.f32.mrf.mxu0
  %1657 = vmatprep.mubr.bf16.mxu0 0
  %1658 = vmatmul.mubr.bf16.gmra.mxu0 %v250
  %v1659 = vpop.f32.mrf.mxu0
  %v1660 = vadd.f32 0.0, %v1659
  %v1661 = vpop.f32.mrf.mxu0
  %v1662 = vpop.f32.mrf.mxu0
  %v1663 = vadd.f32 0.0, %v1662
  %v1664 = vpop.f32.mrf.mxu0
  %1665 = vmatprep.mubr.bf16.mxu0 0
  %1666 = vmatmul.mubr.bf16.gmra.mxu0 %v253
  %v1667 = vpop.f32.mrf.mxu0
  %v1668 = vadd.f32 0.0, %v1667
  %v1669 = vpop.f32.mrf.mxu0
  %v1670 = vpop.f32.mrf.mxu0
  %v1671 = vadd.f32 0.0, %v1670
  %v1672 = vpop.f32.mrf.mxu0
  %1673 = vmatprep.mubr.bf16.mxu0 0
  %1674 = vmatmul.mubr.bf16.gmra.mxu0 %v256
  %v1675 = vpop.f32.mrf.mxu0
  %v1676 = vadd.f32 0.0, %v1675
  %v1677 = vpop.f32.mrf.mxu0
  %v1678 = vpop.f32.mrf.mxu0
  %v1679 = vadd.f32 0.0, %v1678
  %v1680 = vpop.f32.mrf.mxu0
  %1681 = vmatprep.mubr.bf16.mxu0 0
  %1682 = vmatmul.mubr.bf16.gmra.mxu0 %v259
  %v1683 = vpop.f32.mrf.mxu0
  %v1684 = vadd.f32 0.0, %v1683
  %v1685 = vpop.f32.mrf.mxu0
  %v1686 = vpop.f32.mrf.mxu0
  %v1687 = vadd.f32 0.0, %v1686
  %v1688 = vpop.f32.mrf.mxu0
  %1689 = vmatprep.mubr.bf16.mxu0 0
  %1690 = vmatmul.mubr.bf16.gmra.mxu0 %v262
  %v1691 = vpop.f32.mrf.mxu0
  %v1692 = vadd.f32 0.0, %v1691
  %v1693 = vpop.f32.mrf.mxu0
  %v1694 = vpop.f32.mrf.mxu0
  %v1695 = vadd.f32 0.0, %v1694
  %v1696 = vpop.f32.mrf.mxu0
  %1697 = vmatprep.mubr.bf16.mxu0 0
  %1698 = vmatmul.mubr.bf16.gmra.mxu0 %v265
  %v1699 = vpop.f32.mrf.mxu0
  %v1700 = vadd.f32 0.0, %v1699
  %v1701 = vpop.f32.mrf.mxu0
  %v1702 = vpop.f32.mrf.mxu0
  %v1703 = vadd.f32 0.0, %v1702
  %v1704 = vpop.f32.mrf.mxu0
  %1705 = vmatprep.mubr.bf16.mxu0 0
  %1706 = vmatmul.mubr.bf16.gmra.mxu0 %v268
  %v1707 = vpop.f32.mrf.mxu0
  %v1708 = vadd.f32 0.0, %v1707
  %v1709 = vpop.f32.mrf.mxu0
  %v1710 = vpop.f32.mrf.mxu0
  %v1711 = vadd.f32 0.0, %v1710
  %v1712 = vpop.f32.mrf.mxu0
  %1713 = vmatprep.mubr.bf16.mxu0 0
  %1714 = vmatmul.mubr.bf16.gmra.mxu0 %v271
  %v1715 = vpop.f32.mrf.mxu0
  %v1716 = vadd.f32 0.0, %v1715
  %v1717 = vpop.f32.mrf.mxu0
  %v1718 = vpop.f32.mrf.mxu0
  %v1719 = vadd.f32 0.0, %v1718
  %v1720 = vpop.f32.mrf.mxu0
  %1721 = vmatprep.mubr.bf16.mxu0 0
  %1722 = vmatmul.mubr.bf16.gmra.mxu0 %v274
  %v1723 = vpop.f32.mrf.mxu0
  %v1724 = vadd.f32 0.0, %v1723
  %v1725 = vpop.f32.mrf.mxu0
  %v1726 = vpop.f32.mrf.mxu0
  %v1727 = vadd.f32 0.0, %v1726
  %v1728 = vpop.f32.mrf.mxu0
  %1729 = vmatprep.mubr.bf16.mxu0 0
  %1730 = vmatmul.mubr.bf16.gmra.mxu0 %v277
  %v1731 = vpop.f32.mrf.mxu0
  %v1732 = vadd.f32 0.0, %v1731
  %v1733 = vpop.f32.mrf.mxu0
  %v1734 = vpop.f32.mrf.mxu0
  %v1735 = vadd.f32 0.0, %v1734
  %v1736 = vpop.f32.mrf.mxu0
  %1737 = vmatprep.mubr.bf16.mxu0 0
  %1738 = vmatmul.mubr.bf16.gmra.mxu0 %v1599
  %v1739 = vpop.f32.mrf.mxu0
  %v1740 = vadd.f32 0.0, %v1739
  %v1741 = vpop.f32.mrf.mxu0
  %v1742 = vpop.f32.mrf.mxu0
  %v1743 = vadd.f32 0.0, %v1742
  %v1744 = vpop.f32.mrf.mxu0
  %1745 = vdwg.mxu0
  %v1746 = vadd.f32 %v1294, %v1636
  %v1747 = vadd.f32 %v1295, %v1639
  %v1748 = vadd.f32 %v1296, %v1644
  %v1749 = vadd.f32 %v1297, %v1647
  %v1750 = vadd.f32 %v1298, %v1652
  %v1751 = vadd.f32 %v1299, %v1655
  %v1752 = vadd.f32 %v1300, %v1660
  %v1753 = vadd.f32 %v1301, %v1663
  %v1754 = vadd.f32 %v1302, %v1668
  %v1755 = vadd.f32 %v1303, %v1671
  %v1756 = vadd.f32 %v1304, %v1676
  %v1757 = vadd.f32 %v1305, %v1679
  %v1758 = vadd.f32 %v1306, %v1684
  %v1759 = vadd.f32 %v1307, %v1687
  %v1760 = vadd.f32 %v1308, %v1692
  %v1761 = vadd.f32 %v1309, %v1695
  %v1762 = vadd.f32 %v1310, %v1700
  %v1763 = vadd.f32 %v1311, %v1703
  %v1764 = vadd.f32 %v1312, %v1708
  %v1765 = vadd.f32 %v1313, %v1711
  %v1766 = vadd.f32 %v1314, %v1716
  %v1767 = vadd.f32 %v1315, %v1719
  %v1768 = vadd.f32 %v1316, %v1724
  %v1769 = vadd.f32 %v1317, %v1727
  %v1770 = vadd.f32 %v1318, %v1732
  %v1771 = vadd.f32 %v1319, %v1735
  %v1772 = vadd.f32 %v1320, %v1740
  %v1773 = vadd.f32 %v1321, %v1743
  %s1774 = scalar_lea.vmem %s1, 384
  %v1775 = vld [vmem:[%s1774] sm:$0xf]
  %v1776 = vld [vmem:[%s1774 + $0x4] sm:$0xf]
  %v1777 = vld [vmem:[%s1774 + $0x8] sm:$0xf]
  %v1778 = vld [vmem:[%s1774 + $0xc] sm:$0xf]
  %v1779 = vld [vmem:[%s1774 + $0x10] sm:$0xf]
  %v1780 = vld [vmem:[%s1774 + $0x14] sm:$0xf]
  %v1781 = vld [vmem:[%s1774 + $0x18] sm:$0xf]
  %v1782 = vld [vmem:[%s1774 + $0x1c] sm:$0xf]
  %v1783 = vld [vmem:[%s1774 + $0x20] sm:$0xf]
  %v1784 = vld [vmem:[%s1774 + $0x24] sm:$0xf]
  %v1785 = vld [vmem:[%s1774 + $0x28] sm:$0xf]
  %v1786 = vld [vmem:[%s1774 + $0x2c] sm:$0xf]
  %v1799 = vunpack.c.l.b16 %v1775
  %v1800 = vunpack.c.l.b16 %v1776
  %v1801 = vunpack.c.l.b16 %v1777
  %v1802 = vunpack.c.l.b16 %v1778
  %v1803 = vunpack.c.l.b16 %v1779
  %v1804 = vunpack.c.l.b16 %v1780
  %v1805 = vunpack.c.l.b16 %v1781
  %v1806 = vunpack.c.l.b16 %v1782
  %v1807 = vunpack.c.l.b16 %v1783
  %v1808 = vunpack.c.l.b16 %v1784
  %v1809 = vunpack.c.l.b16 %v1785
  %v1810 = vunpack.c.l.b16 %v1786
  %v1811 = vpack.c.b16 %v1800, %v1799
  %v1812 = vpack.c.b16 %v1802, %v1801
  %v1813 = vpack.c.b16 %v1804, %v1803
  %v1814 = vpack.c.b16 %v1806, %v1805
  %v1815 = vpack.c.b16 %v1808, %v1807
  %v1816 = vpack.c.b16 %v1810, %v1809
  %1823 = vmatprep.subr.bf16.mxu0 0
  %1824 = vmatpush1.bf16.msra.mxu0 0
  %1825 = vmatprep.subr.bf16.mxu0 0
  %1826 = vmatpush1.bf16.msra.mxu0 0
  %1827 = vmatprep.subr.bf16.mxu0 0
  %1828 = vmatpush1.bf16.msra.mxu0 %v1816
  %1829 = vmatprep.subr.bf16.mxu0 0
  %1830 = vmatpush1.bf16.msra.mxu0 %v1815
  %1831 = vmatprep.subr.bf16.mxu0 0
  %1832 = vmatpush1.bf16.msra.mxu0 %v1814
  %1833 = vmatprep.subr.bf16.mxu0 0
  %1834 = vmatpush1.bf16.msra.mxu0 %v1813
  %1835 = vmatprep.subr.bf16.mxu0 0
  %1836 = vmatpush1.bf16.msra.mxu0 %v1812
  %1837 = vmatprep.subr.bf16.mxu0 0
  %1838 = vmatpush1.bf16.msra.mxu0 %v1811
  %1839 = vmatprep.subr.bf16.mxu0 0
  %1840 = vmatpush2.bf16.msra.mxu0 0
  %1841 = vmatprep.subr.bf16.mxu0 0
  %1842 = vmatpush2.bf16.msra.mxu0 0
  %1843 = vmatprep.subr.bf16.mxu0 0
  %1844 = vmatpush2.bf16.msra.mxu0 0
  %1845 = vmatprep.subr.bf16.mxu0 0
  %1846 = vmatpush2.bf16.msra.mxu0 0
  %1847 = vmatprep.subr.bf16.mxu0 0
  %1848 = vmatpush2.bf16.msra.mxu0 0
  %1849 = vmatprep.subr.bf16.mxu0 0
  %1850 = vmatpush2.bf16.msra.mxu0 0
  %1851 = vmatprep.subr.bf16.mxu0 0
  %1852 = vmatpush2.bf16.msra.mxu0 0
  %1853 = vmatprep.subr.bf16.mxu0 0
  %1854 = vmatpush2.bf16.msra.mxu0 0
  %1855 = vmatprep.mubr.bf16.mxu0 0
  %1856 = vmatmul.mubr.bf16.gmra.mxu0 %v241
  %v1857 = vpop.f32.mrf.mxu0
  %v1858 = vadd.f32 0.0, %v1857
  %v1859 = vpop.f32.mrf.mxu0
  %v1860 = vpop.f32.mrf.mxu0
  %v1861 = vadd.f32 0.0, %v1860
  %v1862 = vpop.f32.mrf.mxu0
  %1863 = vmatprep.mubr.bf16.mxu0 0
  %1864 = vmatmul.mubr.bf16.gmra.mxu0 %v244
  %v1865 = vpop.f32.mrf.mxu0
  %v1866 = vadd.f32 0.0, %v1865
  %v1867 = vpop.f32.mrf.mxu0
  %v1868 = vpop.f32.mrf.mxu0
  %v1869 = vadd.f32 0.0, %v1868
  %v1870 = vpop.f32.mrf.mxu0
  %1871 = vmatprep.mubr.bf16.mxu0 0
  %1872 = vmatmul.mubr.bf16.gmra.mxu0 %v247
  %v1873 = vpop.f32.mrf.mxu0
  %v1874 = vadd.f32 0.0, %v1873
  %v1875 = vpop.f32.mrf.mxu0
  %v1876 = vpop.f32.mrf.mxu0
  %v1877 = vadd.f32 0.0, %v1876
  %v1878 = vpop.f32.mrf.mxu0
  %1879 = vmatprep.mubr.bf16.mxu0 0
  %1880 = vmatmul.mubr.bf16.gmra.mxu0 %v250
  %v1881 = vpop.f32.mrf.mxu0
  %v1882 = vadd.f32 0.0, %v1881
  %v1883 = vpop.f32.mrf.mxu0
  %v1884 = vpop.f32.mrf.mxu0
  %v1885 = vadd.f32 0.0, %v1884
  %v1886 = vpop.f32.mrf.mxu0
  %1887 = vmatprep.mubr.bf16.mxu0 0
  %1888 = vmatmul.mubr.bf16.gmra.mxu0 %v253
  %v1889 = vpop.f32.mrf.mxu0
  %v1890 = vadd.f32 0.0, %v1889
  %v1891 = vpop.f32.mrf.mxu0
  %v1892 = vpop.f32.mrf.mxu0
  %v1893 = vadd.f32 0.0, %v1892
  %v1894 = vpop.f32.mrf.mxu0
  %1895 = vmatprep.mubr.bf16.mxu0 0
  %1896 = vmatmul.mubr.bf16.gmra.mxu0 %v256
  %v1897 = vpop.f32.mrf.mxu0
  %v1898 = vadd.f32 0.0, %v1897
  %v1899 = vpop.f32.mrf.mxu0
  %v1900 = vpop.f32.mrf.mxu0
  %v1901 = vadd.f32 0.0, %v1900
  %v1902 = vpop.f32.mrf.mxu0
  %1903 = vmatprep.mubr.bf16.mxu0 0
  %1904 = vmatmul.mubr.bf16.gmra.mxu0 %v259
  %v1905 = vpop.f32.mrf.mxu0
  %v1906 = vadd.f32 0.0, %v1905
  %v1907 = vpop.f32.mrf.mxu0
  %v1908 = vpop.f32.mrf.mxu0
  %v1909 = vadd.f32 0.0, %v1908
  %v1910 = vpop.f32.mrf.mxu0
  %1911 = vmatprep.mubr.bf16.mxu0 0
  %1912 = vmatmul.mubr.bf16.gmra.mxu0 %v262
  %v1913 = vpop.f32.mrf.mxu0
  %v1914 = vadd.f32 0.0, %v1913
  %v1915 = vpop.f32.mrf.mxu0
  %v1916 = vpop.f32.mrf.mxu0
  %v1917 = vadd.f32 0.0, %v1916
  %v1918 = vpop.f32.mrf.mxu0
  %1919 = vmatprep.mubr.bf16.mxu0 0
  %1920 = vmatmul.mubr.bf16.gmra.mxu0 %v265
  %v1921 = vpop.f32.mrf.mxu0
  %v1922 = vadd.f32 0.0, %v1921
  %v1923 = vpop.f32.mrf.mxu0
  %v1924 = vpop.f32.mrf.mxu0
  %v1925 = vadd.f32 0.0, %v1924
  %v1926 = vpop.f32.mrf.mxu0
  %1927 = vmatprep.mubr.bf16.mxu0 0
  %1928 = vmatmul.mubr.bf16.gmra.mxu0 %v268
  %v1929 = vpop.f32.mrf.mxu0
  %v1930 = vadd.f32 0.0, %v1929
  %v1931 = vpop.f32.mrf.mxu0
  %v1932 = vpop.f32.mrf.mxu0
  %v1933 = vadd.f32 0.0, %v1932
  %v1934 = vpop.f32.mrf.mxu0
  %1935 = vmatprep.mubr.bf16.mxu0 0
  %1936 = vmatmul.mubr.bf16.gmra.mxu0 %v271
  %v1937 = vpop.f32.mrf.mxu0
  %v1938 = vadd.f32 0.0, %v1937
  %v1939 = vpop.f32.mrf.mxu0
  %v1940 = vpop.f32.mrf.mxu0
  %v1941 = vadd.f32 0.0, %v1940
  %v1942 = vpop.f32.mrf.mxu0
  %1943 = vmatprep.mubr.bf16.mxu0 0
  %1944 = vmatmul.mubr.bf16.gmra.mxu0 %v274
  %v1945 = vpop.f32.mrf.mxu0
  %v1946 = vadd.f32 0.0, %v1945
  %v1947 = vpop.f32.mrf.mxu0
  %v1948 = vpop.f32.mrf.mxu0
  %v1949 = vadd.f32 0.0, %v1948
  %v1950 = vpop.f32.mrf.mxu0
  %1951 = vmatprep.mubr.bf16.mxu0 0
  %1952 = vmatmul.mubr.bf16.gmra.mxu0 %v277
  %v1953 = vpop.f32.mrf.mxu0
  %v1954 = vadd.f32 0.0, %v1953
  %v1955 = vpop.f32.mrf.mxu0
  %v1956 = vpop.f32.mrf.mxu0
  %v1957 = vadd.f32 0.0, %v1956
  %v1958 = vpop.f32.mrf.mxu0
  %1959 = vmatprep.mubr.bf16.mxu0 0
  %1960 = vmatmul.mubr.bf16.gmra.mxu0 %v1599
  %v1961 = vpop.f32.mrf.mxu0
  %v1962 = vadd.f32 0.0, %v1961
  %v1963 = vpop.f32.mrf.mxu0
  %v1964 = vpop.f32.mrf.mxu0
  %v1965 = vadd.f32 0.0, %v1964
  %v1966 = vpop.f32.mrf.mxu0
  %1967 = vdwg.mxu0
  %v1968 = vadd.f32 %v1516, %v1858
  %v1969 = vadd.f32 %v1517, %v1861
  %v1970 = vadd.f32 %v1518, %v1866
  %v1971 = vadd.f32 %v1519, %v1869
  %v1972 = vadd.f32 %v1520, %v1874
  %v1973 = vadd.f32 %v1521, %v1877
  %v1974 = vadd.f32 %v1522, %v1882
  %v1975 = vadd.f32 %v1523, %v1885
  %v1976 = vadd.f32 %v1524, %v1890
  %v1977 = vadd.f32 %v1525, %v1893
  %v1978 = vadd.f32 %v1526, %v1898
  %v1979 = vadd.f32 %v1527, %v1901
  %v1980 = vadd.f32 %v1528, %v1906
  %v1981 = vadd.f32 %v1529, %v1909
  %v1982 = vadd.f32 %v1530, %v1914
  %v1983 = vadd.f32 %v1531, %v1917
  %v1984 = vadd.f32 %v1532, %v1922
  %v1985 = vadd.f32 %v1533, %v1925
  %v1986 = vadd.f32 %v1534, %v1930
  %v1987 = vadd.f32 %v1535, %v1933
  %v1988 = vadd.f32 %v1536, %v1938
  %v1989 = vadd.f32 %v1537, %v1941
  %v1990 = vadd.f32 %v1538, %v1946
  %v1991 = vadd.f32 %v1539, %v1949
  %v1992 = vadd.f32 %v1540, %v1954
  %v1993 = vadd.f32 %v1541, %v1957
  %v1994 = vadd.f32 %v1542, %v1962
  %v1995 = vadd.f32 %v1543, %v1965
  %s1996 = scalar_lea.vmem %s1, 192
  %v1997 = vld [vmem:[%s1996] sm:$0xf]
  %v1998 = vld [vmem:[%s1996 + $0x4] sm:$0xf]
  %v1999 = vld [vmem:[%s1996 + $0x8] sm:$0xf]
  %v2000 = vld [vmem:[%s1996 + $0xc] sm:$0xf]
  %v2001 = vld [vmem:[%s1996 + $0x10] sm:$0xf]
  %v2002 = vld [vmem:[%s1996 + $0x14] sm:$0xf]
  %v2003 = vld [vmem:[%s1996 + $0x18] sm:$0xf]
  %v2004 = vld [vmem:[%s1996 + $0x1c] sm:$0xf]
  %v2005 = vld [vmem:[%s1996 + $0x20] sm:$0xf]
  %v2006 = vld [vmem:[%s1996 + $0x24] sm:$0xf]
  %v2007 = vld [vmem:[%s1996 + $0x28] sm:$0xf]
  %v2008 = vld [vmem:[%s1996 + $0x2c] sm:$0xf]
  %v2011 = vunpack.c.l.b16 %v88
  %v2012 = vunpack.c.l.b16 %v89
  %v2013 = vpack.c.b16 %v2012, %v2011
  %v2026 = vunpack.c.l.b16 %v1997
  %v2027 = vunpack.c.l.b16 %v1998
  %v2028 = vunpack.c.l.b16 %v1999
  %v2029 = vunpack.c.l.b16 %v2000
  %v2030 = vunpack.c.l.b16 %v2001
  %v2031 = vunpack.c.l.b16 %v2002
  %v2032 = vunpack.c.l.b16 %v2003
  %v2033 = vunpack.c.l.b16 %v2004
  %v2034 = vunpack.c.l.b16 %v2005
  %v2035 = vunpack.c.l.b16 %v2006
  %v2036 = vunpack.c.l.b16 %v2007
  %v2037 = vunpack.c.l.b16 %v2008
  %v2038 = vpack.c.b16 %v2027, %v2026
  %v2039 = vpack.c.b16 %v2029, %v2028
  %v2040 = vpack.c.b16 %v2031, %v2030
  %v2041 = vpack.c.b16 %v2033, %v2032
  %v2042 = vpack.c.b16 %v2035, %v2034
  %v2043 = vpack.c.b16 %v2037, %v2036
  %v2051 = vsel %vm236, %v2013, 0
  %2053 = vmatprep.subr.bf16.mxu0 0
  %2054 = vmatpush1.bf16.msra.mxu0 0
  %2055 = vmatprep.subr.bf16.mxu0 0
  %2056 = vmatpush1.bf16.msra.mxu0 0
  %2057 = vmatprep.subr.bf16.mxu0 0
  %2058 = vmatpush1.bf16.msra.mxu0 %v2043
  %2059 = vmatprep.subr.bf16.mxu0 0
  %2060 = vmatpush1.bf16.msra.mxu0 %v2042
  %2061 = vmatprep.subr.bf16.mxu0 0
  %2062 = vmatpush1.bf16.msra.mxu0 %v2041
  %2063 = vmatprep.subr.bf16.mxu0 0
  %2064 = vmatpush1.bf16.msra.mxu0 %v2040
  %2065 = vmatprep.subr.bf16.mxu0 0
  %2066 = vmatpush1.bf16.msra.mxu0 %v2039
  %2067 = vmatprep.subr.bf16.mxu0 0
  %2068 = vmatpush1.bf16.msra.mxu0 %v2038
  %2069 = vmatprep.subr.bf16.mxu0 0
  %2070 = vmatpush2.bf16.msra.mxu0 0
  %2071 = vmatprep.subr.bf16.mxu0 0
  %2072 = vmatpush2.bf16.msra.mxu0 0
  %2073 = vmatprep.subr.bf16.mxu0 0
  %2074 = vmatpush2.bf16.msra.mxu0 0
  %2075 = vmatprep.subr.bf16.mxu0 0
  %2076 = vmatpush2.bf16.msra.mxu0 0
  %2077 = vmatprep.subr.bf16.mxu0 0
  %2078 = vmatpush2.bf16.msra.mxu0 0
  %2079 = vmatprep.subr.bf16.mxu0 0
  %2080 = vmatpush2.bf16.msra.mxu0 0
  %2081 = vmatprep.subr.bf16.mxu0 0
  %2082 = vmatpush2.bf16.msra.mxu0 0
  %2083 = vmatprep.subr.bf16.mxu0 0
  %2084 = vmatpush2.bf16.msra.mxu0 0
  %2085 = vmatprep.mubr.bf16.mxu0 0
  %2086 = vmatmul.mubr.bf16.gmra.mxu0 %v537
  %v2087 = vpop.f32.mrf.mxu0
  %v2088 = vadd.f32 0.0, %v2087
  %v2089 = vpop.f32.mrf.mxu0
  %v2090 = vpop.f32.mrf.mxu0
  %v2091 = vadd.f32 0.0, %v2090
  %v2092 = vpop.f32.mrf.mxu0
  %2093 = vmatprep.mubr.bf16.mxu0 0
  %2094 = vmatmul.mubr.bf16.gmra.mxu0 %v540
  %v2095 = vpop.f32.mrf.mxu0
  %v2096 = vadd.f32 0.0, %v2095
  %v2097 = vpop.f32.mrf.mxu0
  %v2098 = vpop.f32.mrf.mxu0
  %v2099 = vadd.f32 0.0, %v2098
  %v2100 = vpop.f32.mrf.mxu0
  %2101 = vmatprep.mubr.bf16.mxu0 0
  %2102 = vmatmul.mubr.bf16.gmra.mxu0 %v543
  %v2103 = vpop.f32.mrf.mxu0
  %v2104 = vadd.f32 0.0, %v2103
  %v2105 = vpop.f32.mrf.mxu0
  %v2106 = vpop.f32.mrf.mxu0
  %v2107 = vadd.f32 0.0, %v2106
  %v2108 = vpop.f32.mrf.mxu0
  %2109 = vmatprep.mubr.bf16.mxu0 0
  %2110 = vmatmul.mubr.bf16.gmra.mxu0 %v546
  %v2111 = vpop.f32.mrf.mxu0
  %v2112 = vadd.f32 0.0, %v2111
  %v2113 = vpop.f32.mrf.mxu0
  %v2114 = vpop.f32.mrf.mxu0
  %v2115 = vadd.f32 0.0, %v2114
  %v2116 = vpop.f32.mrf.mxu0
  %2117 = vmatprep.mubr.bf16.mxu0 0
  %2118 = vmatmul.mubr.bf16.gmra.mxu0 %v549
  %v2119 = vpop.f32.mrf.mxu0
  %v2120 = vadd.f32 0.0, %v2119
  %v2121 = vpop.f32.mrf.mxu0
  %v2122 = vpop.f32.mrf.mxu0
  %v2123 = vadd.f32 0.0, %v2122
  %v2124 = vpop.f32.mrf.mxu0
  %2125 = vmatprep.mubr.bf16.mxu0 0
  %2126 = vmatmul.mubr.bf16.gmra.mxu0 %v552
  %v2127 = vpop.f32.mrf.mxu0
  %v2128 = vadd.f32 0.0, %v2127
  %v2129 = vpop.f32.mrf.mxu0
  %v2130 = vpop.f32.mrf.mxu0
  %v2131 = vadd.f32 0.0, %v2130
  %v2132 = vpop.f32.mrf.mxu0
  %2133 = vmatprep.mubr.bf16.mxu0 0
  %2134 = vmatmul.mubr.bf16.gmra.mxu0 %v555
  %v2135 = vpop.f32.mrf.mxu0
  %v2136 = vadd.f32 0.0, %v2135
  %v2137 = vpop.f32.mrf.mxu0
  %v2138 = vpop.f32.mrf.mxu0
  %v2139 = vadd.f32 0.0, %v2138
  %v2140 = vpop.f32.mrf.mxu0
  %2141 = vmatprep.mubr.bf16.mxu0 0
  %2142 = vmatmul.mubr.bf16.gmra.mxu0 %v558
  %v2143 = vpop.f32.mrf.mxu0
  %v2144 = vadd.f32 0.0, %v2143
  %v2145 = vpop.f32.mrf.mxu0
  %v2146 = vpop.f32.mrf.mxu0
  %v2147 = vadd.f32 0.0, %v2146
  %v2148 = vpop.f32.mrf.mxu0
  %2149 = vmatprep.mubr.bf16.mxu0 0
  %2150 = vmatmul.mubr.bf16.gmra.mxu0 %v561
  %v2151 = vpop.f32.mrf.mxu0
  %v2152 = vadd.f32 0.0, %v2151
  %v2153 = vpop.f32.mrf.mxu0
  %v2154 = vpop.f32.mrf.mxu0
  %v2155 = vadd.f32 0.0, %v2154
  %v2156 = vpop.f32.mrf.mxu0
  %2157 = vmatprep.mubr.bf16.mxu0 0
  %2158 = vmatmul.mubr.bf16.gmra.mxu0 %v564
  %v2159 = vpop.f32.mrf.mxu0
  %v2160 = vadd.f32 0.0, %v2159
  %v2161 = vpop.f32.mrf.mxu0
  %v2162 = vpop.f32.mrf.mxu0
  %v2163 = vadd.f32 0.0, %v2162
  %v2164 = vpop.f32.mrf.mxu0
  %2165 = vmatprep.mubr.bf16.mxu0 0
  %2166 = vmatmul.mubr.bf16.gmra.mxu0 %v567
  %v2167 = vpop.f32.mrf.mxu0
  %v2168 = vadd.f32 0.0, %v2167
  %v2169 = vpop.f32.mrf.mxu0
  %v2170 = vpop.f32.mrf.mxu0
  %v2171 = vadd.f32 0.0, %v2170
  %v2172 = vpop.f32.mrf.mxu0
  %2173 = vmatprep.mubr.bf16.mxu0 0
  %2174 = vmatmul.mubr.bf16.gmra.mxu0 %v570
  %v2175 = vpop.f32.mrf.mxu0
  %v2176 = vadd.f32 0.0, %v2175
  %v2177 = vpop.f32.mrf.mxu0
  %v2178 = vpop.f32.mrf.mxu0
  %v2179 = vadd.f32 0.0, %v2178
  %v2180 = vpop.f32.mrf.mxu0
  %2181 = vmatprep.mubr.bf16.mxu0 0
  %2182 = vmatmul.mubr.bf16.gmra.mxu0 %v1147
  %v2183 = vpop.f32.mrf.mxu0
  %v2184 = vadd.f32 0.0, %v2183
  %v2185 = vpop.f32.mrf.mxu0
  %v2186 = vpop.f32.mrf.mxu0
  %v2187 = vadd.f32 0.0, %v2186
  %v2188 = vpop.f32.mrf.mxu0
  %2189 = vmatprep.mubr.bf16.mxu0 0
  %2190 = vmatmul.mubr.bf16.gmra.mxu0 %v2051
  %v2191 = vpop.f32.mrf.mxu0
  %v2192 = vadd.f32 0.0, %v2191
  %v2193 = vpop.f32.mrf.mxu0
  %v2194 = vpop.f32.mrf.mxu0
  %v2195 = vadd.f32 0.0, %v2194
  %v2196 = vpop.f32.mrf.mxu0
  %2197 = vdwg.mxu0
  %v2198 = vadd.f32 %v1746, %v2088
  %v2199 = vadd.f32 %v1747, %v2091
  %v2200 = vadd.f32 %v1748, %v2096
  %v2201 = vadd.f32 %v1749, %v2099
  %v2202 = vadd.f32 %v1750, %v2104
  %v2203 = vadd.f32 %v1751, %v2107
  %v2204 = vadd.f32 %v1752, %v2112
  %v2205 = vadd.f32 %v1753, %v2115
  %v2206 = vadd.f32 %v1754, %v2120
  %v2207 = vadd.f32 %v1755, %v2123
  %v2208 = vadd.f32 %v1756, %v2128
  %v2209 = vadd.f32 %v1757, %v2131
  %v2210 = vadd.f32 %v1758, %v2136
  %v2211 = vadd.f32 %v1759, %v2139
  %v2212 = vadd.f32 %v1760, %v2144
  %v2213 = vadd.f32 %v1761, %v2147
  %v2214 = vadd.f32 %v1762, %v2152
  %v2215 = vadd.f32 %v1763, %v2155
  %v2216 = vadd.f32 %v1764, %v2160
  %v2217 = vadd.f32 %v1765, %v2163
  %v2218 = vadd.f32 %v1766, %v2168
  %v2219 = vadd.f32 %v1767, %v2171
  %v2220 = vadd.f32 %v1768, %v2176
  %v2221 = vadd.f32 %v1769, %v2179
  %v2222 = vadd.f32 %v1770, %v2184
  %v2223 = vadd.f32 %v1771, %v2187
  %v2224 = vadd.f32 %v1772, %v2192
  %v2225 = vadd.f32 %v1773, %v2195
  %s2226 = scalar_lea.vmem %s1, 432
  %v2227 = vld [vmem:[%s2226] sm:$0xf]
  %v2228 = vld [vmem:[%s2226 + $0x4] sm:$0xf]
  %v2229 = vld [vmem:[%s2226 + $0x8] sm:$0xf]
  %v2230 = vld [vmem:[%s2226 + $0xc] sm:$0xf]
  %v2231 = vld [vmem:[%s2226 + $0x10] sm:$0xf]
  %v2232 = vld [vmem:[%s2226 + $0x14] sm:$0xf]
  %v2233 = vld [vmem:[%s2226 + $0x18] sm:$0xf]
  %v2234 = vld [vmem:[%s2226 + $0x1c] sm:$0xf]
  %v2235 = vld [vmem:[%s2226 + $0x20] sm:$0xf]
  %v2236 = vld [vmem:[%s2226 + $0x24] sm:$0xf]
  %v2237 = vld [vmem:[%s2226 + $0x28] sm:$0xf]
  %v2238 = vld [vmem:[%s2226 + $0x2c] sm:$0xf]
  %v2251 = vunpack.c.l.b16 %v2227
  %v2252 = vunpack.c.l.b16 %v2228
  %v2253 = vunpack.c.l.b16 %v2229
  %v2254 = vunpack.c.l.b16 %v2230
  %v2255 = vunpack.c.l.b16 %v2231
  %v2256 = vunpack.c.l.b16 %v2232
  %v2257 = vunpack.c.l.b16 %v2233
  %v2258 = vunpack.c.l.b16 %v2234
  %v2259 = vunpack.c.l.b16 %v2235
  %v2260 = vunpack.c.l.b16 %v2236
  %v2261 = vunpack.c.l.b16 %v2237
  %v2262 = vunpack.c.l.b16 %v2238
  %v2263 = vpack.c.b16 %v2252, %v2251
  %v2264 = vpack.c.b16 %v2254, %v2253
  %v2265 = vpack.c.b16 %v2256, %v2255
  %v2266 = vpack.c.b16 %v2258, %v2257
  %v2267 = vpack.c.b16 %v2260, %v2259
  %v2268 = vpack.c.b16 %v2262, %v2261
  %2275 = vmatprep.subr.bf16.mxu0 0
  %2276 = vmatpush1.bf16.msra.mxu0 0
  %2277 = vmatprep.subr.bf16.mxu0 0
  %2278 = vmatpush1.bf16.msra.mxu0 0
  %2279 = vmatprep.subr.bf16.mxu0 0
  %2280 = vmatpush1.bf16.msra.mxu0 %v2268
  %2281 = vmatprep.subr.bf16.mxu0 0
  %2282 = vmatpush1.bf16.msra.mxu0 %v2267
  %2283 = vmatprep.subr.bf16.mxu0 0
  %2284 = vmatpush1.bf16.msra.mxu0 %v2266
  %2285 = vmatprep.subr.bf16.mxu0 0
  %2286 = vmatpush1.bf16.msra.mxu0 %v2265
  %2287 = vmatprep.subr.bf16.mxu0 0
  %2288 = vmatpush1.bf16.msra.mxu0 %v2264
  %2289 = vmatprep.subr.bf16.mxu0 0
  %2290 = vmatpush1.bf16.msra.mxu0 %v2263
  %2291 = vmatprep.subr.bf16.mxu0 0
  %2292 = vmatpush2.bf16.msra.mxu0 0
  %2293 = vmatprep.subr.bf16.mxu0 0
  %2294 = vmatpush2.bf16.msra.mxu0 0
  %2295 = vmatprep.subr.bf16.mxu0 0
  %2296 = vmatpush2.bf16.msra.mxu0 0
  %2297 = vmatprep.subr.bf16.mxu0 0
  %2298 = vmatpush2.bf16.msra.mxu0 0
  %2299 = vmatprep.subr.bf16.mxu0 0
  %2300 = vmatpush2.bf16.msra.mxu0 0
  %2301 = vmatprep.subr.bf16.mxu0 0
  %2302 = vmatpush2.bf16.msra.mxu0 0
  %2303 = vmatprep.subr.bf16.mxu0 0
  %2304 = vmatpush2.bf16.msra.mxu0 0
  %2305 = vmatprep.subr.bf16.mxu0 0
  %2306 = vmatpush2.bf16.msra.mxu0 0
  %2307 = vmatprep.mubr.bf16.mxu0 0
  %2308 = vmatmul.mubr.bf16.gmra.mxu0 %v537
  %v2309 = vpop.f32.mrf.mxu0
  %v2310 = vadd.f32 0.0, %v2309
  %v2311 = vpop.f32.mrf.mxu0
  %v2312 = vpop.f32.mrf.mxu0
  %v2313 = vadd.f32 0.0, %v2312
  %v2314 = vpop.f32.mrf.mxu0
  %2315 = vmatprep.mubr.bf16.mxu0 0
  %2316 = vmatmul.mubr.bf16.gmra.mxu0 %v540
  %v2317 = vpop.f32.mrf.mxu0
  %v2318 = vadd.f32 0.0, %v2317
  %v2319 = vpop.f32.mrf.mxu0
  %v2320 = vpop.f32.mrf.mxu0
  %v2321 = vadd.f32 0.0, %v2320
  %v2322 = vpop.f32.mrf.mxu0
  %2323 = vmatprep.mubr.bf16.mxu0 0
  %2324 = vmatmul.mubr.bf16.gmra.mxu0 %v543
  %v2325 = vpop.f32.mrf.mxu0
  %v2326 = vadd.f32 0.0, %v2325
  %v2327 = vpop.f32.mrf.mxu0
  %v2328 = vpop.f32.mrf.mxu0
  %v2329 = vadd.f32 0.0, %v2328
  %v2330 = vpop.f32.mrf.mxu0
  %2331 = vmatprep.mubr.bf16.mxu0 0
  %2332 = vmatmul.mubr.bf16.gmra.mxu0 %v546
  %v2333 = vpop.f32.mrf.mxu0
  %v2334 = vadd.f32 0.0, %v2333
  %v2335 = vpop.f32.mrf.mxu0
  %v2336 = vpop.f32.mrf.mxu0
  %v2337 = vadd.f32 0.0, %v2336
  %v2338 = vpop.f32.mrf.mxu0
  %2339 = vmatprep.mubr.bf16.mxu0 0
  %2340 = vmatmul.mubr.bf16.gmra.mxu0 %v549
  %v2341 = vpop.f32.mrf.mxu0
  %v2342 = vadd.f32 0.0, %v2341
  %v2343 = vpop.f32.mrf.mxu0
  %v2344 = vpop.f32.mrf.mxu0
  %v2345 = vadd.f32 0.0, %v2344
  %v2346 = vpop.f32.mrf.mxu0
  %2347 = vmatprep.mubr.bf16.mxu0 0
  %2348 = vmatmul.mubr.bf16.gmra.mxu0 %v552
  %v2349 = vpop.f32.mrf.mxu0
  %v2350 = vadd.f32 0.0, %v2349
  %v2351 = vpop.f32.mrf.mxu0
  %v2352 = vpop.f32.mrf.mxu0
  %v2353 = vadd.f32 0.0, %v2352
  %v2354 = vpop.f32.mrf.mxu0
  %2355 = vmatprep.mubr.bf16.mxu0 0
  %2356 = vmatmul.mubr.bf16.gmra.mxu0 %v555
  %v2357 = vpop.f32.mrf.mxu0
  %v2358 = vadd.f32 0.0, %v2357
  %v2359 = vpop.f32.mrf.mxu0
  %v2360 = vpop.f32.mrf.mxu0
  %v2361 = vadd.f32 0.0, %v2360
  %v2362 = vpop.f32.mrf.mxu0
  %2363 = vmatprep.mubr.bf16.mxu0 0
  %2364 = vmatmul.mubr.bf16.gmra.mxu0 %v558
  %v2365 = vpop.f32.mrf.mxu0
  %v2366 = vadd.f32 0.0, %v2365
  %v2367 = vpop.f32.mrf.mxu0
  %v2368 = vpop.f32.mrf.mxu0
  %v2369 = vadd.f32 0.0, %v2368
  %v2370 = vpop.f32.mrf.mxu0
  %2371 = vmatprep.mubr.bf16.mxu0 0
  %2372 = vmatmul.mubr.bf16.gmra.mxu0 %v561
  %v2373 = vpop.f32.mrf.mxu0
  %v2374 = vadd.f32 0.0, %v2373
  %v2375 = vpop.f32.mrf.mxu0
  %v2376 = vpop.f32.mrf.mxu0
  %v2377 = vadd.f32 0.0, %v2376
  %v2378 = vpop.f32.mrf.mxu0
  %2379 = vmatprep.mubr.bf16.mxu0 0
  %2380 = vmatmul.mubr.bf16.gmra.mxu0 %v564
  %v2381 = vpop.f32.mrf.mxu0
  %v2382 = vadd.f32 0.0, %v2381
  %v2383 = vpop.f32.mrf.mxu0
  %v2384 = vpop.f32.mrf.mxu0
  %v2385 = vadd.f32 0.0, %v2384
  %v2386 = vpop.f32.mrf.mxu0
  %2387 = vmatprep.mubr.bf16.mxu0 0
  %2388 = vmatmul.mubr.bf16.gmra.mxu0 %v567
  %v2389 = vpop.f32.mrf.mxu0
  %v2390 = vadd.f32 0.0, %v2389
  %v2391 = vpop.f32.mrf.mxu0
  %v2392 = vpop.f32.mrf.mxu0
  %v2393 = vadd.f32 0.0, %v2392
  %v2394 = vpop.f32.mrf.mxu0
  %2395 = vmatprep.mubr.bf16.mxu0 0
  %2396 = vmatmul.mubr.bf16.gmra.mxu0 %v570
  %v2397 = vpop.f32.mrf.mxu0
  %v2398 = vadd.f32 0.0, %v2397
  %v2399 = vpop.f32.mrf.mxu0
  %v2400 = vpop.f32.mrf.mxu0
  %v2401 = vadd.f32 0.0, %v2400
  %v2402 = vpop.f32.mrf.mxu0
  %2403 = vmatprep.mubr.bf16.mxu0 0
  %2404 = vmatmul.mubr.bf16.gmra.mxu0 %v1147
  %v2405 = vpop.f32.mrf.mxu0
  %v2406 = vadd.f32 0.0, %v2405
  %v2407 = vpop.f32.mrf.mxu0
  %v2408 = vpop.f32.mrf.mxu0
  %v2409 = vadd.f32 0.0, %v2408
  %v2410 = vpop.f32.mrf.mxu0
  %2411 = vmatprep.mubr.bf16.mxu0 0
  %2412 = vmatmul.mubr.bf16.gmra.mxu0 %v2051
  %v2413 = vpop.f32.mrf.mxu0
  %v2414 = vadd.f32 0.0, %v2413
  %v2415 = vpop.f32.mrf.mxu0
  %v2416 = vpop.f32.mrf.mxu0
  %v2417 = vadd.f32 0.0, %v2416
  %v2418 = vpop.f32.mrf.mxu0
  %2419 = vdwg.mxu0
  %v2420 = vadd.f32 %v1968, %v2310
  %v2421 = vadd.f32 %v1969, %v2313
  %v2422 = vadd.f32 %v1970, %v2318
  %v2423 = vadd.f32 %v1971, %v2321
  %v2424 = vadd.f32 %v1972, %v2326
  %v2425 = vadd.f32 %v1973, %v2329
  %v2426 = vadd.f32 %v1974, %v2334
  %v2427 = vadd.f32 %v1975, %v2337
  %v2428 = vadd.f32 %v1976, %v2342
  %v2429 = vadd.f32 %v1977, %v2345
  %v2430 = vadd.f32 %v1978, %v2350
  %v2431 = vadd.f32 %v1979, %v2353
  %v2432 = vadd.f32 %v1980, %v2358
  %v2433 = vadd.f32 %v1981, %v2361
  %v2434 = vadd.f32 %v1982, %v2366
  %v2435 = vadd.f32 %v1983, %v2369
  %v2436 = vadd.f32 %v1984, %v2374
  %v2437 = vadd.f32 %v1985, %v2377
  %v2438 = vadd.f32 %v1986, %v2382
  %v2439 = vadd.f32 %v1987, %v2385
  %v2440 = vadd.f32 %v1988, %v2390
  %v2441 = vadd.f32 %v1989, %v2393
  %v2442 = vadd.f32 %v1990, %v2398
  %v2443 = vadd.f32 %v1991, %v2401
  %v2444 = vadd.f32 %v1992, %v2406
  %v2445 = vadd.f32 %v1993, %v2409
  %v2446 = vadd.f32 %v1994, %v2414
  %v2447 = vadd.f32 %v1995, %v2417
  %2448 = vmatprep.subr.bf16.mxu0 0
  %2449 = vmatpush1.bf16.msra.mxu0 0
  %2450 = vmatprep.subr.bf16.mxu0 0
  %2451 = vmatpush1.bf16.msra.mxu0 0
  %2452 = vmatprep.subr.bf16.mxu0 0
  %2453 = vmatpush1.bf16.msra.mxu0 %v229
  %2454 = vmatprep.subr.bf16.mxu0 0
  %2455 = vmatpush1.bf16.msra.mxu0 %v228
  %2456 = vmatprep.subr.bf16.mxu0 0
  %2457 = vmatpush1.bf16.msra.mxu0 %v227
  %2458 = vmatprep.subr.bf16.mxu0 0
  %2459 = vmatpush1.bf16.msra.mxu0 %v226
  %2460 = vmatprep.subr.bf16.mxu0 0
  %2461 = vmatpush1.bf16.msra.mxu0 %v225
  %2462 = vmatprep.subr.bf16.mxu0 0
  %2463 = vmatpush1.bf16.msra.mxu0 %v224
  %2464 = vmatprep.subr.bf16.mxu0 0
  %2465 = vmatpush2.bf16.msra.mxu0 0
  %2466 = vmatprep.subr.bf16.mxu0 0
  %2467 = vmatpush2.bf16.msra.mxu0 0
  %2468 = vmatprep.subr.bf16.mxu0 0
  %2469 = vmatpush2.bf16.msra.mxu0 0
  %2470 = vmatprep.subr.bf16.mxu0 0
  %2471 = vmatpush2.bf16.msra.mxu0 0
  %2472 = vmatprep.subr.bf16.mxu0 0
  %2473 = vmatpush2.bf16.msra.mxu0 0
  %2474 = vmatprep.subr.bf16.mxu0 0
  %2475 = vmatpush2.bf16.msra.mxu0 0
  %2476 = vmatprep.subr.bf16.mxu0 0
  %2477 = vmatpush2.bf16.msra.mxu0 0
  %2478 = vmatprep.subr.bf16.mxu0 0
  %2479 = vmatpush2.bf16.msra.mxu0 0
  %2480 = vmatprep.mubr.bf16.mxu0 0
  %2481 = vmatmul.mubr.bf16.gmra.mxu0 %v534
  %v2482 = vpop.f32.mrf.mxu0
  %v2483 = vadd.f32 0.0, %v2482
  %v2484 = vpop.f32.mrf.mxu0
  %v2485 = vpop.f32.mrf.mxu0
  %v2486 = vadd.f32 0.0, %v2485
  %v2487 = vpop.f32.mrf.mxu0
  %2488 = vmatprep.mubr.bf16.mxu0 0
  %2489 = vmatmul.mubr.bf16.gmra.mxu0 %v537
  %v2490 = vpop.f32.mrf.mxu0
  %v2491 = vadd.f32 0.0, %v2490
  %v2492 = vpop.f32.mrf.mxu0
  %v2493 = vpop.f32.mrf.mxu0
  %v2494 = vadd.f32 0.0, %v2493
  %v2495 = vpop.f32.mrf.mxu0
  %2496 = vmatprep.mubr.bf16.mxu0 0
  %2497 = vmatmul.mubr.bf16.gmra.mxu0 %v540
  %v2498 = vpop.f32.mrf.mxu0
  %v2499 = vadd.f32 0.0, %v2498
  %v2500 = vpop.f32.mrf.mxu0
  %v2501 = vpop.f32.mrf.mxu0
  %v2502 = vadd.f32 0.0, %v2501
  %v2503 = vpop.f32.mrf.mxu0
  %2504 = vmatprep.mubr.bf16.mxu0 0
  %2505 = vmatmul.mubr.bf16.gmra.mxu0 %v543
  %v2506 = vpop.f32.mrf.mxu0
  %v2507 = vadd.f32 0.0, %v2506
  %v2508 = vpop.f32.mrf.mxu0
  %v2509 = vpop.f32.mrf.mxu0
  %v2510 = vadd.f32 0.0, %v2509
  %v2511 = vpop.f32.mrf.mxu0
  %2512 = vmatprep.mubr.bf16.mxu0 0
  %2513 = vmatmul.mubr.bf16.gmra.mxu0 %v546
  %v2514 = vpop.f32.mrf.mxu0
  %v2515 = vadd.f32 0.0, %v2514
  %v2516 = vpop.f32.mrf.mxu0
  %v2517 = vpop.f32.mrf.mxu0
  %v2518 = vadd.f32 0.0, %v2517
  %v2519 = vpop.f32.mrf.mxu0
  %2520 = vmatprep.mubr.bf16.mxu0 0
  %2521 = vmatmul.mubr.bf16.gmra.mxu0 %v549
  %v2522 = vpop.f32.mrf.mxu0
  %v2523 = vadd.f32 0.0, %v2522
  %v2524 = vpop.f32.mrf.mxu0
  %v2525 = vpop.f32.mrf.mxu0
  %v2526 = vadd.f32 0.0, %v2525
  %v2527 = vpop.f32.mrf.mxu0
  %2528 = vmatprep.mubr.bf16.mxu0 0
  %2529 = vmatmul.mubr.bf16.gmra.mxu0 %v552
  %v2530 = vpop.f32.mrf.mxu0
  %v2531 = vadd.f32 0.0, %v2530
  %v2532 = vpop.f32.mrf.mxu0
  %v2533 = vpop.f32.mrf.mxu0
  %v2534 = vadd.f32 0.0, %v2533
  %v2535 = vpop.f32.mrf.mxu0
  %2536 = vmatprep.mubr.bf16.mxu0 0
  %2537 = vmatmul.mubr.bf16.gmra.mxu0 %v555
  %v2538 = vpop.f32.mrf.mxu0
  %v2539 = vadd.f32 0.0, %v2538
  %v2540 = vpop.f32.mrf.mxu0
  %v2541 = vpop.f32.mrf.mxu0
  %v2542 = vadd.f32 0.0, %v2541
  %v2543 = vpop.f32.mrf.mxu0
  %2544 = vmatprep.mubr.bf16.mxu0 0
  %2545 = vmatmul.mubr.bf16.gmra.mxu0 %v558
  %v2546 = vpop.f32.mrf.mxu0
  %v2547 = vadd.f32 0.0, %v2546
  %v2548 = vpop.f32.mrf.mxu0
  %v2549 = vpop.f32.mrf.mxu0
  %v2550 = vadd.f32 0.0, %v2549
  %v2551 = vpop.f32.mrf.mxu0
  %2552 = vmatprep.mubr.bf16.mxu0 0
  %2553 = vmatmul.mubr.bf16.gmra.mxu0 %v561
  %v2554 = vpop.f32.mrf.mxu0
  %v2555 = vadd.f32 0.0, %v2554
  %v2556 = vpop.f32.mrf.mxu0
  %v2557 = vpop.f32.mrf.mxu0
  %v2558 = vadd.f32 0.0, %v2557
  %v2559 = vpop.f32.mrf.mxu0
  %2560 = vmatprep.mubr.bf16.mxu0 0
  %2561 = vmatmul.mubr.bf16.gmra.mxu0 %v564
  %v2562 = vpop.f32.mrf.mxu0
  %v2563 = vadd.f32 0.0, %v2562
  %v2564 = vpop.f32.mrf.mxu0
  %v2565 = vpop.f32.mrf.mxu0
  %v2566 = vadd.f32 0.0, %v2565
  %v2567 = vpop.f32.mrf.mxu0
  %2568 = vmatprep.mubr.bf16.mxu0 0
  %2569 = vmatmul.mubr.bf16.gmra.mxu0 %v567
  %v2570 = vpop.f32.mrf.mxu0
  %v2571 = vadd.f32 0.0, %v2570
  %v2572 = vpop.f32.mrf.mxu0
  %v2573 = vpop.f32.mrf.mxu0
  %v2574 = vadd.f32 0.0, %v2573
  %v2575 = vpop.f32.mrf.mxu0
  %2576 = vmatprep.mubr.bf16.mxu0 0
  %2577 = vmatmul.mubr.bf16.gmra.mxu0 %v570
  %v2578 = vpop.f32.mrf.mxu0
  %v2579 = vadd.f32 0.0, %v2578
  %v2580 = vpop.f32.mrf.mxu0
  %v2581 = vpop.f32.mrf.mxu0
  %v2582 = vadd.f32 0.0, %v2581
  %v2583 = vpop.f32.mrf.mxu0
  %2584 = vmatprep.mubr.bf16.mxu0 0
  %2585 = vmatmul.mubr.bf16.gmra.mxu0 %v1147
  %v2586 = vpop.f32.mrf.mxu0
  %v2587 = vadd.f32 0.0, %v2586
  %v2588 = vpop.f32.mrf.mxu0
  %v2589 = vpop.f32.mrf.mxu0
  %v2590 = vadd.f32 0.0, %v2589
  %v2591 = vpop.f32.mrf.mxu0
  %2592 = vdwg.mxu0
  %2593 = vmatprep.subr.bf16.mxu0 0
  %2594 = vmatpush1.bf16.msra.mxu0 0
  %2595 = vmatprep.subr.bf16.mxu0 0
  %2596 = vmatpush1.bf16.msra.mxu0 0
  %2597 = vmatprep.subr.bf16.mxu0 0
  %2598 = vmatpush1.bf16.msra.mxu0 %v523
  %2599 = vmatprep.subr.bf16.mxu0 0
  %2600 = vmatpush1.bf16.msra.mxu0 %v522
  %2601 = vmatprep.subr.bf16.mxu0 0
  %2602 = vmatpush1.bf16.msra.mxu0 %v521
  %2603 = vmatprep.subr.bf16.mxu0 0
  %2604 = vmatpush1.bf16.msra.mxu0 %v520
  %2605 = vmatprep.subr.bf16.mxu0 0
  %2606 = vmatpush1.bf16.msra.mxu0 %v519
  %2607 = vmatprep.subr.bf16.mxu0 0
  %2608 = vmatpush1.bf16.msra.mxu0 %v518
  %2609 = vmatprep.subr.bf16.mxu0 0
  %2610 = vmatpush2.bf16.msra.mxu0 0
  %2611 = vmatprep.subr.bf16.mxu0 0
  %2612 = vmatpush2.bf16.msra.mxu0 0
  %2613 = vmatprep.subr.bf16.mxu0 0
  %2614 = vmatpush2.bf16.msra.mxu0 0
  %2615 = vmatprep.subr.bf16.mxu0 0
  %2616 = vmatpush2.bf16.msra.mxu0 0
  %2617 = vmatprep.subr.bf16.mxu0 0
  %2618 = vmatpush2.bf16.msra.mxu0 0
  %2619 = vmatprep.subr.bf16.mxu0 0
  %2620 = vmatpush2.bf16.msra.mxu0 0
  %2621 = vmatprep.subr.bf16.mxu0 0
  %2622 = vmatpush2.bf16.msra.mxu0 0
  %2623 = vmatprep.subr.bf16.mxu0 0
  %2624 = vmatpush2.bf16.msra.mxu0 0
  %2625 = vmatprep.mubr.bf16.mxu0 0
  %2626 = vmatmul.mubr.bf16.gmra.mxu0 %v238
  %v2627 = vpop.f32.mrf.mxu0
  %v2628 = vadd.f32 %v2483, %v2627
  %v2629 = vpop.f32.mrf.mxu0
  %v2630 = vpop.f32.mrf.mxu0
  %v2631 = vadd.f32 %v2486, %v2630
  %v2632 = vpop.f32.mrf.mxu0
  %2633 = vmatprep.mubr.bf16.mxu0 0
  %2634 = vmatmul.mubr.bf16.gmra.mxu0 %v241
  %v2635 = vpop.f32.mrf.mxu0
  %v2636 = vadd.f32 %v2491, %v2635
  %v2637 = vpop.f32.mrf.mxu0
  %v2638 = vpop.f32.mrf.mxu0
  %v2639 = vadd.f32 %v2494, %v2638
  %v2640 = vpop.f32.mrf.mxu0
  %2641 = vmatprep.mubr.bf16.mxu0 0
  %2642 = vmatmul.mubr.bf16.gmra.mxu0 %v244
  %v2643 = vpop.f32.mrf.mxu0
  %v2644 = vadd.f32 %v2499, %v2643
  %v2645 = vpop.f32.mrf.mxu0
  %v2646 = vpop.f32.mrf.mxu0
  %v2647 = vadd.f32 %v2502, %v2646
  %v2648 = vpop.f32.mrf.mxu0
  %2649 = vmatprep.mubr.bf16.mxu0 0
  %2650 = vmatmul.mubr.bf16.gmra.mxu0 %v247
  %v2651 = vpop.f32.mrf.mxu0
  %v2652 = vadd.f32 %v2507, %v2651
  %v2653 = vpop.f32.mrf.mxu0
  %v2654 = vpop.f32.mrf.mxu0
  %v2655 = vadd.f32 %v2510, %v2654
  %v2656 = vpop.f32.mrf.mxu0
  %2657 = vmatprep.mubr.bf16.mxu0 0
  %2658 = vmatmul.mubr.bf16.gmra.mxu0 %v250
  %v2659 = vpop.f32.mrf.mxu0
  %v2660 = vadd.f32 %v2515, %v2659
  %v2661 = vpop.f32.mrf.mxu0
  %v2662 = vpop.f32.mrf.mxu0
  %v2663 = vadd.f32 %v2518, %v2662
  %v2664 = vpop.f32.mrf.mxu0
  %2665 = vmatprep.mubr.bf16.mxu0 0
  %2666 = vmatmul.mubr.bf16.gmra.mxu0 %v253
  %v2667 = vpop.f32.mrf.mxu0
  %v2668 = vadd.f32 %v2523, %v2667
  %v2669 = vpop.f32.mrf.mxu0
  %v2670 = vpop.f32.mrf.mxu0
  %v2671 = vadd.f32 %v2526, %v2670
  %v2672 = vpop.f32.mrf.mxu0
  %2673 = vmatprep.mubr.bf16.mxu0 0
  %2674 = vmatmul.mubr.bf16.gmra.mxu0 %v256
  %v2675 = vpop.f32.mrf.mxu0
  %v2676 = vadd.f32 %v2531, %v2675
  %v2677 = vpop.f32.mrf.mxu0
  %v2678 = vpop.f32.mrf.mxu0
  %v2679 = vadd.f32 %v2534, %v2678
  %v2680 = vpop.f32.mrf.mxu0
  %2681 = vmatprep.mubr.bf16.mxu0 0
  %2682 = vmatmul.mubr.bf16.gmra.mxu0 %v259
  %v2683 = vpop.f32.mrf.mxu0
  %v2684 = vadd.f32 %v2539, %v2683
  %v2685 = vpop.f32.mrf.mxu0
  %v2686 = vpop.f32.mrf.mxu0
  %v2687 = vadd.f32 %v2542, %v2686
  %v2688 = vpop.f32.mrf.mxu0
  %2689 = vmatprep.mubr.bf16.mxu0 0
  %2690 = vmatmul.mubr.bf16.gmra.mxu0 %v262
  %v2691 = vpop.f32.mrf.mxu0
  %v2692 = vadd.f32 %v2547, %v2691
  %v2693 = vpop.f32.mrf.mxu0
  %v2694 = vpop.f32.mrf.mxu0
  %v2695 = vadd.f32 %v2550, %v2694
  %v2696 = vpop.f32.mrf.mxu0
  %2697 = vmatprep.mubr.bf16.mxu0 0
  %2698 = vmatmul.mubr.bf16.gmra.mxu0 %v265
  %v2699 = vpop.f32.mrf.mxu0
  %v2700 = vadd.f32 %v2555, %v2699
  %v2701 = vpop.f32.mrf.mxu0
  %v2702 = vpop.f32.mrf.mxu0
  %v2703 = vadd.f32 %v2558, %v2702
  %v2704 = vpop.f32.mrf.mxu0
  %2705 = vmatprep.mubr.bf16.mxu0 0
  %2706 = vmatmul.mubr.bf16.gmra.mxu0 %v268
  %v2707 = vpop.f32.mrf.mxu0
  %v2708 = vadd.f32 %v2563, %v2707
  %v2709 = vpop.f32.mrf.mxu0
  %v2710 = vpop.f32.mrf.mxu0
  %v2711 = vadd.f32 %v2566, %v2710
  %v2712 = vpop.f32.mrf.mxu0
  %2713 = vmatprep.mubr.bf16.mxu0 0
  %2714 = vmatmul.mubr.bf16.gmra.mxu0 %v271
  %v2715 = vpop.f32.mrf.mxu0
  %v2716 = vadd.f32 %v2571, %v2715
  %v2717 = vpop.f32.mrf.mxu0
  %v2718 = vpop.f32.mrf.mxu0
  %v2719 = vadd.f32 %v2574, %v2718
  %v2720 = vpop.f32.mrf.mxu0
  %2721 = vmatprep.mubr.bf16.mxu0 0
  %2722 = vmatmul.mubr.bf16.gmra.mxu0 %v274
  %v2723 = vpop.f32.mrf.mxu0
  %v2724 = vadd.f32 %v2579, %v2723
  %v2725 = vpop.f32.mrf.mxu0
  %v2726 = vpop.f32.mrf.mxu0
  %v2727 = vadd.f32 %v2582, %v2726
  %v2728 = vpop.f32.mrf.mxu0
  %2729 = vmatprep.mubr.bf16.mxu0 0
  %2730 = vmatmul.mubr.bf16.gmra.mxu0 %v277
  %v2731 = vpop.f32.mrf.mxu0
  %v2732 = vadd.f32 %v2587, %v2731
  %v2733 = vpop.f32.mrf.mxu0
  %v2734 = vpop.f32.mrf.mxu0
  %v2735 = vadd.f32 %v2590, %v2734
  %v2736 = vpop.f32.mrf.mxu0
  %2737 = vdwg.mxu0
  %2738 = vmatprep.subr.bf16.mxu0 0
  %2739 = vmatpush1.bf16.msra.mxu0 0
  %2740 = vmatprep.subr.bf16.mxu0 0
  %2741 = vmatpush1.bf16.msra.mxu0 0
  %2742 = vmatprep.subr.bf16.mxu0 0
  %2743 = vmatpush1.bf16.msra.mxu0 %v759
  %2744 = vmatprep.subr.bf16.mxu0 0
  %2745 = vmatpush1.bf16.msra.mxu0 %v758
  %2746 = vmatprep.subr.bf16.mxu0 0
  %2747 = vmatpush1.bf16.msra.mxu0 %v757
  %2748 = vmatprep.subr.bf16.mxu0 0
  %2749 = vmatpush1.bf16.msra.mxu0 %v756
  %2750 = vmatprep.subr.bf16.mxu0 0
  %2751 = vmatpush1.bf16.msra.mxu0 %v755
  %2752 = vmatprep.subr.bf16.mxu0 0
  %2753 = vmatpush1.bf16.msra.mxu0 %v754
  %2754 = vmatprep.subr.bf16.mxu0 0
  %2755 = vmatpush2.bf16.msra.mxu0 0
  %2756 = vmatprep.subr.bf16.mxu0 0
  %2757 = vmatpush2.bf16.msra.mxu0 0
  %2758 = vmatprep.subr.bf16.mxu0 0
  %2759 = vmatpush2.bf16.msra.mxu0 0
  %2760 = vmatprep.subr.bf16.mxu0 0
  %2761 = vmatpush2.bf16.msra.mxu0 0
  %2762 = vmatprep.subr.bf16.mxu0 0
  %2763 = vmatpush2.bf16.msra.mxu0 0
  %2764 = vmatprep.subr.bf16.mxu0 0
  %2765 = vmatpush2.bf16.msra.mxu0 0
  %2766 = vmatprep.subr.bf16.mxu0 0
  %2767 = vmatpush2.bf16.msra.mxu0 0
  %2768 = vmatprep.subr.bf16.mxu0 0
  %2769 = vmatpush2.bf16.msra.mxu0 0
  %2770 = vmatprep.mubr.bf16.mxu0 0
  %2771 = vmatmul.mubr.bf16.gmra.mxu0 %v534
  %v2772 = vpop.f32.mrf.mxu0
  %v2773 = vadd.f32 0.0, %v2772
  %v2774 = vpop.f32.mrf.mxu0
  %v2775 = vpop.f32.mrf.mxu0
  %v2776 = vadd.f32 0.0, %v2775
  %v2777 = vpop.f32.mrf.mxu0
  %2778 = vmatprep.mubr.bf16.mxu0 0
  %2779 = vmatmul.mubr.bf16.gmra.mxu0 %v537
  %v2780 = vpop.f32.mrf.mxu0
  %v2781 = vadd.f32 0.0, %v2780
  %v2782 = vpop.f32.mrf.mxu0
  %v2783 = vpop.f32.mrf.mxu0
  %v2784 = vadd.f32 0.0, %v2783
  %v2785 = vpop.f32.mrf.mxu0
  %2786 = vmatprep.mubr.bf16.mxu0 0
  %2787 = vmatmul.mubr.bf16.gmra.mxu0 %v540
  %v2788 = vpop.f32.mrf.mxu0
  %v2789 = vadd.f32 0.0, %v2788
  %v2790 = vpop.f32.mrf.mxu0
  %v2791 = vpop.f32.mrf.mxu0
  %v2792 = vadd.f32 0.0, %v2791
  %v2793 = vpop.f32.mrf.mxu0
  %2794 = vmatprep.mubr.bf16.mxu0 0
  %2795 = vmatmul.mubr.bf16.gmra.mxu0 %v543
  %v2796 = vpop.f32.mrf.mxu0
  %v2797 = vadd.f32 0.0, %v2796
  %v2798 = vpop.f32.mrf.mxu0
  %v2799 = vpop.f32.mrf.mxu0
  %v2800 = vadd.f32 0.0, %v2799
  %v2801 = vpop.f32.mrf.mxu0
  %2802 = vmatprep.mubr.bf16.mxu0 0
  %2803 = vmatmul.mubr.bf16.gmra.mxu0 %v546
  %v2804 = vpop.f32.mrf.mxu0
  %v2805 = vadd.f32 0.0, %v2804
  %v2806 = vpop.f32.mrf.mxu0
  %v2807 = vpop.f32.mrf.mxu0
  %v2808 = vadd.f32 0.0, %v2807
  %v2809 = vpop.f32.mrf.mxu0
  %2810 = vmatprep.mubr.bf16.mxu0 0
  %2811 = vmatmul.mubr.bf16.gmra.mxu0 %v549
  %v2812 = vpop.f32.mrf.mxu0
  %v2813 = vadd.f32 0.0, %v2812
  %v2814 = vpop.f32.mrf.mxu0
  %v2815 = vpop.f32.mrf.mxu0
  %v2816 = vadd.f32 0.0, %v2815
  %v2817 = vpop.f32.mrf.mxu0
  %2818 = vmatprep.mubr.bf16.mxu0 0
  %2819 = vmatmul.mubr.bf16.gmra.mxu0 %v552
  %v2820 = vpop.f32.mrf.mxu0
  %v2821 = vadd.f32 0.0, %v2820
  %v2822 = vpop.f32.mrf.mxu0
  %v2823 = vpop.f32.mrf.mxu0
  %v2824 = vadd.f32 0.0, %v2823
  %v2825 = vpop.f32.mrf.mxu0
  %2826 = vmatprep.mubr.bf16.mxu0 0
  %2827 = vmatmul.mubr.bf16.gmra.mxu0 %v555
  %v2828 = vpop.f32.mrf.mxu0
  %v2829 = vadd.f32 0.0, %v2828
  %v2830 = vpop.f32.mrf.mxu0
  %v2831 = vpop.f32.mrf.mxu0
  %v2832 = vadd.f32 0.0, %v2831
  %v2833 = vpop.f32.mrf.mxu0
  %2834 = vmatprep.mubr.bf16.mxu0 0
  %2835 = vmatmul.mubr.bf16.gmra.mxu0 %v558
  %v2836 = vpop.f32.mrf.mxu0
  %v2837 = vadd.f32 0.0, %v2836
  %v2838 = vpop.f32.mrf.mxu0
  %v2839 = vpop.f32.mrf.mxu0
  %v2840 = vadd.f32 0.0, %v2839
  %v2841 = vpop.f32.mrf.mxu0
  %2842 = vmatprep.mubr.bf16.mxu0 0
  %2843 = vmatmul.mubr.bf16.gmra.mxu0 %v561
  %v2844 = vpop.f32.mrf.mxu0
  %v2845 = vadd.f32 0.0, %v2844
  %v2846 = vpop.f32.mrf.mxu0
  %v2847 = vpop.f32.mrf.mxu0
  %v2848 = vadd.f32 0.0, %v2847
  %v2849 = vpop.f32.mrf.mxu0
  %2850 = vmatprep.mubr.bf16.mxu0 0
  %2851 = vmatmul.mubr.bf16.gmra.mxu0 %v564
  %v2852 = vpop.f32.mrf.mxu0
  %v2853 = vadd.f32 0.0, %v2852
  %v2854 = vpop.f32.mrf.mxu0
  %v2855 = vpop.f32.mrf.mxu0
  %v2856 = vadd.f32 0.0, %v2855
  %v2857 = vpop.f32.mrf.mxu0
  %2858 = vmatprep.mubr.bf16.mxu0 0
  %2859 = vmatmul.mubr.bf16.gmra.mxu0 %v567
  %v2860 = vpop.f32.mrf.mxu0
  %v2861 = vadd.f32 0.0, %v2860
  %v2862 = vpop.f32.mrf.mxu0
  %v2863 = vpop.f32.mrf.mxu0
  %v2864 = vadd.f32 0.0, %v2863
  %v2865 = vpop.f32.mrf.mxu0
  %2866 = vmatprep.mubr.bf16.mxu0 0
  %2867 = vmatmul.mubr.bf16.gmra.mxu0 %v570
  %v2868 = vpop.f32.mrf.mxu0
  %v2869 = vadd.f32 0.0, %v2868
  %v2870 = vpop.f32.mrf.mxu0
  %v2871 = vpop.f32.mrf.mxu0
  %v2872 = vadd.f32 0.0, %v2871
  %v2873 = vpop.f32.mrf.mxu0
  %2874 = vmatprep.mubr.bf16.mxu0 0
  %2875 = vmatmul.mubr.bf16.gmra.mxu0 %v1147
  %v2876 = vpop.f32.mrf.mxu0
  %v2877 = vadd.f32 0.0, %v2876
  %v2878 = vpop.f32.mrf.mxu0
  %v2879 = vpop.f32.mrf.mxu0
  %v2880 = vadd.f32 0.0, %v2879
  %v2881 = vpop.f32.mrf.mxu0
  %2882 = vdwg.mxu0
  %2883 = vmatprep.subr.bf16.mxu0 0
  %2884 = vmatpush1.bf16.msra.mxu0 0
  %2885 = vmatprep.subr.bf16.mxu0 0
  %2886 = vmatpush1.bf16.msra.mxu0 0
  %2887 = vmatprep.subr.bf16.mxu0 0
  %2888 = vmatpush1.bf16.msra.mxu0 %v940
  %2889 = vmatprep.subr.bf16.mxu0 0
  %2890 = vmatpush1.bf16.msra.mxu0 %v939
  %2891 = vmatprep.subr.bf16.mxu0 0
  %2892 = vmatpush1.bf16.msra.mxu0 %v938
  %2893 = vmatprep.subr.bf16.mxu0 0
  %2894 = vmatpush1.bf16.msra.mxu0 %v937
  %2895 = vmatprep.subr.bf16.mxu0 0
  %2896 = vmatpush1.bf16.msra.mxu0 %v936
  %2897 = vmatprep.subr.bf16.mxu0 0
  %2898 = vmatpush1.bf16.msra.mxu0 %v935
  %2899 = vmatprep.subr.bf16.mxu0 0
  %2900 = vmatpush2.bf16.msra.mxu0 0
  %2901 = vmatprep.subr.bf16.mxu0 0
  %2902 = vmatpush2.bf16.msra.mxu0 0
  %2903 = vmatprep.subr.bf16.mxu0 0
  %2904 = vmatpush2.bf16.msra.mxu0 0
  %2905 = vmatprep.subr.bf16.mxu0 0
  %2906 = vmatpush2.bf16.msra.mxu0 0
  %2907 = vmatprep.subr.bf16.mxu0 0
  %2908 = vmatpush2.bf16.msra.mxu0 0
  %2909 = vmatprep.subr.bf16.mxu0 0
  %2910 = vmatpush2.bf16.msra.mxu0 0
  %2911 = vmatprep.subr.bf16.mxu0 0
  %2912 = vmatpush2.bf16.msra.mxu0 0
  %2913 = vmatprep.subr.bf16.mxu0 0
  %2914 = vmatpush2.bf16.msra.mxu0 0
  %2915 = vmatprep.mubr.bf16.mxu0 0
  %2916 = vmatmul.mubr.bf16.gmra.mxu0 %v238
  %v2917 = vpop.f32.mrf.mxu0
  %v2918 = vadd.f32 %v2773, %v2917
  %v2919 = vpop.f32.mrf.mxu0
  %v2920 = vpop.f32.mrf.mxu0
  %v2921 = vadd.f32 %v2776, %v2920
  %v2922 = vpop.f32.mrf.mxu0
  %2923 = vmatprep.mubr.bf16.mxu0 0
  %2924 = vmatmul.mubr.bf16.gmra.mxu0 %v241
  %v2925 = vpop.f32.mrf.mxu0
  %v2926 = vadd.f32 %v2781, %v2925
  %v2927 = vpop.f32.mrf.mxu0
  %v2928 = vpop.f32.mrf.mxu0
  %v2929 = vadd.f32 %v2784, %v2928
  %v2930 = vpop.f32.mrf.mxu0
  %2931 = vmatprep.mubr.bf16.mxu0 0
  %2932 = vmatmul.mubr.bf16.gmra.mxu0 %v244
  %v2933 = vpop.f32.mrf.mxu0
  %v2934 = vadd.f32 %v2789, %v2933
  %v2935 = vpop.f32.mrf.mxu0
  %v2936 = vpop.f32.mrf.mxu0
  %v2937 = vadd.f32 %v2792, %v2936
  %v2938 = vpop.f32.mrf.mxu0
  %2939 = vmatprep.mubr.bf16.mxu0 0
  %2940 = vmatmul.mubr.bf16.gmra.mxu0 %v247
  %v2941 = vpop.f32.mrf.mxu0
  %v2942 = vadd.f32 %v2797, %v2941
  %v2943 = vpop.f32.mrf.mxu0
  %v2944 = vpop.f32.mrf.mxu0
  %v2945 = vadd.f32 %v2800, %v2944
  %v2946 = vpop.f32.mrf.mxu0
  %2947 = vmatprep.mubr.bf16.mxu0 0
  %2948 = vmatmul.mubr.bf16.gmra.mxu0 %v250
  %v2949 = vpop.f32.mrf.mxu0
  %v2950 = vadd.f32 %v2805, %v2949
  %v2951 = vpop.f32.mrf.mxu0
  %v2952 = vpop.f32.mrf.mxu0
  %v2953 = vadd.f32 %v2808, %v2952
  %v2954 = vpop.f32.mrf.mxu0
  %2955 = vmatprep.mubr.bf16.mxu0 0
  %2956 = vmatmul.mubr.bf16.gmra.mxu0 %v253
  %v2957 = vpop.f32.mrf.mxu0
  %v2958 = vadd.f32 %v2813, %v2957
  %v2959 = vpop.f32.mrf.mxu0
  %v2960 = vpop.f32.mrf.mxu0
  %v2961 = vadd.f32 %v2816, %v2960
  %v2962 = vpop.f32.mrf.mxu0
  %2963 = vmatprep.mubr.bf16.mxu0 0
  %2964 = vmatmul.mubr.bf16.gmra.mxu0 %v256
  %v2965 = vpop.f32.mrf.mxu0
  %v2966 = vadd.f32 %v2821, %v2965
  %v2967 = vpop.f32.mrf.mxu0
  %v2968 = vpop.f32.mrf.mxu0
  %v2969 = vadd.f32 %v2824, %v2968
  %v2970 = vpop.f32.mrf.mxu0
  %2971 = vmatprep.mubr.bf16.mxu0 0
  %2972 = vmatmul.mubr.bf16.gmra.mxu0 %v259
  %v2973 = vpop.f32.mrf.mxu0
  %v2974 = vadd.f32 %v2829, %v2973
  %v2975 = vpop.f32.mrf.mxu0
  %v2976 = vpop.f32.mrf.mxu0
  %v2977 = vadd.f32 %v2832, %v2976
  %v2978 = vpop.f32.mrf.mxu0
  %2979 = vmatprep.mubr.bf16.mxu0 0
  %2980 = vmatmul.mubr.bf16.gmra.mxu0 %v262
  %v2981 = vpop.f32.mrf.mxu0
  %v2982 = vadd.f32 %v2837, %v2981
  %v2983 = vpop.f32.mrf.mxu0
  %v2984 = vpop.f32.mrf.mxu0
  %v2985 = vadd.f32 %v2840, %v2984
  %v2986 = vpop.f32.mrf.mxu0
  %2987 = vmatprep.mubr.bf16.mxu0 0
  %2988 = vmatmul.mubr.bf16.gmra.mxu0 %v265
  %v2989 = vpop.f32.mrf.mxu0
  %v2990 = vadd.f32 %v2845, %v2989
  %v2991 = vpop.f32.mrf.mxu0
  %v2992 = vpop.f32.mrf.mxu0
  %v2993 = vadd.f32 %v2848, %v2992
  %v2994 = vpop.f32.mrf.mxu0
  %2995 = vmatprep.mubr.bf16.mxu0 0
  %2996 = vmatmul.mubr.bf16.gmra.mxu0 %v268
  %v2997 = vpop.f32.mrf.mxu0
  %v2998 = vadd.f32 %v2853, %v2997
  %v2999 = vpop.f32.mrf.mxu0
  %v3000 = vpop.f32.mrf.mxu0
  %v3001 = vadd.f32 %v2856, %v3000
  %v3002 = vpop.f32.mrf.mxu0
  %3003 = vmatprep.mubr.bf16.mxu0 0
  %3004 = vmatmul.mubr.bf16.gmra.mxu0 %v271
  %v3005 = vpop.f32.mrf.mxu0
  %v3006 = vadd.f32 %v2861, %v3005
  %v3007 = vpop.f32.mrf.mxu0
  %v3008 = vpop.f32.mrf.mxu0
  %v3009 = vadd.f32 %v2864, %v3008
  %v3010 = vpop.f32.mrf.mxu0
  %3011 = vmatprep.mubr.bf16.mxu0 0
  %3012 = vmatmul.mubr.bf16.gmra.mxu0 %v274
  %v3013 = vpop.f32.mrf.mxu0
  %v3014 = vadd.f32 %v2869, %v3013
  %v3015 = vpop.f32.mrf.mxu0
  %v3016 = vpop.f32.mrf.mxu0
  %v3017 = vadd.f32 %v2872, %v3016
  %v3018 = vpop.f32.mrf.mxu0
  %3019 = vmatprep.mubr.bf16.mxu0 0
  %3020 = vmatmul.mubr.bf16.gmra.mxu0 %v277
  %v3021 = vpop.f32.mrf.mxu0
  %v3022 = vadd.f32 %v2877, %v3021
  %v3023 = vpop.f32.mrf.mxu0
  %v3024 = vpop.f32.mrf.mxu0
  %v3025 = vadd.f32 %v2880, %v3024
  %v3026 = vpop.f32.mrf.mxu0
  %3027 = vdwg.mxu0
  %3028 = vmatprep.subr.bf16.mxu0 0
  %3029 = vmatpush1.bf16.msra.mxu0 0
  %3030 = vmatprep.subr.bf16.mxu0 0
  %3031 = vmatpush1.bf16.msra.mxu0 0
  %3032 = vmatprep.subr.bf16.mxu0 0
  %3033 = vmatpush1.bf16.msra.mxu0 %v1139
  %3034 = vmatprep.subr.bf16.mxu0 0
  %3035 = vmatpush1.bf16.msra.mxu0 %v1138
  %3036 = vmatprep.subr.bf16.mxu0 0
  %3037 = vmatpush1.bf16.msra.mxu0 %v1137
  %3038 = vmatprep.subr.bf16.mxu0 0
  %3039 = vmatpush1.bf16.msra.mxu0 %v1136
  %3040 = vmatprep.subr.bf16.mxu0 0
  %3041 = vmatpush1.bf16.msra.mxu0 %v1135
  %3042 = vmatprep.subr.bf16.mxu0 0
  %3043 = vmatpush1.bf16.msra.mxu0 %v1134
  %3044 = vmatprep.subr.bf16.mxu0 0
  %3045 = vmatpush2.bf16.msra.mxu0 0
  %3046 = vmatprep.subr.bf16.mxu0 0
  %3047 = vmatpush2.bf16.msra.mxu0 0
  %3048 = vmatprep.subr.bf16.mxu0 0
  %3049 = vmatpush2.bf16.msra.mxu0 0
  %3050 = vmatprep.subr.bf16.mxu0 0
  %3051 = vmatpush2.bf16.msra.mxu0 0
  %3052 = vmatprep.subr.bf16.mxu0 0
  %3053 = vmatpush2.bf16.msra.mxu0 0
  %3054 = vmatprep.subr.bf16.mxu0 0
  %3055 = vmatpush2.bf16.msra.mxu0 0
  %3056 = vmatprep.subr.bf16.mxu0 0
  %3057 = vmatpush2.bf16.msra.mxu0 0
  %3058 = vmatprep.subr.bf16.mxu0 0
  %3059 = vmatpush2.bf16.msra.mxu0 0
  %3060 = vmatprep.mubr.bf16.mxu0 0
  %3061 = vmatmul.mubr.bf16.gmra.mxu0 %v241
  %v3062 = vpop.f32.mrf.mxu0
  %v3063 = vadd.f32 0.0, %v3062
  %v3064 = vpop.f32.mrf.mxu0
  %v3065 = vpop.f32.mrf.mxu0
  %v3066 = vadd.f32 0.0, %v3065
  %v3067 = vpop.f32.mrf.mxu0
  %3068 = vmatprep.mubr.bf16.mxu0 0
  %3069 = vmatmul.mubr.bf16.gmra.mxu0 %v244
  %v3070 = vpop.f32.mrf.mxu0
  %v3071 = vadd.f32 0.0, %v3070
  %v3072 = vpop.f32.mrf.mxu0
  %v3073 = vpop.f32.mrf.mxu0
  %v3074 = vadd.f32 0.0, %v3073
  %v3075 = vpop.f32.mrf.mxu0
  %3076 = vmatprep.mubr.bf16.mxu0 0
  %3077 = vmatmul.mubr.bf16.gmra.mxu0 %v247
  %v3078 = vpop.f32.mrf.mxu0
  %v3079 = vadd.f32 0.0, %v3078
  %v3080 = vpop.f32.mrf.mxu0
  %v3081 = vpop.f32.mrf.mxu0
  %v3082 = vadd.f32 0.0, %v3081
  %v3083 = vpop.f32.mrf.mxu0
  %3084 = vmatprep.mubr.bf16.mxu0 0
  %3085 = vmatmul.mubr.bf16.gmra.mxu0 %v250
  %v3086 = vpop.f32.mrf.mxu0
  %v3087 = vadd.f32 0.0, %v3086
  %v3088 = vpop.f32.mrf.mxu0
  %v3089 = vpop.f32.mrf.mxu0
  %v3090 = vadd.f32 0.0, %v3089
  %v3091 = vpop.f32.mrf.mxu0
  %3092 = vmatprep.mubr.bf16.mxu0 0
  %3093 = vmatmul.mubr.bf16.gmra.mxu0 %v253
  %v3094 = vpop.f32.mrf.mxu0
  %v3095 = vadd.f32 0.0, %v3094
  %v3096 = vpop.f32.mrf.mxu0
  %v3097 = vpop.f32.mrf.mxu0
  %v3098 = vadd.f32 0.0, %v3097
  %v3099 = vpop.f32.mrf.mxu0
  %3100 = vmatprep.mubr.bf16.mxu0 0
  %3101 = vmatmul.mubr.bf16.gmra.mxu0 %v256
  %v3102 = vpop.f32.mrf.mxu0
  %v3103 = vadd.f32 0.0, %v3102
  %v3104 = vpop.f32.mrf.mxu0
  %v3105 = vpop.f32.mrf.mxu0
  %v3106 = vadd.f32 0.0, %v3105
  %v3107 = vpop.f32.mrf.mxu0
  %3108 = vmatprep.mubr.bf16.mxu0 0
  %3109 = vmatmul.mubr.bf16.gmra.mxu0 %v259
  %v3110 = vpop.f32.mrf.mxu0
  %v3111 = vadd.f32 0.0, %v3110
  %v3112 = vpop.f32.mrf.mxu0
  %v3113 = vpop.f32.mrf.mxu0
  %v3114 = vadd.f32 0.0, %v3113
  %v3115 = vpop.f32.mrf.mxu0
  %3116 = vmatprep.mubr.bf16.mxu0 0
  %3117 = vmatmul.mubr.bf16.gmra.mxu0 %v262
  %v3118 = vpop.f32.mrf.mxu0
  %v3119 = vadd.f32 0.0, %v3118
  %v3120 = vpop.f32.mrf.mxu0
  %v3121 = vpop.f32.mrf.mxu0
  %v3122 = vadd.f32 0.0, %v3121
  %v3123 = vpop.f32.mrf.mxu0
  %3124 = vmatprep.mubr.bf16.mxu0 0
  %3125 = vmatmul.mubr.bf16.gmra.mxu0 %v265
  %v3126 = vpop.f32.mrf.mxu0
  %v3127 = vadd.f32 0.0, %v3126
  %v3128 = vpop.f32.mrf.mxu0
  %v3129 = vpop.f32.mrf.mxu0
  %v3130 = vadd.f32 0.0, %v3129
  %v3131 = vpop.f32.mrf.mxu0
  %3132 = vmatprep.mubr.bf16.mxu0 0
  %3133 = vmatmul.mubr.bf16.gmra.mxu0 %v268
  %v3134 = vpop.f32.mrf.mxu0
  %v3135 = vadd.f32 0.0, %v3134
  %v3136 = vpop.f32.mrf.mxu0
  %v3137 = vpop.f32.mrf.mxu0
  %v3138 = vadd.f32 0.0, %v3137
  %v3139 = vpop.f32.mrf.mxu0
  %3140 = vmatprep.mubr.bf16.mxu0 0
  %3141 = vmatmul.mubr.bf16.gmra.mxu0 %v271
  %v3142 = vpop.f32.mrf.mxu0
  %v3143 = vadd.f32 0.0, %v3142
  %v3144 = vpop.f32.mrf.mxu0
  %v3145 = vpop.f32.mrf.mxu0
  %v3146 = vadd.f32 0.0, %v3145
  %v3147 = vpop.f32.mrf.mxu0
  %3148 = vmatprep.mubr.bf16.mxu0 0
  %3149 = vmatmul.mubr.bf16.gmra.mxu0 %v274
  %v3150 = vpop.f32.mrf.mxu0
  %v3151 = vadd.f32 0.0, %v3150
  %v3152 = vpop.f32.mrf.mxu0
  %v3153 = vpop.f32.mrf.mxu0
  %v3154 = vadd.f32 0.0, %v3153
  %v3155 = vpop.f32.mrf.mxu0
  %3156 = vmatprep.mubr.bf16.mxu0 0
  %3157 = vmatmul.mubr.bf16.gmra.mxu0 %v277
  %v3158 = vpop.f32.mrf.mxu0
  %v3159 = vadd.f32 0.0, %v3158
  %v3160 = vpop.f32.mrf.mxu0
  %v3161 = vpop.f32.mrf.mxu0
  %v3162 = vadd.f32 0.0, %v3161
  %v3163 = vpop.f32.mrf.mxu0
  %3164 = vmatprep.mubr.bf16.mxu0 0
  %3165 = vmatmul.mubr.bf16.gmra.mxu0 %v1599
  %v3166 = vpop.f32.mrf.mxu0
  %v3167 = vadd.f32 0.0, %v3166
  %v3168 = vpop.f32.mrf.mxu0
  %v3169 = vpop.f32.mrf.mxu0
  %v3170 = vadd.f32 0.0, %v3169
  %v3171 = vpop.f32.mrf.mxu0
  %3172 = vdwg.mxu0
  %v3173 = vadd.f32 %v2628, %v3063
  %v3174 = vadd.f32 %v2631, %v3066
  %v3175 = vadd.f32 %v2636, %v3071
  %v3176 = vadd.f32 %v2639, %v3074
  %v3177 = vadd.f32 %v2644, %v3079
  %v3178 = vadd.f32 %v2647, %v3082
  %v3179 = vadd.f32 %v2652, %v3087
  %v3180 = vadd.f32 %v2655, %v3090
  %v3181 = vadd.f32 %v2660, %v3095
  %v3182 = vadd.f32 %v2663, %v3098
  %v3183 = vadd.f32 %v2668, %v3103
  %v3184 = vadd.f32 %v2671, %v3106
  %v3185 = vadd.f32 %v2676, %v3111
  %v3186 = vadd.f32 %v2679, %v3114
  %v3187 = vadd.f32 %v2684, %v3119
  %v3188 = vadd.f32 %v2687, %v3122
  %v3189 = vadd.f32 %v2692, %v3127
  %v3190 = vadd.f32 %v2695, %v3130
  %v3191 = vadd.f32 %v2700, %v3135
  %v3192 = vadd.f32 %v2703, %v3138
  %v3193 = vadd.f32 %v2708, %v3143
  %v3194 = vadd.f32 %v2711, %v3146
  %v3195 = vadd.f32 %v2716, %v3151
  %v3196 = vadd.f32 %v2719, %v3154
  %v3197 = vadd.f32 %v2724, %v3159
  %v3198 = vadd.f32 %v2727, %v3162
  %v3199 = vadd.f32 %v2732, %v3167
  %v3200 = vadd.f32 %v2735, %v3170
  %3201 = vmatprep.subr.bf16.mxu0 0
  %3202 = vmatpush1.bf16.msra.mxu0 0
  %3203 = vmatprep.subr.bf16.mxu0 0
  %3204 = vmatpush1.bf16.msra.mxu0 0
  %3205 = vmatprep.subr.bf16.mxu0 0
  %3206 = vmatpush1.bf16.msra.mxu0 %v1364
  %3207 = vmatprep.subr.bf16.mxu0 0
  %3208 = vmatpush1.bf16.msra.mxu0 %v1363
  %3209 = vmatprep.subr.bf16.mxu0 0
  %3210 = vmatpush1.bf16.msra.mxu0 %v1362
  %3211 = vmatprep.subr.bf16.mxu0 0
  %3212 = vmatpush1.bf16.msra.mxu0 %v1361
  %3213 = vmatprep.subr.bf16.mxu0 0
  %3214 = vmatpush1.bf16.msra.mxu0 %v1360
  %3215 = vmatprep.subr.bf16.mxu0 0
  %3216 = vmatpush1.bf16.msra.mxu0 %v1359
  %3217 = vmatprep.subr.bf16.mxu0 0
  %3218 = vmatpush2.bf16.msra.mxu0 0
  %3219 = vmatprep.subr.bf16.mxu0 0
  %3220 = vmatpush2.bf16.msra.mxu0 0
  %3221 = vmatprep.subr.bf16.mxu0 0
  %3222 = vmatpush2.bf16.msra.mxu0 0
  %3223 = vmatprep.subr.bf16.mxu0 0
  %3224 = vmatpush2.bf16.msra.mxu0 0
  %3225 = vmatprep.subr.bf16.mxu0 0
  %3226 = vmatpush2.bf16.msra.mxu0 0
  %3227 = vmatprep.subr.bf16.mxu0 0
  %3228 = vmatpush2.bf16.msra.mxu0 0
  %3229 = vmatprep.subr.bf16.mxu0 0
  %3230 = vmatpush2.bf16.msra.mxu0 0
  %3231 = vmatprep.subr.bf16.mxu0 0
  %3232 = vmatpush2.bf16.msra.mxu0 0
  %3233 = vmatprep.mubr.bf16.mxu0 0
  %3234 = vmatmul.mubr.bf16.gmra.mxu0 %v241
  %v3235 = vpop.f32.mrf.mxu0
  %v3236 = vadd.f32 0.0, %v3235
  %v3237 = vpop.f32.mrf.mxu0
  %v3238 = vpop.f32.mrf.mxu0
  %v3239 = vadd.f32 0.0, %v3238
  %v3240 = vpop.f32.mrf.mxu0
  %3241 = vmatprep.mubr.bf16.mxu0 0
  %3242 = vmatmul.mubr.bf16.gmra.mxu0 %v244
  %v3243 = vpop.f32.mrf.mxu0
  %v3244 = vadd.f32 0.0, %v3243
  %v3245 = vpop.f32.mrf.mxu0
  %v3246 = vpop.f32.mrf.mxu0
  %v3247 = vadd.f32 0.0, %v3246
  %v3248 = vpop.f32.mrf.mxu0
  %3249 = vmatprep.mubr.bf16.mxu0 0
  %3250 = vmatmul.mubr.bf16.gmra.mxu0 %v247
  %v3251 = vpop.f32.mrf.mxu0
  %v3252 = vadd.f32 0.0, %v3251
  %v3253 = vpop.f32.mrf.mxu0
  %v3254 = vpop.f32.mrf.mxu0
  %v3255 = vadd.f32 0.0, %v3254
  %v3256 = vpop.f32.mrf.mxu0
  %3257 = vmatprep.mubr.bf16.mxu0 0
  %3258 = vmatmul.mubr.bf16.gmra.mxu0 %v250
  %v3259 = vpop.f32.mrf.mxu0
  %v3260 = vadd.f32 0.0, %v3259
  %v3261 = vpop.f32.mrf.mxu0
  %v3262 = vpop.f32.mrf.mxu0
  %v3263 = vadd.f32 0.0, %v3262
  %v3264 = vpop.f32.mrf.mxu0
  %3265 = vmatprep.mubr.bf16.mxu0 0
  %3266 = vmatmul.mubr.bf16.gmra.mxu0 %v253
  %v3267 = vpop.f32.mrf.mxu0
  %v3268 = vadd.f32 0.0, %v3267
  %v3269 = vpop.f32.mrf.mxu0
  %v3270 = vpop.f32.mrf.mxu0
  %v3271 = vadd.f32 0.0, %v3270
  %v3272 = vpop.f32.mrf.mxu0
  %3273 = vmatprep.mubr.bf16.mxu0 0
  %3274 = vmatmul.mubr.bf16.gmra.mxu0 %v256
  %v3275 = vpop.f32.mrf.mxu0
  %v3276 = vadd.f32 0.0, %v3275
  %v3277 = vpop.f32.mrf.mxu0
  %v3278 = vpop.f32.mrf.mxu0
  %v3279 = vadd.f32 0.0, %v3278
  %v3280 = vpop.f32.mrf.mxu0
  %3281 = vmatprep.mubr.bf16.mxu0 0
  %3282 = vmatmul.mubr.bf16.gmra.mxu0 %v259
  %v3283 = vpop.f32.mrf.mxu0
  %v3284 = vadd.f32 0.0, %v3283
  %v3285 = vpop.f32.mrf.mxu0
  %v3286 = vpop.f32.mrf.mxu0
  %v3287 = vadd.f32 0.0, %v3286
  %v3288 = vpop.f32.mrf.mxu0
  %3289 = vmatprep.mubr.bf16.mxu0 0
  %3290 = vmatmul.mubr.bf16.gmra.mxu0 %v262
  %v3291 = vpop.f32.mrf.mxu0
  %v3292 = vadd.f32 0.0, %v3291
  %v3293 = vpop.f32.mrf.mxu0
  %v3294 = vpop.f32.mrf.mxu0
  %v3295 = vadd.f32 0.0, %v3294
  %v3296 = vpop.f32.mrf.mxu0
  %3297 = vmatprep.mubr.bf16.mxu0 0
  %3298 = vmatmul.mubr.bf16.gmra.mxu0 %v265
  %v3299 = vpop.f32.mrf.mxu0
  %v3300 = vadd.f32 0.0, %v3299
  %v3301 = vpop.f32.mrf.mxu0
  %v3302 = vpop.f32.mrf.mxu0
  %v3303 = vadd.f32 0.0, %v3302
  %v3304 = vpop.f32.mrf.mxu0
  %3305 = vmatprep.mubr.bf16.mxu0 0
  %3306 = vmatmul.mubr.bf16.gmra.mxu0 %v268
  %v3307 = vpop.f32.mrf.mxu0
  %v3308 = vadd.f32 0.0, %v3307
  %v3309 = vpop.f32.mrf.mxu0
  %v3310 = vpop.f32.mrf.mxu0
  %v3311 = vadd.f32 0.0, %v3310
  %v3312 = vpop.f32.mrf.mxu0
  %3313 = vmatprep.mubr.bf16.mxu0 0
  %3314 = vmatmul.mubr.bf16.gmra.mxu0 %v271
  %v3315 = vpop.f32.mrf.mxu0
  %v3316 = vadd.f32 0.0, %v3315
  %v3317 = vpop.f32.mrf.mxu0
  %v3318 = vpop.f32.mrf.mxu0
  %v3319 = vadd.f32 0.0, %v3318
  %v3320 = vpop.f32.mrf.mxu0
  %3321 = vmatprep.mubr.bf16.mxu0 0
  %3322 = vmatmul.mubr.bf16.gmra.mxu0 %v274
  %v3323 = vpop.f32.mrf.mxu0
  %v3324 = vadd.f32 0.0, %v3323
  %v3325 = vpop.f32.mrf.mxu0
  %v3326 = vpop.f32.mrf.mxu0
  %v3327 = vadd.f32 0.0, %v3326
  %v3328 = vpop.f32.mrf.mxu0
  %3329 = vmatprep.mubr.bf16.mxu0 0
  %3330 = vmatmul.mubr.bf16.gmra.mxu0 %v277
  %v3331 = vpop.f32.mrf.mxu0
  %v3332 = vadd.f32 0.0, %v3331
  %v3333 = vpop.f32.mrf.mxu0
  %v3334 = vpop.f32.mrf.mxu0
  %v3335 = vadd.f32 0.0, %v3334
  %v3336 = vpop.f32.mrf.mxu0
  %3337 = vmatprep.mubr.bf16.mxu0 0
  %3338 = vmatmul.mubr.bf16.gmra.mxu0 %v1599
  %v3339 = vpop.f32.mrf.mxu0
  %v3340 = vadd.f32 0.0, %v3339
  %v3341 = vpop.f32.mrf.mxu0
  %v3342 = vpop.f32.mrf.mxu0
  %v3343 = vadd.f32 0.0, %v3342
  %v3344 = vpop.f32.mrf.mxu0
  %3345 = vdwg.mxu0
  %v3346 = vadd.f32 %v2918, %v3236
  %v3347 = vadd.f32 %v2921, %v3239
  %v3348 = vadd.f32 %v2926, %v3244
  %v3349 = vadd.f32 %v2929, %v3247
  %v3350 = vadd.f32 %v2934, %v3252
  %v3351 = vadd.f32 %v2937, %v3255
  %v3352 = vadd.f32 %v2942, %v3260
  %v3353 = vadd.f32 %v2945, %v3263
  %v3354 = vadd.f32 %v2950, %v3268
  %v3355 = vadd.f32 %v2953, %v3271
  %v3356 = vadd.f32 %v2958, %v3276
  %v3357 = vadd.f32 %v2961, %v3279
  %v3358 = vadd.f32 %v2966, %v3284
  %v3359 = vadd.f32 %v2969, %v3287
  %v3360 = vadd.f32 %v2974, %v3292
  %v3361 = vadd.f32 %v2977, %v3295
  %v3362 = vadd.f32 %v2982, %v3300
  %v3363 = vadd.f32 %v2985, %v3303
  %v3364 = vadd.f32 %v2990, %v3308
  %v3365 = vadd.f32 %v2993, %v3311
  %v3366 = vadd.f32 %v2998, %v3316
  %v3367 = vadd.f32 %v3001, %v3319
  %v3368 = vadd.f32 %v3006, %v3324
  %v3369 = vadd.f32 %v3009, %v3327
  %v3370 = vadd.f32 %v3014, %v3332
  %v3371 = vadd.f32 %v3017, %v3335
  %v3372 = vadd.f32 %v3022, %v3340
  %v3373 = vadd.f32 %v3025, %v3343
  %3374 = vmatprep.subr.bf16.mxu0 0
  %3375 = vmatpush1.bf16.msra.mxu0 0
  %3376 = vmatprep.subr.bf16.mxu0 0
  %3377 = vmatpush1.bf16.msra.mxu0 0
  %3378 = vmatprep.subr.bf16.mxu0 0
  %3379 = vmatpush1.bf16.msra.mxu0 %v1591
  %3380 = vmatprep.subr.bf16.mxu0 0
  %3381 = vmatpush1.bf16.msra.mxu0 %v1590
  %3382 = vmatprep.subr.bf16.mxu0 0
  %3383 = vmatpush1.bf16.msra.mxu0 %v1589
  %3384 = vmatprep.subr.bf16.mxu0 0
  %3385 = vmatpush1.bf16.msra.mxu0 %v1588
  %3386 = vmatprep.subr.bf16.mxu0 0
  %3387 = vmatpush1.bf16.msra.mxu0 %v1587
  %3388 = vmatprep.subr.bf16.mxu0 0
  %3389 = vmatpush1.bf16.msra.mxu0 %v1586
  %3390 = vmatprep.subr.bf16.mxu0 0
  %3391 = vmatpush2.bf16.msra.mxu0 0
  %3392 = vmatprep.subr.bf16.mxu0 0
  %3393 = vmatpush2.bf16.msra.mxu0 0
  %3394 = vmatprep.subr.bf16.mxu0 0
  %3395 = vmatpush2.bf16.msra.mxu0 0
  %3396 = vmatprep.subr.bf16.mxu0 0
  %3397 = vmatpush2.bf16.msra.mxu0 0
  %3398 = vmatprep.subr.bf16.mxu0 0
  %3399 = vmatpush2.bf16.msra.mxu0 0
  %3400 = vmatprep.subr.bf16.mxu0 0
  %3401 = vmatpush2.bf16.msra.mxu0 0
  %3402 = vmatprep.subr.bf16.mxu0 0
  %3403 = vmatpush2.bf16.msra.mxu0 0
  %3404 = vmatprep.subr.bf16.mxu0 0
  %3405 = vmatpush2.bf16.msra.mxu0 0
  %3406 = vmatprep.mubr.bf16.mxu0 0
  %3407 = vmatmul.mubr.bf16.gmra.mxu0 %v537
  %v3408 = vpop.f32.mrf.mxu0
  %v3409 = vadd.f32 0.0, %v3408
  %v3410 = vpop.f32.mrf.mxu0
  %v3411 = vpop.f32.mrf.mxu0
  %v3412 = vadd.f32 0.0, %v3411
  %v3413 = vpop.f32.mrf.mxu0
  %3414 = vmatprep.mubr.bf16.mxu0 0
  %3415 = vmatmul.mubr.bf16.gmra.mxu0 %v540
  %v3416 = vpop.f32.mrf.mxu0
  %v3417 = vadd.f32 0.0, %v3416
  %v3418 = vpop.f32.mrf.mxu0
  %v3419 = vpop.f32.mrf.mxu0
  %v3420 = vadd.f32 0.0, %v3419
  %v3421 = vpop.f32.mrf.mxu0
  %3422 = vmatprep.mubr.bf16.mxu0 0
  %3423 = vmatmul.mubr.bf16.gmra.mxu0 %v543
  %v3424 = vpop.f32.mrf.mxu0
  %v3425 = vadd.f32 0.0, %v3424
  %v3426 = vpop.f32.mrf.mxu0
  %v3427 = vpop.f32.mrf.mxu0
  %v3428 = vadd.f32 0.0, %v3427
  %v3429 = vpop.f32.mrf.mxu0
  %3430 = vmatprep.mubr.bf16.mxu0 0
  %3431 = vmatmul.mubr.bf16.gmra.mxu0 %v546
  %v3432 = vpop.f32.mrf.mxu0
  %v3433 = vadd.f32 0.0, %v3432
  %v3434 = vpop.f32.mrf.mxu0
  %v3435 = vpop.f32.mrf.mxu0
  %v3436 = vadd.f32 0.0, %v3435
  %v3437 = vpop.f32.mrf.mxu0
  %3438 = vmatprep.mubr.bf16.mxu0 0
  %3439 = vmatmul.mubr.bf16.gmra.mxu0 %v549
  %v3440 = vpop.f32.mrf.mxu0
  %v3441 = vadd.f32 0.0, %v3440
  %v3442 = vpop.f32.mrf.mxu0
  %v3443 = vpop.f32.mrf.mxu0
  %v3444 = vadd.f32 0.0, %v3443
  %v3445 = vpop.f32.mrf.mxu0
  %3446 = vmatprep.mubr.bf16.mxu0 0
  %3447 = vmatmul.mubr.bf16.gmra.mxu0 %v552
  %v3448 = vpop.f32.mrf.mxu0
  %v3449 = vadd.f32 0.0, %v3448
  %v3450 = vpop.f32.mrf.mxu0
  %v3451 = vpop.f32.mrf.mxu0
  %v3452 = vadd.f32 0.0, %v3451
  %v3453 = vpop.f32.mrf.mxu0
  %3454 = vmatprep.mubr.bf16.mxu0 0
  %3455 = vmatmul.mubr.bf16.gmra.mxu0 %v555
  %v3456 = vpop.f32.mrf.mxu0
  %v3457 = vadd.f32 0.0, %v3456
  %v3458 = vpop.f32.mrf.mxu0
  %v3459 = vpop.f32.mrf.mxu0
  %v3460 = vadd.f32 0.0, %v3459
  %v3461 = vpop.f32.mrf.mxu0
  %3462 = vmatprep.mubr.bf16.mxu0 0
  %3463 = vmatmul.mubr.bf16.gmra.mxu0 %v558
  %v3464 = vpop.f32.mrf.mxu0
  %v3465 = vadd.f32 0.0, %v3464
  %v3466 = vpop.f32.mrf.mxu0
  %v3467 = vpop.f32.mrf.mxu0
  %v3468 = vadd.f32 0.0, %v3467
  %v3469 = vpop.f32.mrf.mxu0
  %3470 = vmatprep.mubr.bf16.mxu0 0
  %3471 = vmatmul.mubr.bf16.gmra.mxu0 %v561
  %v3472 = vpop.f32.mrf.mxu0
  %v3473 = vadd.f32 0.0, %v3472
  %v3474 = vpop.f32.mrf.mxu0
  %v3475 = vpop.f32.mrf.mxu0
  %v3476 = vadd.f32 0.0, %v3475
  %v3477 = vpop.f32.mrf.mxu0
  %3478 = vmatprep.mubr.bf16.mxu0 0
  %3479 = vmatmul.mubr.bf16.gmra.mxu0 %v564
  %v3480 = vpop.f32.mrf.mxu0
  %v3481 = vadd.f32 0.0, %v3480
  %v3482 = vpop.f32.mrf.mxu0
  %v3483 = vpop.f32.mrf.mxu0
  %v3484 = vadd.f32 0.0, %v3483
  %v3485 = vpop.f32.mrf.mxu0
  %3486 = vmatprep.mubr.bf16.mxu0 0
  %3487 = vmatmul.mubr.bf16.gmra.mxu0 %v567
  %v3488 = vpop.f32.mrf.mxu0
  %v3489 = vadd.f32 0.0, %v3488
  %v3490 = vpop.f32.mrf.mxu0
  %v3491 = vpop.f32.mrf.mxu0
  %v3492 = vadd.f32 0.0, %v3491
  %v3493 = vpop.f32.mrf.mxu0
  %3494 = vmatprep.mubr.bf16.mxu0 0
  %3495 = vmatmul.mubr.bf16.gmra.mxu0 %v570
  %v3496 = vpop.f32.mrf.mxu0
  %v3497 = vadd.f32 0.0, %v3496
  %v3498 = vpop.f32.mrf.mxu0
  %v3499 = vpop.f32.mrf.mxu0
  %v3500 = vadd.f32 0.0, %v3499
  %v3501 = vpop.f32.mrf.mxu0
  %3502 = vmatprep.mubr.bf16.mxu0 0
  %3503 = vmatmul.mubr.bf16.gmra.mxu0 %v1147
  %v3504 = vpop.f32.mrf.mxu0
  %v3505 = vadd.f32 0.0, %v3504
  %v3506 = vpop.f32.mrf.mxu0
  %v3507 = vpop.f32.mrf.mxu0
  %v3508 = vadd.f32 0.0, %v3507
  %v3509 = vpop.f32.mrf.mxu0
  %3510 = vmatprep.mubr.bf16.mxu0 0
  %3511 = vmatmul.mubr.bf16.gmra.mxu0 %v2051
  %v3512 = vpop.f32.mrf.mxu0
  %v3513 = vadd.f32 0.0, %v3512
  %v3514 = vpop.f32.mrf.mxu0
  %v3515 = vpop.f32.mrf.mxu0
  %v3516 = vadd.f32 0.0, %v3515
  %v3517 = vpop.f32.mrf.mxu0
  %3518 = vdwg.mxu0
  %v3519 = vadd.f32 %v3173, %v3409
  %v3520 = vadd.f32 %v3174, %v3412
  %v3521 = vadd.f32 %v3175, %v3417
  %v3522 = vadd.f32 %v3176, %v3420
  %v3523 = vadd.f32 %v3177, %v3425
  %v3524 = vadd.f32 %v3178, %v3428
  %v3525 = vadd.f32 %v3179, %v3433
  %v3526 = vadd.f32 %v3180, %v3436
  %v3527 = vadd.f32 %v3181, %v3441
  %v3528 = vadd.f32 %v3182, %v3444
  %v3529 = vadd.f32 %v3183, %v3449
  %v3530 = vadd.f32 %v3184, %v3452
  %v3531 = vadd.f32 %v3185, %v3457
  %v3532 = vadd.f32 %v3186, %v3460
  %v3533 = vadd.f32 %v3187, %v3465
  %v3534 = vadd.f32 %v3188, %v3468
  %v3535 = vadd.f32 %v3189, %v3473
  %v3536 = vadd.f32 %v3190, %v3476
  %v3537 = vadd.f32 %v3191, %v3481
  %v3538 = vadd.f32 %v3192, %v3484
  %v3539 = vadd.f32 %v3193, %v3489
  %v3540 = vadd.f32 %v3194, %v3492
  %v3541 = vadd.f32 %v3195, %v3497
  %v3542 = vadd.f32 %v3196, %v3500
  %v3543 = vadd.f32 %v3197, %v3505
  %v3544 = vadd.f32 %v3198, %v3508
  %v3545 = vadd.f32 %v3199, %v3513
  %v3546 = vadd.f32 %v3200, %v3516
  %3547 = vmatprep.subr.bf16.mxu0 0
  %3548 = vmatpush1.bf16.msra.mxu0 0
  %3549 = vmatprep.subr.bf16.mxu0 0
  %3550 = vmatpush1.bf16.msra.mxu0 0
  %3551 = vmatprep.subr.bf16.mxu0 0
  %3552 = vmatpush1.bf16.msra.mxu0 %v1816
  %3553 = vmatprep.subr.bf16.mxu0 0
  %3554 = vmatpush1.bf16.msra.mxu0 %v1815
  %3555 = vmatprep.subr.bf16.mxu0 0
  %3556 = vmatpush1.bf16.msra.mxu0 %v1814
  %3557 = vmatprep.subr.bf16.mxu0 0
  %3558 = vmatpush1.bf16.msra.mxu0 %v1813
  %3559 = vmatprep.subr.bf16.mxu0 0
  %3560 = vmatpush1.bf16.msra.mxu0 %v1812
  %3561 = vmatprep.subr.bf16.mxu0 0
  %3562 = vmatpush1.bf16.msra.mxu0 %v1811
  %3563 = vmatprep.subr.bf16.mxu0 0
  %3564 = vmatpush2.bf16.msra.mxu0 0
  %3565 = vmatprep.subr.bf16.mxu0 0
  %3566 = vmatpush2.bf16.msra.mxu0 0
  %3567 = vmatprep.subr.bf16.mxu0 0
  %3568 = vmatpush2.bf16.msra.mxu0 0
  %3569 = vmatprep.subr.bf16.mxu0 0
  %3570 = vmatpush2.bf16.msra.mxu0 0
  %3571 = vmatprep.subr.bf16.mxu0 0
  %3572 = vmatpush2.bf16.msra.mxu0 0
  %3573 = vmatprep.subr.bf16.mxu0 0
  %3574 = vmatpush2.bf16.msra.mxu0 0
  %3575 = vmatprep.subr.bf16.mxu0 0
  %3576 = vmatpush2.bf16.msra.mxu0 0
  %3577 = vmatprep.subr.bf16.mxu0 0
  %3578 = vmatpush2.bf16.msra.mxu0 0
  %3579 = vmatprep.mubr.bf16.mxu0 0
  %3580 = vmatmul.mubr.bf16.gmra.mxu0 %v537
  %v3581 = vpop.f32.mrf.mxu0
  %v3582 = vadd.f32 0.0, %v3581
  %v3583 = vpop.f32.mrf.mxu0
  %v3584 = vpop.f32.mrf.mxu0
  %v3585 = vadd.f32 0.0, %v3584
  %v3586 = vpop.f32.mrf.mxu0
  %3587 = vmatprep.mubr.bf16.mxu0 0
  %3588 = vmatmul.mubr.bf16.gmra.mxu0 %v540
  %v3589 = vpop.f32.mrf.mxu0
  %v3590 = vadd.f32 0.0, %v3589
  %v3591 = vpop.f32.mrf.mxu0
  %v3592 = vpop.f32.mrf.mxu0
  %v3593 = vadd.f32 0.0, %v3592
  %v3594 = vpop.f32.mrf.mxu0
  %3595 = vmatprep.mubr.bf16.mxu0 0
  %3596 = vmatmul.mubr.bf16.gmra.mxu0 %v543
  %v3597 = vpop.f32.mrf.mxu0
  %v3598 = vadd.f32 0.0, %v3597
  %v3599 = vpop.f32.mrf.mxu0
  %v3600 = vpop.f32.mrf.mxu0
  %v3601 = vadd.f32 0.0, %v3600
  %v3602 = vpop.f32.mrf.mxu0
  %3603 = vmatprep.mubr.bf16.mxu0 0
  %3604 = vmatmul.mubr.bf16.gmra.mxu0 %v546
  %v3605 = vpop.f32.mrf.mxu0
  %v3606 = vadd.f32 0.0, %v3605
  %v3607 = vpop.f32.mrf.mxu0
  %v3608 = vpop.f32.mrf.mxu0
  %v3609 = vadd.f32 0.0, %v3608
  %v3610 = vpop.f32.mrf.mxu0
  %3611 = vmatprep.mubr.bf16.mxu0 0
  %3612 = vmatmul.mubr.bf16.gmra.mxu0 %v549
  %v3613 = vpop.f32.mrf.mxu0
  %v3614 = vadd.f32 0.0, %v3613
  %v3615 = vpop.f32.mrf.mxu0
  %v3616 = vpop.f32.mrf.mxu0
  %v3617 = vadd.f32 0.0, %v3616
  %v3618 = vpop.f32.mrf.mxu0
  %3619 = vmatprep.mubr.bf16.mxu0 0
  %3620 = vmatmul.mubr.bf16.gmra.mxu0 %v552
  %v3621 = vpop.f32.mrf.mxu0
  %v3622 = vadd.f32 0.0, %v3621
  %v3623 = vpop.f32.mrf.mxu0
  %v3624 = vpop.f32.mrf.mxu0
  %v3625 = vadd.f32 0.0, %v3624
  %v3626 = vpop.f32.mrf.mxu0
  %3627 = vmatprep.mubr.bf16.mxu0 0
  %3628 = vmatmul.mubr.bf16.gmra.mxu0 %v555
  %v3629 = vpop.f32.mrf.mxu0
  %v3630 = vadd.f32 0.0, %v3629
  %v3631 = vpop.f32.mrf.mxu0
  %v3632 = vpop.f32.mrf.mxu0
  %v3633 = vadd.f32 0.0, %v3632
  %v3634 = vpop.f32.mrf.mxu0
  %3635 = vmatprep.mubr.bf16.mxu0 0
  %3636 = vmatmul.mubr.bf16.gmra.mxu0 %v558
  %v3637 = vpop.f32.mrf.mxu0
  %v3638 = vadd.f32 0.0, %v3637
  %v3639 = vpop.f32.mrf.mxu0
  %v3640 = vpop.f32.mrf.mxu0
  %v3641 = vadd.f32 0.0, %v3640
  %v3642 = vpop.f32.mrf.mxu0
  %3643 = vmatprep.mubr.bf16.mxu0 0
  %3644 = vmatmul.mubr.bf16.gmra.mxu0 %v561
  %v3645 = vpop.f32.mrf.mxu0
  %v3646 = vadd.f32 0.0, %v3645
  %v3647 = vpop.f32.mrf.mxu0
  %v3648 = vpop.f32.mrf.mxu0
  %v3649 = vadd.f32 0.0, %v3648
  %v3650 = vpop.f32.mrf.mxu0
  %3651 = vmatprep.mubr.bf16.mxu0 0
  %3652 = vmatmul.mubr.bf16.gmra.mxu0 %v564
  %v3653 = vpop.f32.mrf.mxu0
  %v3654 = vadd.f32 0.0, %v3653
  %v3655 = vpop.f32.mrf.mxu0
  %v3656 = vpop.f32.mrf.mxu0
  %v3657 = vadd.f32 0.0, %v3656
  %v3658 = vpop.f32.mrf.mxu0
  %3659 = vmatprep.mubr.bf16.mxu0 0
  %3660 = vmatmul.mubr.bf16.gmra.mxu0 %v567
  %v3661 = vpop.f32.mrf.mxu0
  %v3662 = vadd.f32 0.0, %v3661
  %v3663 = vpop.f32.mrf.mxu0
  %v3664 = vpop.f32.mrf.mxu0
  %v3665 = vadd.f32 0.0, %v3664
  %v3666 = vpop.f32.mrf.mxu0
  %3667 = vmatprep.mubr.bf16.mxu0 0
  %3668 = vmatmul.mubr.bf16.gmra.mxu0 %v570
  %v3669 = vpop.f32.mrf.mxu0
  %v3670 = vadd.f32 0.0, %v3669
  %v3671 = vpop.f32.mrf.mxu0
  %v3672 = vpop.f32.mrf.mxu0
  %v3673 = vadd.f32 0.0, %v3672
  %v3674 = vpop.f32.mrf.mxu0
  %3675 = vmatprep.mubr.bf16.mxu0 0
  %3676 = vmatmul.mubr.bf16.gmra.mxu0 %v1147
  %v3677 = vpop.f32.mrf.mxu0
  %v3678 = vadd.f32 0.0, %v3677
  %v3679 = vpop.f32.mrf.mxu0
  %v3680 = vpop.f32.mrf.mxu0
  %v3681 = vadd.f32 0.0, %v3680
  %v3682 = vpop.f32.mrf.mxu0
  %3683 = vmatprep.mubr.bf16.mxu0 0
  %3684 = vmatmul.mubr.bf16.gmra.mxu0 %v2051
  %v3685 = vpop.f32.mrf.mxu0
  %v3686 = vadd.f32 0.0, %v3685
  %v3687 = vpop.f32.mrf.mxu0
  %v3688 = vpop.f32.mrf.mxu0
  %v3689 = vadd.f32 0.0, %v3688
  %v3690 = vpop.f32.mrf.mxu0
  %3691 = vdwg.mxu0
  %v3692 = vadd.f32 %v3346, %v3582
  %v3693 = vadd.f32 %v3347, %v3585
  %v3694 = vadd.f32 %v3348, %v3590
  %v3695 = vadd.f32 %v3349, %v3593
  %v3696 = vadd.f32 %v3350, %v3598
  %v3697 = vadd.f32 %v3351, %v3601
  %v3698 = vadd.f32 %v3352, %v3606
  %v3699 = vadd.f32 %v3353, %v3609
  %v3700 = vadd.f32 %v3354, %v3614
  %v3701 = vadd.f32 %v3355, %v3617
  %v3702 = vadd.f32 %v3356, %v3622
  %v3703 = vadd.f32 %v3357, %v3625
  %v3704 = vadd.f32 %v3358, %v3630
  %v3705 = vadd.f32 %v3359, %v3633
  %v3706 = vadd.f32 %v3360, %v3638
  %v3707 = vadd.f32 %v3361, %v3641
  %v3708 = vadd.f32 %v3362, %v3646
  %v3709 = vadd.f32 %v3363, %v3649
  %v3710 = vadd.f32 %v3364, %v3654
  %v3711 = vadd.f32 %v3365, %v3657
  %v3712 = vadd.f32 %v3366, %v3662
  %v3713 = vadd.f32 %v3367, %v3665
  %v3714 = vadd.f32 %v3368, %v3670
  %v3715 = vadd.f32 %v3369, %v3673
  %v3716 = vadd.f32 %v3370, %v3678
  %v3717 = vadd.f32 %v3371, %v3681
  %v3718 = vadd.f32 %v3372, %v3686
  %v3719 = vadd.f32 %v3373, %v3689
  %v3722 = vunpack.c.l.b16 %v90
  %v3723 = vunpack.c.l.b16 %v91
  %v3724 = vpack.c.b16 %v3723, %v3722
  %v3726 = vsel %vm236, %v3724, 0
  %3728 = vmatprep.subr.bf16.mxu0 0
  %3729 = vmatpush1.bf16.msra.mxu0 0
  %3730 = vmatprep.subr.bf16.mxu0 0
  %3731 = vmatpush1.bf16.msra.mxu0 0
  %3732 = vmatprep.subr.bf16.mxu0 0
  %3733 = vmatpush1.bf16.msra.mxu0 %v2043
  %3734 = vmatprep.subr.bf16.mxu0 0
  %3735 = vmatpush1.bf16.msra.mxu0 %v2042
  %3736 = vmatprep.subr.bf16.mxu0 0
  %3737 = vmatpush1.bf16.msra.mxu0 %v2041
  %3738 = vmatprep.subr.bf16.mxu0 0
  %3739 = vmatpush1.bf16.msra.mxu0 %v2040
  %3740 = vmatprep.subr.bf16.mxu0 0
  %3741 = vmatpush1.bf16.msra.mxu0 %v2039
  %3742 = vmatprep.subr.bf16.mxu0 0
  %3743 = vmatpush1.bf16.msra.mxu0 %v2038
  %3744 = vmatprep.subr.bf16.mxu0 0
  %3745 = vmatpush2.bf16.msra.mxu0 0
  %3746 = vmatprep.subr.bf16.mxu0 0
  %3747 = vmatpush2.bf16.msra.mxu0 0
  %3748 = vmatprep.subr.bf16.mxu0 0
  %3749 = vmatpush2.bf16.msra.mxu0 0
  %3750 = vmatprep.subr.bf16.mxu0 0
  %3751 = vmatpush2.bf16.msra.mxu0 0
  %3752 = vmatprep.subr.bf16.mxu0 0
  %3753 = vmatpush2.bf16.msra.mxu0 0
  %3754 = vmatprep.subr.bf16.mxu0 0
  %3755 = vmatpush2.bf16.msra.mxu0 0
  %3756 = vmatprep.subr.bf16.mxu0 0
  %3757 = vmatpush2.bf16.msra.mxu0 0
  %3758 = vmatprep.subr.bf16.mxu0 0
  %3759 = vmatpush2.bf16.msra.mxu0 0
  %3760 = vmatprep.mubr.bf16.mxu0 0
  %3761 = vmatmul.mubr.bf16.gmra.mxu0 %v244
  %v3762 = vpop.f32.mrf.mxu0
  %v3763 = vadd.f32 0.0, %v3762
  %v3764 = vpop.f32.mrf.mxu0
  %v3765 = vpop.f32.mrf.mxu0
  %v3766 = vadd.f32 0.0, %v3765
  %v3767 = vpop.f32.mrf.mxu0
  %3768 = vmatprep.mubr.bf16.mxu0 0
  %3769 = vmatmul.mubr.bf16.gmra.mxu0 %v247
  %v3770 = vpop.f32.mrf.mxu0
  %v3771 = vadd.f32 0.0, %v3770
  %v3772 = vpop.f32.mrf.mxu0
  %v3773 = vpop.f32.mrf.mxu0
  %v3774 = vadd.f32 0.0, %v3773
  %v3775 = vpop.f32.mrf.mxu0
  %3776 = vmatprep.mubr.bf16.mxu0 0
  %3777 = vmatmul.mubr.bf16.gmra.mxu0 %v250
  %v3778 = vpop.f32.mrf.mxu0
  %v3779 = vadd.f32 0.0, %v3778
  %v3780 = vpop.f32.mrf.mxu0
  %v3781 = vpop.f32.mrf.mxu0
  %v3782 = vadd.f32 0.0, %v3781
  %v3783 = vpop.f32.mrf.mxu0
  %3784 = vmatprep.mubr.bf16.mxu0 0
  %3785 = vmatmul.mubr.bf16.gmra.mxu0 %v253
  %v3786 = vpop.f32.mrf.mxu0
  %v3787 = vadd.f32 0.0, %v3786
  %v3788 = vpop.f32.mrf.mxu0
  %v3789 = vpop.f32.mrf.mxu0
  %v3790 = vadd.f32 0.0, %v3789
  %v3791 = vpop.f32.mrf.mxu0
  %3792 = vmatprep.mubr.bf16.mxu0 0
  %3793 = vmatmul.mubr.bf16.gmra.mxu0 %v256
  %v3794 = vpop.f32.mrf.mxu0
  %v3795 = vadd.f32 0.0, %v3794
  %v3796 = vpop.f32.mrf.mxu0
  %v3797 = vpop.f32.mrf.mxu0
  %v3798 = vadd.f32 0.0, %v3797
  %v3799 = vpop.f32.mrf.mxu0
  %3800 = vmatprep.mubr.bf16.mxu0 0
  %3801 = vmatmul.mubr.bf16.gmra.mxu0 %v259
  %v3802 = vpop.f32.mrf.mxu0
  %v3803 = vadd.f32 0.0, %v3802
  %v3804 = vpop.f32.mrf.mxu0
  %v3805 = vpop.f32.mrf.mxu0
  %v3806 = vadd.f32 0.0, %v3805
  %v3807 = vpop.f32.mrf.mxu0
  %3808 = vmatprep.mubr.bf16.mxu0 0
  %3809 = vmatmul.mubr.bf16.gmra.mxu0 %v262
  %v3810 = vpop.f32.mrf.mxu0
  %v3811 = vadd.f32 0.0, %v3810
  %v3812 = vpop.f32.mrf.mxu0
  %v3813 = vpop.f32.mrf.mxu0
  %v3814 = vadd.f32 0.0, %v3813
  %v3815 = vpop.f32.mrf.mxu0
  %3816 = vmatprep.mubr.bf16.mxu0 0
  %3817 = vmatmul.mubr.bf16.gmra.mxu0 %v265
  %v3818 = vpop.f32.mrf.mxu0
  %v3819 = vadd.f32 0.0, %v3818
  %v3820 = vpop.f32.mrf.mxu0
  %v3821 = vpop.f32.mrf.mxu0
  %v3822 = vadd.f32 0.0, %v3821
  %v3823 = vpop.f32.mrf.mxu0
  %3824 = vmatprep.mubr.bf16.mxu0 0
  %3825 = vmatmul.mubr.bf16.gmra.mxu0 %v268
  %v3826 = vpop.f32.mrf.mxu0
  %v3827 = vadd.f32 0.0, %v3826
  %v3828 = vpop.f32.mrf.mxu0
  %v3829 = vpop.f32.mrf.mxu0
  %v3830 = vadd.f32 0.0, %v3829
  %v3831 = vpop.f32.mrf.mxu0
  %3832 = vmatprep.mubr.bf16.mxu0 0
  %3833 = vmatmul.mubr.bf16.gmra.mxu0 %v271
  %v3834 = vpop.f32.mrf.mxu0
  %v3835 = vadd.f32 0.0, %v3834
  %v3836 = vpop.f32.mrf.mxu0
  %v3837 = vpop.f32.mrf.mxu0
  %v3838 = vadd.f32 0.0, %v3837
  %v3839 = vpop.f32.mrf.mxu0
  %3840 = vmatprep.mubr.bf16.mxu0 0
  %3841 = vmatmul.mubr.bf16.gmra.mxu0 %v274
  %v3842 = vpop.f32.mrf.mxu0
  %v3843 = vadd.f32 0.0, %v3842
  %v3844 = vpop.f32.mrf.mxu0
  %v3845 = vpop.f32.mrf.mxu0
  %v3846 = vadd.f32 0.0, %v3845
  %v3847 = vpop.f32.mrf.mxu0
  %3848 = vmatprep.mubr.bf16.mxu0 0
  %3849 = vmatmul.mubr.bf16.gmra.mxu0 %v277
  %v3850 = vpop.f32.mrf.mxu0
  %v3851 = vadd.f32 0.0, %v3850
  %v3852 = vpop.f32.mrf.mxu0
  %v3853 = vpop.f32.mrf.mxu0
  %v3854 = vadd.f32 0.0, %v3853
  %v3855 = vpop.f32.mrf.mxu0
  %3856 = vmatprep.mubr.bf16.mxu0 0
  %3857 = vmatmul.mubr.bf16.gmra.mxu0 %v1599
  %v3858 = vpop.f32.mrf.mxu0
  %v3859 = vadd.f32 0.0, %v3858
  %v3860 = vpop.f32.mrf.mxu0
  %v3861 = vpop.f32.mrf.mxu0
  %v3862 = vadd.f32 0.0, %v3861
  %v3863 = vpop.f32.mrf.mxu0
  %3864 = vmatprep.mubr.bf16.mxu0 0
  %3865 = vmatmul.mubr.bf16.gmra.mxu0 %v3726
  %v3866 = vpop.f32.mrf.mxu0
  %v3867 = vadd.f32 0.0, %v3866
  %v3868 = vpop.f32.mrf.mxu0
  %v3869 = vpop.f32.mrf.mxu0
  %v3870 = vadd.f32 0.0, %v3869
  %v3871 = vpop.f32.mrf.mxu0
  %3872 = vdwg.mxu0
  %v3873 = vadd.f32 %v3519, %v3763
  %v3874 = vadd.f32 %v3520, %v3766
  %v3875 = vadd.f32 %v3521, %v3771
  %v3876 = vadd.f32 %v3522, %v3774
  %v3877 = vadd.f32 %v3523, %v3779
  %v3878 = vadd.f32 %v3524, %v3782
  %v3879 = vadd.f32 %v3525, %v3787
  %v3880 = vadd.f32 %v3526, %v3790
  %v3881 = vadd.f32 %v3527, %v3795
  %v3882 = vadd.f32 %v3528, %v3798
  %v3883 = vadd.f32 %v3529, %v3803
  %v3884 = vadd.f32 %v3530, %v3806
  %v3885 = vadd.f32 %v3531, %v3811
  %v3886 = vadd.f32 %v3532, %v3814
  %v3887 = vadd.f32 %v3533, %v3819
  %v3888 = vadd.f32 %v3534, %v3822
  %v3889 = vadd.f32 %v3535, %v3827
  %v3890 = vadd.f32 %v3536, %v3830
  %v3891 = vadd.f32 %v3537, %v3835
  %v3892 = vadd.f32 %v3538, %v3838
  %v3893 = vadd.f32 %v3539, %v3843
  %v3894 = vadd.f32 %v3540, %v3846
  %v3895 = vadd.f32 %v3541, %v3851
  %v3896 = vadd.f32 %v3542, %v3854
  %v3897 = vadd.f32 %v3543, %v3859
  %v3898 = vadd.f32 %v3544, %v3862
  %v3899 = vadd.f32 %v3545, %v3867
  %v3900 = vadd.f32 %v3546, %v3870
  %3901 = vmatprep.subr.bf16.mxu0 0
  %3902 = vmatpush1.bf16.msra.mxu0 0
  %3903 = vmatprep.subr.bf16.mxu0 0
  %3904 = vmatpush1.bf16.msra.mxu0 0
  %3905 = vmatprep.subr.bf16.mxu0 0
  %3906 = vmatpush1.bf16.msra.mxu0 %v2268
  %3907 = vmatprep.subr.bf16.mxu0 0
  %3908 = vmatpush1.bf16.msra.mxu0 %v2267
  %3909 = vmatprep.subr.bf16.mxu0 0
  %3910 = vmatpush1.bf16.msra.mxu0 %v2266
  %3911 = vmatprep.subr.bf16.mxu0 0
  %3912 = vmatpush1.bf16.msra.mxu0 %v2265
  %3913 = vmatprep.subr.bf16.mxu0 0
  %3914 = vmatpush1.bf16.msra.mxu0 %v2264
  %3915 = vmatprep.subr.bf16.mxu0 0
  %3916 = vmatpush1.bf16.msra.mxu0 %v2263
  %3917 = vmatprep.subr.bf16.mxu0 0
  %3918 = vmatpush2.bf16.msra.mxu0 0
  %3919 = vmatprep.subr.bf16.mxu0 0
  %3920 = vmatpush2.bf16.msra.mxu0 0
  %3921 = vmatprep.subr.bf16.mxu0 0
  %3922 = vmatpush2.bf16.msra.mxu0 0
  %3923 = vmatprep.subr.bf16.mxu0 0
  %3924 = vmatpush2.bf16.msra.mxu0 0
  %3925 = vmatprep.subr.bf16.mxu0 0
  %3926 = vmatpush2.bf16.msra.mxu0 0
  %3927 = vmatprep.subr.bf16.mxu0 0
  %3928 = vmatpush2.bf16.msra.mxu0 0
  %3929 = vmatprep.subr.bf16.mxu0 0
  %3930 = vmatpush2.bf16.msra.mxu0 0
  %3931 = vmatprep.subr.bf16.mxu0 0
  %3932 = vmatpush2.bf16.msra.mxu0 0
  %3933 = vmatprep.mubr.bf16.mxu0 0
  %3934 = vmatmul.mubr.bf16.gmra.mxu0 %v244
  %v3935 = vpop.f32.mrf.mxu0
  %v3936 = vadd.f32 0.0, %v3935
  %v3937 = vpop.f32.mrf.mxu0
  %v3938 = vpop.f32.mrf.mxu0
  %v3939 = vadd.f32 0.0, %v3938
  %v3940 = vpop.f32.mrf.mxu0
  %3941 = vmatprep.mubr.bf16.mxu0 0
  %3942 = vmatmul.mubr.bf16.gmra.mxu0 %v247
  %v3943 = vpop.f32.mrf.mxu0
  %v3944 = vadd.f32 0.0, %v3943
  %v3945 = vpop.f32.mrf.mxu0
  %v3946 = vpop.f32.mrf.mxu0
  %v3947 = vadd.f32 0.0, %v3946
  %v3948 = vpop.f32.mrf.mxu0
  %3949 = vmatprep.mubr.bf16.mxu0 0
  %3950 = vmatmul.mubr.bf16.gmra.mxu0 %v250
  %v3951 = vpop.f32.mrf.mxu0
  %v3952 = vadd.f32 0.0, %v3951
  %v3953 = vpop.f32.mrf.mxu0
  %v3954 = vpop.f32.mrf.mxu0
  %v3955 = vadd.f32 0.0, %v3954
  %v3956 = vpop.f32.mrf.mxu0
  %3957 = vmatprep.mubr.bf16.mxu0 0
  %3958 = vmatmul.mubr.bf16.gmra.mxu0 %v253
  %v3959 = vpop.f32.mrf.mxu0
  %v3960 = vadd.f32 0.0, %v3959
  %v3961 = vpop.f32.mrf.mxu0
  %v3962 = vpop.f32.mrf.mxu0
  %v3963 = vadd.f32 0.0, %v3962
  %v3964 = vpop.f32.mrf.mxu0
  %3965 = vmatprep.mubr.bf16.mxu0 0
  %3966 = vmatmul.mubr.bf16.gmra.mxu0 %v256
  %v3967 = vpop.f32.mrf.mxu0
  %v3968 = vadd.f32 0.0, %v3967
  %v3969 = vpop.f32.mrf.mxu0
  %v3970 = vpop.f32.mrf.mxu0
  %v3971 = vadd.f32 0.0, %v3970
  %v3972 = vpop.f32.mrf.mxu0
  %3973 = vmatprep.mubr.bf16.mxu0 0
  %3974 = vmatmul.mubr.bf16.gmra.mxu0 %v259
  %v3975 = vpop.f32.mrf.mxu0
  %v3976 = vadd.f32 0.0, %v3975
  %v3977 = vpop.f32.mrf.mxu0
  %v3978 = vpop.f32.mrf.mxu0
  %v3979 = vadd.f32 0.0, %v3978
  %v3980 = vpop.f32.mrf.mxu0
  %3981 = vmatprep.mubr.bf16.mxu0 0
  %3982 = vmatmul.mubr.bf16.gmra.mxu0 %v262
  %v3983 = vpop.f32.mrf.mxu0
  %v3984 = vadd.f32 0.0, %v3983
  %v3985 = vpop.f32.mrf.mxu0
  %v3986 = vpop.f32.mrf.mxu0
  %v3987 = vadd.f32 0.0, %v3986
  %v3988 = vpop.f32.mrf.mxu0
  %3989 = vmatprep.mubr.bf16.mxu0 0
  %3990 = vmatmul.mubr.bf16.gmra.mxu0 %v265
  %v3991 = vpop.f32.mrf.mxu0
  %v3992 = vadd.f32 0.0, %v3991
  %v3993 = vpop.f32.mrf.mxu0
  %v3994 = vpop.f32.mrf.mxu0
  %v3995 = vadd.f32 0.0, %v3994
  %v3996 = vpop.f32.mrf.mxu0
  %3997 = vmatprep.mubr.bf16.mxu0 0
  %3998 = vmatmul.mubr.bf16.gmra.mxu0 %v268
  %v3999 = vpop.f32.mrf.mxu0
  %v4000 = vadd.f32 0.0, %v3999
  %v4001 = vpop.f32.mrf.mxu0
  %v4002 = vpop.f32.mrf.mxu0
  %v4003 = vadd.f32 0.0, %v4002
  %v4004 = vpop.f32.mrf.mxu0
  %4005 = vmatprep.mubr.bf16.mxu0 0
  %4006 = vmatmul.mubr.bf16.gmra.mxu0 %v271
  %v4007 = vpop.f32.mrf.mxu0
  %v4008 = vadd.f32 0.0, %v4007
  %v4009 = vpop.f32.mrf.mxu0
  %v4010 = vpop.f32.mrf.mxu0
  %v4011 = vadd.f32 0.0, %v4010
  %v4012 = vpop.f32.mrf.mxu0
  %4013 = vmatprep.mubr.bf16.mxu0 0
  %4014 = vmatmul.mubr.bf16.gmra.mxu0 %v274
  %v4015 = vpop.f32.mrf.mxu0
  %v4016 = vadd.f32 0.0, %v4015
  %v4017 = vpop.f32.mrf.mxu0
  %v4018 = vpop.f32.mrf.mxu0
  %v4019 = vadd.f32 0.0, %v4018
  %v4020 = vpop.f32.mrf.mxu0
  %4021 = vmatprep.mubr.bf16.mxu0 0
  %4022 = vmatmul.mubr.bf16.gmra.mxu0 %v277
  %v4023 = vpop.f32.mrf.mxu0
  %v4024 = vadd.f32 0.0, %v4023
  %v4025 = vpop.f32.mrf.mxu0
  %v4026 = vpop.f32.mrf.mxu0
  %v4027 = vadd.f32 0.0, %v4026
  %v4028 = vpop.f32.mrf.mxu0
  %4029 = vmatprep.mubr.bf16.mxu0 0
  %4030 = vmatmul.mubr.bf16.gmra.mxu0 %v1599
  %v4031 = vpop.f32.mrf.mxu0
  %v4032 = vadd.f32 0.0, %v4031
  %v4033 = vpop.f32.mrf.mxu0
  %v4034 = vpop.f32.mrf.mxu0
  %v4035 = vadd.f32 0.0, %v4034
  %v4036 = vpop.f32.mrf.mxu0
  %4037 = vmatprep.mubr.bf16.mxu0 0
  %4038 = vmatmul.mubr.bf16.gmra.mxu0 %v3726
  %v4039 = vpop.f32.mrf.mxu0
  %v4040 = vadd.f32 0.0, %v4039
  %v4041 = vpop.f32.mrf.mxu0
  %v4042 = vpop.f32.mrf.mxu0
  %v4043 = vadd.f32 0.0, %v4042
  %v4044 = vpop.f32.mrf.mxu0
  %4045 = vdwg.mxu0
  %v4046 = vadd.f32 %v3692, %v3936
  %v4047 = vadd.f32 %v3693, %v3939
  %v4048 = vadd.f32 %v3694, %v3944
  %v4049 = vadd.f32 %v3695, %v3947
  %v4050 = vadd.f32 %v3696, %v3952
  %v4051 = vadd.f32 %v3697, %v3955
  %v4052 = vadd.f32 %v3698, %v3960
  %v4053 = vadd.f32 %v3699, %v3963
  %v4054 = vadd.f32 %v3700, %v3968
  %v4055 = vadd.f32 %v3701, %v3971
  %v4056 = vadd.f32 %v3702, %v3976
  %v4057 = vadd.f32 %v3703, %v3979
  %v4058 = vadd.f32 %v3704, %v3984
  %v4059 = vadd.f32 %v3705, %v3987
  %v4060 = vadd.f32 %v3706, %v3992
  %v4061 = vadd.f32 %v3707, %v3995
  %v4062 = vadd.f32 %v3708, %v4000
  %v4063 = vadd.f32 %v3709, %v4003
  %v4064 = vadd.f32 %v3710, %v4008
  %v4065 = vadd.f32 %v3711, %v4011
  %v4066 = vadd.f32 %v3712, %v4016
  %v4067 = vadd.f32 %v3713, %v4019
  %v4068 = vadd.f32 %v3714, %v4024
  %v4069 = vadd.f32 %v3715, %v4027
  %v4070 = vadd.f32 %v3716, %v4032
  %v4071 = vadd.f32 %v3717, %v4035
  %v4072 = vadd.f32 %v3718, %v4040
  %v4073 = vadd.f32 %v3719, %v4043
  %v4074 = vmax.f32 %v2198, %v2420
  %v4075 = vmax.f32 %v2199, %v2421
  %v4076 = vmax.f32 %v2200, %v2422
  %v4077 = vmax.f32 %v2201, %v2423
  %v4078 = vmax.f32 %v2202, %v2424
  %v4079 = vmax.f32 %v2203, %v2425
  %v4080 = vmax.f32 %v2204, %v2426
  %v4081 = vmax.f32 %v2205, %v2427
  %v4082 = vmax.f32 %v2206, %v2428
  %v4083 = vmax.f32 %v2207, %v2429
  %v4084 = vmax.f32 %v2208, %v2430
  %v4085 = vmax.f32 %v2209, %v2431
  %v4086 = vmax.f32 %v2210, %v2432
  %v4087 = vmax.f32 %v2211, %v2433
  %v4088 = vmax.f32 %v2212, %v2434
  %v4089 = vmax.f32 %v2213, %v2435
  %v4090 = vmax.f32 %v2214, %v2436
  %v4091 = vmax.f32 %v2215, %v2437
  %v4092 = vmax.f32 %v2216, %v2438
  %v4093 = vmax.f32 %v2217, %v2439
  %v4094 = vmax.f32 %v2218, %v2440
  %v4095 = vmax.f32 %v2219, %v2441
  %v4096 = vmax.f32 %v2220, %v2442
  %v4097 = vmax.f32 %v2221, %v2443
  %v4098 = vmax.f32 %v2222, %v2444
  %v4099 = vmax.f32 %v2223, %v2445
  %v4100 = vmax.f32 %v2224, %v2446
  %v4101 = vmax.f32 %v2225, %v2447
  %v4102 = vmax.f32 %v3873, %v4046
  %v4103 = vmax.f32 %v3874, %v4047
  %v4104 = vmax.f32 %v3875, %v4048
  %v4105 = vmax.f32 %v3876, %v4049
  %v4106 = vmax.f32 %v3877, %v4050
  %v4107 = vmax.f32 %v3878, %v4051
  %v4108 = vmax.f32 %v3879, %v4052
  %v4109 = vmax.f32 %v3880, %v4053
  %v4110 = vmax.f32 %v3881, %v4054
  %v4111 = vmax.f32 %v3882, %v4055
  %v4112 = vmax.f32 %v3883, %v4056
  %v4113 = vmax.f32 %v3884, %v4057
  %v4114 = vmax.f32 %v3885, %v4058
  %v4115 = vmax.f32 %v3886, %v4059
  %v4116 = vmax.f32 %v3887, %v4060
  %v4117 = vmax.f32 %v3888, %v4061
  %v4118 = vmax.f32 %v3889, %v4062
  %v4119 = vmax.f32 %v3890, %v4063
  %v4120 = vmax.f32 %v3891, %v4064
  %v4121 = vmax.f32 %v3892, %v4065
  %v4122 = vmax.f32 %v3893, %v4066
  %v4123 = vmax.f32 %v3894, %v4067
  %v4124 = vmax.f32 %v3895, %v4068
  %v4125 = vmax.f32 %v3896, %v4069
  %v4126 = vmax.f32 %v3897, %v4070
  %v4127 = vmax.f32 %v3898, %v4071
  %v4128 = vmax.f32 %v3899, %v4072
  %v4129 = vmax.f32 %v3900, %v4073
  %v4130 = vmax.f32 %v4074, %v4102
  %v4131 = vmax.f32 %v4075, %v4103
  %v4132 = vmax.f32 %v4076, %v4104
  %v4133 = vmax.f32 %v4077, %v4105
  %v4134 = vmax.f32 %v4078, %v4106
  %v4135 = vmax.f32 %v4079, %v4107
  %v4136 = vmax.f32 %v4080, %v4108
  %v4137 = vmax.f32 %v4081, %v4109
  %v4138 = vmax.f32 %v4082, %v4110
  %v4139 = vmax.f32 %v4083, %v4111
  %v4140 = vmax.f32 %v4084, %v4112
  %v4141 = vmax.f32 %v4085, %v4113
  %v4142 = vmax.f32 %v4086, %v4114
  %v4143 = vmax.f32 %v4087, %v4115
  %v4144 = vmax.f32 %v4088, %v4116
  %v4145 = vmax.f32 %v4089, %v4117
  %v4146 = vmax.f32 %v4090, %v4118
  %v4147 = vmax.f32 %v4091, %v4119
  %v4148 = vmax.f32 %v4092, %v4120
  %v4149 = vmax.f32 %v4093, %v4121
  %v4150 = vmax.f32 %v4094, %v4122
  %v4151 = vmax.f32 %v4095, %v4123
  %v4152 = vmax.f32 %v4096, %v4124
  %v4153 = vmax.f32 %v4097, %v4125
  %v4154 = vmax.f32 %v4098, %v4126
  %v4155 = vmax.f32 %v4099, %v4127
  %v4156 = vmax.f32 %v4100, %v4128
  %v4157 = vmax.f32 %v4101, %v4129
  %v4158 = vld [vmem:[%s6] sm:$0x1]
  %v4159 = vlaneseq
  %v4160 = vshrl.u32 %v4159, 7
  %v4161 = vsub.s32 0, %v4160
  %v4162 = vrot.slane %v4158, %v4161
  %v4163 = vadd.f32 %v4130, %v4162
  %v4164 = vadd.f32 %v4131, %v4162
  %v4165 = vadd.f32 %v4132, %v4162
  %v4166 = vadd.f32 %v4133, %v4162
  %v4167 = vadd.f32 %v4134, %v4162
  %v4168 = vadd.f32 %v4135, %v4162
  %v4169 = vadd.f32 %v4136, %v4162
  %v4170 = vadd.f32 %v4137, %v4162
  %v4171 = vadd.f32 %v4138, %v4162
  %v4172 = vadd.f32 %v4139, %v4162
  %v4173 = vadd.f32 %v4140, %v4162
  %v4174 = vadd.f32 %v4141, %v4162
  %v4175 = vadd.f32 %v4142, %v4162
  %v4176 = vadd.f32 %v4143, %v4162
  %v4177 = vadd.f32 %v4144, %v4162
  %v4178 = vadd.f32 %v4145, %v4162
  %v4179 = vadd.f32 %v4146, %v4162
  %v4180 = vadd.f32 %v4147, %v4162
  %v4181 = vadd.f32 %v4148, %v4162
  %v4182 = vadd.f32 %v4149, %v4162
  %v4183 = vadd.f32 %v4150, %v4162
  %v4184 = vadd.f32 %v4151, %v4162
  %v4185 = vadd.f32 %v4152, %v4162
  %v4186 = vadd.f32 %v4153, %v4162
  %v4187 = vadd.f32 %v4154, %v4162
  %v4188 = vadd.f32 %v4155, %v4162
  %v4189 = vadd.f32 %v4156, %v4162
  %v4190 = vadd.f32 %v4157, %v4162
  %v4191 = vmax.f32 %v4163, 0.0
  %v4192 = vmax.f32 %v4164, 0.0
  %v4193 = vmax.f32 %v4165, 0.0
  %v4194 = vmax.f32 %v4166, 0.0
  %v4195 = vmax.f32 %v4167, 0.0
  %v4196 = vmax.f32 %v4168, 0.0
  %v4197 = vmax.f32 %v4169, 0.0
  %v4198 = vmax.f32 %v4170, 0.0
  %v4199 = vmax.f32 %v4171, 0.0
  %v4200 = vmax.f32 %v4172, 0.0
  %v4201 = vmax.f32 %v4173, 0.0
  %v4202 = vmax.f32 %v4174, 0.0
  %v4203 = vmax.f32 %v4175, 0.0
  %v4204 = vmax.f32 %v4176, 0.0
  %v4205 = vmax.f32 %v4177, 0.0
  %v4206 = vmax.f32 %v4178, 0.0
  %v4207 = vmax.f32 %v4179, 0.0
  %v4208 = vmax.f32 %v4180, 0.0
  %v4209 = vmax.f32 %v4181, 0.0
  %v4210 = vmax.f32 %v4182, 0.0
  %v4211 = vmax.f32 %v4183, 0.0
  %v4212 = vmax.f32 %v4184, 0.0
  %v4213 = vmax.f32 %v4185, 0.0
  %v4214 = vmax.f32 %v4186, 0.0
  %v4215 = vmax.f32 %v4187, 0.0
  %v4216 = vmax.f32 %v4188, 0.0
  %v4217 = vmax.f32 %v4189, 0.0
  %v4218 = vmax.f32 %v4190, 0.0
  %v4219 = vpack.c.bf16 %v4192, %v4191
  %v4220 = vpack.c.bf16 %v4194, %v4193
  %v4221 = vpack.c.bf16 %v4196, %v4195
  %v4222 = vpack.c.bf16 %v4198, %v4197
  %v4223 = vpack.c.bf16 %v4200, %v4199
  %v4224 = vpack.c.bf16 %v4202, %v4201
  %v4225 = vpack.c.bf16 %v4204, %v4203
  %v4226 = vpack.c.bf16 %v4206, %v4205
  %v4227 = vpack.c.bf16 %v4208, %v4207
  %v4228 = vpack.c.bf16 %v4210, %v4209
  %v4229 = vpack.c.bf16 %v4212, %v4211
  %v4230 = vpack.c.bf16 %v4214, %v4213
  %v4231 = vpack.c.bf16 %v4216, %v4215
  %v4232 = vpack.c.bf16 %v4218, %v4217
  %v4233 = vld [vmem:[%s2] sm:$0xf]
  %v4234 = vld [vmem:[%s2 + $0x4] sm:$0xf]
  %v4235 = vld [vmem:[%s2 + $0x8] sm:$0xf]
  %v4236 = vld [vmem:[%s2 + $0xc] sm:$0xf]
  %v4237 = vld [vmem:[%s2 + $0x10] sm:$0xf]
  %v4238 = vld [vmem:[%s2 + $0x14] sm:$0xf]
  %v4239 = vld [vmem:[%s2 + $0x18] sm:$0xf]
  %v4240 = vld [vmem:[%s2 + $0x1c] sm:$0xf]
  %v4241 = vld [vmem:[%s2 + $0x20] sm:$0xf]
  %v4242 = vld [vmem:[%s2 + $0x24] sm:$0xf]
  %v4243 = vld [vmem:[%s2 + $0x28] sm:$0x3]
  %s4244 = scalar_lea.vmem %s2, 220
  %v4245 = vld [vmem:[%s4244] sm:$0xf]
  %v4246 = vld [vmem:[%s4244 + $0x4] sm:$0xf]
  %v4247 = vld [vmem:[%s4244 + $0x8] sm:$0xf]
  %v4248 = vld [vmem:[%s4244 + $0xc] sm:$0xf]
  %v4249 = vld [vmem:[%s4244 + $0x10] sm:$0xf]
  %v4250 = vld [vmem:[%s4244 + $0x14] sm:$0xf]
  %v4251 = vld [vmem:[%s4244 + $0x18] sm:$0xf]
  %v4252 = vld [vmem:[%s4244 + $0x1c] sm:$0xf]
  %v4253 = vld [vmem:[%s4244 + $0x20] sm:$0xf]
  %v4254 = vld [vmem:[%s4244 + $0x24] sm:$0xf]
  %v4255 = vld [vmem:[%s4244 + $0x28] sm:$0x3]
  %s4256 = scalar_lea.vmem %s2, 44
  %v4257 = vld [vmem:[%s4256] sm:$0xf]
  %v4258 = vld [vmem:[%s4256 + $0x4] sm:$0xf]
  %v4259 = vld [vmem:[%s4256 + $0x8] sm:$0xf]
  %v4260 = vld [vmem:[%s4256 + $0xc] sm:$0xf]
  %v4261 = vld [vmem:[%s4256 + $0x10] sm:$0xf]
  %v4262 = vld [vmem:[%s4256 + $0x14] sm:$0xf]
  %v4263 = vld [vmem:[%s4256 + $0x18] sm:$0xf]
  %v4264 = vld [vmem:[%s4256 + $0x1c] sm:$0xf]
  %v4265 = vld [vmem:[%s4256 + $0x20] sm:$0xf]
  %v4266 = vld [vmem:[%s4256 + $0x24] sm:$0xf]
  %v4267 = vld [vmem:[%s4256 + $0x28] sm:$0x3]
  %v4279 = vunpack.c.l.b16 %v4257
  %v4280 = vunpack.c.l.b16 %v4258
  %v4281 = vunpack.c.l.b16 %v4259
  %v4282 = vunpack.c.l.b16 %v4260
  %v4283 = vunpack.c.l.b16 %v4261
  %v4284 = vunpack.c.l.b16 %v4262
  %v4285 = vunpack.c.l.b16 %v4263
  %v4286 = vunpack.c.l.b16 %v4264
  %v4287 = vunpack.c.l.b16 %v4265
  %v4288 = vunpack.c.l.b16 %v4266
  %v4289 = vunpack.c.l.b16 %v4267
  %v4290 = vpack.c.b16 %v4280, %v4279
  %v4291 = vpack.c.b16 %v4282, %v4281
  %v4292 = vpack.c.b16 %v4284, %v4283
  %v4293 = vpack.c.b16 %v4286, %v4285
  %v4294 = vpack.c.b16 %v4288, %v4287
  %v4295 = vpack.c.b16 %v4289, %v4289
  %vm4301 = vcmask 687104
  %v4303 = vsel %vm4301, %v4220, 0
  %v4306 = vsel %vm4301, %v4221, 0
  %v4309 = vsel %vm4301, %v4222, 0
  %v4312 = vsel %vm4301, %v4223, 0
  %v4315 = vsel %vm4301, %v4224, 0
  %v4318 = vsel %vm4301, %v4225, 0
  %v4321 = vsel %vm4301, %v4226, 0
  %v4324 = vsel %vm4301, %v4227, 0
  %v4327 = vsel %vm4301, %v4228, 0
  %v4330 = vsel %vm4301, %v4229, 0
  %vm4332 = vcmask 1041408
  %v4334 = vsel %vm4332, %v4295, 0
  %4336 = vmatprep.subr.bf16.mxu0 0
  %4337 = vmatpush1.bf16.msra.mxu0 0
  %4338 = vmatprep.subr.bf16.mxu0 0
  %4339 = vmatpush1.bf16.msra.mxu0 0
  %4340 = vmatprep.subr.bf16.mxu0 0
  %4341 = vmatpush1.bf16.msra.mxu0 %v4334
  %4342 = vmatprep.subr.bf16.mxu0 0
  %4343 = vmatpush1.bf16.msra.mxu0 %v4294
  %4344 = vmatprep.subr.bf16.mxu0 0
  %4345 = vmatpush1.bf16.msra.mxu0 %v4293
  %4346 = vmatprep.subr.bf16.mxu0 0
  %4347 = vmatpush1.bf16.msra.mxu0 %v4292
  %4348 = vmatprep.subr.bf16.mxu0 0
  %4349 = vmatpush1.bf16.msra.mxu0 %v4291
  %4350 = vmatprep.subr.bf16.mxu0 0
  %4351 = vmatpush1.bf16.msra.mxu0 %v4290
  %4352 = vmatprep.subr.bf16.mxu0 0
  %4353 = vmatpush2.bf16.msra.mxu0 0
  %4354 = vmatprep.subr.bf16.mxu0 0
  %4355 = vmatpush2.bf16.msra.mxu0 0
  %4356 = vmatprep.subr.bf16.mxu0 0
  %4357 = vmatpush2.bf16.msra.mxu0 0
  %4358 = vmatprep.subr.bf16.mxu0 0
  %4359 = vmatpush2.bf16.msra.mxu0 0
  %4360 = vmatprep.subr.bf16.mxu0 0
  %4361 = vmatpush2.bf16.msra.mxu0 0
  %4362 = vmatprep.subr.bf16.mxu0 0
  %4363 = vmatpush2.bf16.msra.mxu0 0
  %4364 = vmatprep.subr.bf16.mxu0 0
  %4365 = vmatpush2.bf16.msra.mxu0 0
  %4366 = vmatprep.subr.bf16.mxu0 0
  %4367 = vmatpush2.bf16.msra.mxu0 0
  %4368 = vmatprep.mubr.bf16.mxu0 0
  %4369 = vmatmul.mubr.bf16.gmra.mxu0 %v4303
  %v4370 = vpop.f32.mrf.mxu0
  %v4371 = vadd.f32 0.0, %v4370
  %v4372 = vpop.f32.mrf.mxu0
  %v4373 = vpop.f32.mrf.mxu0
  %v4374 = vadd.f32 0.0, %v4373
  %v4375 = vpop.f32.mrf.mxu0
  %4376 = vmatprep.mubr.bf16.mxu0 0
  %4377 = vmatmul.mubr.bf16.gmra.mxu0 %v4306
  %v4378 = vpop.f32.mrf.mxu0
  %v4379 = vadd.f32 0.0, %v4378
  %v4380 = vpop.f32.mrf.mxu0
  %v4381 = vpop.f32.mrf.mxu0
  %v4382 = vadd.f32 0.0, %v4381
  %v4383 = vpop.f32.mrf.mxu0
  %4384 = vmatprep.mubr.bf16.mxu0 0
  %4385 = vmatmul.mubr.bf16.gmra.mxu0 %v4309
  %v4386 = vpop.f32.mrf.mxu0
  %v4387 = vadd.f32 0.0, %v4386
  %v4388 = vpop.f32.mrf.mxu0
  %v4389 = vpop.f32.mrf.mxu0
  %v4390 = vadd.f32 0.0, %v4389
  %v4391 = vpop.f32.mrf.mxu0
  %4392 = vmatprep.mubr.bf16.mxu0 0
  %4393 = vmatmul.mubr.bf16.gmra.mxu0 %v4312
  %v4394 = vpop.f32.mrf.mxu0
  %v4395 = vadd.f32 0.0, %v4394
  %v4396 = vpop.f32.mrf.mxu0
  %v4397 = vpop.f32.mrf.mxu0
  %v4398 = vadd.f32 0.0, %v4397
  %v4399 = vpop.f32.mrf.mxu0
  %4400 = vmatprep.mubr.bf16.mxu0 0
  %4401 = vmatmul.mubr.bf16.gmra.mxu0 %v4315
  %v4402 = vpop.f32.mrf.mxu0
  %v4403 = vadd.f32 0.0, %v4402
  %v4404 = vpop.f32.mrf.mxu0
  %v4405 = vpop.f32.mrf.mxu0
  %v4406 = vadd.f32 0.0, %v4405
  %v4407 = vpop.f32.mrf.mxu0
  %4408 = vmatprep.mubr.bf16.mxu0 0
  %4409 = vmatmul.mubr.bf16.gmra.mxu0 %v4318
  %v4410 = vpop.f32.mrf.mxu0
  %v4411 = vadd.f32 0.0, %v4410
  %v4412 = vpop.f32.mrf.mxu0
  %v4413 = vpop.f32.mrf.mxu0
  %v4414 = vadd.f32 0.0, %v4413
  %v4415 = vpop.f32.mrf.mxu0
  %4416 = vmatprep.mubr.bf16.mxu0 0
  %4417 = vmatmul.mubr.bf16.gmra.mxu0 %v4321
  %v4418 = vpop.f32.mrf.mxu0
  %v4419 = vadd.f32 0.0, %v4418
  %v4420 = vpop.f32.mrf.mxu0
  %v4421 = vpop.f32.mrf.mxu0
  %v4422 = vadd.f32 0.0, %v4421
  %v4423 = vpop.f32.mrf.mxu0
  %4424 = vmatprep.mubr.bf16.mxu0 0
  %4425 = vmatmul.mubr.bf16.gmra.mxu0 %v4324
  %v4426 = vpop.f32.mrf.mxu0
  %v4427 = vadd.f32 0.0, %v4426
  %v4428 = vpop.f32.mrf.mxu0
  %v4429 = vpop.f32.mrf.mxu0
  %v4430 = vadd.f32 0.0, %v4429
  %v4431 = vpop.f32.mrf.mxu0
  %4432 = vmatprep.mubr.bf16.mxu0 0
  %4433 = vmatmul.mubr.bf16.gmra.mxu0 %v4327
  %v4434 = vpop.f32.mrf.mxu0
  %v4435 = vadd.f32 0.0, %v4434
  %v4436 = vpop.f32.mrf.mxu0
  %v4437 = vpop.f32.mrf.mxu0
  %v4438 = vadd.f32 0.0, %v4437
  %v4439 = vpop.f32.mrf.mxu0
  %4440 = vmatprep.mubr.bf16.mxu0 0
  %4441 = vmatmul.mubr.bf16.gmra.mxu0 %v4330
  %v4442 = vpop.f32.mrf.mxu0
  %v4443 = vadd.f32 0.0, %v4442
  %v4444 = vpop.f32.mrf.mxu0
  %v4445 = vpop.f32.mrf.mxu0
  %v4446 = vadd.f32 0.0, %v4445
  %v4447 = vpop.f32.mrf.mxu0
  %4448 = vdwg.mxu0
  %s4449 = scalar_lea.vmem %s2, 264
  %v4450 = vld [vmem:[%s4449] sm:$0xf]
  %v4451 = vld [vmem:[%s4449 + $0x4] sm:$0xf]
  %v4452 = vld [vmem:[%s4449 + $0x8] sm:$0xf]
  %v4453 = vld [vmem:[%s4449 + $0xc] sm:$0xf]
  %v4454 = vld [vmem:[%s4449 + $0x10] sm:$0xf]
  %v4455 = vld [vmem:[%s4449 + $0x14] sm:$0xf]
  %v4456 = vld [vmem:[%s4449 + $0x18] sm:$0xf]
  %v4457 = vld [vmem:[%s4449 + $0x1c] sm:$0xf]
  %v4458 = vld [vmem:[%s4449 + $0x20] sm:$0xf]
  %v4459 = vld [vmem:[%s4449 + $0x24] sm:$0xf]
  %v4460 = vld [vmem:[%s4449 + $0x28] sm:$0x3]
  %v4472 = vunpack.c.l.b16 %v4450
  %v4473 = vunpack.c.l.b16 %v4451
  %v4474 = vunpack.c.l.b16 %v4452
  %v4475 = vunpack.c.l.b16 %v4453
  %v4476 = vunpack.c.l.b16 %v4454
  %v4477 = vunpack.c.l.b16 %v4455
  %v4478 = vunpack.c.l.b16 %v4456
  %v4479 = vunpack.c.l.b16 %v4457
  %v4480 = vunpack.c.l.b16 %v4458
  %v4481 = vunpack.c.l.b16 %v4459
  %v4482 = vunpack.c.l.b16 %v4460
  %v4483 = vpack.c.b16 %v4473, %v4472
  %v4484 = vpack.c.b16 %v4475, %v4474
  %v4485 = vpack.c.b16 %v4477, %v4476
  %v4486 = vpack.c.b16 %v4479, %v4478
  %v4487 = vpack.c.b16 %v4481, %v4480
  %v4488 = vpack.c.b16 %v4482, %v4482
  %v4495 = vsel %vm4332, %v4488, 0
  %4497 = vmatprep.subr.bf16.mxu0 0
  %4498 = vmatpush1.bf16.msra.mxu0 0
  %4499 = vmatprep.subr.bf16.mxu0 0
  %4500 = vmatpush1.bf16.msra.mxu0 0
  %4501 = vmatprep.subr.bf16.mxu0 0
  %4502 = vmatpush1.bf16.msra.mxu0 %v4495
  %4503 = vmatprep.subr.bf16.mxu0 0
  %4504 = vmatpush1.bf16.msra.mxu0 %v4487
  %4505 = vmatprep.subr.bf16.mxu0 0
  %4506 = vmatpush1.bf16.msra.mxu0 %v4486
  %4507 = vmatprep.subr.bf16.mxu0 0
  %4508 = vmatpush1.bf16.msra.mxu0 %v4485
  %4509 = vmatprep.subr.bf16.mxu0 0
  %4510 = vmatpush1.bf16.msra.mxu0 %v4484
  %4511 = vmatprep.subr.bf16.mxu0 0
  %4512 = vmatpush1.bf16.msra.mxu0 %v4483
  %4513 = vmatprep.subr.bf16.mxu0 0
  %4514 = vmatpush2.bf16.msra.mxu0 0
  %4515 = vmatprep.subr.bf16.mxu0 0
  %4516 = vmatpush2.bf16.msra.mxu0 0
  %4517 = vmatprep.subr.bf16.mxu0 0
  %4518 = vmatpush2.bf16.msra.mxu0 0
  %4519 = vmatprep.subr.bf16.mxu0 0
  %4520 = vmatpush2.bf16.msra.mxu0 0
  %4521 = vmatprep.subr.bf16.mxu0 0
  %4522 = vmatpush2.bf16.msra.mxu0 0
  %4523 = vmatprep.subr.bf16.mxu0 0
  %4524 = vmatpush2.bf16.msra.mxu0 0
  %4525 = vmatprep.subr.bf16.mxu0 0
  %4526 = vmatpush2.bf16.msra.mxu0 0
  %4527 = vmatprep.subr.bf16.mxu0 0
  %4528 = vmatpush2.bf16.msra.mxu0 0
  %4529 = vmatprep.mubr.bf16.mxu0 0
  %4530 = vmatmul.mubr.bf16.gmra.mxu0 %v4303
  %v4531 = vpop.f32.mrf.mxu0
  %v4532 = vadd.f32 0.0, %v4531
  %v4533 = vpop.f32.mrf.mxu0
  %v4534 = vpop.f32.mrf.mxu0
  %v4535 = vadd.f32 0.0, %v4534
  %v4536 = vpop.f32.mrf.mxu0
  %4537 = vmatprep.mubr.bf16.mxu0 0
  %4538 = vmatmul.mubr.bf16.gmra.mxu0 %v4306
  %v4539 = vpop.f32.mrf.mxu0
  %v4540 = vadd.f32 0.0, %v4539
  %v4541 = vpop.f32.mrf.mxu0
  %v4542 = vpop.f32.mrf.mxu0
  %v4543 = vadd.f32 0.0, %v4542
  %v4544 = vpop.f32.mrf.mxu0
  %4545 = vmatprep.mubr.bf16.mxu0 0
  %4546 = vmatmul.mubr.bf16.gmra.mxu0 %v4309
  %v4547 = vpop.f32.mrf.mxu0
  %v4548 = vadd.f32 0.0, %v4547
  %v4549 = vpop.f32.mrf.mxu0
  %v4550 = vpop.f32.mrf.mxu0
  %v4551 = vadd.f32 0.0, %v4550
  %v4552 = vpop.f32.mrf.mxu0
  %4553 = vmatprep.mubr.bf16.mxu0 0
  %4554 = vmatmul.mubr.bf16.gmra.mxu0 %v4312
  %v4555 = vpop.f32.mrf.mxu0
  %v4556 = vadd.f32 0.0, %v4555
  %v4557 = vpop.f32.mrf.mxu0
  %v4558 = vpop.f32.mrf.mxu0
  %v4559 = vadd.f32 0.0, %v4558
  %v4560 = vpop.f32.mrf.mxu0
  %4561 = vmatprep.mubr.bf16.mxu0 0
  %4562 = vmatmul.mubr.bf16.gmra.mxu0 %v4315
  %v4563 = vpop.f32.mrf.mxu0
  %v4564 = vadd.f32 0.0, %v4563
  %v4565 = vpop.f32.mrf.mxu0
  %v4566 = vpop.f32.mrf.mxu0
  %v4567 = vadd.f32 0.0, %v4566
  %v4568 = vpop.f32.mrf.mxu0
  %4569 = vmatprep.mubr.bf16.mxu0 0
  %4570 = vmatmul.mubr.bf16.gmra.mxu0 %v4318
  %v4571 = vpop.f32.mrf.mxu0
  %v4572 = vadd.f32 0.0, %v4571
  %v4573 = vpop.f32.mrf.mxu0
  %v4574 = vpop.f32.mrf.mxu0
  %v4575 = vadd.f32 0.0, %v4574
  %v4576 = vpop.f32.mrf.mxu0
  %4577 = vmatprep.mubr.bf16.mxu0 0
  %4578 = vmatmul.mubr.bf16.gmra.mxu0 %v4321
  %v4579 = vpop.f32.mrf.mxu0
  %v4580 = vadd.f32 0.0, %v4579
  %v4581 = vpop.f32.mrf.mxu0
  %v4582 = vpop.f32.mrf.mxu0
  %v4583 = vadd.f32 0.0, %v4582
  %v4584 = vpop.f32.mrf.mxu0
  %4585 = vmatprep.mubr.bf16.mxu0 0
  %4586 = vmatmul.mubr.bf16.gmra.mxu0 %v4324
  %v4587 = vpop.f32.mrf.mxu0
  %v4588 = vadd.f32 0.0, %v4587
  %v4589 = vpop.f32.mrf.mxu0
  %v4590 = vpop.f32.mrf.mxu0
  %v4591 = vadd.f32 0.0, %v4590
  %v4592 = vpop.f32.mrf.mxu0
  %4593 = vmatprep.mubr.bf16.mxu0 0
  %4594 = vmatmul.mubr.bf16.gmra.mxu0 %v4327
  %v4595 = vpop.f32.mrf.mxu0
  %v4596 = vadd.f32 0.0, %v4595
  %v4597 = vpop.f32.mrf.mxu0
  %v4598 = vpop.f32.mrf.mxu0
  %v4599 = vadd.f32 0.0, %v4598
  %v4600 = vpop.f32.mrf.mxu0
  %4601 = vmatprep.mubr.bf16.mxu0 0
  %4602 = vmatmul.mubr.bf16.gmra.mxu0 %v4330
  %v4603 = vpop.f32.mrf.mxu0
  %v4604 = vadd.f32 0.0, %v4603
  %v4605 = vpop.f32.mrf.mxu0
  %v4606 = vpop.f32.mrf.mxu0
  %v4607 = vadd.f32 0.0, %v4606
  %v4608 = vpop.f32.mrf.mxu0
  %4609 = vdwg.mxu0
  %v4621 = vunpack.c.l.b16 %v4233
  %v4622 = vunpack.c.l.b16 %v4234
  %v4623 = vunpack.c.l.b16 %v4235
  %v4624 = vunpack.c.l.b16 %v4236
  %v4625 = vunpack.c.l.b16 %v4237
  %v4626 = vunpack.c.l.b16 %v4238
  %v4627 = vunpack.c.l.b16 %v4239
  %v4628 = vunpack.c.l.b16 %v4240
  %v4629 = vunpack.c.l.b16 %v4241
  %v4630 = vunpack.c.l.b16 %v4242
  %v4631 = vunpack.c.l.b16 %v4243
  %v4632 = vpack.c.b16 %v4622, %v4621
  %v4633 = vpack.c.b16 %v4624, %v4623
  %v4634 = vpack.c.b16 %v4626, %v4625
  %v4635 = vpack.c.b16 %v4628, %v4627
  %v4636 = vpack.c.b16 %v4630, %v4629
  %v4637 = vpack.c.b16 %v4631, %v4631
  %v4644 = vsel %vm4301, %v4219, 0
  %v4647 = vsel %vm4332, %v4637, 0
  %4649 = vmatprep.subr.bf16.mxu0 0
  %4650 = vmatpush1.bf16.msra.mxu0 0
  %4651 = vmatprep.subr.bf16.mxu0 0
  %4652 = vmatpush1.bf16.msra.mxu0 0
  %4653 = vmatprep.subr.bf16.mxu0 0
  %4654 = vmatpush1.bf16.msra.mxu0 %v4647
  %4655 = vmatprep.subr.bf16.mxu0 0
  %4656 = vmatpush1.bf16.msra.mxu0 %v4636
  %4657 = vmatprep.subr.bf16.mxu0 0
  %4658 = vmatpush1.bf16.msra.mxu0 %v4635
  %4659 = vmatprep.subr.bf16.mxu0 0
  %4660 = vmatpush1.bf16.msra.mxu0 %v4634
  %4661 = vmatprep.subr.bf16.mxu0 0
  %4662 = vmatpush1.bf16.msra.mxu0 %v4633
  %4663 = vmatprep.subr.bf16.mxu0 0
  %4664 = vmatpush1.bf16.msra.mxu0 %v4632
  %4665 = vmatprep.subr.bf16.mxu0 0
  %4666 = vmatpush2.bf16.msra.mxu0 0
  %4667 = vmatprep.subr.bf16.mxu0 0
  %4668 = vmatpush2.bf16.msra.mxu0 0
  %4669 = vmatprep.subr.bf16.mxu0 0
  %4670 = vmatpush2.bf16.msra.mxu0 0
  %4671 = vmatprep.subr.bf16.mxu0 0
  %4672 = vmatpush2.bf16.msra.mxu0 0
  %4673 = vmatprep.subr.bf16.mxu0 0
  %4674 = vmatpush2.bf16.msra.mxu0 0
  %4675 = vmatprep.subr.bf16.mxu0 0
  %4676 = vmatpush2.bf16.msra.mxu0 0
  %4677 = vmatprep.subr.bf16.mxu0 0
  %4678 = vmatpush2.bf16.msra.mxu0 0
  %4679 = vmatprep.subr.bf16.mxu0 0
  %4680 = vmatpush2.bf16.msra.mxu0 0
  %4681 = vmatprep.mubr.bf16.mxu0 0
  %4682 = vmatmul.mubr.bf16.gmra.mxu0 %v4644
  %v4683 = vpop.f32.mrf.mxu0
  %v4684 = vadd.f32 %v4371, %v4683
  %v4685 = vpop.f32.mrf.mxu0
  %v4686 = vpop.f32.mrf.mxu0
  %v4687 = vadd.f32 %v4374, %v4686
  %v4688 = vpop.f32.mrf.mxu0
  %4689 = vmatprep.mubr.bf16.mxu0 0
  %4690 = vmatmul.mubr.bf16.gmra.mxu0 %v4303
  %v4691 = vpop.f32.mrf.mxu0
  %v4692 = vadd.f32 %v4379, %v4691
  %v4693 = vpop.f32.mrf.mxu0
  %v4694 = vpop.f32.mrf.mxu0
  %v4695 = vadd.f32 %v4382, %v4694
  %v4696 = vpop.f32.mrf.mxu0
  %4697 = vmatprep.mubr.bf16.mxu0 0
  %4698 = vmatmul.mubr.bf16.gmra.mxu0 %v4306
  %v4699 = vpop.f32.mrf.mxu0
  %v4700 = vadd.f32 %v4387, %v4699
  %v4701 = vpop.f32.mrf.mxu0
  %v4702 = vpop.f32.mrf.mxu0
  %v4703 = vadd.f32 %v4390, %v4702
  %v4704 = vpop.f32.mrf.mxu0
  %4705 = vmatprep.mubr.bf16.mxu0 0
  %4706 = vmatmul.mubr.bf16.gmra.mxu0 %v4309
  %v4707 = vpop.f32.mrf.mxu0
  %v4708 = vadd.f32 %v4395, %v4707
  %v4709 = vpop.f32.mrf.mxu0
  %v4710 = vpop.f32.mrf.mxu0
  %v4711 = vadd.f32 %v4398, %v4710
  %v4712 = vpop.f32.mrf.mxu0
  %4713 = vmatprep.mubr.bf16.mxu0 0
  %4714 = vmatmul.mubr.bf16.gmra.mxu0 %v4312
  %v4715 = vpop.f32.mrf.mxu0
  %v4716 = vadd.f32 %v4403, %v4715
  %v4717 = vpop.f32.mrf.mxu0
  %v4718 = vpop.f32.mrf.mxu0
  %v4719 = vadd.f32 %v4406, %v4718
  %v4720 = vpop.f32.mrf.mxu0
  %4721 = vmatprep.mubr.bf16.mxu0 0
  %4722 = vmatmul.mubr.bf16.gmra.mxu0 %v4315
  %v4723 = vpop.f32.mrf.mxu0
  %v4724 = vadd.f32 %v4411, %v4723
  %v4725 = vpop.f32.mrf.mxu0
  %v4726 = vpop.f32.mrf.mxu0
  %v4727 = vadd.f32 %v4414, %v4726
  %v4728 = vpop.f32.mrf.mxu0
  %4729 = vmatprep.mubr.bf16.mxu0 0
  %4730 = vmatmul.mubr.bf16.gmra.mxu0 %v4318
  %v4731 = vpop.f32.mrf.mxu0
  %v4732 = vadd.f32 %v4419, %v4731
  %v4733 = vpop.f32.mrf.mxu0
  %v4734 = vpop.f32.mrf.mxu0
  %v4735 = vadd.f32 %v4422, %v4734
  %v4736 = vpop.f32.mrf.mxu0
  %4737 = vmatprep.mubr.bf16.mxu0 0
  %4738 = vmatmul.mubr.bf16.gmra.mxu0 %v4321
  %v4739 = vpop.f32.mrf.mxu0
  %v4740 = vadd.f32 %v4427, %v4739
  %v4741 = vpop.f32.mrf.mxu0
  %v4742 = vpop.f32.mrf.mxu0
  %v4743 = vadd.f32 %v4430, %v4742
  %v4744 = vpop.f32.mrf.mxu0
  %4745 = vmatprep.mubr.bf16.mxu0 0
  %4746 = vmatmul.mubr.bf16.gmra.mxu0 %v4324
  %v4747 = vpop.f32.mrf.mxu0
  %v4748 = vadd.f32 %v4435, %v4747
  %v4749 = vpop.f32.mrf.mxu0
  %v4750 = vpop.f32.mrf.mxu0
  %v4751 = vadd.f32 %v4438, %v4750
  %v4752 = vpop.f32.mrf.mxu0
  %4753 = vmatprep.mubr.bf16.mxu0 0
  %4754 = vmatmul.mubr.bf16.gmra.mxu0 %v4327
  %v4755 = vpop.f32.mrf.mxu0
  %v4756 = vadd.f32 %v4443, %v4755
  %v4757 = vpop.f32.mrf.mxu0
  %v4758 = vpop.f32.mrf.mxu0
  %v4759 = vadd.f32 %v4446, %v4758
  %v4760 = vpop.f32.mrf.mxu0
  %4761 = vdwg.mxu0
  %v4773 = vunpack.c.l.b16 %v4245
  %v4774 = vunpack.c.l.b16 %v4246
  %v4775 = vunpack.c.l.b16 %v4247
  %v4776 = vunpack.c.l.b16 %v4248
  %v4777 = vunpack.c.l.b16 %v4249
  %v4778 = vunpack.c.l.b16 %v4250
  %v4779 = vunpack.c.l.b16 %v4251
  %v4780 = vunpack.c.l.b16 %v4252
  %v4781 = vunpack.c.l.b16 %v4253
  %v4782 = vunpack.c.l.b16 %v4254
  %v4783 = vunpack.c.l.b16 %v4255
  %v4784 = vpack.c.b16 %v4774, %v4773
  %v4785 = vpack.c.b16 %v4776, %v4775
  %v4786 = vpack.c.b16 %v4778, %v4777
  %v4787 = vpack.c.b16 %v4780, %v4779
  %v4788 = vpack.c.b16 %v4782, %v4781
  %v4789 = vpack.c.b16 %v4783, %v4783
  %v4796 = vsel %vm4332, %v4789, 0
  %4798 = vmatprep.subr.bf16.mxu0 0
  %4799 = vmatpush1.bf16.msra.mxu0 0
  %4800 = vmatprep.subr.bf16.mxu0 0
  %4801 = vmatpush1.bf16.msra.mxu0 0
  %4802 = vmatprep.subr.bf16.mxu0 0
  %4803 = vmatpush1.bf16.msra.mxu0 %v4796
  %4804 = vmatprep.subr.bf16.mxu0 0
  %4805 = vmatpush1.bf16.msra.mxu0 %v4788
  %4806 = vmatprep.subr.bf16.mxu0 0
  %4807 = vmatpush1.bf16.msra.mxu0 %v4787
  %4808 = vmatprep.subr.bf16.mxu0 0
  %4809 = vmatpush1.bf16.msra.mxu0 %v4786
  %4810 = vmatprep.subr.bf16.mxu0 0
  %4811 = vmatpush1.bf16.msra.mxu0 %v4785
  %4812 = vmatprep.subr.bf16.mxu0 0
  %4813 = vmatpush1.bf16.msra.mxu0 %v4784
  %4814 = vmatprep.subr.bf16.mxu0 0
  %4815 = vmatpush2.bf16.msra.mxu0 0
  %4816 = vmatprep.subr.bf16.mxu0 0
  %4817 = vmatpush2.bf16.msra.mxu0 0
  %4818 = vmatprep.subr.bf16.mxu0 0
  %4819 = vmatpush2.bf16.msra.mxu0 0
  %4820 = vmatprep.subr.bf16.mxu0 0
  %4821 = vmatpush2.bf16.msra.mxu0 0
  %4822 = vmatprep.subr.bf16.mxu0 0
  %4823 = vmatpush2.bf16.msra.mxu0 0
  %4824 = vmatprep.subr.bf16.mxu0 0
  %4825 = vmatpush2.bf16.msra.mxu0 0
  %4826 = vmatprep.subr.bf16.mxu0 0
  %4827 = vmatpush2.bf16.msra.mxu0 0
  %4828 = vmatprep.subr.bf16.mxu0 0
  %4829 = vmatpush2.bf16.msra.mxu0 0
  %4830 = vmatprep.mubr.bf16.mxu0 0
  %4831 = vmatmul.mubr.bf16.gmra.mxu0 %v4644
  %v4832 = vpop.f32.mrf.mxu0
  %v4833 = vadd.f32 %v4532, %v4832
  %v4834 = vpop.f32.mrf.mxu0
  %v4835 = vpop.f32.mrf.mxu0
  %v4836 = vadd.f32 %v4535, %v4835
  %v4837 = vpop.f32.mrf.mxu0
  %4838 = vmatprep.mubr.bf16.mxu0 0
  %4839 = vmatmul.mubr.bf16.gmra.mxu0 %v4303
  %v4840 = vpop.f32.mrf.mxu0
  %v4841 = vadd.f32 %v4540, %v4840
  %v4842 = vpop.f32.mrf.mxu0
  %v4843 = vpop.f32.mrf.mxu0
  %v4844 = vadd.f32 %v4543, %v4843
  %v4845 = vpop.f32.mrf.mxu0
  %4846 = vmatprep.mubr.bf16.mxu0 0
  %4847 = vmatmul.mubr.bf16.gmra.mxu0 %v4306
  %v4848 = vpop.f32.mrf.mxu0
  %v4849 = vadd.f32 %v4548, %v4848
  %v4850 = vpop.f32.mrf.mxu0
  %v4851 = vpop.f32.mrf.mxu0
  %v4852 = vadd.f32 %v4551, %v4851
  %v4853 = vpop.f32.mrf.mxu0
  %4854 = vmatprep.mubr.bf16.mxu0 0
  %4855 = vmatmul.mubr.bf16.gmra.mxu0 %v4309
  %v4856 = vpop.f32.mrf.mxu0
  %v4857 = vadd.f32 %v4556, %v4856
  %v4858 = vpop.f32.mrf.mxu0
  %v4859 = vpop.f32.mrf.mxu0
  %v4860 = vadd.f32 %v4559, %v4859
  %v4861 = vpop.f32.mrf.mxu0
  %4862 = vmatprep.mubr.bf16.mxu0 0
  %4863 = vmatmul.mubr.bf16.gmra.mxu0 %v4312
  %v4864 = vpop.f32.mrf.mxu0
  %v4865 = vadd.f32 %v4564, %v4864
  %v4866 = vpop.f32.mrf.mxu0
  %v4867 = vpop.f32.mrf.mxu0
  %v4868 = vadd.f32 %v4567, %v4867
  %v4869 = vpop.f32.mrf.mxu0
  %4870 = vmatprep.mubr.bf16.mxu0 0
  %4871 = vmatmul.mubr.bf16.gmra.mxu0 %v4315
  %v4872 = vpop.f32.mrf.mxu0
  %v4873 = vadd.f32 %v4572, %v4872
  %v4874 = vpop.f32.mrf.mxu0
  %v4875 = vpop.f32.mrf.mxu0
  %v4876 = vadd.f32 %v4575, %v4875
  %v4877 = vpop.f32.mrf.mxu0
  %4878 = vmatprep.mubr.bf16.mxu0 0
  %4879 = vmatmul.mubr.bf16.gmra.mxu0 %v4318
  %v4880 = vpop.f32.mrf.mxu0
  %v4881 = vadd.f32 %v4580, %v4880
  %v4882 = vpop.f32.mrf.mxu0
  %v4883 = vpop.f32.mrf.mxu0
  %v4884 = vadd.f32 %v4583, %v4883
  %v4885 = vpop.f32.mrf.mxu0
  %4886 = vmatprep.mubr.bf16.mxu0 0
  %4887 = vmatmul.mubr.bf16.gmra.mxu0 %v4321
  %v4888 = vpop.f32.mrf.mxu0
  %v4889 = vadd.f32 %v4588, %v4888
  %v4890 = vpop.f32.mrf.mxu0
  %v4891 = vpop.f32.mrf.mxu0
  %v4892 = vadd.f32 %v4591, %v4891
  %v4893 = vpop.f32.mrf.mxu0
  %4894 = vmatprep.mubr.bf16.mxu0 0
  %4895 = vmatmul.mubr.bf16.gmra.mxu0 %v4324
  %v4896 = vpop.f32.mrf.mxu0
  %v4897 = vadd.f32 %v4596, %v4896
  %v4898 = vpop.f32.mrf.mxu0
  %v4899 = vpop.f32.mrf.mxu0
  %v4900 = vadd.f32 %v4599, %v4899
  %v4901 = vpop.f32.mrf.mxu0
  %4902 = vmatprep.mubr.bf16.mxu0 0
  %4903 = vmatmul.mubr.bf16.gmra.mxu0 %v4327
  %v4904 = vpop.f32.mrf.mxu0
  %v4905 = vadd.f32 %v4604, %v4904
  %v4906 = vpop.f32.mrf.mxu0
  %v4907 = vpop.f32.mrf.mxu0
  %v4908 = vadd.f32 %v4607, %v4907
  %v4909 = vpop.f32.mrf.mxu0
  %4910 = vdwg.mxu0
  %s4911 = scalar_lea.vmem %s2, 88
  %v4912 = vld [vmem:[%s4911] sm:$0xf]
  %v4913 = vld [vmem:[%s4911 + $0x4] sm:$0xf]
  %v4914 = vld [vmem:[%s4911 + $0x8] sm:$0xf]
  %v4915 = vld [vmem:[%s4911 + $0xc] sm:$0xf]
  %v4916 = vld [vmem:[%s4911 + $0x10] sm:$0xf]
  %v4917 = vld [vmem:[%s4911 + $0x14] sm:$0xf]
  %v4918 = vld [vmem:[%s4911 + $0x18] sm:$0xf]
  %v4919 = vld [vmem:[%s4911 + $0x1c] sm:$0xf]
  %v4920 = vld [vmem:[%s4911 + $0x20] sm:$0xf]
  %v4921 = vld [vmem:[%s4911 + $0x24] sm:$0xf]
  %v4922 = vld [vmem:[%s4911 + $0x28] sm:$0x3]
  %v4934 = vunpack.c.l.b16 %v4912
  %v4935 = vunpack.c.l.b16 %v4913
  %v4936 = vunpack.c.l.b16 %v4914
  %v4937 = vunpack.c.l.b16 %v4915
  %v4938 = vunpack.c.l.b16 %v4916
  %v4939 = vunpack.c.l.b16 %v4917
  %v4940 = vunpack.c.l.b16 %v4918
  %v4941 = vunpack.c.l.b16 %v4919
  %v4942 = vunpack.c.l.b16 %v4920
  %v4943 = vunpack.c.l.b16 %v4921
  %v4944 = vunpack.c.l.b16 %v4922
  %v4945 = vpack.c.b16 %v4935, %v4934
  %v4946 = vpack.c.b16 %v4937, %v4936
  %v4947 = vpack.c.b16 %v4939, %v4938
  %v4948 = vpack.c.b16 %v4941, %v4940
  %v4949 = vpack.c.b16 %v4943, %v4942
  %v4950 = vpack.c.b16 %v4944, %v4944
  %v4957 = vsel %vm4301, %v4230, 0
  %v4960 = vsel %vm4332, %v4950, 0
  %4962 = vmatprep.subr.bf16.mxu0 0
  %4963 = vmatpush1.bf16.msra.mxu0 0
  %4964 = vmatprep.subr.bf16.mxu0 0
  %4965 = vmatpush1.bf16.msra.mxu0 0
  %4966 = vmatprep.subr.bf16.mxu0 0
  %4967 = vmatpush1.bf16.msra.mxu0 %v4960
  %4968 = vmatprep.subr.bf16.mxu0 0
  %4969 = vmatpush1.bf16.msra.mxu0 %v4949
  %4970 = vmatprep.subr.bf16.mxu0 0
  %4971 = vmatpush1.bf16.msra.mxu0 %v4948
  %4972 = vmatprep.subr.bf16.mxu0 0
  %4973 = vmatpush1.bf16.msra.mxu0 %v4947
  %4974 = vmatprep.subr.bf16.mxu0 0
  %4975 = vmatpush1.bf16.msra.mxu0 %v4946
  %4976 = vmatprep.subr.bf16.mxu0 0
  %4977 = vmatpush1.bf16.msra.mxu0 %v4945
  %4978 = vmatprep.subr.bf16.mxu0 0
  %4979 = vmatpush2.bf16.msra.mxu0 0
  %4980 = vmatprep.subr.bf16.mxu0 0
  %4981 = vmatpush2.bf16.msra.mxu0 0
  %4982 = vmatprep.subr.bf16.mxu0 0
  %4983 = vmatpush2.bf16.msra.mxu0 0
  %4984 = vmatprep.subr.bf16.mxu0 0
  %4985 = vmatpush2.bf16.msra.mxu0 0
  %4986 = vmatprep.subr.bf16.mxu0 0
  %4987 = vmatpush2.bf16.msra.mxu0 0
  %4988 = vmatprep.subr.bf16.mxu0 0
  %4989 = vmatpush2.bf16.msra.mxu0 0
  %4990 = vmatprep.subr.bf16.mxu0 0
  %4991 = vmatpush2.bf16.msra.mxu0 0
  %4992 = vmatprep.subr.bf16.mxu0 0
  %4993 = vmatpush2.bf16.msra.mxu0 0
  %4994 = vmatprep.mubr.bf16.mxu0 0
  %4995 = vmatmul.mubr.bf16.gmra.mxu0 %v4306
  %v4996 = vpop.f32.mrf.mxu0
  %v4997 = vadd.f32 0.0, %v4996
  %v4998 = vpop.f32.mrf.mxu0
  %v4999 = vpop.f32.mrf.mxu0
  %v5000 = vadd.f32 0.0, %v4999
  %v5001 = vpop.f32.mrf.mxu0
  %5002 = vmatprep.mubr.bf16.mxu0 0
  %5003 = vmatmul.mubr.bf16.gmra.mxu0 %v4309
  %v5004 = vpop.f32.mrf.mxu0
  %v5005 = vadd.f32 0.0, %v5004
  %v5006 = vpop.f32.mrf.mxu0
  %v5007 = vpop.f32.mrf.mxu0
  %v5008 = vadd.f32 0.0, %v5007
  %v5009 = vpop.f32.mrf.mxu0
  %5010 = vmatprep.mubr.bf16.mxu0 0
  %5011 = vmatmul.mubr.bf16.gmra.mxu0 %v4312
  %v5012 = vpop.f32.mrf.mxu0
  %v5013 = vadd.f32 0.0, %v5012
  %v5014 = vpop.f32.mrf.mxu0
  %v5015 = vpop.f32.mrf.mxu0
  %v5016 = vadd.f32 0.0, %v5015
  %v5017 = vpop.f32.mrf.mxu0
  %5018 = vmatprep.mubr.bf16.mxu0 0
  %5019 = vmatmul.mubr.bf16.gmra.mxu0 %v4315
  %v5020 = vpop.f32.mrf.mxu0
  %v5021 = vadd.f32 0.0, %v5020
  %v5022 = vpop.f32.mrf.mxu0
  %v5023 = vpop.f32.mrf.mxu0
  %v5024 = vadd.f32 0.0, %v5023
  %v5025 = vpop.f32.mrf.mxu0
  %5026 = vmatprep.mubr.bf16.mxu0 0
  %5027 = vmatmul.mubr.bf16.gmra.mxu0 %v4318
  %v5028 = vpop.f32.mrf.mxu0
  %v5029 = vadd.f32 0.0, %v5028
  %v5030 = vpop.f32.mrf.mxu0
  %v5031 = vpop.f32.mrf.mxu0
  %v5032 = vadd.f32 0.0, %v5031
  %v5033 = vpop.f32.mrf.mxu0
  %5034 = vmatprep.mubr.bf16.mxu0 0
  %5035 = vmatmul.mubr.bf16.gmra.mxu0 %v4321
  %v5036 = vpop.f32.mrf.mxu0
  %v5037 = vadd.f32 0.0, %v5036
  %v5038 = vpop.f32.mrf.mxu0
  %v5039 = vpop.f32.mrf.mxu0
  %v5040 = vadd.f32 0.0, %v5039
  %v5041 = vpop.f32.mrf.mxu0
  %5042 = vmatprep.mubr.bf16.mxu0 0
  %5043 = vmatmul.mubr.bf16.gmra.mxu0 %v4324
  %v5044 = vpop.f32.mrf.mxu0
  %v5045 = vadd.f32 0.0, %v5044
  %v5046 = vpop.f32.mrf.mxu0
  %v5047 = vpop.f32.mrf.mxu0
  %v5048 = vadd.f32 0.0, %v5047
  %v5049 = vpop.f32.mrf.mxu0
  %5050 = vmatprep.mubr.bf16.mxu0 0
  %5051 = vmatmul.mubr.bf16.gmra.mxu0 %v4327
  %v5052 = vpop.f32.mrf.mxu0
  %v5053 = vadd.f32 0.0, %v5052
  %v5054 = vpop.f32.mrf.mxu0
  %v5055 = vpop.f32.mrf.mxu0
  %v5056 = vadd.f32 0.0, %v5055
  %v5057 = vpop.f32.mrf.mxu0
  %5058 = vmatprep.mubr.bf16.mxu0 0
  %5059 = vmatmul.mubr.bf16.gmra.mxu0 %v4330
  %v5060 = vpop.f32.mrf.mxu0
  %v5061 = vadd.f32 0.0, %v5060
  %v5062 = vpop.f32.mrf.mxu0
  %v5063 = vpop.f32.mrf.mxu0
  %v5064 = vadd.f32 0.0, %v5063
  %v5065 = vpop.f32.mrf.mxu0
  %5066 = vmatprep.mubr.bf16.mxu0 0
  %5067 = vmatmul.mubr.bf16.gmra.mxu0 %v4957
  %v5068 = vpop.f32.mrf.mxu0
  %v5069 = vadd.f32 0.0, %v5068
  %v5070 = vpop.f32.mrf.mxu0
  %v5071 = vpop.f32.mrf.mxu0
  %v5072 = vadd.f32 0.0, %v5071
  %v5073 = vpop.f32.mrf.mxu0
  %5074 = vdwg.mxu0
  %s5075 = scalar_lea.vmem %s2, 308
  %v5076 = vld [vmem:[%s5075] sm:$0xf]
  %v5077 = vld [vmem:[%s5075 + $0x4] sm:$0xf]
  %v5078 = vld [vmem:[%s5075 + $0x8] sm:$0xf]
  %v5079 = vld [vmem:[%s5075 + $0xc] sm:$0xf]
  %v5080 = vld [vmem:[%s5075 + $0x10] sm:$0xf]
  %v5081 = vld [vmem:[%s5075 + $0x14] sm:$0xf]
  %v5082 = vld [vmem:[%s5075 + $0x18] sm:$0xf]
  %v5083 = vld [vmem:[%s5075 + $0x1c] sm:$0xf]
  %v5084 = vld [vmem:[%s5075 + $0x20] sm:$0xf]
  %v5085 = vld [vmem:[%s5075 + $0x24] sm:$0xf]
  %v5086 = vld [vmem:[%s5075 + $0x28] sm:$0x3]
  %v5098 = vunpack.c.l.b16 %v5076
  %v5099 = vunpack.c.l.b16 %v5077
  %v5100 = vunpack.c.l.b16 %v5078
  %v5101 = vunpack.c.l.b16 %v5079
  %v5102 = vunpack.c.l.b16 %v5080
  %v5103 = vunpack.c.l.b16 %v5081
  %v5104 = vunpack.c.l.b16 %v5082
  %v5105 = vunpack.c.l.b16 %v5083
  %v5106 = vunpack.c.l.b16 %v5084
  %v5107 = vunpack.c.l.b16 %v5085
  %v5108 = vunpack.c.l.b16 %v5086
  %v5109 = vpack.c.b16 %v5099, %v5098
  %v5110 = vpack.c.b16 %v5101, %v5100
  %v5111 = vpack.c.b16 %v5103, %v5102
  %v5112 = vpack.c.b16 %v5105, %v5104
  %v5113 = vpack.c.b16 %v5107, %v5106
  %v5114 = vpack.c.b16 %v5108, %v5108
  %v5121 = vsel %vm4332, %v5114, 0
  %5123 = vmatprep.subr.bf16.mxu0 0
  %5124 = vmatpush1.bf16.msra.mxu0 0
  %5125 = vmatprep.subr.bf16.mxu0 0
  %5126 = vmatpush1.bf16.msra.mxu0 0
  %5127 = vmatprep.subr.bf16.mxu0 0
  %5128 = vmatpush1.bf16.msra.mxu0 %v5121
  %5129 = vmatprep.subr.bf16.mxu0 0
  %5130 = vmatpush1.bf16.msra.mxu0 %v5113
  %5131 = vmatprep.subr.bf16.mxu0 0
  %5132 = vmatpush1.bf16.msra.mxu0 %v5112
  %5133 = vmatprep.subr.bf16.mxu0 0
  %5134 = vmatpush1.bf16.msra.mxu0 %v5111
  %5135 = vmatprep.subr.bf16.mxu0 0
  %5136 = vmatpush1.bf16.msra.mxu0 %v5110
  %5137 = vmatprep.subr.bf16.mxu0 0
  %5138 = vmatpush1.bf16.msra.mxu0 %v5109
  %5139 = vmatprep.subr.bf16.mxu0 0
  %5140 = vmatpush2.bf16.msra.mxu0 0
  %5141 = vmatprep.subr.bf16.mxu0 0
  %5142 = vmatpush2.bf16.msra.mxu0 0
  %5143 = vmatprep.subr.bf16.mxu0 0
  %5144 = vmatpush2.bf16.msra.mxu0 0
  %5145 = vmatprep.subr.bf16.mxu0 0
  %5146 = vmatpush2.bf16.msra.mxu0 0
  %5147 = vmatprep.subr.bf16.mxu0 0
  %5148 = vmatpush2.bf16.msra.mxu0 0
  %5149 = vmatprep.subr.bf16.mxu0 0
  %5150 = vmatpush2.bf16.msra.mxu0 0
  %5151 = vmatprep.subr.bf16.mxu0 0
  %5152 = vmatpush2.bf16.msra.mxu0 0
  %5153 = vmatprep.subr.bf16.mxu0 0
  %5154 = vmatpush2.bf16.msra.mxu0 0
  %5155 = vmatprep.mubr.bf16.mxu0 0
  %5156 = vmatmul.mubr.bf16.gmra.mxu0 %v4306
  %v5157 = vpop.f32.mrf.mxu0
  %v5158 = vadd.f32 0.0, %v5157
  %v5159 = vpop.f32.mrf.mxu0
  %v5160 = vpop.f32.mrf.mxu0
  %v5161 = vadd.f32 0.0, %v5160
  %v5162 = vpop.f32.mrf.mxu0
  %5163 = vmatprep.mubr.bf16.mxu0 0
  %5164 = vmatmul.mubr.bf16.gmra.mxu0 %v4309
  %v5165 = vpop.f32.mrf.mxu0
  %v5166 = vadd.f32 0.0, %v5165
  %v5167 = vpop.f32.mrf.mxu0
  %v5168 = vpop.f32.mrf.mxu0
  %v5169 = vadd.f32 0.0, %v5168
  %v5170 = vpop.f32.mrf.mxu0
  %5171 = vmatprep.mubr.bf16.mxu0 0
  %5172 = vmatmul.mubr.bf16.gmra.mxu0 %v4312
  %v5173 = vpop.f32.mrf.mxu0
  %v5174 = vadd.f32 0.0, %v5173
  %v5175 = vpop.f32.mrf.mxu0
  %v5176 = vpop.f32.mrf.mxu0
  %v5177 = vadd.f32 0.0, %v5176
  %v5178 = vpop.f32.mrf.mxu0
  %5179 = vmatprep.mubr.bf16.mxu0 0
  %5180 = vmatmul.mubr.bf16.gmra.mxu0 %v4315
  %v5181 = vpop.f32.mrf.mxu0
  %v5182 = vadd.f32 0.0, %v5181
  %v5183 = vpop.f32.mrf.mxu0
  %v5184 = vpop.f32.mrf.mxu0
  %v5185 = vadd.f32 0.0, %v5184
  %v5186 = vpop.f32.mrf.mxu0
  %5187 = vmatprep.mubr.bf16.mxu0 0
  %5188 = vmatmul.mubr.bf16.gmra.mxu0 %v4318
  %v5189 = vpop.f32.mrf.mxu0
  %v5190 = vadd.f32 0.0, %v5189
  %v5191 = vpop.f32.mrf.mxu0
  %v5192 = vpop.f32.mrf.mxu0
  %v5193 = vadd.f32 0.0, %v5192
  %v5194 = vpop.f32.mrf.mxu0
  %5195 = vmatprep.mubr.bf16.mxu0 0
  %5196 = vmatmul.mubr.bf16.gmra.mxu0 %v4321
  %v5197 = vpop.f32.mrf.mxu0
  %v5198 = vadd.f32 0.0, %v5197
  %v5199 = vpop.f32.mrf.mxu0
  %v5200 = vpop.f32.mrf.mxu0
  %v5201 = vadd.f32 0.0, %v5200
  %v5202 = vpop.f32.mrf.mxu0
  %5203 = vmatprep.mubr.bf16.mxu0 0
  %5204 = vmatmul.mubr.bf16.gmra.mxu0 %v4324
  %v5205 = vpop.f32.mrf.mxu0
  %v5206 = vadd.f32 0.0, %v5205
  %v5207 = vpop.f32.mrf.mxu0
  %v5208 = vpop.f32.mrf.mxu0
  %v5209 = vadd.f32 0.0, %v5208
  %v5210 = vpop.f32.mrf.mxu0
  %5211 = vmatprep.mubr.bf16.mxu0 0
  %5212 = vmatmul.mubr.bf16.gmra.mxu0 %v4327
  %v5213 = vpop.f32.mrf.mxu0
  %v5214 = vadd.f32 0.0, %v5213
  %v5215 = vpop.f32.mrf.mxu0
  %v5216 = vpop.f32.mrf.mxu0
  %v5217 = vadd.f32 0.0, %v5216
  %v5218 = vpop.f32.mrf.mxu0
  %5219 = vmatprep.mubr.bf16.mxu0 0
  %5220 = vmatmul.mubr.bf16.gmra.mxu0 %v4330
  %v5221 = vpop.f32.mrf.mxu0
  %v5222 = vadd.f32 0.0, %v5221
  %v5223 = vpop.f32.mrf.mxu0
  %v5224 = vpop.f32.mrf.mxu0
  %v5225 = vadd.f32 0.0, %v5224
  %v5226 = vpop.f32.mrf.mxu0
  %5227 = vmatprep.mubr.bf16.mxu0 0
  %5228 = vmatmul.mubr.bf16.gmra.mxu0 %v4957
  %v5229 = vpop.f32.mrf.mxu0
  %v5230 = vadd.f32 0.0, %v5229
  %v5231 = vpop.f32.mrf.mxu0
  %v5232 = vpop.f32.mrf.mxu0
  %v5233 = vadd.f32 0.0, %v5232
  %v5234 = vpop.f32.mrf.mxu0
  %5235 = vdwg.mxu0
  %v5236 = vadd.f32 %v4684, %v4997
  %v5237 = vadd.f32 %v4687, %v5000
  %v5238 = vadd.f32 %v4692, %v5005
  %v5239 = vadd.f32 %v4695, %v5008
  %v5240 = vadd.f32 %v4700, %v5013
  %v5241 = vadd.f32 %v4703, %v5016
  %v5242 = vadd.f32 %v4708, %v5021
  %v5243 = vadd.f32 %v4711, %v5024
  %v5244 = vadd.f32 %v4716, %v5029
  %v5245 = vadd.f32 %v4719, %v5032
  %v5246 = vadd.f32 %v4724, %v5037
  %v5247 = vadd.f32 %v4727, %v5040
  %v5248 = vadd.f32 %v4732, %v5045
  %v5249 = vadd.f32 %v4735, %v5048
  %v5250 = vadd.f32 %v4740, %v5053
  %v5251 = vadd.f32 %v4743, %v5056
  %v5252 = vadd.f32 %v4748, %v5061
  %v5253 = vadd.f32 %v4751, %v5064
  %v5254 = vadd.f32 %v4756, %v5069
  %v5255 = vadd.f32 %v4759, %v5072
  %v5256 = vadd.f32 %v4833, %v5158
  %v5257 = vadd.f32 %v4836, %v5161
  %v5258 = vadd.f32 %v4841, %v5166
  %v5259 = vadd.f32 %v4844, %v5169
  %v5260 = vadd.f32 %v4849, %v5174
  %v5261 = vadd.f32 %v4852, %v5177
  %v5262 = vadd.f32 %v4857, %v5182
  %v5263 = vadd.f32 %v4860, %v5185
  %v5264 = vadd.f32 %v4865, %v5190
  %v5265 = vadd.f32 %v4868, %v5193
  %v5266 = vadd.f32 %v4873, %v5198
  %v5267 = vadd.f32 %v4876, %v5201
  %v5268 = vadd.f32 %v4881, %v5206
  %v5269 = vadd.f32 %v4884, %v5209
  %v5270 = vadd.f32 %v4889, %v5214
  %v5271 = vadd.f32 %v4892, %v5217
  %v5272 = vadd.f32 %v4897, %v5222
  %v5273 = vadd.f32 %v4900, %v5225
  %v5274 = vadd.f32 %v4905, %v5230
  %v5275 = vadd.f32 %v4908, %v5233
  %s5276 = scalar_lea.vmem %s2, 132
  %v5277 = vld [vmem:[%s5276] sm:$0xf]
  %v5278 = vld [vmem:[%s5276 + $0x4] sm:$0xf]
  %v5279 = vld [vmem:[%s5276 + $0x8] sm:$0xf]
  %v5280 = vld [vmem:[%s5276 + $0xc] sm:$0xf]
  %v5281 = vld [vmem:[%s5276 + $0x10] sm:$0xf]
  %v5282 = vld [vmem:[%s5276 + $0x14] sm:$0xf]
  %v5283 = vld [vmem:[%s5276 + $0x18] sm:$0xf]
  %v5284 = vld [vmem:[%s5276 + $0x1c] sm:$0xf]
  %v5285 = vld [vmem:[%s5276 + $0x20] sm:$0xf]
  %v5286 = vld [vmem:[%s5276 + $0x24] sm:$0xf]
  %v5287 = vld [vmem:[%s5276 + $0x28] sm:$0x3]
  %v5299 = vunpack.c.l.b16 %v5277
  %v5300 = vunpack.c.l.b16 %v5278
  %v5301 = vunpack.c.l.b16 %v5279
  %v5302 = vunpack.c.l.b16 %v5280
  %v5303 = vunpack.c.l.b16 %v5281
  %v5304 = vunpack.c.l.b16 %v5282
  %v5305 = vunpack.c.l.b16 %v5283
  %v5306 = vunpack.c.l.b16 %v5284
  %v5307 = vunpack.c.l.b16 %v5285
  %v5308 = vunpack.c.l.b16 %v5286
  %v5309 = vunpack.c.l.b16 %v5287
  %v5310 = vpack.c.b16 %v5300, %v5299
  %v5311 = vpack.c.b16 %v5302, %v5301
  %v5312 = vpack.c.b16 %v5304, %v5303
  %v5313 = vpack.c.b16 %v5306, %v5305
  %v5314 = vpack.c.b16 %v5308, %v5307
  %v5315 = vpack.c.b16 %v5309, %v5309
  %v5322 = vsel %vm4301, %v4231, 0
  %v5325 = vsel %vm4332, %v5315, 0
  %5327 = vmatprep.subr.bf16.mxu0 0
  %5328 = vmatpush1.bf16.msra.mxu0 0
  %5329 = vmatprep.subr.bf16.mxu0 0
  %5330 = vmatpush1.bf16.msra.mxu0 0
  %5331 = vmatprep.subr.bf16.mxu0 0
  %5332 = vmatpush1.bf16.msra.mxu0 %v5325
  %5333 = vmatprep.subr.bf16.mxu0 0
  %5334 = vmatpush1.bf16.msra.mxu0 %v5314
  %5335 = vmatprep.subr.bf16.mxu0 0
  %5336 = vmatpush1.bf16.msra.mxu0 %v5313
  %5337 = vmatprep.subr.bf16.mxu0 0
  %5338 = vmatpush1.bf16.msra.mxu0 %v5312
  %5339 = vmatprep.subr.bf16.mxu0 0
  %5340 = vmatpush1.bf16.msra.mxu0 %v5311
  %5341 = vmatprep.subr.bf16.mxu0 0
  %5342 = vmatpush1.bf16.msra.mxu0 %v5310
  %5343 = vmatprep.subr.bf16.mxu0 0
  %5344 = vmatpush2.bf16.msra.mxu0 0
  %5345 = vmatprep.subr.bf16.mxu0 0
  %5346 = vmatpush2.bf16.msra.mxu0 0
  %5347 = vmatprep.subr.bf16.mxu0 0
  %5348 = vmatpush2.bf16.msra.mxu0 0
  %5349 = vmatprep.subr.bf16.mxu0 0
  %5350 = vmatpush2.bf16.msra.mxu0 0
  %5351 = vmatprep.subr.bf16.mxu0 0
  %5352 = vmatpush2.bf16.msra.mxu0 0
  %5353 = vmatprep.subr.bf16.mxu0 0
  %5354 = vmatpush2.bf16.msra.mxu0 0
  %5355 = vmatprep.subr.bf16.mxu0 0
  %5356 = vmatpush2.bf16.msra.mxu0 0
  %5357 = vmatprep.subr.bf16.mxu0 0
  %5358 = vmatpush2.bf16.msra.mxu0 0
  %5359 = vmatprep.mubr.bf16.mxu0 0
  %5360 = vmatmul.mubr.bf16.gmra.mxu0 %v4309
  %v5361 = vpop.f32.mrf.mxu0
  %v5362 = vadd.f32 0.0, %v5361
  %v5363 = vpop.f32.mrf.mxu0
  %v5364 = vpop.f32.mrf.mxu0
  %v5365 = vadd.f32 0.0, %v5364
  %v5366 = vpop.f32.mrf.mxu0
  %5367 = vmatprep.mubr.bf16.mxu0 0
  %5368 = vmatmul.mubr.bf16.gmra.mxu0 %v4312
  %v5369 = vpop.f32.mrf.mxu0
  %v5370 = vadd.f32 0.0, %v5369
  %v5371 = vpop.f32.mrf.mxu0
  %v5372 = vpop.f32.mrf.mxu0
  %v5373 = vadd.f32 0.0, %v5372
  %v5374 = vpop.f32.mrf.mxu0
  %5375 = vmatprep.mubr.bf16.mxu0 0
  %5376 = vmatmul.mubr.bf16.gmra.mxu0 %v4315
  %v5377 = vpop.f32.mrf.mxu0
  %v5378 = vadd.f32 0.0, %v5377
  %v5379 = vpop.f32.mrf.mxu0
  %v5380 = vpop.f32.mrf.mxu0
  %v5381 = vadd.f32 0.0, %v5380
  %v5382 = vpop.f32.mrf.mxu0
  %5383 = vmatprep.mubr.bf16.mxu0 0
  %5384 = vmatmul.mubr.bf16.gmra.mxu0 %v4318
  %v5385 = vpop.f32.mrf.mxu0
  %v5386 = vadd.f32 0.0, %v5385
  %v5387 = vpop.f32.mrf.mxu0
  %v5388 = vpop.f32.mrf.mxu0
  %v5389 = vadd.f32 0.0, %v5388
  %v5390 = vpop.f32.mrf.mxu0
  %5391 = vmatprep.mubr.bf16.mxu0 0
  %5392 = vmatmul.mubr.bf16.gmra.mxu0 %v4321
  %v5393 = vpop.f32.mrf.mxu0
  %v5394 = vadd.f32 0.0, %v5393
  %v5395 = vpop.f32.mrf.mxu0
  %v5396 = vpop.f32.mrf.mxu0
  %v5397 = vadd.f32 0.0, %v5396
  %v5398 = vpop.f32.mrf.mxu0
  %5399 = vmatprep.mubr.bf16.mxu0 0
  %5400 = vmatmul.mubr.bf16.gmra.mxu0 %v4324
  %v5401 = vpop.f32.mrf.mxu0
  %v5402 = vadd.f32 0.0, %v5401
  %v5403 = vpop.f32.mrf.mxu0
  %v5404 = vpop.f32.mrf.mxu0
  %v5405 = vadd.f32 0.0, %v5404
  %v5406 = vpop.f32.mrf.mxu0
  %5407 = vmatprep.mubr.bf16.mxu0 0
  %5408 = vmatmul.mubr.bf16.gmra.mxu0 %v4327
  %v5409 = vpop.f32.mrf.mxu0
  %v5410 = vadd.f32 0.0, %v5409
  %v5411 = vpop.f32.mrf.mxu0
  %v5412 = vpop.f32.mrf.mxu0
  %v5413 = vadd.f32 0.0, %v5412
  %v5414 = vpop.f32.mrf.mxu0
  %5415 = vmatprep.mubr.bf16.mxu0 0
  %5416 = vmatmul.mubr.bf16.gmra.mxu0 %v4330
  %v5417 = vpop.f32.mrf.mxu0
  %v5418 = vadd.f32 0.0, %v5417
  %v5419 = vpop.f32.mrf.mxu0
  %v5420 = vpop.f32.mrf.mxu0
  %v5421 = vadd.f32 0.0, %v5420
  %v5422 = vpop.f32.mrf.mxu0
  %5423 = vmatprep.mubr.bf16.mxu0 0
  %5424 = vmatmul.mubr.bf16.gmra.mxu0 %v4957
  %v5425 = vpop.f32.mrf.mxu0
  %v5426 = vadd.f32 0.0, %v5425
  %v5427 = vpop.f32.mrf.mxu0
  %v5428 = vpop.f32.mrf.mxu0
  %v5429 = vadd.f32 0.0, %v5428
  %v5430 = vpop.f32.mrf.mxu0
  %5431 = vmatprep.mubr.bf16.mxu0 0
  %5432 = vmatmul.mubr.bf16.gmra.mxu0 %v5322
  %v5433 = vpop.f32.mrf.mxu0
  %v5434 = vadd.f32 0.0, %v5433
  %v5435 = vpop.f32.mrf.mxu0
  %v5436 = vpop.f32.mrf.mxu0
  %v5437 = vadd.f32 0.0, %v5436
  %v5438 = vpop.f32.mrf.mxu0
  %5439 = vdwg.mxu0
  %s5440 = scalar_lea.vmem %s2, 352
  %v5441 = vld [vmem:[%s5440] sm:$0xf]
  %v5442 = vld [vmem:[%s5440 + $0x4] sm:$0xf]
  %v5443 = vld [vmem:[%s5440 + $0x8] sm:$0xf]
  %v5444 = vld [vmem:[%s5440 + $0xc] sm:$0xf]
  %v5445 = vld [vmem:[%s5440 + $0x10] sm:$0xf]
  %v5446 = vld [vmem:[%s5440 + $0x14] sm:$0xf]
  %v5447 = vld [vmem:[%s5440 + $0x18] sm:$0xf]
  %v5448 = vld [vmem:[%s5440 + $0x1c] sm:$0xf]
  %v5449 = vld [vmem:[%s5440 + $0x20] sm:$0xf]
  %v5450 = vld [vmem:[%s5440 + $0x24] sm:$0xf]
  %v5451 = vld [vmem:[%s5440 + $0x28] sm:$0x3]
  %v5463 = vunpack.c.l.b16 %v5441
  %v5464 = vunpack.c.l.b16 %v5442
  %v5465 = vunpack.c.l.b16 %v5443
  %v5466 = vunpack.c.l.b16 %v5444
  %v5467 = vunpack.c.l.b16 %v5445
  %v5468 = vunpack.c.l.b16 %v5446
  %v5469 = vunpack.c.l.b16 %v5447
  %v5470 = vunpack.c.l.b16 %v5448
  %v5471 = vunpack.c.l.b16 %v5449
  %v5472 = vunpack.c.l.b16 %v5450
  %v5473 = vunpack.c.l.b16 %v5451
  %v5474 = vpack.c.b16 %v5464, %v5463
  %v5475 = vpack.c.b16 %v5466, %v5465
  %v5476 = vpack.c.b16 %v5468, %v5467
  %v5477 = vpack.c.b16 %v5470, %v5469
  %v5478 = vpack.c.b16 %v5472, %v5471
  %v5479 = vpack.c.b16 %v5473, %v5473
  %v5486 = vsel %vm4332, %v5479, 0
  %5488 = vmatprep.subr.bf16.mxu0 0
  %5489 = vmatpush1.bf16.msra.mxu0 0
  %5490 = vmatprep.subr.bf16.mxu0 0
  %5491 = vmatpush1.bf16.msra.mxu0 0
  %5492 = vmatprep.subr.bf16.mxu0 0
  %5493 = vmatpush1.bf16.msra.mxu0 %v5486
  %5494 = vmatprep.subr.bf16.mxu0 0
  %5495 = vmatpush1.bf16.msra.mxu0 %v5478
  %5496 = vmatprep.subr.bf16.mxu0 0
  %5497 = vmatpush1.bf16.msra.mxu0 %v5477
  %5498 = vmatprep.subr.bf16.mxu0 0
  %5499 = vmatpush1.bf16.msra.mxu0 %v5476
  %5500 = vmatprep.subr.bf16.mxu0 0
  %5501 = vmatpush1.bf16.msra.mxu0 %v5475
  %5502 = vmatprep.subr.bf16.mxu0 0
  %5503 = vmatpush1.bf16.msra.mxu0 %v5474
  %5504 = vmatprep.subr.bf16.mxu0 0
  %5505 = vmatpush2.bf16.msra.mxu0 0
  %5506 = vmatprep.subr.bf16.mxu0 0
  %5507 = vmatpush2.bf16.msra.mxu0 0
  %5508 = vmatprep.subr.bf16.mxu0 0
  %5509 = vmatpush2.bf16.msra.mxu0 0
  %5510 = vmatprep.subr.bf16.mxu0 0
  %5511 = vmatpush2.bf16.msra.mxu0 0
  %5512 = vmatprep.subr.bf16.mxu0 0
  %5513 = vmatpush2.bf16.msra.mxu0 0
  %5514 = vmatprep.subr.bf16.mxu0 0
  %5515 = vmatpush2.bf16.msra.mxu0 0
  %5516 = vmatprep.subr.bf16.mxu0 0
  %5517 = vmatpush2.bf16.msra.mxu0 0
  %5518 = vmatprep.subr.bf16.mxu0 0
  %5519 = vmatpush2.bf16.msra.mxu0 0
  %5520 = vmatprep.mubr.bf16.mxu0 0
  %5521 = vmatmul.mubr.bf16.gmra.mxu0 %v4309
  %v5522 = vpop.f32.mrf.mxu0
  %v5523 = vadd.f32 0.0, %v5522
  %v5524 = vpop.f32.mrf.mxu0
  %v5525 = vpop.f32.mrf.mxu0
  %v5526 = vadd.f32 0.0, %v5525
  %v5527 = vpop.f32.mrf.mxu0
  %5528 = vmatprep.mubr.bf16.mxu0 0
  %5529 = vmatmul.mubr.bf16.gmra.mxu0 %v4312
  %v5530 = vpop.f32.mrf.mxu0
  %v5531 = vadd.f32 0.0, %v5530
  %v5532 = vpop.f32.mrf.mxu0
  %v5533 = vpop.f32.mrf.mxu0
  %v5534 = vadd.f32 0.0, %v5533
  %v5535 = vpop.f32.mrf.mxu0
  %5536 = vmatprep.mubr.bf16.mxu0 0
  %5537 = vmatmul.mubr.bf16.gmra.mxu0 %v4315
  %v5538 = vpop.f32.mrf.mxu0
  %v5539 = vadd.f32 0.0, %v5538
  %v5540 = vpop.f32.mrf.mxu0
  %v5541 = vpop.f32.mrf.mxu0
  %v5542 = vadd.f32 0.0, %v5541
  %v5543 = vpop.f32.mrf.mxu0
  %5544 = vmatprep.mubr.bf16.mxu0 0
  %5545 = vmatmul.mubr.bf16.gmra.mxu0 %v4318
  %v5546 = vpop.f32.mrf.mxu0
  %v5547 = vadd.f32 0.0, %v5546
  %v5548 = vpop.f32.mrf.mxu0
  %v5549 = vpop.f32.mrf.mxu0
  %v5550 = vadd.f32 0.0, %v5549
  %v5551 = vpop.f32.mrf.mxu0
  %5552 = vmatprep.mubr.bf16.mxu0 0
  %5553 = vmatmul.mubr.bf16.gmra.mxu0 %v4321
  %v5554 = vpop.f32.mrf.mxu0
  %v5555 = vadd.f32 0.0, %v5554
  %v5556 = vpop.f32.mrf.mxu0
  %v5557 = vpop.f32.mrf.mxu0
  %v5558 = vadd.f32 0.0, %v5557
  %v5559 = vpop.f32.mrf.mxu0
  %5560 = vmatprep.mubr.bf16.mxu0 0
  %5561 = vmatmul.mubr.bf16.gmra.mxu0 %v4324
  %v5562 = vpop.f32.mrf.mxu0
  %v5563 = vadd.f32 0.0, %v5562
  %v5564 = vpop.f32.mrf.mxu0
  %v5565 = vpop.f32.mrf.mxu0
  %v5566 = vadd.f32 0.0, %v5565
  %v5567 = vpop.f32.mrf.mxu0
  %5568 = vmatprep.mubr.bf16.mxu0 0
  %5569 = vmatmul.mubr.bf16.gmra.mxu0 %v4327
  %v5570 = vpop.f32.mrf.mxu0
  %v5571 = vadd.f32 0.0, %v5570
  %v5572 = vpop.f32.mrf.mxu0
  %v5573 = vpop.f32.mrf.mxu0
  %v5574 = vadd.f32 0.0, %v5573
  %v5575 = vpop.f32.mrf.mxu0
  %5576 = vmatprep.mubr.bf16.mxu0 0
  %5577 = vmatmul.mubr.bf16.gmra.mxu0 %v4330
  %v5578 = vpop.f32.mrf.mxu0
  %v5579 = vadd.f32 0.0, %v5578
  %v5580 = vpop.f32.mrf.mxu0
  %v5581 = vpop.f32.mrf.mxu0
  %v5582 = vadd.f32 0.0, %v5581
  %v5583 = vpop.f32.mrf.mxu0
  %5584 = vmatprep.mubr.bf16.mxu0 0
  %5585 = vmatmul.mubr.bf16.gmra.mxu0 %v4957
  %v5586 = vpop.f32.mrf.mxu0
  %v5587 = vadd.f32 0.0, %v5586
  %v5588 = vpop.f32.mrf.mxu0
  %v5589 = vpop.f32.mrf.mxu0
  %v5590 = vadd.f32 0.0, %v5589
  %v5591 = vpop.f32.mrf.mxu0
  %5592 = vmatprep.mubr.bf16.mxu0 0
  %5593 = vmatmul.mubr.bf16.gmra.mxu0 %v5322
  %v5594 = vpop.f32.mrf.mxu0
  %v5595 = vadd.f32 0.0, %v5594
  %v5596 = vpop.f32.mrf.mxu0
  %v5597 = vpop.f32.mrf.mxu0
  %v5598 = vadd.f32 0.0, %v5597
  %v5599 = vpop.f32.mrf.mxu0
  %5600 = vdwg.mxu0
  %v5601 = vadd.f32 %v5236, %v5362
  %v5602 = vadd.f32 %v5237, %v5365
  %v5603 = vadd.f32 %v5238, %v5370
  %v5604 = vadd.f32 %v5239, %v5373
  %v5605 = vadd.f32 %v5240, %v5378
  %v5606 = vadd.f32 %v5241, %v5381
  %v5607 = vadd.f32 %v5242, %v5386
  %v5608 = vadd.f32 %v5243, %v5389
  %v5609 = vadd.f32 %v5244, %v5394
  %v5610 = vadd.f32 %v5245, %v5397
  %v5611 = vadd.f32 %v5246, %v5402
  %v5612 = vadd.f32 %v5247, %v5405
  %v5613 = vadd.f32 %v5248, %v5410
  %v5614 = vadd.f32 %v5249, %v5413
  %v5615 = vadd.f32 %v5250, %v5418
  %v5616 = vadd.f32 %v5251, %v5421
  %v5617 = vadd.f32 %v5252, %v5426
  %v5618 = vadd.f32 %v5253, %v5429
  %v5619 = vadd.f32 %v5254, %v5434
  %v5620 = vadd.f32 %v5255, %v5437
  %v5621 = vadd.f32 %v5256, %v5523
  %v5622 = vadd.f32 %v5257, %v5526
  %v5623 = vadd.f32 %v5258, %v5531
  %v5624 = vadd.f32 %v5259, %v5534
  %v5625 = vadd.f32 %v5260, %v5539
  %v5626 = vadd.f32 %v5261, %v5542
  %v5627 = vadd.f32 %v5262, %v5547
  %v5628 = vadd.f32 %v5263, %v5550
  %v5629 = vadd.f32 %v5264, %v5555
  %v5630 = vadd.f32 %v5265, %v5558
  %v5631 = vadd.f32 %v5266, %v5563
  %v5632 = vadd.f32 %v5267, %v5566
  %v5633 = vadd.f32 %v5268, %v5571
  %v5634 = vadd.f32 %v5269, %v5574
  %v5635 = vadd.f32 %v5270, %v5579
  %v5636 = vadd.f32 %v5271, %v5582
  %v5637 = vadd.f32 %v5272, %v5587
  %v5638 = vadd.f32 %v5273, %v5590
  %v5639 = vadd.f32 %v5274, %v5595
  %v5640 = vadd.f32 %v5275, %v5598
  %s5641 = scalar_lea.vmem %s2, 176
  %v5642 = vld [vmem:[%s5641] sm:$0xf]
  %v5643 = vld [vmem:[%s5641 + $0x4] sm:$0xf]
  %v5644 = vld [vmem:[%s5641 + $0x8] sm:$0xf]
  %v5645 = vld [vmem:[%s5641 + $0xc] sm:$0xf]
  %v5646 = vld [vmem:[%s5641 + $0x10] sm:$0xf]
  %v5647 = vld [vmem:[%s5641 + $0x14] sm:$0xf]
  %v5648 = vld [vmem:[%s5641 + $0x18] sm:$0xf]
  %v5649 = vld [vmem:[%s5641 + $0x1c] sm:$0xf]
  %v5650 = vld [vmem:[%s5641 + $0x20] sm:$0xf]
  %v5651 = vld [vmem:[%s5641 + $0x24] sm:$0xf]
  %v5652 = vld [vmem:[%s5641 + $0x28] sm:$0x3]
  %v5664 = vunpack.c.l.b16 %v5642
  %v5665 = vunpack.c.l.b16 %v5643
  %v5666 = vunpack.c.l.b16 %v5644
  %v5667 = vunpack.c.l.b16 %v5645
  %v5668 = vunpack.c.l.b16 %v5646
  %v5669 = vunpack.c.l.b16 %v5647
  %v5670 = vunpack.c.l.b16 %v5648
  %v5671 = vunpack.c.l.b16 %v5649
  %v5672 = vunpack.c.l.b16 %v5650
  %v5673 = vunpack.c.l.b16 %v5651
  %v5674 = vunpack.c.l.b16 %v5652
  %v5675 = vpack.c.b16 %v5665, %v5664
  %v5676 = vpack.c.b16 %v5667, %v5666
  %v5677 = vpack.c.b16 %v5669, %v5668
  %v5678 = vpack.c.b16 %v5671, %v5670
  %v5679 = vpack.c.b16 %v5673, %v5672
  %v5680 = vpack.c.b16 %v5674, %v5674
  %v5687 = vsel %vm4301, %v4232, 0
  %v5690 = vsel %vm4332, %v5680, 0
  %5692 = vmatprep.subr.bf16.mxu0 0
  %5693 = vmatpush1.bf16.msra.mxu0 0
  %5694 = vmatprep.subr.bf16.mxu0 0
  %5695 = vmatpush1.bf16.msra.mxu0 0
  %5696 = vmatprep.subr.bf16.mxu0 0
  %5697 = vmatpush1.bf16.msra.mxu0 %v5690
  %5698 = vmatprep.subr.bf16.mxu0 0
  %5699 = vmatpush1.bf16.msra.mxu0 %v5679
  %5700 = vmatprep.subr.bf16.mxu0 0
  %5701 = vmatpush1.bf16.msra.mxu0 %v5678
  %5702 = vmatprep.subr.bf16.mxu0 0
  %5703 = vmatpush1.bf16.msra.mxu0 %v5677
  %5704 = vmatprep.subr.bf16.mxu0 0
  %5705 = vmatpush1.bf16.msra.mxu0 %v5676
  %5706 = vmatprep.subr.bf16.mxu0 0
  %5707 = vmatpush1.bf16.msra.mxu0 %v5675
  %5708 = vmatprep.subr.bf16.mxu0 0
  %5709 = vmatpush2.bf16.msra.mxu0 0
  %5710 = vmatprep.subr.bf16.mxu0 0
  %5711 = vmatpush2.bf16.msra.mxu0 0
  %5712 = vmatprep.subr.bf16.mxu0 0
  %5713 = vmatpush2.bf16.msra.mxu0 0
  %5714 = vmatprep.subr.bf16.mxu0 0
  %5715 = vmatpush2.bf16.msra.mxu0 0
  %5716 = vmatprep.subr.bf16.mxu0 0
  %5717 = vmatpush2.bf16.msra.mxu0 0
  %5718 = vmatprep.subr.bf16.mxu0 0
  %5719 = vmatpush2.bf16.msra.mxu0 0
  %5720 = vmatprep.subr.bf16.mxu0 0
  %5721 = vmatpush2.bf16.msra.mxu0 0
  %5722 = vmatprep.subr.bf16.mxu0 0
  %5723 = vmatpush2.bf16.msra.mxu0 0
  %5724 = vmatprep.mubr.bf16.mxu0 0
  %5725 = vmatmul.mubr.bf16.gmra.mxu0 %v4312
  %v5726 = vpop.f32.mrf.mxu0
  %v5727 = vadd.f32 0.0, %v5726
  %v5728 = vpop.f32.mrf.mxu0
  %v5729 = vpop.f32.mrf.mxu0
  %v5730 = vadd.f32 0.0, %v5729
  %v5731 = vpop.f32.mrf.mxu0
  %5732 = vmatprep.mubr.bf16.mxu0 0
  %5733 = vmatmul.mubr.bf16.gmra.mxu0 %v4315
  %v5734 = vpop.f32.mrf.mxu0
  %v5735 = vadd.f32 0.0, %v5734
  %v5736 = vpop.f32.mrf.mxu0
  %v5737 = vpop.f32.mrf.mxu0
  %v5738 = vadd.f32 0.0, %v5737
  %v5739 = vpop.f32.mrf.mxu0
  %5740 = vmatprep.mubr.bf16.mxu0 0
  %5741 = vmatmul.mubr.bf16.gmra.mxu0 %v4318
  %v5742 = vpop.f32.mrf.mxu0
  %v5743 = vadd.f32 0.0, %v5742
  %v5744 = vpop.f32.mrf.mxu0
  %v5745 = vpop.f32.mrf.mxu0
  %v5746 = vadd.f32 0.0, %v5745
  %v5747 = vpop.f32.mrf.mxu0
  %5748 = vmatprep.mubr.bf16.mxu0 0
  %5749 = vmatmul.mubr.bf16.gmra.mxu0 %v4321
  %v5750 = vpop.f32.mrf.mxu0
  %v5751 = vadd.f32 0.0, %v5750
  %v5752 = vpop.f32.mrf.mxu0
  %v5753 = vpop.f32.mrf.mxu0
  %v5754 = vadd.f32 0.0, %v5753
  %v5755 = vpop.f32.mrf.mxu0
  %5756 = vmatprep.mubr.bf16.mxu0 0
  %5757 = vmatmul.mubr.bf16.gmra.mxu0 %v4324
  %v5758 = vpop.f32.mrf.mxu0
  %v5759 = vadd.f32 0.0, %v5758
  %v5760 = vpop.f32.mrf.mxu0
  %v5761 = vpop.f32.mrf.mxu0
  %v5762 = vadd.f32 0.0, %v5761
  %v5763 = vpop.f32.mrf.mxu0
  %5764 = vmatprep.mubr.bf16.mxu0 0
  %5765 = vmatmul.mubr.bf16.gmra.mxu0 %v4327
  %v5766 = vpop.f32.mrf.mxu0
  %v5767 = vadd.f32 0.0, %v5766
  %v5768 = vpop.f32.mrf.mxu0
  %v5769 = vpop.f32.mrf.mxu0
  %v5770 = vadd.f32 0.0, %v5769
  %v5771 = vpop.f32.mrf.mxu0
  %5772 = vmatprep.mubr.bf16.mxu0 0
  %5773 = vmatmul.mubr.bf16.gmra.mxu0 %v4330
  %v5774 = vpop.f32.mrf.mxu0
  %v5775 = vadd.f32 0.0, %v5774
  %v5776 = vpop.f32.mrf.mxu0
  %v5777 = vpop.f32.mrf.mxu0
  %v5778 = vadd.f32 0.0, %v5777
  %v5779 = vpop.f32.mrf.mxu0
  %5780 = vmatprep.mubr.bf16.mxu0 0
  %5781 = vmatmul.mubr.bf16.gmra.mxu0 %v4957
  %v5782 = vpop.f32.mrf.mxu0
  %v5783 = vadd.f32 0.0, %v5782
  %v5784 = vpop.f32.mrf.mxu0
  %v5785 = vpop.f32.mrf.mxu0
  %v5786 = vadd.f32 0.0, %v5785
  %v5787 = vpop.f32.mrf.mxu0
  %5788 = vmatprep.mubr.bf16.mxu0 0
  %5789 = vmatmul.mubr.bf16.gmra.mxu0 %v5322
  %v5790 = vpop.f32.mrf.mxu0
  %v5791 = vadd.f32 0.0, %v5790
  %v5792 = vpop.f32.mrf.mxu0
  %v5793 = vpop.f32.mrf.mxu0
  %v5794 = vadd.f32 0.0, %v5793
  %v5795 = vpop.f32.mrf.mxu0
  %5796 = vmatprep.mubr.bf16.mxu0 0
  %5797 = vmatmul.mubr.bf16.gmra.mxu0 %v5687
  %v5798 = vpop.f32.mrf.mxu0
  %v5799 = vadd.f32 0.0, %v5798
  %v5800 = vpop.f32.mrf.mxu0
  %v5801 = vpop.f32.mrf.mxu0
  %v5802 = vadd.f32 0.0, %v5801
  %v5803 = vpop.f32.mrf.mxu0
  %5804 = vdwg.mxu0
  %s5805 = scalar_lea.vmem %s2, 396
  %v5806 = vld [vmem:[%s5805] sm:$0xf]
  %v5807 = vld [vmem:[%s5805 + $0x4] sm:$0xf]
  %v5808 = vld [vmem:[%s5805 + $0x8] sm:$0xf]
  %v5809 = vld [vmem:[%s5805 + $0xc] sm:$0xf]
  %v5810 = vld [vmem:[%s5805 + $0x10] sm:$0xf]
  %v5811 = vld [vmem:[%s5805 + $0x14] sm:$0xf]
  %v5812 = vld [vmem:[%s5805 + $0x18] sm:$0xf]
  %v5813 = vld [vmem:[%s5805 + $0x1c] sm:$0xf]
  %v5814 = vld [vmem:[%s5805 + $0x20] sm:$0xf]
  %v5815 = vld [vmem:[%s5805 + $0x24] sm:$0xf]
  %v5816 = vld [vmem:[%s5805 + $0x28] sm:$0x3]
  %v5828 = vunpack.c.l.b16 %v5806
  %v5829 = vunpack.c.l.b16 %v5807
  %v5830 = vunpack.c.l.b16 %v5808
  %v5831 = vunpack.c.l.b16 %v5809
  %v5832 = vunpack.c.l.b16 %v5810
  %v5833 = vunpack.c.l.b16 %v5811
  %v5834 = vunpack.c.l.b16 %v5812
  %v5835 = vunpack.c.l.b16 %v5813
  %v5836 = vunpack.c.l.b16 %v5814
  %v5837 = vunpack.c.l.b16 %v5815
  %v5838 = vunpack.c.l.b16 %v5816
  %v5839 = vpack.c.b16 %v5829, %v5828
  %v5840 = vpack.c.b16 %v5831, %v5830
  %v5841 = vpack.c.b16 %v5833, %v5832
  %v5842 = vpack.c.b16 %v5835, %v5834
  %v5843 = vpack.c.b16 %v5837, %v5836
  %v5844 = vpack.c.b16 %v5838, %v5838
  %v5851 = vsel %vm4332, %v5844, 0
  %5853 = vmatprep.subr.bf16.mxu0 0
  %5854 = vmatpush1.bf16.msra.mxu0 0
  %5855 = vmatprep.subr.bf16.mxu0 0
  %5856 = vmatpush1.bf16.msra.mxu0 0
  %5857 = vmatprep.subr.bf16.mxu0 0
  %5858 = vmatpush1.bf16.msra.mxu0 %v5851
  %5859 = vmatprep.subr.bf16.mxu0 0
  %5860 = vmatpush1.bf16.msra.mxu0 %v5843
  %5861 = vmatprep.subr.bf16.mxu0 0
  %5862 = vmatpush1.bf16.msra.mxu0 %v5842
  %5863 = vmatprep.subr.bf16.mxu0 0
  %5864 = vmatpush1.bf16.msra.mxu0 %v5841
  %5865 = vmatprep.subr.bf16.mxu0 0
  %5866 = vmatpush1.bf16.msra.mxu0 %v5840
  %5867 = vmatprep.subr.bf16.mxu0 0
  %5868 = vmatpush1.bf16.msra.mxu0 %v5839
  %5869 = vmatprep.subr.bf16.mxu0 0
  %5870 = vmatpush2.bf16.msra.mxu0 0
  %5871 = vmatprep.subr.bf16.mxu0 0
  %5872 = vmatpush2.bf16.msra.mxu0 0
  %5873 = vmatprep.subr.bf16.mxu0 0
  %5874 = vmatpush2.bf16.msra.mxu0 0
  %5875 = vmatprep.subr.bf16.mxu0 0
  %5876 = vmatpush2.bf16.msra.mxu0 0
  %5877 = vmatprep.subr.bf16.mxu0 0
  %5878 = vmatpush2.bf16.msra.mxu0 0
  %5879 = vmatprep.subr.bf16.mxu0 0
  %5880 = vmatpush2.bf16.msra.mxu0 0
  %5881 = vmatprep.subr.bf16.mxu0 0
  %5882 = vmatpush2.bf16.msra.mxu0 0
  %5883 = vmatprep.subr.bf16.mxu0 0
  %5884 = vmatpush2.bf16.msra.mxu0 0
  %5885 = vmatprep.mubr.bf16.mxu0 0
  %5886 = vmatmul.mubr.bf16.gmra.mxu0 %v4312
  %v5887 = vpop.f32.mrf.mxu0
  %v5888 = vadd.f32 0.0, %v5887
  %v5889 = vpop.f32.mrf.mxu0
  %v5890 = vpop.f32.mrf.mxu0
  %v5891 = vadd.f32 0.0, %v5890
  %v5892 = vpop.f32.mrf.mxu0
  %5893 = vmatprep.mubr.bf16.mxu0 0
  %5894 = vmatmul.mubr.bf16.gmra.mxu0 %v4315
  %v5895 = vpop.f32.mrf.mxu0
  %v5896 = vadd.f32 0.0, %v5895
  %v5897 = vpop.f32.mrf.mxu0
  %v5898 = vpop.f32.mrf.mxu0
  %v5899 = vadd.f32 0.0, %v5898
  %v5900 = vpop.f32.mrf.mxu0
  %5901 = vmatprep.mubr.bf16.mxu0 0
  %5902 = vmatmul.mubr.bf16.gmra.mxu0 %v4318
  %v5903 = vpop.f32.mrf.mxu0
  %v5904 = vadd.f32 0.0, %v5903
  %v5905 = vpop.f32.mrf.mxu0
  %v5906 = vpop.f32.mrf.mxu0
  %v5907 = vadd.f32 0.0, %v5906
  %v5908 = vpop.f32.mrf.mxu0
  %5909 = vmatprep.mubr.bf16.mxu0 0
  %5910 = vmatmul.mubr.bf16.gmra.mxu0 %v4321
  %v5911 = vpop.f32.mrf.mxu0
  %v5912 = vadd.f32 0.0, %v5911
  %v5913 = vpop.f32.mrf.mxu0
  %v5914 = vpop.f32.mrf.mxu0
  %v5915 = vadd.f32 0.0, %v5914
  %v5916 = vpop.f32.mrf.mxu0
  %5917 = vmatprep.mubr.bf16.mxu0 0
  %5918 = vmatmul.mubr.bf16.gmra.mxu0 %v4324
  %v5919 = vpop.f32.mrf.mxu0
  %v5920 = vadd.f32 0.0, %v5919
  %v5921 = vpop.f32.mrf.mxu0
  %v5922 = vpop.f32.mrf.mxu0
  %v5923 = vadd.f32 0.0, %v5922
  %v5924 = vpop.f32.mrf.mxu0
  %5925 = vmatprep.mubr.bf16.mxu0 0
  %5926 = vmatmul.mubr.bf16.gmra.mxu0 %v4327
  %v5927 = vpop.f32.mrf.mxu0
  %v5928 = vadd.f32 0.0, %v5927
  %v5929 = vpop.f32.mrf.mxu0
  %v5930 = vpop.f32.mrf.mxu0
  %v5931 = vadd.f32 0.0, %v5930
  %v5932 = vpop.f32.mrf.mxu0
  %5933 = vmatprep.mubr.bf16.mxu0 0
  %5934 = vmatmul.mubr.bf16.gmra.mxu0 %v4330
  %v5935 = vpop.f32.mrf.mxu0
  %v5936 = vadd.f32 0.0, %v5935
  %v5937 = vpop.f32.mrf.mxu0
  %v5938 = vpop.f32.mrf.mxu0
  %v5939 = vadd.f32 0.0, %v5938
  %v5940 = vpop.f32.mrf.mxu0
  %5941 = vmatprep.mubr.bf16.mxu0 0
  %5942 = vmatmul.mubr.bf16.gmra.mxu0 %v4957
  %v5943 = vpop.f32.mrf.mxu0
  %v5944 = vadd.f32 0.0, %v5943
  %v5945 = vpop.f32.mrf.mxu0
  %v5946 = vpop.f32.mrf.mxu0
  %v5947 = vadd.f32 0.0, %v5946
  %v5948 = vpop.f32.mrf.mxu0
  %5949 = vmatprep.mubr.bf16.mxu0 0
  %5950 = vmatmul.mubr.bf16.gmra.mxu0 %v5322
  %v5951 = vpop.f32.mrf.mxu0
  %v5952 = vadd.f32 0.0, %v5951
  %v5953 = vpop.f32.mrf.mxu0
  %v5954 = vpop.f32.mrf.mxu0
  %v5955 = vadd.f32 0.0, %v5954
  %v5956 = vpop.f32.mrf.mxu0
  %5957 = vmatprep.mubr.bf16.mxu0 0
  %5958 = vmatmul.mubr.bf16.gmra.mxu0 %v5687
  %v5959 = vpop.f32.mrf.mxu0
  %v5960 = vadd.f32 0.0, %v5959
  %v5961 = vpop.f32.mrf.mxu0
  %v5962 = vpop.f32.mrf.mxu0
  %v5963 = vadd.f32 0.0, %v5962
  %v5964 = vpop.f32.mrf.mxu0
  %5965 = vdwg.mxu0
  %v5966 = vadd.f32 %v5601, %v5727
  %v5967 = vadd.f32 %v5602, %v5730
  %v5968 = vadd.f32 %v5603, %v5735
  %v5969 = vadd.f32 %v5604, %v5738
  %v5970 = vadd.f32 %v5605, %v5743
  %v5971 = vadd.f32 %v5606, %v5746
  %v5972 = vadd.f32 %v5607, %v5751
  %v5973 = vadd.f32 %v5608, %v5754
  %v5974 = vadd.f32 %v5609, %v5759
  %v5975 = vadd.f32 %v5610, %v5762
  %v5976 = vadd.f32 %v5611, %v5767
  %v5977 = vadd.f32 %v5612, %v5770
  %v5978 = vadd.f32 %v5613, %v5775
  %v5979 = vadd.f32 %v5614, %v5778
  %v5980 = vadd.f32 %v5615, %v5783
  %v5981 = vadd.f32 %v5616, %v5786
  %v5982 = vadd.f32 %v5617, %v5791
  %v5983 = vadd.f32 %v5618, %v5794
  %v5984 = vadd.f32 %v5619, %v5799
  %v5985 = vadd.f32 %v5620, %v5802
  %v5986 = vadd.f32 %v5621, %v5888
  %v5987 = vadd.f32 %v5622, %v5891
  %v5988 = vadd.f32 %v5623, %v5896
  %v5989 = vadd.f32 %v5624, %v5899
  %v5990 = vadd.f32 %v5625, %v5904
  %v5991 = vadd.f32 %v5626, %v5907
  %v5992 = vadd.f32 %v5627, %v5912
  %v5993 = vadd.f32 %v5628, %v5915
  %v5994 = vadd.f32 %v5629, %v5920
  %v5995 = vadd.f32 %v5630, %v5923
  %v5996 = vadd.f32 %v5631, %v5928
  %v5997 = vadd.f32 %v5632, %v5931
  %v5998 = vadd.f32 %v5633, %v5936
  %v5999 = vadd.f32 %v5634, %v5939
  %v6000 = vadd.f32 %v5635, %v5944
  %v6001 = vadd.f32 %v5636, %v5947
  %v6002 = vadd.f32 %v5637, %v5952
  %v6003 = vadd.f32 %v5638, %v5955
  %v6004 = vadd.f32 %v5639, %v5960
  %v6005 = vadd.f32 %v5640, %v5963
  %v6006 = vmax.f32 %v5966, %v5986
  %v6007 = vmax.f32 %v5967, %v5987
  %v6008 = vmax.f32 %v5968, %v5988
  %v6009 = vmax.f32 %v5969, %v5989
  %v6010 = vmax.f32 %v5970, %v5990
  %v6011 = vmax.f32 %v5971, %v5991
  %v6012 = vmax.f32 %v5972, %v5992
  %v6013 = vmax.f32 %v5973, %v5993
  %v6014 = vmax.f32 %v5974, %v5994
  %v6015 = vmax.f32 %v5975, %v5995
  %v6016 = vmax.f32 %v5976, %v5996
  %v6017 = vmax.f32 %v5977, %v5997
  %v6018 = vmax.f32 %v5978, %v5998
  %v6019 = vmax.f32 %v5979, %v5999
  %v6020 = vmax.f32 %v5980, %v6000
  %v6021 = vmax.f32 %v5981, %v6001
  %v6022 = vmax.f32 %v5982, %v6002
  %v6023 = vmax.f32 %v5983, %v6003
  %v6024 = vmax.f32 %v5984, %v6004
  %v6025 = vmax.f32 %v5985, %v6005
  %v6026 = vld [vmem:[%s6 + $0x1] sm:$0x1]
  %v6027 = vlaneseq
  %v6028 = vshrl.u32 %v6027, 7
  %v6029 = vsub.s32 0, %v6028
  %v6030 = vrot.slane %v6026, %v6029
  %v6031 = vadd.f32 %v6006, %v6030
  %v6032 = vadd.f32 %v6007, %v6030
  %v6033 = vadd.f32 %v6008, %v6030
  %v6034 = vadd.f32 %v6009, %v6030
  %v6035 = vadd.f32 %v6010, %v6030
  %v6036 = vadd.f32 %v6011, %v6030
  %v6037 = vadd.f32 %v6012, %v6030
  %v6038 = vadd.f32 %v6013, %v6030
  %v6039 = vadd.f32 %v6014, %v6030
  %v6040 = vadd.f32 %v6015, %v6030
  %v6041 = vadd.f32 %v6016, %v6030
  %v6042 = vadd.f32 %v6017, %v6030
  %v6043 = vadd.f32 %v6018, %v6030
  %v6044 = vadd.f32 %v6019, %v6030
  %v6045 = vadd.f32 %v6020, %v6030
  %v6046 = vadd.f32 %v6021, %v6030
  %v6047 = vadd.f32 %v6022, %v6030
  %v6048 = vadd.f32 %v6023, %v6030
  %v6049 = vadd.f32 %v6024, %v6030
  %v6050 = vadd.f32 %v6025, %v6030
  %v6051 = vmax.f32 %v6031, 0.0
  %v6052 = vmax.f32 %v6032, 0.0
  %v6053 = vmax.f32 %v6033, 0.0
  %v6054 = vmax.f32 %v6034, 0.0
  %v6055 = vmax.f32 %v6035, 0.0
  %v6056 = vmax.f32 %v6036, 0.0
  %v6057 = vmax.f32 %v6037, 0.0
  %v6058 = vmax.f32 %v6038, 0.0
  %v6059 = vmax.f32 %v6039, 0.0
  %v6060 = vmax.f32 %v6040, 0.0
  %v6061 = vmax.f32 %v6041, 0.0
  %v6062 = vmax.f32 %v6042, 0.0
  %v6063 = vmax.f32 %v6043, 0.0
  %v6064 = vmax.f32 %v6044, 0.0
  %v6065 = vmax.f32 %v6045, 0.0
  %v6066 = vmax.f32 %v6046, 0.0
  %v6067 = vmax.f32 %v6047, 0.0
  %v6068 = vmax.f32 %v6048, 0.0
  %v6069 = vmax.f32 %v6049, 0.0
  %v6070 = vmax.f32 %v6050, 0.0
  %v6071 = vpack.c.bf16 %v6052, %v6051
  %v6072 = vpack.c.bf16 %v6054, %v6053
  %v6073 = vpack.c.bf16 %v6056, %v6055
  %v6074 = vpack.c.bf16 %v6058, %v6057
  %v6075 = vpack.c.bf16 %v6060, %v6059
  %v6076 = vpack.c.bf16 %v6062, %v6061
  %v6077 = vpack.c.bf16 %v6064, %v6063
  %v6078 = vpack.c.bf16 %v6066, %v6065
  %v6079 = vpack.c.bf16 %v6068, %v6067
  %v6080 = vpack.c.bf16 %v6070, %v6069
  %v6081 = vmax.bf16 %v6071, %v6072
  %v6082 = vld [vmem:[%s3] sm:$0xf]
  %v6083 = vld [vmem:[%s3 + $0x4] sm:$0xf]
  %v6084 = vld [vmem:[%s3 + $0x8] sm:$0xf]
  %v6085 = vld [vmem:[%s3 + $0xc] sm:$0xf]
  %v6086 = vld [vmem:[%s3 + $0x10] sm:$0xf]
  %v6087 = vld [vmem:[%s3 + $0x14] sm:$0xf]
  %v6088 = vld [vmem:[%s3 + $0x18] sm:$0xf]
  %v6089 = vld [vmem:[%s3 + $0x1c] sm:$0xf]
  %v6090 = vld [vmem:[%s3 + $0x20] sm:$0xf]
  %v6091 = vld [vmem:[%s3 + $0x24] sm:$0xf]
  %v6092 = vmax.bf16 %v6073, %v6074
  %s6093 = scalar_lea.vmem %s3, 40
  %v6094 = vld [vmem:[%s6093] sm:$0xf]
  %v6095 = vld [vmem:[%s6093 + $0x4] sm:$0xf]
  %v6096 = vld [vmem:[%s6093 + $0x8] sm:$0xf]
  %v6097 = vld [vmem:[%s6093 + $0xc] sm:$0xf]
  %v6098 = vld [vmem:[%s6093 + $0x10] sm:$0xf]
  %v6099 = vld [vmem:[%s6093 + $0x14] sm:$0xf]
  %v6100 = vld [vmem:[%s6093 + $0x18] sm:$0xf]
  %v6101 = vld [vmem:[%s6093 + $0x1c] sm:$0xf]
  %v6102 = vld [vmem:[%s6093 + $0x20] sm:$0xf]
  %v6103 = vld [vmem:[%s6093 + $0x24] sm:$0xf]
  %v6114 = vunpack.c.l.b16 %v6094
  %v6115 = vunpack.c.l.b16 %v6095
  %v6116 = vunpack.c.l.b16 %v6096
  %v6117 = vunpack.c.l.b16 %v6097
  %v6118 = vunpack.c.l.b16 %v6098
  %v6119 = vunpack.c.l.b16 %v6099
  %v6120 = vunpack.c.l.b16 %v6100
  %v6121 = vunpack.c.l.b16 %v6101
  %v6122 = vunpack.c.l.b16 %v6102
  %v6123 = vunpack.c.l.b16 %v6103
  %v6124 = vpack.c.b16 %v6115, %v6114
  %v6125 = vpack.c.b16 %v6117, %v6116
  %v6126 = vpack.c.b16 %v6119, %v6118
  %v6127 = vpack.c.b16 %v6121, %v6120
  %v6128 = vpack.c.b16 %v6123, %v6122
  %vm6134 = vcmask 654336
  %v6136 = vsel %vm6134, %v6092, 0
  %6138 = vmatprep.subr.bf16.mxu0 0
  %6139 = vmatpush1.bf16.msra.mxu0 0
  %6140 = vmatprep.subr.bf16.mxu0 0
  %6141 = vmatpush1.bf16.msra.mxu0 0
  %6142 = vmatprep.subr.bf16.mxu0 0
  %6143 = vmatpush1.bf16.msra.mxu0 0
  %6144 = vmatprep.subr.bf16.mxu0 0
  %6145 = vmatpush1.bf16.msra.mxu0 %v6128
  %6146 = vmatprep.subr.bf16.mxu0 0
  %6147 = vmatpush1.bf16.msra.mxu0 %v6127
  %6148 = vmatprep.subr.bf16.mxu0 0
  %6149 = vmatpush1.bf16.msra.mxu0 %v6126
  %6150 = vmatprep.subr.bf16.mxu0 0
  %6151 = vmatpush1.bf16.msra.mxu0 %v6125
  %6152 = vmatprep.subr.bf16.mxu0 0
  %6153 = vmatpush1.bf16.msra.mxu0 %v6124
  %6154 = vmatprep.subr.bf16.mxu0 0
  %6155 = vmatpush2.bf16.msra.mxu0 0
  %6156 = vmatprep.subr.bf16.mxu0 0
  %6157 = vmatpush2.bf16.msra.mxu0 0
  %6158 = vmatprep.subr.bf16.mxu0 0
  %6159 = vmatpush2.bf16.msra.mxu0 0
  %6160 = vmatprep.subr.bf16.mxu0 0
  %6161 = vmatpush2.bf16.msra.mxu0 0
  %6162 = vmatprep.subr.bf16.mxu0 0
  %6163 = vmatpush2.bf16.msra.mxu0 0
  %6164 = vmatprep.subr.bf16.mxu0 0
  %6165 = vmatpush2.bf16.msra.mxu0 0
  %6166 = vmatprep.subr.bf16.mxu0 0
  %6167 = vmatpush2.bf16.msra.mxu0 0
  %6168 = vmatprep.subr.bf16.mxu0 0
  %6169 = vmatpush2.bf16.msra.mxu0 0
  %6170 = vmatprep.mubr.bf16.mxu0 0
  %6171 = vmatmul.mubr.bf16.gmra.mxu0 %v6136
  %v6172 = vpop.f32.mrf.mxu0
  %v6173 = vadd.f32 0.0, %v6172
  %v6174 = vpop.f32.mrf.mxu0
  %v6175 = vpop.f32.mrf.mxu0
  %v6176 = vadd.f32 0.0, %v6175
  %v6177 = vpop.f32.mrf.mxu0
  %6178 = vdwg.mxu0
  %v6189 = vunpack.c.l.b16 %v6082
  %v6190 = vunpack.c.l.b16 %v6083
  %v6191 = vunpack.c.l.b16 %v6084
  %v6192 = vunpack.c.l.b16 %v6085
  %v6193 = vunpack.c.l.b16 %v6086
  %v6194 = vunpack.c.l.b16 %v6087
  %v6195 = vunpack.c.l.b16 %v6088
  %v6196 = vunpack.c.l.b16 %v6089
  %v6197 = vunpack.c.l.b16 %v6090
  %v6198 = vunpack.c.l.b16 %v6091
  %v6199 = vpack.c.b16 %v6190, %v6189
  %v6200 = vpack.c.b16 %v6192, %v6191
  %v6201 = vpack.c.b16 %v6194, %v6193
  %v6202 = vpack.c.b16 %v6196, %v6195
  %v6203 = vpack.c.b16 %v6198, %v6197
  %v6210 = vsel %vm6134, %v6081, 0
  %6212 = vmatprep.subr.bf16.mxu0 0
  %6213 = vmatpush1.bf16.msra.mxu0 0
  %6214 = vmatprep.subr.bf16.mxu0 0
  %6215 = vmatpush1.bf16.msra.mxu0 0
  %6216 = vmatprep.subr.bf16.mxu0 0
  %6217 = vmatpush1.bf16.msra.mxu0 0
  %6218 = vmatprep.subr.bf16.mxu0 0
  %6219 = vmatpush1.bf16.msra.mxu0 %v6203
  %6220 = vmatprep.subr.bf16.mxu0 0
  %6221 = vmatpush1.bf16.msra.mxu0 %v6202
  %6222 = vmatprep.subr.bf16.mxu0 0
  %6223 = vmatpush1.bf16.msra.mxu0 %v6201
  %6224 = vmatprep.subr.bf16.mxu0 0
  %6225 = vmatpush1.bf16.msra.mxu0 %v6200
  %6226 = vmatprep.subr.bf16.mxu0 0
  %6227 = vmatpush1.bf16.msra.mxu0 %v6199
  %6228 = vmatprep.subr.bf16.mxu0 0
  %6229 = vmatpush2.bf16.msra.mxu0 0
  %6230 = vmatprep.subr.bf16.mxu0 0
  %6231 = vmatpush2.bf16.msra.mxu0 0
  %6232 = vmatprep.subr.bf16.mxu0 0
  %6233 = vmatpush2.bf16.msra.mxu0 0
  %6234 = vmatprep.subr.bf16.mxu0 0
  %6235 = vmatpush2.bf16.msra.mxu0 0
  %6236 = vmatprep.subr.bf16.mxu0 0
  %6237 = vmatpush2.bf16.msra.mxu0 0
  %6238 = vmatprep.subr.bf16.mxu0 0
  %6239 = vmatpush2.bf16.msra.mxu0 0
  %6240 = vmatprep.subr.bf16.mxu0 0
  %6241 = vmatpush2.bf16.msra.mxu0 0
  %6242 = vmatprep.subr.bf16.mxu0 0
  %6243 = vmatpush2.bf16.msra.mxu0 0
  %6244 = vmatprep.mubr.bf16.mxu0 0
  %6245 = vmatmul.mubr.bf16.gmra.mxu0 %v6210
  %v6246 = vpop.f32.mrf.mxu0
  %v6247 = vadd.f32 %v6173, %v6246
  %v6248 = vpop.f32.mrf.mxu0
  %v6249 = vpop.f32.mrf.mxu0
  %v6250 = vadd.f32 %v6176, %v6249
  %v6251 = vpop.f32.mrf.mxu0
  %6252 = vdwg.mxu0
  %v6253 = vmax.bf16 %v6075, %v6076
  %s6254 = scalar_lea.vmem %s3, 80
  %v6255 = vld [vmem:[%s6254] sm:$0xf]
  %v6256 = vld [vmem:[%s6254 + $0x4] sm:$0xf]
  %v6257 = vld [vmem:[%s6254 + $0x8] sm:$0xf]
  %v6258 = vld [vmem:[%s6254 + $0xc] sm:$0xf]
  %v6259 = vld [vmem:[%s6254 + $0x10] sm:$0xf]
  %v6260 = vld [vmem:[%s6254 + $0x14] sm:$0xf]
  %v6261 = vld [vmem:[%s6254 + $0x18] sm:$0xf]
  %v6262 = vld [vmem:[%s6254 + $0x1c] sm:$0xf]
  %v6263 = vld [vmem:[%s6254 + $0x20] sm:$0xf]
  %v6264 = vld [vmem:[%s6254 + $0x24] sm:$0xf]
  %v6275 = vunpack.c.l.b16 %v6255
  %v6276 = vunpack.c.l.b16 %v6256
  %v6277 = vunpack.c.l.b16 %v6257
  %v6278 = vunpack.c.l.b16 %v6258
  %v6279 = vunpack.c.l.b16 %v6259
  %v6280 = vunpack.c.l.b16 %v6260
  %v6281 = vunpack.c.l.b16 %v6261
  %v6282 = vunpack.c.l.b16 %v6262
  %v6283 = vunpack.c.l.b16 %v6263
  %v6284 = vunpack.c.l.b16 %v6264
  %v6285 = vpack.c.b16 %v6276, %v6275
  %v6286 = vpack.c.b16 %v6278, %v6277
  %v6287 = vpack.c.b16 %v6280, %v6279
  %v6288 = vpack.c.b16 %v6282, %v6281
  %v6289 = vpack.c.b16 %v6284, %v6283
  %v6296 = vsel %vm6134, %v6253, 0
  %6298 = vmatprep.subr.bf16.mxu0 0
  %6299 = vmatpush1.bf16.msra.mxu0 0
  %6300 = vmatprep.subr.bf16.mxu0 0
  %6301 = vmatpush1.bf16.msra.mxu0 0
  %6302 = vmatprep.subr.bf16.mxu0 0
  %6303 = vmatpush1.bf16.msra.mxu0 0
  %6304 = vmatprep.subr.bf16.mxu0 0
  %6305 = vmatpush1.bf16.msra.mxu0 %v6289
  %6306 = vmatprep.subr.bf16.mxu0 0
  %6307 = vmatpush1.bf16.msra.mxu0 %v6288
  %6308 = vmatprep.subr.bf16.mxu0 0
  %6309 = vmatpush1.bf16.msra.mxu0 %v6287
  %6310 = vmatprep.subr.bf16.mxu0 0
  %6311 = vmatpush1.bf16.msra.mxu0 %v6286
  %6312 = vmatprep.subr.bf16.mxu0 0
  %6313 = vmatpush1.bf16.msra.mxu0 %v6285
  %6314 = vmatprep.subr.bf16.mxu0 0
  %6315 = vmatpush2.bf16.msra.mxu0 0
  %6316 = vmatprep.subr.bf16.mxu0 0
  %6317 = vmatpush2.bf16.msra.mxu0 0
  %6318 = vmatprep.subr.bf16.mxu0 0
  %6319 = vmatpush2.bf16.msra.mxu0 0
  %6320 = vmatprep.subr.bf16.mxu0 0
  %6321 = vmatpush2.bf16.msra.mxu0 0
  %6322 = vmatprep.subr.bf16.mxu0 0
  %6323 = vmatpush2.bf16.msra.mxu0 0
  %6324 = vmatprep.subr.bf16.mxu0 0
  %6325 = vmatpush2.bf16.msra.mxu0 0
  %6326 = vmatprep.subr.bf16.mxu0 0
  %6327 = vmatpush2.bf16.msra.mxu0 0
  %6328 = vmatprep.subr.bf16.mxu0 0
  %6329 = vmatpush2.bf16.msra.mxu0 0
  %6330 = vmatprep.mubr.bf16.mxu0 0
  %6331 = vmatmul.mubr.bf16.gmra.mxu0 %v6296
  %v6332 = vpop.f32.mrf.mxu0
  %v6333 = vadd.f32 0.0, %v6332
  %v6334 = vpop.f32.mrf.mxu0
  %v6335 = vpop.f32.mrf.mxu0
  %v6336 = vadd.f32 0.0, %v6335
  %v6337 = vpop.f32.mrf.mxu0
  %6338 = vdwg.mxu0
  %v6339 = vadd.f32 %v6247, %v6333
  %v6340 = vadd.f32 %v6250, %v6336
  %v6341 = vmax.bf16 %v6077, %v6078
  %s6342 = scalar_lea.vmem %s3, 120
  %v6343 = vld [vmem:[%s6342] sm:$0xf]
  %v6344 = vld [vmem:[%s6342 + $0x4] sm:$0xf]
  %v6345 = vld [vmem:[%s6342 + $0x8] sm:$0xf]
  %v6346 = vld [vmem:[%s6342 + $0xc] sm:$0xf]
  %v6347 = vld [vmem:[%s6342 + $0x10] sm:$0xf]
  %v6348 = vld [vmem:[%s6342 + $0x14] sm:$0xf]
  %v6349 = vld [vmem:[%s6342 + $0x18] sm:$0xf]
  %v6350 = vld [vmem:[%s6342 + $0x1c] sm:$0xf]
  %v6351 = vld [vmem:[%s6342 + $0x20] sm:$0xf]
  %v6352 = vld [vmem:[%s6342 + $0x24] sm:$0xf]
  %v6363 = vunpack.c.l.b16 %v6343
  %v6364 = vunpack.c.l.b16 %v6344
  %v6365 = vunpack.c.l.b16 %v6345
  %v6366 = vunpack.c.l.b16 %v6346
  %v6367 = vunpack.c.l.b16 %v6347
  %v6368 = vunpack.c.l.b16 %v6348
  %v6369 = vunpack.c.l.b16 %v6349
  %v6370 = vunpack.c.l.b16 %v6350
  %v6371 = vunpack.c.l.b16 %v6351
  %v6372 = vunpack.c.l.b16 %v6352
  %v6373 = vpack.c.b16 %v6364, %v6363
  %v6374 = vpack.c.b16 %v6366, %v6365
  %v6375 = vpack.c.b16 %v6368, %v6367
  %v6376 = vpack.c.b16 %v6370, %v6369
  %v6377 = vpack.c.b16 %v6372, %v6371
  %v6384 = vsel %vm6134, %v6341, 0
  %6386 = vmatprep.subr.bf16.mxu0 0
  %6387 = vmatpush1.bf16.msra.mxu0 0
  %6388 = vmatprep.subr.bf16.mxu0 0
  %6389 = vmatpush1.bf16.msra.mxu0 0
  %6390 = vmatprep.subr.bf16.mxu0 0
  %6391 = vmatpush1.bf16.msra.mxu0 0
  %6392 = vmatprep.subr.bf16.mxu0 0
  %6393 = vmatpush1.bf16.msra.mxu0 %v6377
  %6394 = vmatprep.subr.bf16.mxu0 0
  %6395 = vmatpush1.bf16.msra.mxu0 %v6376
  %6396 = vmatprep.subr.bf16.mxu0 0
  %6397 = vmatpush1.bf16.msra.mxu0 %v6375
  %6398 = vmatprep.subr.bf16.mxu0 0
  %6399 = vmatpush1.bf16.msra.mxu0 %v6374
  %6400 = vmatprep.subr.bf16.mxu0 0
  %6401 = vmatpush1.bf16.msra.mxu0 %v6373
  %6402 = vmatprep.subr.bf16.mxu0 0
  %6403 = vmatpush2.bf16.msra.mxu0 0
  %6404 = vmatprep.subr.bf16.mxu0 0
  %6405 = vmatpush2.bf16.msra.mxu0 0
  %6406 = vmatprep.subr.bf16.mxu0 0
  %6407 = vmatpush2.bf16.msra.mxu0 0
  %6408 = vmatprep.subr.bf16.mxu0 0
  %6409 = vmatpush2.bf16.msra.mxu0 0
  %6410 = vmatprep.subr.bf16.mxu0 0
  %6411 = vmatpush2.bf16.msra.mxu0 0
  %6412 = vmatprep.subr.bf16.mxu0 0
  %6413 = vmatpush2.bf16.msra.mxu0 0
  %6414 = vmatprep.subr.bf16.mxu0 0
  %6415 = vmatpush2.bf16.msra.mxu0 0
  %6416 = vmatprep.subr.bf16.mxu0 0
  %6417 = vmatpush2.bf16.msra.mxu0 0
  %6418 = vmatprep.mubr.bf16.mxu0 0
  %6419 = vmatmul.mubr.bf16.gmra.mxu0 %v6384
  %v6420 = vpop.f32.mrf.mxu0
  %v6421 = vadd.f32 0.0, %v6420
  %v6422 = vpop.f32.mrf.mxu0
  %v6423 = vpop.f32.mrf.mxu0
  %v6424 = vadd.f32 0.0, %v6423
  %v6425 = vpop.f32.mrf.mxu0
  %6426 = vdwg.mxu0
  %v6427 = vadd.f32 %v6339, %v6421
  %v6428 = vadd.f32 %v6340, %v6424
  %v6429 = vmax.bf16 %v6079, %v6080
  %s6430 = scalar_lea.vmem %s3, 160
  %v6431 = vld [vmem:[%s6430] sm:$0xf]
  %v6432 = vld [vmem:[%s6430 + $0x4] sm:$0xf]
  %v6433 = vld [vmem:[%s6430 + $0x8] sm:$0xf]
  %v6434 = vld [vmem:[%s6430 + $0xc] sm:$0xf]
  %v6435 = vld [vmem:[%s6430 + $0x10] sm:$0xf]
  %v6436 = vld [vmem:[%s6430 + $0x14] sm:$0xf]
  %v6437 = vld [vmem:[%s6430 + $0x18] sm:$0xf]
  %v6438 = vld [vmem:[%s6430 + $0x1c] sm:$0xf]
  %v6439 = vld [vmem:[%s6430 + $0x20] sm:$0xf]
  %v6440 = vld [vmem:[%s6430 + $0x24] sm:$0xf]
  %v6451 = vunpack.c.l.b16 %v6431
  %v6452 = vunpack.c.l.b16 %v6432
  %v6453 = vunpack.c.l.b16 %v6433
  %v6454 = vunpack.c.l.b16 %v6434
  %v6455 = vunpack.c.l.b16 %v6435
  %v6456 = vunpack.c.l.b16 %v6436
  %v6457 = vunpack.c.l.b16 %v6437
  %v6458 = vunpack.c.l.b16 %v6438
  %v6459 = vunpack.c.l.b16 %v6439
  %v6460 = vunpack.c.l.b16 %v6440
  %v6461 = vpack.c.b16 %v6452, %v6451
  %v6462 = vpack.c.b16 %v6454, %v6453
  %v6463 = vpack.c.b16 %v6456, %v6455
  %v6464 = vpack.c.b16 %v6458, %v6457
  %v6465 = vpack.c.b16 %v6460, %v6459
  %v6472 = vsel %vm6134, %v6429, 0
  %6474 = vmatprep.subr.bf16.mxu0 0
  %6475 = vmatpush1.bf16.msra.mxu0 0
  %6476 = vmatprep.subr.bf16.mxu0 0
  %6477 = vmatpush1.bf16.msra.mxu0 0
  %6478 = vmatprep.subr.bf16.mxu0 0
  %6479 = vmatpush1.bf16.msra.mxu0 0
  %6480 = vmatprep.subr.bf16.mxu0 0
  %6481 = vmatpush1.bf16.msra.mxu0 %v6465
  %6482 = vmatprep.subr.bf16.mxu0 0
  %6483 = vmatpush1.bf16.msra.mxu0 %v6464
  %6484 = vmatprep.subr.bf16.mxu0 0
  %6485 = vmatpush1.bf16.msra.mxu0 %v6463
  %6486 = vmatprep.subr.bf16.mxu0 0
  %6487 = vmatpush1.bf16.msra.mxu0 %v6462
  %6488 = vmatprep.subr.bf16.mxu0 0
  %6489 = vmatpush1.bf16.msra.mxu0 %v6461
  %6490 = vmatprep.subr.bf16.mxu0 0
  %6491 = vmatpush2.bf16.msra.mxu0 0
  %6492 = vmatprep.subr.bf16.mxu0 0
  %6493 = vmatpush2.bf16.msra.mxu0 0
  %6494 = vmatprep.subr.bf16.mxu0 0
  %6495 = vmatpush2.bf16.msra.mxu0 0
  %6496 = vmatprep.subr.bf16.mxu0 0
  %6497 = vmatpush2.bf16.msra.mxu0 0
  %6498 = vmatprep.subr.bf16.mxu0 0
  %6499 = vmatpush2.bf16.msra.mxu0 0
  %6500 = vmatprep.subr.bf16.mxu0 0
  %6501 = vmatpush2.bf16.msra.mxu0 0
  %6502 = vmatprep.subr.bf16.mxu0 0
  %6503 = vmatpush2.bf16.msra.mxu0 0
  %6504 = vmatprep.subr.bf16.mxu0 0
  %6505 = vmatpush2.bf16.msra.mxu0 0
  %6506 = vmatprep.mubr.bf16.mxu0 0
  %6507 = vmatmul.mubr.bf16.gmra.mxu0 %v6472
  %v6508 = vpop.f32.mrf.mxu0
  %v6509 = vadd.f32 0.0, %v6508
  %v6510 = vpop.f32.mrf.mxu0
  %v6511 = vpop.f32.mrf.mxu0
  %v6512 = vadd.f32 0.0, %v6511
  %v6513 = vpop.f32.mrf.mxu0
  %6514 = vdwg.mxu0
  %v6515 = vadd.f32 %v6427, %v6509
  %v6516 = vadd.f32 %v6428, %v6512
  %v6517 = vld [vmem:[%s6 + $0x2] sm:$0x1]
  %v6518 = vlaneseq
  %v6519 = vshrl.u32 %v6518, 7
  %v6520 = vsub.s32 0, %v6519
  %v6521 = vrot.slane %v6517, %v6520
  %v6522 = vadd.f32 %v6515, %v6521
  %v6523 = vadd.f32 %v6516, %v6521
  %v6524 = vmax.f32 %v6522, 0.0
  %v6525 = vmax.f32 %v6523, 0.0
  %v6526 = vpack.c.bf16 %v6525, %v6524
  %v6527 = vld [vmem:[%s4] sm:$0xf]
  %v6528 = vld [vmem:[%s4 + $0x4] sm:$0xf]
  %v6529 = vld [vmem:[%s4 + $0x8] sm:$0xf]
  %v6530 = vld [vmem:[%s4 + $0xc] sm:$0xf]
  %v6531 = vld [vmem:[%s4 + $0x10] sm:$0xf]
  %v6532 = vld [vmem:[%s4 + $0x14] sm:$0xf]
  %v6533 = vld [vmem:[%s4 + $0x18] sm:$0xf]
  %v6534 = vld [vmem:[%s4 + $0x1c] sm:$0xf]
  %v6535 = vld [vmem:[%s4 + $0x20] sm:$0xf]
  %v6536 = vld [vmem:[%s4 + $0x24] sm:$0xf]
  %v6537 = vld [vmem:[%s4 + $0x28] sm:$0xf]
  %v6538 = vld [vmem:[%s4 + $0x2c] sm:$0xf]
  %v6539 = vld [vmem:[%s4 + $0x30] sm:$0xf]
  %v6540 = vld [vmem:[%s4 + $0x34] sm:$0xf]
  %v6541 = vld [vmem:[%s4 + $0x38] sm:$0xf]
  %v6542 = vld [vmem:[%s6 + $0x3] sm:$0x1]
  %v6543 = vlaneseq
  %v6544 = vshrl.u32 %v6543, 7
  %v6545 = vsub.s32 0, %v6544
  %v6546 = vrot.slane %v6542, %v6545
  %v6562 = vunpack.c.l.b16 %v6527
  %v6563 = vunpack.c.l.b16 %v6528
  %v6564 = vunpack.c.l.b16 %v6529
  %v6565 = vunpack.c.l.b16 %v6530
  %v6566 = vunpack.c.l.b16 %v6531
  %v6567 = vunpack.c.l.b16 %v6532
  %v6568 = vunpack.c.l.b16 %v6533
  %v6569 = vunpack.c.l.b16 %v6534
  %v6570 = vunpack.c.l.b16 %v6535
  %v6571 = vunpack.c.l.b16 %v6536
  %v6572 = vunpack.c.l.b16 %v6537
  %v6573 = vunpack.c.l.b16 %v6538
  %v6574 = vunpack.c.l.b16 %v6539
  %v6575 = vunpack.c.l.b16 %v6540
  %v6576 = vunpack.c.l.b16 %v6541
  %v6577 = vpack.c.b16 %v6563, %v6562
  %v6578 = vpack.c.b16 %v6565, %v6564
  %v6579 = vpack.c.b16 %v6567, %v6566
  %v6580 = vpack.c.b16 %v6569, %v6568
  %v6581 = vpack.c.b16 %v6571, %v6570
  %v6582 = vpack.c.b16 %v6573, %v6572
  %v6583 = vpack.c.b16 %v6575, %v6574
  %v6584 = vpack.c.b16 %v6576, %v6576
  %vm6592 = vcmask 982016
  %v6594 = vsel %vm6592, %v6526, 0
  %vm6596 = vcmask 1043456
  %v6598 = vsel %vm6596, %v6584, 0
  %6600 = vmatprep.subr.bf16.mxu0 0
  %6601 = vmatpush1.bf16.msra.mxu0 %v6598
  %6602 = vmatprep.subr.bf16.mxu0 0
  %6603 = vmatpush1.bf16.msra.mxu0 %v6583
  %6604 = vmatprep.subr.bf16.mxu0 0
  %6605 = vmatpush1.bf16.msra.mxu0 %v6582
  %6606 = vmatprep.subr.bf16.mxu0 0
  %6607 = vmatpush1.bf16.msra.mxu0 %v6581
  %6608 = vmatprep.subr.bf16.mxu0 0
  %6609 = vmatpush1.bf16.msra.mxu0 %v6580
  %6610 = vmatprep.subr.bf16.mxu0 0
  %6611 = vmatpush1.bf16.msra.mxu0 %v6579
  %6612 = vmatprep.subr.bf16.mxu0 0
  %6613 = vmatpush1.bf16.msra.mxu0 %v6578
  %6614 = vmatprep.subr.bf16.mxu0 0
  %6615 = vmatpush1.bf16.msra.mxu0 %v6577
  %6616 = vmatprep.subr.bf16.mxu0 0
  %6617 = vmatpush2.bf16.msra.mxu0 0
  %6618 = vmatprep.subr.bf16.mxu0 0
  %6619 = vmatpush2.bf16.msra.mxu0 0
  %6620 = vmatprep.subr.bf16.mxu0 0
  %6621 = vmatpush2.bf16.msra.mxu0 0
  %6622 = vmatprep.subr.bf16.mxu0 0
  %6623 = vmatpush2.bf16.msra.mxu0 0
  %6624 = vmatprep.subr.bf16.mxu0 0
  %6625 = vmatpush2.bf16.msra.mxu0 0
  %6626 = vmatprep.subr.bf16.mxu0 0
  %6627 = vmatpush2.bf16.msra.mxu0 0
  %6628 = vmatprep.subr.bf16.mxu0 0
  %6629 = vmatpush2.bf16.msra.mxu0 0
  %6630 = vmatprep.subr.bf16.mxu0 0
  %6631 = vmatpush2.bf16.msra.mxu0 0
  %6632 = vmatprep.mubr.bf16.mxu0 0
  %6633 = vmatmul.mubr.bf16.gmra.mxu0 %v6594
  %v6634 = vpop.f32.mrf.mxu0
  %v6635 = vadd.f32 %v6546, %v6634
  %v6636 = vpop.f32.mrf.mxu0
  %v6637 = vpop.f32.mrf.mxu0
  %v6638 = vadd.f32 %v6546, %v6637
  %v6639 = vpop.f32.mrf.mxu0
  %6640 = vdwg.mxu0
  %v6641 = vmax.f32 %v6635, 0.0
  %v6642 = vmax.f32 %v6638, 0.0
  %v6643 = vpack.c.bf16 %v6642, %v6641
  %v6644 = vld [vmem:[%s5] sm:$0xf]
  %v6645 = vld [vmem:[%s5 + $0x4] sm:$0xf]
  %v6646 = vld [vmem:[%s5 + $0x8] sm:$0x3]
  %v6647 = vld [vmem:[%s6 + $0x4] sm:$0x1]
  %v6648 = vlaneseq
  %v6649 = vshrl.u32 %v6648, 7
  %v6650 = vsub.s32 0, %v6649
  %v6651 = vrot.slane %v6647, %v6650
  %v6655 = vunpack.c.l.b16 %v6644
  %v6656 = vunpack.c.l.b16 %v6645
  %v6657 = vunpack.c.l.b16 %v6646
  %v6658 = vpack.c.b16 %v6656, %v6655
  %v6659 = vpack.c.b16 %v6657, %v6657
  %vm6661 = vcmask 162816
  %v6663 = vsel %vm6661, %v6643, 0
  %v6666 = vsel %vm4332, %v6659, 0
  %6668 = vmatprep.subr.bf16.mxu0 0
  %6669 = vmatpush1.bf16.msra.mxu0 0
  %6670 = vmatprep.subr.bf16.mxu0 0
  %6671 = vmatpush1.bf16.msra.mxu0 0
  %6672 = vmatprep.subr.bf16.mxu0 0
  %6673 = vmatpush1.bf16.msra.mxu0 0
  %6674 = vmatprep.subr.bf16.mxu0 0
  %6675 = vmatpush1.bf16.msra.mxu0 0
  %6676 = vmatprep.subr.bf16.mxu0 0
  %6677 = vmatpush1.bf16.msra.mxu0 0
  %6678 = vmatprep.subr.bf16.mxu0 0
  %6679 = vmatpush1.bf16.msra.mxu0 0
  %6680 = vmatprep.subr.bf16.mxu0 0
  %6681 = vmatpush1.bf16.msra.mxu0 %v6666
  %6682 = vmatprep.subr.bf16.mxu0 0
  %6683 = vmatpush1.bf16.msra.mxu0 %v6658
  %6684 = vmatprep.subr.bf16.mxu0 0
  %6685 = vmatpush2.bf16.msra.mxu0 0
  %6686 = vmatprep.subr.bf16.mxu0 0
  %6687 = vmatpush2.bf16.msra.mxu0 0
  %6688 = vmatprep.subr.bf16.mxu0 0
  %6689 = vmatpush2.bf16.msra.mxu0 0
  %6690 = vmatprep.subr.bf16.mxu0 0
  %6691 = vmatpush2.bf16.msra.mxu0 0
  %6692 = vmatprep.subr.bf16.mxu0 0
  %6693 = vmatpush2.bf16.msra.mxu0 0
  %6694 = vmatprep.subr.bf16.mxu0 0
  %6695 = vmatpush2.bf16.msra.mxu0 0
  %6696 = vmatprep.subr.bf16.mxu0 0
  %6697 = vmatpush2.bf16.msra.mxu0 0
  %6698 = vmatprep.subr.bf16.mxu0 0
  %6699 = vmatpush2.bf16.msra.mxu0 0
  %6700 = vmatprep.mubr.bf16.mxu0 0
  %6701 = vmatmul.mubr.bf16.gmra.mxu0 %v6663
  %v6702 = vpop.f32.mrf.mxu0
  %v6703 = vadd.f32 %v6651, %v6702
  %v6704 = vpop.f32.mrf.mxu0
  %v6705 = vpop.f32.mrf.mxu0
  %v6706 = vadd.f32 %v6651, %v6705
  %v6707 = vpop.f32.mrf.mxu0
  %6708 = vdwg.mxu0
  %vm6709 = vcmask 72704
  %6710 = vst.msk [vmem:[%s7] sm:$0xff] %vm6709, %v6703
  %6711 = vst.msk [vmem:[%s7 + $0x8] sm:$0xff] %vm6709, %v6706
  // Predicated region
  $region30: #{net_forward.1} parent=0 // pred_check
    _
  $region31: #{net_forward.1} parent=0 // pred_check_branch
    %6713 = sbr.rel (0) target = $region33
  $region32: #{net_forward.1} parent=0 // pred_region
    _
  $region33: #{net_forward.1} parent=0 // pred_fallthru
    _
  // Predicated region
  $region34: #{net_forward.1} parent=0 // pred_check
    _
  $region35: #{net_forward.1} parent=0 // pred_check_branch
    %6715 = sbr.rel (0) target = $region37
  $region36: #{net_forward.1} parent=0 // pred_region
    _
  $region37: #{net_forward.1} parent=0 // pred_fallthru
    _

</llo_original>
